<compile_context>
chip_gen: v7x
topology: tpu7x:2x2x1
jax: 0.10.0
libtpu: 0.0.40
codegen_flags: <defaults>
</compile_context>

<pallas_src>
import jax
import jax.numpy as jnp
from jax.experimental import pallas as pl
from jax.experimental.pallas import tpu as pltpu

EPS = 1e-5


# --------------------------------------------------------------------------
# Helpers
# --------------------------------------------------------------------------
def _resident(shape):
    """Whole array, same block every grid step -> stays VMEM-resident."""
    nd = len(shape)
    return pl.BlockSpec(tuple(shape), lambda n, _nd=nd: (0,) * _nd)


def _batched(shape, nb):
    """(N, ...) array tiled NB images per grid step."""
    nd = len(shape)
    return pl.BlockSpec((nb,) + tuple(shape[1:]),
                        lambda n, _nd=nd: (n,) + (0,) * (_nd - 1))


def _vmem_limit_bytes():
    """Generation-aware VMEM limit (~3/4 of physical, capped at 96 MiB)."""
    try:
        info = pltpu.get_tpu_info()
        phys = int(getattr(info, "vmem_capacity_bytes", 64 * 1024 * 1024))
    except Exception:
        phys = 64 * 1024 * 1024          # v7x-safe fallback
    return max(32 * 1024 * 1024, min((phys * 3) // 4, 96 * 1024 * 1024))


def _pick_batch_block(N, H, W, Cin, Cout, itemsize, target_bytes=2 << 20):
    """Largest divisor NB of N whose per-step working set stays ~< target."""
    per_image = (H + 2) * (W + 2) * (Cin + 2 * Cout + 9 * max(Cin, Cout)) * itemsize
    nb = 1
    for d in range(1, N + 1):
        if N % d == 0 and d * per_image <= target_bytes:
            nb = d
    return nb


def _bn_scale_shift(s, q, g, b, inv_m):
    """Finalize BN scale/shift from per-step sum / sum-of-squares (tiny XLA op)."""
    s = jnp.sum(s, axis=0)                       # (1, Cout)
    q = jnp.sum(q, axis=0)                       # (1, Cout)
    mean = s * inv_m
    var = jnp.maximum(q * inv_m - mean * mean, 0.0)
    scale = g * jax.lax.rsqrt(var + EPS)
    shift = b - mean * scale
    return scale.astype(jnp.float32), shift.astype(jnp.float32)


# --------------------------------------------------------------------------
# In-kernel 3x3 conv over a zero-padded (NB, H+2, W+2, C) VMEM tile
# --------------------------------------------------------------------------
def _conv3x3_taps(xpad, w_ref, NB, H, W, C, fuse):
    """Raw (NB*H*W, Cout) f32 conv output (no bias: it cancels in training BN)."""
    views = [xpad[:, dy:dy + H, dx:dx + W, :].reshape(NB * H * W, C)
             for dy in range(3) for dx in range(3)]
    if fuse:
        # Single matmul with K = 9*C: better MXU utilisation at small C and no
        # 9-long VALU accumulate chain. w_ref is (9*C, Cout).
        patches = jnp.concatenate(views, axis=-1)
        return jnp.dot(patches, w_ref[...], preferred_element_type=jnp.float32)
    # Per-tap matmuls (preferred at C >= 128). w_ref is (9, C, Cout).
    acc = jnp.dot(views[0], w_ref[0], preferred_element_type=jnp.float32)
    for k in range(1, 9):
        acc = acc + jnp.dot(views[k], w_ref[k], preferred_element_type=jnp.float32)
    return acc


# --------------------------------------------------------------------------
# Stage 1: conv1 (raw) + per-step sum/sumsq for BN1 (+ shortcut statistics)
# --------------------------------------------------------------------------
def _make_stage1_kernel(NB, H, W, Cin, Cout, mm_dtype, fuse, has_shortcut):
    def kernel(x_ref, w1_ref, *rest):
        if has_shortcut:
            ws_ref, y1_ref, s1_ref, q1_ref, ss_ref, qs_ref, xpad_ref = rest
        else:
            y1_ref, s1_ref, q1_ref, xpad_ref = rest

        x = x_ref[...].astype(mm_dtype)                     # (NB, H, W, Cin)
        # Zero-pad into VMEM scratch (ring re-zeroed every step: megacore-safe).
        xpad_ref[...] = jnp.zeros_like(xpad_ref)
        xpad_ref[:, 1:H + 1, 1:W + 1, :] = x

        acc = _conv3x3_taps(xpad_ref[...], w1_ref, NB, H, W, Cin, fuse)  # f32
        y1_ref[...] = acc.reshape(NB, H, W, Cout).astype(y1_ref.dtype)
        s1_ref[...] = jnp.sum(acc, axis=0, keepdims=True).reshape(1, 1, Cout)
        q1_ref[...] = jnp.sum(acc * acc, axis=0, keepdims=True).reshape(1, 1, Cout)

        if has_shortcut:
            # 1x1 shortcut conv: only its BN statistics are needed now; the cheap
            # matmul itself is recomputed (bitwise identically) in stage 3.
            sc = jnp.dot(x.reshape(NB * H * W, Cin), ws_ref[...],
                         preferred_element_type=jnp.float32)
            ss_ref[...] = jnp.sum(sc, axis=0, keepdims=True).reshape(1, 1, Cout)
            qs_ref[...] = jnp.sum(sc * sc, axis=0, keepdims=True).reshape(1, 1, Cout)
    return kernel


# --------------------------------------------------------------------------
# Stage 2: BN1 (precomputed scale/shift) + ReLU + conv2 (raw) + sum/sumsq for BN2
# --------------------------------------------------------------------------
def _make_stage2_kernel(NB, H, W, Cout, mm_dtype, fuse):
    def kernel(y1_ref, sc1_ref, sh1_ref, w2_ref, y2_ref, s2_ref, q2_ref, hpad_ref):
        h = jnp.maximum(
            y1_ref[...].astype(jnp.float32) * sc1_ref[...].reshape(1, 1, 1, Cout)
            + sh1_ref[...].reshape(1, 1, 1, Cout), 0.0)
        # Write BN+ReLU only into the interior of a zeroed padded scratch
        # (replaces the old ring-mask multiply + extra resident mask input).
        hpad_ref[...] = jnp.zeros_like(hpad_ref)
        hpad_ref[:, 1:H + 1, 1:W + 1, :] = h.astype(hpad_ref.dtype)

        acc = _conv3x3_taps(hpad_ref[...], w2_ref, NB, H, W, Cout, fuse)  # f32
        y2_ref[...] = acc.reshape(NB, H, W, Cout).astype(y2_ref.dtype)
        s2_ref[...] = jnp.sum(acc, axis=0, keepdims=True).reshape(1, 1, Cout)
        q2_ref[...] = jnp.sum(acc * acc, axis=0, keepdims=True).reshape(1, 1, Cout)
    return kernel


# --------------------------------------------------------------------------
# Stage 3: BN2 + shortcut (1x1 conv + BN, or identity) + add + ReLU
# --------------------------------------------------------------------------
def _make_stage3_kernel(NB, H, W, Cin, Cout, mm_dtype, has_shortcut):
    def kernel(y2_ref, x_ref, sc2_ref, sh2_ref, *rest):
        if has_shortcut:
            ws_ref, scs_ref, shs_ref, out_ref = rest
        else:
            (out_ref,) = rest

        main = (y2_ref[...].astype(jnp.float32) * sc2_ref[...].reshape(1, 1, 1, Cout)
                + sh2_ref[...].reshape(1, 1, 1, Cout))

        if has_shortcut:
            sc = jnp.dot(x_ref[...].reshape(NB * H * W, Cin).astype(mm_dtype),
                         ws_ref[...], preferred_element_type=jnp.float32)
            res = (sc * scs_ref[...] + shs_ref[...]).reshape(NB, H, W, Cout)
        else:
            res = x_ref[...].astype(jnp.float32)

        out_ref[...] = jnp.maximum(main + res, 0.0).astype(out_ref.dtype)
    return kernel


# --------------------------------------------------------------------------
# Wrapper
# --------------------------------------------------------------------------
def residual_block_forward(x_nchw, params, *, mm_dtype=jnp.bfloat16,
                           store_dtype=None, fuse_taps=None):
    N, Cin, H, W = x_nchw.shape
    Cout = params["w1"].shape[-1]
    has_shortcut = (Cin != Cout)
    inv_m = 1.0 / float(N * H * W)
    if store_dtype is None:
        store_dtype = mm_dtype            # bf16 intermediates: ~2x less HBM traffic
    if fuse_taps is None:
        fuse_taps = max(Cin, Cout) < 128  # per-tap K already MXU-native at >=128

    x_nhwc = jnp.transpose(x_nchw, (0, 2, 3, 1)).astype(jnp.float32)

    nb = _pick_batch_block(N, H, W, Cin, Cout, jnp.dtype(mm_dtype).itemsize)
    nsteps = N // nb

    def prep_w(w9):
        w = w9.astype(mm_dtype)
        return w.reshape(-1, w.shape[-1]) if fuse_taps else w    # (9C,Co) or (9,C,Co)

    w1 = prep_w(params["w1"])
    w2 = prep_w(params["w2"])
    ws = params["ws"].astype(mm_dtype) if has_shortcut else None

    cp = pltpu.CompilerParams(dimension_semantics=("parallel",),
                              vmem_limit_bytes=_vmem_limit_bytes())

    stats_shape = jax.ShapeDtypeStruct((nsteps, 1, Cout), jnp.float32)
    stats_spec = pl.BlockSpec((1, 1, Cout), lambda n: (n, 0, 0))

    # ---------------- stage 1: conv1 (+ shortcut 1x1 statistics) ----------------
    in_specs = [_batched((N, H, W, Cin), nb), _resident(w1.shape)]
    args = [x_nhwc, w1]
    out_shape = [jax.ShapeDtypeStruct((N, H, W, Cout), store_dtype), stats_shape, stats_shape]
    out_specs = [_batched((N, H, W, Cout), nb), stats_spec, stats_spec]
    if has_shortcut:
        in_specs.append(_resident(ws.shape)); args.append(ws)
        out_shape += [stats_shape, stats_shape]
        out_specs += [stats_spec, stats_spec]

    res1 = pl.pallas_call(
        _make_stage1_kernel(nb, H, W, Cin, Cout, mm_dtype, fuse_taps, has_shortcut),
        grid=(nsteps,), in_specs=in_specs, out_specs=tuple(out_specs),
        out_shape=tuple(out_shape),
        scratch_shapes=[pltpu.VMEM((nb, H + 2, W + 2, Cin), mm_dtype)],
        compiler_params=cp,
    )(*args)
    if has_shortcut:
        y1, s1, q1, ss, qs = res1
    else:
        y1, s1, q1 = res1

    sc1, sh1 = _bn_scale_shift(s1, q1, params["g1"], params["be1"], inv_m)

    # ---------------- stage 2: BN1 + ReLU + conv2 ----------------
    y2, s2, q2 = pl.pallas_call(
        _make_stage2_kernel(nb, H, W, Cout, mm_dtype, fuse_taps),
        grid=(nsteps,),
        in_specs=[_batched((N, H, W, Cout), nb), _resident((1, Cout)),
                  _resident((1, Cout)), _resident(w2.shape)],
        out_specs=(_batched((N, H, W, Cout), nb), stats_spec, stats_spec),
        out_shape=(jax.ShapeDtypeStruct((N, H, W, Cout), store_dtype),
                   stats_shape, stats_shape),
        scratch_shapes=[pltpu.VMEM((nb, H + 2, W + 2, Cout), mm_dtype)],
        compiler_params=cp,
    )(y1, sc1, sh1, w2)

    sc2, sh2 = _bn_scale_shift(s2, q2, params["g2"], params["be2"], inv_m)

    # ---------------- stage 3: BN2 + shortcut + add + ReLU ----------------
    in_specs3 = [_batched((N, H, W, Cout), nb), _batched((N, H, W, Cin), nb),
                 _resident((1, Cout)), _resident((1, Cout))]
    args3 = [y2, x_nhwc, sc2, sh2]
    if has_shortcut:
        scs, shs = _bn_scale_shift(ss, qs, params["gs"], params["bes"], inv_m)
        in_specs3 += [_resident(ws.shape), _resident((1, Cout)), _resident((1, Cout))]
        args3 += [ws, scs, shs]

    out_nhwc = pl.pallas_call(
        _make_stage3_kernel(nb, H, W, Cin, Cout, mm_dtype, has_shortcut),
        grid=(nsteps,), in_specs=in_specs3,
        out_specs=_batched((N, H, W, Cout), nb),
        out_shape=jax.ShapeDtypeStruct((N, H, W, Cout), jnp.float32),
        compiler_params=cp,
    )(*args3)

    return jnp.transpose(out_nhwc, (0, 3, 1, 2))                 # back to NCHW


# --------------------------------------------------------------------------
# Pure-JAX reference (PyTorch training-mode semantics, incl. the conv biases)
# --------------------------------------------------------------------------
def _reference(x_nchw, params, mm_dtype=jnp.float32):
    x = jnp.transpose(x_nchw, (0, 2, 3, 1)).astype(jnp.float32)  # NHWC
    Cin = x.shape[-1]
    hi = jax.lax.Precision.HIGHEST

    def conv3x3(y, w9, b, ci, co):
        w = w9.reshape(3, 3, ci, co)
        o = jax.lax.conv_general_dilated(
            y.astype(mm_dtype), w.astype(mm_dtype), (1, 1), "SAME",
            dimension_numbers=("NHWC", "HWIO", "NHWC"),
            precision=hi, preferred_element_type=jnp.float32)
        return o + b.reshape(1, 1, 1, -1)

    def bn(y, g, b):
        m = jnp.mean(y, axis=(0, 1, 2), keepdims=True)
        v = jnp.mean((y - m) ** 2, axis=(0, 1, 2), keepdims=True)
        return (y - m) * jax.lax.rsqrt(v + EPS) * g.reshape(1, 1, 1, -1) + b.reshape(1, 1, 1, -1)

    Cout = params["w1"].shape[-1]
    h = jax.nn.relu(bn(conv3x3(x, params["w1"], params["b1"], Cin, Cout),
                       params["g1"], params["be1"]))
    h2 = bn(conv3x3(h, params["w2"], params["b2"], Cout, Cout),
            params["g2"], params["be2"])
    if Cin != Cout:
        sc = jnp.einsum("nhwc,co->nhwo", x.astype(mm_dtype), params["ws"].astype(mm_dtype),
                        precision=hi, preferred_element_type=jnp.float32)
        sc = sc + params["bs"].reshape(1, 1, 1, -1)
        res = bn(sc, params["gs"], params["bes"])
    else:
        res = x
    out = jax.nn.relu(h2 + res)
    return jnp.transpose(out, (0, 3, 1, 2))


def _make_params(key, cin, cout):
    ks = jax.random.split(key, 12)
    p = {
        # conv1: PyTorch weight (Cout, Cin, 3, 3) stored as (9, Cin, Cout), k = kh*3 + kw
        "w1": 0.1 * jax.random.normal(ks[0], (9, cin, cout), jnp.float32),
        "b1": 0.1 * jax.random.normal(ks[1], (1, cout), jnp.float32),
        "g1": 1.0 + 0.1 * jax.random.normal(ks[2], (1, cout), jnp.float32),
        "be1": 0.1 * jax.random.normal(ks[3], (1, cout), jnp.float32),
        "w2": 0.1 * jax.random.normal(ks[4], (9, cout, cout), jnp.float32),
        "b2": 0.1 * jax.random.normal(ks[5], (1, cout), jnp.float32),
        "g2": 1.0 + 0.1 * jax.random.normal(ks[6], (1, cout), jnp.float32),
        "be2": 0.1 * jax.random.normal(ks[7], (1, cout), jnp.float32),
    }
    if cin != cout:
        p.update({
            # shortcut 1x1 conv (torch (Cout, Cin, 1, 1) stored as (Cin, Cout)) + BN
            "ws": 0.1 * jax.random.normal(ks[8], (cin, cout), jnp.float32),
            "bs": 0.1 * jax.random.normal(ks[9], (1, cout), jnp.float32),
            "gs": 1.0 + 0.1 * jax.random.normal(ks[10], (1, cout), jnp.float32),
            "bes": 0.1 * jax.random.normal(ks[11], (1, cout), jnp.float32),
        })
    return p


if __name__ == "__main__":
    # NOTE: toy Cout=8 is lane-sparse (validation only); real use should pick
    # channel counts that are multiples of 128 for lane-dense stores.
    N, Cin, Cout, H, W = 2, 4, 8, 16, 16   # Cin != Cout -> 1x1-conv shortcut path
    key = jax.random.PRNGKey(0)
    kp, kx, kp2, kx2 = jax.random.split(key, 4)
    params = _make_params(kp, Cin, Cout)
    x = jax.random.normal(kx, (N, Cin, H, W), jnp.float32)

    ref_f32 = _reference(x, params, mm_dtype=jnp.float32)

    def run_f32(fuse):
        out = jax.block_until_ready(
            residual_block_forward(x, params, mm_dtype=jnp.float32, fuse_taps=fuse))
        err = float(jnp.max(jnp.abs(out - ref_f32)))
        if not (out.shape == (N, Cout, H, W) and err < 2e-3):
            raise AssertionError(f"f32 mismatch (fuse={fuse}): {err}")

    # Prefer the fused (NB*H*W, 9C) @ (9C, Cout) kernel at small C; fall back to
    # per-tap matmuls if this Mosaic build can't lower the minor-dim concatenate.
    try:
        run_f32(True)
        fuse = True
    except Exception:
        run_f32(False)
        fuse = False

    # Default path: bf16 MXU operands + bf16 intermediates (f32 accumulation/BN).
    # Looser tolerance: BN stats from f32 accumulators applied to bf16-rounded
    # intermediates introduce a small, documented stats/application mismatch.
    out_bf = jax.block_until_ready(residual_block_forward(x, params, fuse_taps=fuse))
    ref_bf = _reference(x, params, mm_dtype=jnp.bfloat16)
    err_bf_max = float(jnp.max(jnp.abs(out_bf - ref_bf)))
    err_bf_mean = float(jnp.mean(jnp.abs(out_bf - ref_bf)))
    assert err_bf_max < 1e-1 and err_bf_mean < 2e-2, (err_bf_max, err_bf_mean)

    # Identity-shortcut path (in_channels == out_channels), exact f32.
    params_id = _make_params(kp2, Cout, Cout)
    x_id = jax.random.normal(kx2, (N, Cout, H, W), jnp.float32)
    out_id = jax.block_until_ready(
        residual_block_forward(x_id, params_id, mm_dtype=jnp.float32, fuse_taps=fuse))
    ref_id = _reference(x_id, params_id, mm_dtype=jnp.float32)
    err_id = float(jnp.max(jnp.abs(out_id - ref_id)))
    assert out_id.shape == (N, Cout, H, W) and err_id < 2e-3, err_id

    print("KERNEL_OK")
</pallas_src>

<mosaic_0001>
module attributes {stable_mosaic.version = 11 : i64} {
  func.func @kernel(%arg0: i32, %arg1: memref<2x16x16x4xf32, #tpu.memory_space<vmem>>, %arg2: memref<36x8xf32, #tpu.memory_space<vmem>>, %arg3: memref<4x8xf32, #tpu.memory_space<vmem>>, %arg4: memref<2x16x16x8xf32, #tpu.memory_space<vmem>>, %arg5: memref<1x1x8xf32, #tpu.memory_space<vmem>>, %arg6: memref<1x1x8xf32, #tpu.memory_space<vmem>>, %arg7: memref<1x1x8xf32, #tpu.memory_space<vmem>>, %arg8: memref<1x1x8xf32, #tpu.memory_space<vmem>>, %arg9: memref<2x18x18x4xf32, #tpu.memory_space<vmem>>) attributes {dimension_semantics = [#tpu.dimension_semantics<parallel>], iteration_bounds = array<i64: 1>, scalar_prefetch = 0 : i64, scratch_operands = 1 : i64, tpu.core_type = #tpu.core_type<tc>, window_params = [{transform_indices = @transform_0, window_bounds = array<i64: 2, 16, 16, 4>}, {pipeline_mode = #tpu.pipeline_mode<synchronous>, transform_indices = @transform_1, window_bounds = array<i64: 36, 8>}, {pipeline_mode = #tpu.pipeline_mode<synchronous>, transform_indices = @transform_2, window_bounds = array<i64: 4, 8>}, {transform_indices = @transform_3, window_bounds = array<i64: 2, 16, 16, 8>}, {transform_indices = @transform_4, window_bounds = array<i64: 1, 1, 8>}, {transform_indices = @transform_5, window_bounds = array<i64: 1, 1, 8>}, {transform_indices = @transform_6, window_bounds = array<i64: 1, 1, 8>}, {transform_indices = @transform_7, window_bounds = array<i64: 1, 1, 8>}]} {
    %c0 = arith.constant 0 : index
    %c0_0 = arith.constant 0 : index
    %c0_1 = arith.constant 0 : index
    %c0_2 = arith.constant 0 : index
    %0 = vector.load %arg1[%c0, %c0_0, %c0_1, %c0_2] : memref<2x16x16x4xf32, #tpu.memory_space<vmem>>, vector<2x16x16x4xf32>
    %cst = arith.constant 0.000000e+00 : f32
    %1 = vector.broadcast %cst : f32 to vector<2x18x18x4xf32>
    %c0_3 = arith.constant 0 : index
    %c0_4 = arith.constant 0 : index
    %c0_5 = arith.constant 0 : index
    %c0_6 = arith.constant 0 : index
    %2 = vector.load %arg9[%c0_3, %c0_4, %c0_5, %c0_6] : memref<2x18x18x4xf32, #tpu.memory_space<vmem>>, vector<2x18x18x4xf32>
    tpu.vector_store %arg9[%c0_3, %c0_4, %c0_5, %c0_6], %1 {strides = array<i32>} : memref<2x18x18x4xf32, #tpu.memory_space<vmem>>, vector<2x18x18x4xf32>,
    %c0_7 = arith.constant 0 : index
    %c1 = arith.constant 1 : index
    %c1_8 = arith.constant 1 : index
    %c0_9 = arith.constant 0 : index
    %3 = vector.load %arg9[%c0_7, %c1, %c1_8, %c0_9] : memref<2x18x18x4xf32, #tpu.memory_space<vmem>>, vector<2x16x16x4xf32>
    tpu.vector_store %arg9[%c0_7, %c1, %c1_8, %c0_9], %0 {strides = array<i32>} : memref<2x18x18x4xf32, #tpu.memory_space<vmem>>, vector<2x16x16x4xf32>,
    %c0_10 = arith.constant 0 : index
    %c0_11 = arith.constant 0 : index
    %c0_12 = arith.constant 0 : index
    %c0_13 = arith.constant 0 : index
    %4 = vector.load %arg9[%c0_10, %c0_11, %c0_12, %c0_13] : memref<2x18x18x4xf32, #tpu.memory_space<vmem>>, vector<2x18x18x4xf32>
    %5 = vector.extract_strided_slice %4 {offsets = [0, 0, 0, 0], sizes = [2, 16, 16, 4], strides = [1, 1, 1, 1]} : vector<2x18x18x4xf32> to vector<2x16x16x4xf32>
    %6 = vector.shape_cast %5 : vector<2x16x16x4xf32> to vector<512x4xf32>
    %7 = vector.extract_strided_slice %4 {offsets = [0, 0, 1, 0], sizes = [2, 16, 16, 4], strides = [1, 1, 1, 1]} : vector<2x18x18x4xf32> to vector<2x16x16x4xf32>
    %8 = vector.shape_cast %7 : vector<2x16x16x4xf32> to vector<512x4xf32>
    %9 = vector.extract_strided_slice %4 {offsets = [0, 0, 2, 0], sizes = [2, 16, 16, 4], strides = [1, 1, 1, 1]} : vector<2x18x18x4xf32> to vector<2x16x16x4xf32>
    %10 = vector.shape_cast %9 : vector<2x16x16x4xf32> to vector<512x4xf32>
    %11 = vector.extract_strided_slice %4 {offsets = [0, 1, 0, 0], sizes = [2, 16, 16, 4], strides = [1, 1, 1, 1]} : vector<2x18x18x4xf32> to vector<2x16x16x4xf32>
    %12 = vector.shape_cast %11 : vector<2x16x16x4xf32> to vector<512x4xf32>
    %13 = vector.extract_strided_slice %4 {offsets = [0, 1, 1, 0], sizes = [2, 16, 16, 4], strides = [1, 1, 1, 1]} : vector<2x18x18x4xf32> to vector<2x16x16x4xf32>
    %14 = vector.shape_cast %13 : vector<2x16x16x4xf32> to vector<512x4xf32>
    %15 = vector.extract_strided_slice %4 {offsets = [0, 1, 2, 0], sizes = [2, 16, 16, 4], strides = [1, 1, 1, 1]} : vector<2x18x18x4xf32> to vector<2x16x16x4xf32>
    %16 = vector.shape_cast %15 : vector<2x16x16x4xf32> to vector<512x4xf32>
    %17 = vector.extract_strided_slice %4 {offsets = [0, 2, 0, 0], sizes = [2, 16, 16, 4], strides = [1, 1, 1, 1]} : vector<2x18x18x4xf32> to vector<2x16x16x4xf32>
    %18 = vector.shape_cast %17 : vector<2x16x16x4xf32> to vector<512x4xf32>
    %19 = vector.extract_strided_slice %4 {offsets = [0, 2, 1, 0], sizes = [2, 16, 16, 4], strides = [1, 1, 1, 1]} : vector<2x18x18x4xf32> to vector<2x16x16x4xf32>
    %20 = vector.shape_cast %19 : vector<2x16x16x4xf32> to vector<512x4xf32>
    %21 = vector.extract_strided_slice %4 {offsets = [0, 2, 2, 0], sizes = [2, 16, 16, 4], strides = [1, 1, 1, 1]} : vector<2x18x18x4xf32> to vector<2x16x16x4xf32>
    %22 = vector.shape_cast %21 : vector<2x16x16x4xf32> to vector<512x4xf32>
    %23 = tpu.concatenate %6, %8, %10, %12, %14, %16, %18, %20, %22 in 1 : vector<512x4xf32>, vector<512x4xf32>, vector<512x4xf32>, vector<512x4xf32>, vector<512x4xf32>, vector<512x4xf32>, vector<512x4xf32>, vector<512x4xf32>, vector<512x4xf32> -> vector<512x36xf32>
    %c0_14 = arith.constant 0 : index
    %c0_15 = arith.constant 0 : index
    %24 = vector.load %arg2[%c0_14, %c0_15] : memref<36x8xf32, #tpu.memory_space<vmem>>, vector<36x8xf32>
    %cst_16 = arith.constant dense<0.000000e+00> : vector<512x8xf32>
    %25 = tpu.matmul %23, %24, %cst_16 {dimension_numbers = #tpu.dot_dimension_numbers<[1], [0], [0], [1], [0, 0, 1, 1], [], []>} : vector<512x36xf32>, vector<36x8xf32>, vector<512x8xf32> -> vector<512x8xf32>
    %26 = vector.shape_cast %25 : vector<512x8xf32> to vector<2x16x16x8xf32>
    %c0_17 = arith.constant 0 : index
    %c0_18 = arith.constant 0 : index
    %c0_19 = arith.constant 0 : index
    %c0_20 = arith.constant 0 : index
    %27 = vector.load %arg4[%c0_17, %c0_18, %c0_19, %c0_20] : memref<2x16x16x8xf32, #tpu.memory_space<vmem>>, vector<2x16x16x8xf32>
    tpu.vector_store %arg4[%c0_17, %c0_18, %c0_19, %c0_20], %26 {strides = array<i32>} : memref<2x16x16x8xf32, #tpu.memory_space<vmem>>, vector<2x16x16x8xf32>,
    %cst_21 = arith.constant dense<0.000000e+00> : vector<8xf32>
    %28 = vector.multi_reduction <add>, %25, %cst_21 [0] : vector<512x8xf32> to vector<8xf32>
    %29 = vector.shape_cast %28 : vector<8xf32> to vector<1x8xf32>
    %30 = vector.shape_cast %29 : vector<1x8xf32> to vector<1x1x8xf32>
    %c0_22 = arith.constant 0 : index
    %c0_23 = arith.constant 0 : index
    %c0_24 = arith.constant 0 : index
    %31 = vector.load %arg5[%c0_22, %c0_23, %c0_24] : memref<1x1x8xf32, #tpu.memory_space<vmem>>, vector<1x1x8xf32>
    tpu.vector_store %arg5[%c0_22, %c0_23, %c0_24], %30 {strides = array<i32>} : memref<1x1x8xf32, #tpu.memory_space<vmem>>, vector<1x1x8xf32>,
    %32 = arith.mulf %25, %25 : vector<512x8xf32>
    %cst_25 = arith.constant dense<0.000000e+00> : vector<8xf32>
    %33 = vector.multi_reduction <add>, %32, %cst_25 [0] : vector<512x8xf32> to vector<8xf32>
    %34 = vector.shape_cast %33 : vector<8xf32> to vector<1x8xf32>
    %35 = vector.shape_cast %34 : vector<1x8xf32> to vector<1x1x8xf32>
    %c0_26 = arith.constant 0 : index
    %c0_27 = arith.constant 0 : index
    %c0_28 = arith.constant 0 : index
    %36 = vector.load %arg6[%c0_26, %c0_27, %c0_28] : memref<1x1x8xf32, #tpu.memory_space<vmem>>, vector<1x1x8xf32>
    tpu.vector_store %arg6[%c0_26, %c0_27, %c0_28], %35 {strides = array<i32>} : memref<1x1x8xf32, #tpu.memory_space<vmem>>, vector<1x1x8xf32>,
    %37 = vector.shape_cast %0 : vector<2x16x16x4xf32> to vector<512x4xf32>
    %c0_29 = arith.constant 0 : index
    %c0_30 = arith.constant 0 : index
    %38 = vector.load %arg3[%c0_29, %c0_30] : memref<4x8xf32, #tpu.memory_space<vmem>>, vector<4x8xf32>
    %cst_31 = arith.constant dense<0.000000e+00> : vector<512x8xf32>
    %39 = tpu.matmul %37, %38, %cst_31 {dimension_numbers = #tpu.dot_dimension_numbers<[1], [0], [0], [1], [0, 0, 1, 1], [], []>} : vector<512x4xf32>, vector<4x8xf32>, vector<512x8xf32> -> vector<512x8xf32>
    %cst_32 = arith.constant dense<0.000000e+00> : vector<8xf32>
    %40 = vector.multi_reduction <add>, %39, %cst_32 [0] : vector<512x8xf32> to vector<8xf32>
    %41 = vector.shape_cast %40 : vector<8xf32> to vector<1x8xf32>
    %42 = vector.shape_cast %41 : vector<1x8xf32> to vector<1x1x8xf32>
    %c0_33 = arith.constant 0 : index
    %c0_34 = arith.constant 0 : index
    %c0_35 = arith.constant 0 : index
    %43 = vector.load %arg7[%c0_33, %c0_34, %c0_35] : memref<1x1x8xf32, #tpu.memory_space<vmem>>, vector<1x1x8xf32>
    tpu.vector_store %arg7[%c0_33, %c0_34, %c0_35], %42 {strides = array<i32>} : memref<1x1x8xf32, #tpu.memory_space<vmem>>, vector<1x1x8xf32>,
    %44 = arith.mulf %39, %39 : vector<512x8xf32>
    %cst_36 = arith.constant dense<0.000000e+00> : vector<8xf32>
    %45 = vector.multi_reduction <add>, %44, %cst_36 [0] : vector<512x8xf32> to vector<8xf32>
    %46 = vector.shape_cast %45 : vector<8xf32> to vector<1x8xf32>
    %47 = vector.shape_cast %46 : vector<1x8xf32> to vector<1x1x8xf32>
    %c0_37 = arith.constant 0 : index
    %c0_38 = arith.constant 0 : index
    %c0_39 = arith.constant 0 : index
    %48 = vector.load %arg8[%c0_37, %c0_38, %c0_39] : memref<1x1x8xf32, #tpu.memory_space<vmem>>, vector<1x1x8xf32>
    tpu.vector_store %arg8[%c0_37, %c0_38, %c0_39], %47 {strides = array<i32>} : memref<1x1x8xf32, #tpu.memory_space<vmem>>, vector<1x1x8xf32>,
    return
  }
  func.func @transform_0(%arg0: i32) -> (i32, i32, i32, i32) {
    %c0_i32 = arith.constant 0 : i32
    %c0_i32_0 = arith.constant 0 : i32
    %c0_i32_1 = arith.constant 0 : i32
    %c0_i32_2 = arith.constant 0 : i32
    return %arg0, %c0_i32, %c0_i32_0, %c0_i32_1 : i32, i32, i32, i32
  }
  func.func @transform_1(%arg0: i32) -> (i32, i32) {
    %c0_i32 = arith.constant 0 : i32
    %c0_i32_0 = arith.constant 0 : i32
    %c0_i32_1 = arith.constant 0 : i32
    return %c0_i32, %c0_i32_0 : i32, i32
  }
  func.func @transform_2(%arg0: i32) -> (i32, i32) {
    %c0_i32 = arith.constant 0 : i32
    %c0_i32_0 = arith.constant 0 : i32
    %c0_i32_1 = arith.constant 0 : i32
    return %c0_i32, %c0_i32_0 : i32, i32
  }
  func.func @transform_3(%arg0: i32) -> (i32, i32, i32, i32) {
    %c0_i32 = arith.constant 0 : i32
    %c0_i32_0 = arith.constant 0 : i32
    %c0_i32_1 = arith.constant 0 : i32
    %c0_i32_2 = arith.constant 0 : i32
    return %arg0, %c0_i32, %c0_i32_0, %c0_i32_1 : i32, i32, i32, i32
  }
  func.func @transform_4(%arg0: i32) -> (i32, i32, i32) {
    %c0_i32 = arith.constant 0 : i32
    %c0_i32_0 = arith.constant 0 : i32
    %c0_i32_1 = arith.constant 0 : i32
    return %arg0, %c0_i32, %c0_i32_0 : i32, i32, i32
  }
  func.func @transform_5(%arg0: i32) -> (i32, i32, i32) {
    %c0_i32 = arith.constant 0 : i32
    %c0_i32_0 = arith.constant 0 : i32
    %c0_i32_1 = arith.constant 0 : i32
    return %arg0, %c0_i32, %c0_i32_0 : i32, i32, i32
  }
  func.func @transform_6(%arg0: i32) -> (i32, i32, i32) {
    %c0_i32 = arith.constant 0 : i32
    %c0_i32_0 = arith.constant 0 : i32
    %c0_i32_1 = arith.constant 0 : i32
    return %arg0, %c0_i32, %c0_i32_0 : i32, i32, i32
  }
  func.func @transform_7(%arg0: i32) -> (i32, i32, i32) {
    %c0_i32 = arith.constant 0 : i32
    %c0_i32_0 = arith.constant 0 : i32
    %c0_i32_1 = arith.constant 0 : i32
    return %arg0, %c0_i32, %c0_i32_0 : i32, i32, i32
  }
}

module attributes {stable_mosaic.version = 11 : i64} {
  func.func @kernel(%arg0: i32, %arg1: memref<2x16x16x4xf32, #tpu.memory_space<vmem>>, %arg2: memref<9x4x8xf32, #tpu.memory_space<vmem>>, %arg3: memref<4x8xf32, #tpu.memory_space<vmem>>, %arg4: memref<2x16x16x8xf32, #tpu.memory_space<vmem>>, %arg5: memref<1x1x8xf32, #tpu.memory_space<vmem>>, %arg6: memref<1x1x8xf32, #tpu.memory_space<vmem>>, %arg7: memref<1x1x8xf32, #tpu.memory_space<vmem>>, %arg8: memref<1x1x8xf32, #tpu.memory_space<vmem>>, %arg9: memref<2x18x18x4xf32, #tpu.memory_space<vmem>>) attributes {dimension_semantics = [#tpu.dimension_semantics<parallel>], iteration_bounds = array<i64: 1>, scalar_prefetch = 0 : i64, scratch_operands = 1 : i64, tpu.core_type = #tpu.core_type<tc>, window_params = [{transform_indices = @transform_0, window_bounds = array<i64: 2, 16, 16, 4>}, {pipeline_mode = #tpu.pipeline_mode<synchronous>, transform_indices = @transform_1, window_bounds = array<i64: 9, 4, 8>}, {pipeline_mode = #tpu.pipeline_mode<synchronous>, transform_indices = @transform_2, window_bounds = array<i64: 4, 8>}, {transform_indices = @transform_3, window_bounds = array<i64: 2, 16, 16, 8>}, {transform_indices = @transform_4, window_bounds = array<i64: 1, 1, 8>}, {transform_indices = @transform_5, window_bounds = array<i64: 1, 1, 8>}, {transform_indices = @transform_6, window_bounds = array<i64: 1, 1, 8>}, {transform_indices = @transform_7, window_bounds = array<i64: 1, 1, 8>}]} {
    %c0 = arith.constant 0 : index
    %c0_0 = arith.constant 0 : index
    %c0_1 = arith.constant 0 : index
    %c0_2 = arith.constant 0 : index
    %0 = vector.load %arg1[%c0, %c0_0, %c0_1, %c0_2] : memref<2x16x16x4xf32, #tpu.memory_space<vmem>>, vector<2x16x16x4xf32>
    %cst = arith.constant 0.000000e+00 : f32
    %1 = vector.broadcast %cst : f32 to vector<2x18x18x4xf32>
    %c0_3 = arith.constant 0 : index
    %c0_4 = arith.constant 0 : index
    %c0_5 = arith.constant 0 : index
    %c0_6 = arith.constant 0 : index
    %2 = vector.load %arg9[%c0_3, %c0_4, %c0_5, %c0_6] : memref<2x18x18x4xf32, #tpu.memory_space<vmem>>, vector<2x18x18x4xf32>
    tpu.vector_store %arg9[%c0_3, %c0_4, %c0_5, %c0_6], %1 {strides = array<i32>} : memref<2x18x18x4xf32, #tpu.memory_space<vmem>>, vector<2x18x18x4xf32>,
    %c0_7 = arith.constant 0 : index
    %c1 = arith.constant 1 : index
    %c1_8 = arith.constant 1 : index
    %c0_9 = arith.constant 0 : index
    %3 = vector.load %arg9[%c0_7, %c1, %c1_8, %c0_9] : memref<2x18x18x4xf32, #tpu.memory_space<vmem>>, vector<2x16x16x4xf32>
    tpu.vector_store %arg9[%c0_7, %c1, %c1_8, %c0_9], %0 {strides = array<i32>} : memref<2x18x18x4xf32, #tpu.memory_space<vmem>>, vector<2x16x16x4xf32>,
    %c0_10 = arith.constant 0 : index
    %c0_11 = arith.constant 0 : index
    %c0_12 = arith.constant 0 : index
    %c0_13 = arith.constant 0 : index
    %4 = vector.load %arg9[%c0_10, %c0_11, %c0_12, %c0_13] : memref<2x18x18x4xf32, #tpu.memory_space<vmem>>, vector<2x18x18x4xf32>
    %5 = vector.extract_strided_slice %4 {offsets = [0, 0, 0, 0], sizes = [2, 16, 16, 4], strides = [1, 1, 1, 1]} : vector<2x18x18x4xf32> to vector<2x16x16x4xf32>
    %6 = vector.shape_cast %5 : vector<2x16x16x4xf32> to vector<512x4xf32>
    %7 = vector.extract_strided_slice %4 {offsets = [0, 0, 1, 0], sizes = [2, 16, 16, 4], strides = [1, 1, 1, 1]} : vector<2x18x18x4xf32> to vector<2x16x16x4xf32>
    %8 = vector.shape_cast %7 : vector<2x16x16x4xf32> to vector<512x4xf32>
    %9 = vector.extract_strided_slice %4 {offsets = [0, 0, 2, 0], sizes = [2, 16, 16, 4], strides = [1, 1, 1, 1]} : vector<2x18x18x4xf32> to vector<2x16x16x4xf32>
    %10 = vector.shape_cast %9 : vector<2x16x16x4xf32> to vector<512x4xf32>
    %11 = vector.extract_strided_slice %4 {offsets = [0, 1, 0, 0], sizes = [2, 16, 16, 4], strides = [1, 1, 1, 1]} : vector<2x18x18x4xf32> to vector<2x16x16x4xf32>
    %12 = vector.shape_cast %11 : vector<2x16x16x4xf32> to vector<512x4xf32>
    %13 = vector.extract_strided_slice %4 {offsets = [0, 1, 1, 0], sizes = [2, 16, 16, 4], strides = [1, 1, 1, 1]} : vector<2x18x18x4xf32> to vector<2x16x16x4xf32>
    %14 = vector.shape_cast %13 : vector<2x16x16x4xf32> to vector<512x4xf32>
    %15 = vector.extract_strided_slice %4 {offsets = [0, 1, 2, 0], sizes = [2, 16, 16, 4], strides = [1, 1, 1, 1]} : vector<2x18x18x4xf32> to vector<2x16x16x4xf32>
    %16 = vector.shape_cast %15 : vector<2x16x16x4xf32> to vector<512x4xf32>
    %17 = vector.extract_strided_slice %4 {offsets = [0, 2, 0, 0], sizes = [2, 16, 16, 4], strides = [1, 1, 1, 1]} : vector<2x18x18x4xf32> to vector<2x16x16x4xf32>
    %18 = vector.shape_cast %17 : vector<2x16x16x4xf32> to vector<512x4xf32>
    %19 = vector.extract_strided_slice %4 {offsets = [0, 2, 1, 0], sizes = [2, 16, 16, 4], strides = [1, 1, 1, 1]} : vector<2x18x18x4xf32> to vector<2x16x16x4xf32>
    %20 = vector.shape_cast %19 : vector<2x16x16x4xf32> to vector<512x4xf32>
    %21 = vector.extract_strided_slice %4 {offsets = [0, 2, 2, 0], sizes = [2, 16, 16, 4], strides = [1, 1, 1, 1]} : vector<2x18x18x4xf32> to vector<2x16x16x4xf32>
    %22 = vector.shape_cast %21 : vector<2x16x16x4xf32> to vector<512x4xf32>
    %c0_14 = arith.constant 0 : index
    %c0_15 = arith.constant 0 : index
    %c0_16 = arith.constant 0 : index
    %23 = vector.load %arg2[%c0_14, %c0_15, %c0_16] : memref<9x4x8xf32, #tpu.memory_space<vmem>>, vector<1x4x8xf32>
    %24 = vector.shape_cast %23 : vector<1x4x8xf32> to vector<4x8xf32>
    %cst_17 = arith.constant dense<0.000000e+00> : vector<512x8xf32>
    %25 = tpu.matmul %6, %24, %cst_17 {dimension_numbers = #tpu.dot_dimension_numbers<[1], [0], [0], [1], [0, 0, 1, 1], [], []>} : vector<512x4xf32>, vector<4x8xf32>, vector<512x8xf32> -> vector<512x8xf32>
    %c1_18 = arith.constant 1 : index
    %c0_19 = arith.constant 0 : index
    %c0_20 = arith.constant 0 : index
    %26 = vector.load %arg2[%c1_18, %c0_19, %c0_20] : memref<9x4x8xf32, #tpu.memory_space<vmem>>, vector<1x4x8xf32>
    %27 = vector.shape_cast %26 : vector<1x4x8xf32> to vector<4x8xf32>
    %cst_21 = arith.constant dense<0.000000e+00> : vector<512x8xf32>
    %28 = tpu.matmul %8, %27, %cst_21 {dimension_numbers = #tpu.dot_dimension_numbers<[1], [0], [0], [1], [0, 0, 1, 1], [], []>} : vector<512x4xf32>, vector<4x8xf32>, vector<512x8xf32> -> vector<512x8xf32>
    %29 = arith.addf %25, %28 : vector<512x8xf32>
    %c2 = arith.constant 2 : index
    %c0_22 = arith.constant 0 : index
    %c0_23 = arith.constant 0 : index
    %30 = vector.load %arg2[%c2, %c0_22, %c0_23] : memref<9x4x8xf32, #tpu.memory_space<vmem>>, vector<1x4x8xf32>
    %31 = vector.shape_cast %30 : vector<1x4x8xf32> to vector<4x8xf32>
    %cst_24 = arith.constant dense<0.000000e+00> : vector<512x8xf32>
    %32 = tpu.matmul %10, %31, %cst_24 {dimension_numbers = #tpu.dot_dimension_numbers<[1], [0], [0], [1], [0, 0, 1, 1], [], []>} : vector<512x4xf32>, vector<4x8xf32>, vector<512x8xf32> -> vector<512x8xf32>
    %33 = arith.addf %29, %32 : vector<512x8xf32>
    %c3 = arith.constant 3 : index
    %c0_25 = arith.constant 0 : index
    %c0_26 = arith.constant 0 : index
    %34 = vector.load %arg2[%c3, %c0_25, %c0_26] : memref<9x4x8xf32, #tpu.memory_space<vmem>>, vector<1x4x8xf32>
    %35 = vector.shape_cast %34 : vector<1x4x8xf32> to vector<4x8xf32>
    %cst_27 = arith.constant dense<0.000000e+00> : vector<512x8xf32>
    %36 = tpu.matmul %12, %35, %cst_27 {dimension_numbers = #tpu.dot_dimension_numbers<[1], [0], [0], [1], [0, 0, 1, 1], [], []>} : vector<512x4xf32>, vector<4x8xf32>, vector<512x8xf32> -> vector<512x8xf32>
    %37 = arith.addf %33, %36 : vector<512x8xf32>
    %c4 = arith.constant 4 : index
    %c0_28 = arith.constant 0 : index
    %c0_29 = arith.constant 0 : index
    %38 = vector.load %arg2[%c4, %c0_28, %c0_29] : memref<9x4x8xf32, #tpu.memory_space<vmem>>, vector<1x4x8xf32>
    %39 = vector.shape_cast %38 : vector<1x4x8xf32> to vector<4x8xf32>
    %cst_30 = arith.constant dense<0.000000e+00> : vector<512x8xf32>
    %40 = tpu.matmul %14, %39, %cst_30 {dimension_numbers = #tpu.dot_dimension_numbers<[1], [0], [0], [1], [0, 0, 1, 1], [], []>} : vector<512x4xf32>, vector<4x8xf32>, vector<512x8xf32> -> vector<512x8xf32>
    %41 = arith.addf %37, %40 : vector<512x8xf32>
    %c5 = arith.constant 5 : index
    %c0_31 = arith.constant 0 : index
    %c0_32 = arith.constant 0 : index
    %42 = vector.load %arg2[%c5, %c0_31, %c0_32] : memref<9x4x8xf32, #tpu.memory_space<vmem>>, vector<1x4x8xf32>
    %43 = vector.shape_cast %42 : vector<1x4x8xf32> to vector<4x8xf32>
    %cst_33 = arith.constant dense<0.000000e+00> : vector<512x8xf32>
    %44 = tpu.matmul %16, %43, %cst_33 {dimension_numbers = #tpu.dot_dimension_numbers<[1], [0], [0], [1], [0, 0, 1, 1], [], []>} : vector<512x4xf32>, vector<4x8xf32>, vector<512x8xf32> -> vector<512x8xf32>
    %45 = arith.addf %41, %44 : vector<512x8xf32>
    %c6 = arith.constant 6 : index
    %c0_34 = arith.constant 0 : index
    %c0_35 = arith.constant 0 : index
    %46 = vector.load %arg2[%c6, %c0_34, %c0_35] : memref<9x4x8xf32, #tpu.memory_space<vmem>>, vector<1x4x8xf32>
    %47 = vector.shape_cast %46 : vector<1x4x8xf32> to vector<4x8xf32>
    %cst_36 = arith.constant dense<0.000000e+00> : vector<512x8xf32>
    %48 = tpu.matmul %18, %47, %cst_36 {dimension_numbers = #tpu.dot_dimension_numbers<[1], [0], [0], [1], [0, 0, 1, 1], [], []>} : vector<512x4xf32>, vector<4x8xf32>, vector<512x8xf32> -> vector<512x8xf32>
    %49 = arith.addf %45, %48 : vector<512x8xf32>
    %c7 = arith.constant 7 : index
    %c0_37 = arith.constant 0 : index
    %c0_38 = arith.constant 0 : index
    %50 = vector.load %arg2[%c7, %c0_37, %c0_38] : memref<9x4x8xf32, #tpu.memory_space<vmem>>, vector<1x4x8xf32>
    %51 = vector.shape_cast %50 : vector<1x4x8xf32> to vector<4x8xf32>
    %cst_39 = arith.constant dense<0.000000e+00> : vector<512x8xf32>
    %52 = tpu.matmul %20, %51, %cst_39 {dimension_numbers = #tpu.dot_dimension_numbers<[1], [0], [0], [1], [0, 0, 1, 1], [], []>} : vector<512x4xf32>, vector<4x8xf32>, vector<512x8xf32> -> vector<512x8xf32>
    %53 = arith.addf %49, %52 : vector<512x8xf32>
    %c8 = arith.constant 8 : index
    %c0_40 = arith.constant 0 : index
    %c0_41 = arith.constant 0 : index
    %54 = vector.load %arg2[%c8, %c0_40, %c0_41] : memref<9x4x8xf32, #tpu.memory_space<vmem>>, vector<1x4x8xf32>
    %55 = vector.shape_cast %54 : vector<1x4x8xf32> to vector<4x8xf32>
    %cst_42 = arith.constant dense<0.000000e+00> : vector<512x8xf32>
    %56 = tpu.matmul %22, %55, %cst_42 {dimension_numbers = #tpu.dot_dimension_numbers<[1], [0], [0], [1], [0, 0, 1, 1], [], []>} : vector<512x4xf32>, vector<4x8xf32>, vector<512x8xf32> -> vector<512x8xf32>
    %57 = arith.addf %53, %56 : vector<512x8xf32>
    %58 = vector.shape_cast %57 : vector<512x8xf32> to vector<2x16x16x8xf32>
    %c0_43 = arith.constant 0 : index
    %c0_44 = arith.constant 0 : index
    %c0_45 = arith.constant 0 : index
    %c0_46 = arith.constant 0 : index
    %59 = vector.load %arg4[%c0_43, %c0_44, %c0_45, %c0_46] : memref<2x16x16x8xf32, #tpu.memory_space<vmem>>, vector<2x16x16x8xf32>
    tpu.vector_store %arg4[%c0_43, %c0_44, %c0_45, %c0_46], %58 {strides = array<i32>} : memref<2x16x16x8xf32, #tpu.memory_space<vmem>>, vector<2x16x16x8xf32>,
    %cst_47 = arith.constant dense<0.000000e+00> : vector<8xf32>
    %60 = vector.multi_reduction <add>, %57, %cst_47 [0] : vector<512x8xf32> to vector<8xf32>
    %61 = vector.shape_cast %60 : vector<8xf32> to vector<1x8xf32>
    %62 = vector.shape_cast %61 : vector<1x8xf32> to vector<1x1x8xf32>
    %c0_48 = arith.constant 0 : index
    %c0_49 = arith.constant 0 : index
    %c0_50 = arith.constant 0 : index
    %63 = vector.load %arg5[%c0_48, %c0_49, %c0_50] : memref<1x1x8xf32, #tpu.memory_space<vmem>>, vector<1x1x8xf32>
    tpu.vector_store %arg5[%c0_48, %c0_49, %c0_50], %62 {strides = array<i32>} : memref<1x1x8xf32, #tpu.memory_space<vmem>>, vector<1x1x8xf32>,
    %64 = arith.mulf %57, %57 : vector<512x8xf32>
    %cst_51 = arith.constant dense<0.000000e+00> : vector<8xf32>
    %65 = vector.multi_reduction <add>, %64, %cst_51 [0] : vector<512x8xf32> to vector<8xf32>
    %66 = vector.shape_cast %65 : vector<8xf32> to vector<1x8xf32>
    %67 = vector.shape_cast %66 : vector<1x8xf32> to vector<1x1x8xf32>
    %c0_52 = arith.constant 0 : index
    %c0_53 = arith.constant 0 : index
    %c0_54 = arith.constant 0 : index
    %68 = vector.load %arg6[%c0_52, %c0_53, %c0_54] : memref<1x1x8xf32, #tpu.memory_space<vmem>>, vector<1x1x8xf32>
    tpu.vector_store %arg6[%c0_52, %c0_53, %c0_54], %67 {strides = array<i32>} : memref<1x1x8xf32, #tpu.memory_space<vmem>>, vector<1x1x8xf32>,
    %69 = vector.shape_cast %0 : vector<2x16x16x4xf32> to vector<512x4xf32>
    %c0_55 = arith.constant 0 : index
    %c0_56 = arith.constant 0 : index
    %70 = vector.load %arg3[%c0_55, %c0_56] : memref<4x8xf32, #tpu.memory_space<vmem>>, vector<4x8xf32>
    %cst_57 = arith.constant dense<0.000000e+00> : vector<512x8xf32>
    %71 = tpu.matmul %69, %70, %cst_57 {dimension_numbers = #tpu.dot_dimension_numbers<[1], [0], [0], [1], [0, 0, 1, 1], [], []>} : vector<512x4xf32>, vector<4x8xf32>, vector<512x8xf32> -> vector<512x8xf32>
    %cst_58 = arith.constant dense<0.000000e+00> : vector<8xf32>
    %72 = vector.multi_reduction <add>, %71, %cst_58 [0] : vector<512x8xf32> to vector<8xf32>
    %73 = vector.shape_cast %72 : vector<8xf32> to vector<1x8xf32>
    %74 = vector.shape_cast %73 : vector<1x8xf32> to vector<1x1x8xf32>
    %c0_59 = arith.constant 0 : index
    %c0_60 = arith.constant 0 : index
    %c0_61 = arith.constant 0 : index
    %75 = vector.load %arg7[%c0_59, %c0_60, %c0_61] : memref<1x1x8xf32, #tpu.memory_space<vmem>>, vector<1x1x8xf32>
    tpu.vector_store %arg7[%c0_59, %c0_60, %c0_61], %74 {strides = array<i32>} : memref<1x1x8xf32, #tpu.memory_space<vmem>>, vector<1x1x8xf32>,
    %76 = arith.mulf %71, %71 : vector<512x8xf32>
    %cst_62 = arith.constant dense<0.000000e+00> : vector<8xf32>
    %77 = vector.multi_reduction <add>, %76, %cst_62 [0] : vector<512x8xf32> to vector<8xf32>
    %78 = vector.shape_cast %77 : vector<8xf32> to vector<1x8xf32>
    %79 = vector.shape_cast %78 : vector<1x8xf32> to vector<1x1x8xf32>
    %c0_63 = arith.constant 0 : index
    %c0_64 = arith.constant 0 : index
    %c0_65 = arith.constant 0 : index
    %80 = vector.load %arg8[%c0_63, %c0_64, %c0_65] : memref<1x1x8xf32, #tpu.memory_space<vmem>>, vector<1x1x8xf32>
    tpu.vector_store %arg8[%c0_63, %c0_64, %c0_65], %79 {strides = array<i32>} : memref<1x1x8xf32, #tpu.memory_space<vmem>>, vector<1x1x8xf32>,
    return
  }
  func.func @transform_0(%arg0: i32) -> (i32, i32, i32, i32) {
    %c0_i32 = arith.constant 0 : i32
    %c0_i32_0 = arith.constant 0 : i32
    %c0_i32_1 = arith.constant 0 : i32
    %c0_i32_2 = arith.constant 0 : i32
    return %arg0, %c0_i32, %c0_i32_0, %c0_i32_1 : i32, i32, i32, i32
  }
  func.func @transform_1(%arg0: i32) -> (i32, i32, i32) {
    %c0_i32 = arith.constant 0 : i32
    %c0_i32_0 = arith.constant 0 : i32
    %c0_i32_1 = arith.constant 0 : i32
    %c0_i32_2 = arith.constant 0 : i32
    return %c0_i32, %c0_i32_0, %c0_i32_1 : i32, i32, i32
  }
  func.func @transform_2(%arg0: i32) -> (i32, i32) {
    %c0_i32 = arith.constant 0 : i32
    %c0_i32_0 = arith.constant 0 : i32
    %c0_i32_1 = arith.constant 0 : i32
    return %c0_i32, %c0_i32_0 : i32, i32
  }
  func.func @transform_3(%arg0: i32) -> (i32, i32, i32, i32) {
    %c0_i32 = arith.constant 0 : i32
    %c0_i32_0 = arith.constant 0 : i32
    %c0_i32_1 = arith.constant 0 : i32
    %c0_i32_2 = arith.constant 0 : i32
    return %arg0, %c0_i32, %c0_i32_0, %c0_i32_1 : i32, i32, i32, i32
  }
  func.func @transform_4(%arg0: i32) -> (i32, i32, i32) {
    %c0_i32 = arith.constant 0 : i32
    %c0_i32_0 = arith.constant 0 : i32
    %c0_i32_1 = arith.constant 0 : i32
    return %arg0, %c0_i32, %c0_i32_0 : i32, i32, i32
  }
  func.func @transform_5(%arg0: i32) -> (i32, i32, i32) {
    %c0_i32 = arith.constant 0 : i32
    %c0_i32_0 = arith.constant 0 : i32
    %c0_i32_1 = arith.constant 0 : i32
    return %arg0, %c0_i32, %c0_i32_0 : i32, i32, i32
  }
  func.func @transform_6(%arg0: i32) -> (i32, i32, i32) {
    %c0_i32 = arith.constant 0 : i32
    %c0_i32_0 = arith.constant 0 : i32
    %c0_i32_1 = arith.constant 0 : i32
    return %arg0, %c0_i32, %c0_i32_0 : i32, i32, i32
  }
  func.func @transform_7(%arg0: i32) -> (i32, i32, i32) {
    %c0_i32 = arith.constant 0 : i32
    %c0_i32_0 = arith.constant 0 : i32
    %c0_i32_1 = arith.constant 0 : i32
    return %arg0, %c0_i32, %c0_i32_0 : i32, i32, i32
  }
}

</mosaic_0001>

<llo_original>
// kernel: tpu_custom_call.1
$region0: #{tpu_custom_call.1}
  #allocation0 [shape = 'u32[]', space=smem, size = 0x4, offset = 0x4, fixed_abs, tag = 'smem constant byte address 0x4 - core index']
  #allocation1 [shape = 'u32[144,128]{1,0:T(1,128)}', space=vmem, size = 0x12000, scoped, tag = 'internal scratch']
  #allocation2 [shape = 'f32[2,18,18,4]{3,2,1,0:T(8,128)}', space=vmem, size = 0x6c000, scoped, tag = 'scratch operand']
  %s0 = inlined_call_operand.vmem [shape: f32[2,16,16,4], index: 0, kind: input, shape index: {}]
  %s1 = inlined_call_operand.vmem [shape: f32[36,8], index: 1, kind: input, shape index: {}]
  %s2 = inlined_call_operand.vmem [shape: f32[4,8], index: 2, kind: input, shape index: {}]
  %s3 = inlined_call_operand.vmem [shape: f32[2,16,16,8], index: 3, kind: output, shape index: {0}]
  %s4 = inlined_call_operand.hbm [shape: f32[1,1,8], index: 4, kind: output, shape index: {1}]
  %s5 = inlined_call_operand.hbm [shape: f32[1,1,8], index: 5, kind: output, shape index: {2}]
  %s6 = inlined_call_operand.hbm [shape: f32[1,1,8], index: 6, kind: output, shape index: {3}]
  %s7 = inlined_call_operand.hbm [shape: f32[1,1,8], index: 7, kind: output, shape index: {4}]
  %8 = xla_tuple %s3, %s4, %s5, %s6, %s7
  %s9 = sld [smem:[#allocation0]]
  $region54: #{tpu_custom_call.1} parent=0
    _
  %s11 = ssub.s32 1, %s9
  %s12 = scalar_select 0, %s11, %s9
  $region1: #{tpu_custom_call.1} parent=0
    #allocation3 [shape = 'u8[512]{0}', space=vmem, size = 0x400, scoped, tag = 'output window, operand 1, single buffered']
    #allocation4 [shape = 's32[1]{0}', space=sflag, size = 0x4, scoped, tag = 'scoped memory for tpu_custom_call.1']
    #allocation5 [shape = 'u8[512]{0}', space=vmem, size = 0x400, scoped, tag = 'output window, operand 2, single buffered']
    #allocation6 [shape = 's32[1]{0}', space=sflag, size = 0x4, scoped, tag = 'scoped memory for tpu_custom_call.1']
    #allocation7 [shape = 'u8[512]{0}', space=vmem, size = 0x400, scoped, tag = 'output window, operand 3, single buffered']
    #allocation8 [shape = 'u8[512]{0}', space=vmem, size = 0x400, scoped, tag = 'output window, operand 4, single buffered']
    #allocation9 [shape = 's32[1]{0}', space=sflag, size = 0x4, scoped, tag = 'scoped memory for tpu_custom_call.1']
    %13 = vsyncpa [#allocation4], 0
    %14 = vsyncpa [#allocation6], 0
    %15 = vsyncpa [#allocation9], 0
    // Predicated region
    $region2: #{tpu_custom_call.1} parent=1 // pred_check
      _
    $region3: #{tpu_custom_call.1} parent=1 // pred_check_branch
      %17 = sbr.rel (0) target = $region5
    $region4: #{tpu_custom_call.1} parent=1 // pred_region
      _
    $region5: #{tpu_custom_call.1} parent=1 // pred_fallthru
      _
    // Predicated region
    $region6: #{tpu_custom_call.1} parent=1 // pred_check
      _
    $region7: #{tpu_custom_call.1} parent=1 // pred_check_branch
      %19 = sbr.rel (0) target = $region9
    $region8: #{tpu_custom_call.1} parent=1 // pred_region
      _
    $region9: #{tpu_custom_call.1} parent=1 // pred_fallthru
      _
    // Predicated region
    $region10: #{tpu_custom_call.1} parent=1 // pred_check
      _
    $region11: #{tpu_custom_call.1} parent=1 // pred_check_branch
      %21 = sbr.rel (0) target = $region13
    $region12: #{tpu_custom_call.1} parent=1 // pred_region
      _
    $region13: #{tpu_custom_call.1} parent=1 // pred_fallthru
      _
    %v22 = vld [vmem:[%s0] sm:$0xff]
    %v23 = vld [vmem:[%s0 + $0x8] sm:$0xff]
    %v24 = vld [vmem:[%s0 + $0x10] sm:$0xff]
    %v25 = vld [vmem:[%s0 + $0x18] sm:$0xff]
    %v26 = vld [vmem:[%s0 + $0x20] sm:$0xff]
    %v27 = vld [vmem:[%s0 + $0x28] sm:$0xff]
    %v28 = vld [vmem:[%s0 + $0x30] sm:$0xff]
    %v29 = vld [vmem:[%s0 + $0x38] sm:$0xff]
    %v30 = vld [vmem:[%s0 + $0x40] sm:$0xff]
    %v31 = vld [vmem:[%s0 + $0x48] sm:$0xff]
    %v32 = vld [vmem:[%s0 + $0x50] sm:$0xff]
    %v33 = vld [vmem:[%s0 + $0x58] sm:$0xff]
    %v34 = vld [vmem:[%s0 + $0x60] sm:$0xff]
    %v35 = vld [vmem:[%s0 + $0x68] sm:$0xff]
    %v36 = vld [vmem:[%s0 + $0x70] sm:$0xff]
    %v37 = vld [vmem:[%s0 + $0x78] sm:$0xff]
    %v38 = vld [vmem:[%s0 + $0x80] sm:$0xff]
    %v39 = vld [vmem:[%s0 + $0x88] sm:$0xff]
    %v40 = vld [vmem:[%s0 + $0x90] sm:$0xff]
    %v41 = vld [vmem:[%s0 + $0x98] sm:$0xff]
    %v42 = vld [vmem:[%s0 + $0xa0] sm:$0xff]
    %v43 = vld [vmem:[%s0 + $0xa8] sm:$0xff]
    %v44 = vld [vmem:[%s0 + $0xb0] sm:$0xff]
    %v45 = vld [vmem:[%s0 + $0xb8] sm:$0xff]
    %v46 = vld [vmem:[%s0 + $0xc0] sm:$0xff]
    %v47 = vld [vmem:[%s0 + $0xc8] sm:$0xff]
    %v48 = vld [vmem:[%s0 + $0xd0] sm:$0xff]
    %v49 = vld [vmem:[%s0 + $0xd8] sm:$0xff]
    %v50 = vld [vmem:[%s0 + $0xe0] sm:$0xff]
    %v51 = vld [vmem:[%s0 + $0xe8] sm:$0xff]
    %v52 = vld [vmem:[%s0 + $0xf0] sm:$0xff]
    %v53 = vld [vmem:[%s0 + $0xf8] sm:$0xff]
    %v54 = vld [vmem:[%s0 + $0x100] sm:$0xff]
    %v55 = vld [vmem:[%s0 + $0x108] sm:$0xff]
    %v56 = vld [vmem:[%s0 + $0x110] sm:$0xff]
    %v57 = vld [vmem:[%s0 + $0x118] sm:$0xff]
    %v58 = vld [vmem:[%s0 + $0x120] sm:$0xff]
    %v59 = vld [vmem:[%s0 + $0x128] sm:$0xff]
    %v60 = vld [vmem:[%s0 + $0x130] sm:$0xff]
    %v61 = vld [vmem:[%s0 + $0x138] sm:$0xff]
    %v62 = vld [vmem:[%s0 + $0x140] sm:$0xff]
    %v63 = vld [vmem:[%s0 + $0x148] sm:$0xff]
    %v64 = vld [vmem:[%s0 + $0x150] sm:$0xff]
    %v65 = vld [vmem:[%s0 + $0x158] sm:$0xff]
    %v66 = vld [vmem:[%s0 + $0x160] sm:$0xff]
    %v67 = vld [vmem:[%s0 + $0x168] sm:$0xff]
    %v68 = vld [vmem:[%s0 + $0x170] sm:$0xff]
    %v69 = vld [vmem:[%s0 + $0x178] sm:$0xff]
    %v70 = vld [vmem:[%s0 + $0x180] sm:$0xff]
    %v71 = vld [vmem:[%s0 + $0x188] sm:$0xff]
    %v72 = vld [vmem:[%s0 + $0x190] sm:$0xff]
    %v73 = vld [vmem:[%s0 + $0x198] sm:$0xff]
    %v74 = vld [vmem:[%s0 + $0x1a0] sm:$0xff]
    %v75 = vld [vmem:[%s0 + $0x1a8] sm:$0xff]
    %v76 = vld [vmem:[%s0 + $0x1b0] sm:$0xff]
    %v77 = vld [vmem:[%s0 + $0x1b8] sm:$0xff]
    %v78 = vld [vmem:[%s0 + $0x1c0] sm:$0xff]
    %v79 = vld [vmem:[%s0 + $0x1c8] sm:$0xff]
    %v80 = vld [vmem:[%s0 + $0x1d0] sm:$0xff]
    %v81 = vld [vmem:[%s0 + $0x1d8] sm:$0xff]
    %v82 = vld [vmem:[%s0 + $0x1e0] sm:$0xff]
    %v83 = vld [vmem:[%s0 + $0x1e8] sm:$0xff]
    %v84 = vld [vmem:[%s0 + $0x1f0] sm:$0xff]
    %v85 = vld [vmem:[%s0 + $0x1f8] sm:$0xff]
    %vm86 = vcmask 31744
    %87 = vst.msk [vmem:[#allocation2] sm:$0xff] %vm86, 0.0
    %88 = vst.msk [vmem:[#allocation2 + $0x8] sm:$0xff] %vm86, 0.0
    %vm89 = vcmask 25600
    %90 = vst.msk [vmem:[#allocation2 + $0x10] sm:$0x3] %vm89, 0.0
    %91 = vst.msk [vmem:[#allocation2 + $0x18] sm:$0xff] %vm86, 0.0
    %92 = vst.msk [vmem:[#allocation2 + $0x20] sm:$0xff] %vm86, 0.0
    %93 = vst.msk [vmem:[#allocation2 + $0x28] sm:$0x3] %vm89, 0.0
    %94 = vst.msk [vmem:[#allocation2 + $0x30] sm:$0xff] %vm86, 0.0
    %95 = vst.msk [vmem:[#allocation2 + $0x38] sm:$0xff] %vm86, 0.0
    %96 = vst.msk [vmem:[#allocation2 + $0x40] sm:$0x3] %vm89, 0.0
    %97 = vst.msk [vmem:[#allocation2 + $0x48] sm:$0xff] %vm86, 0.0
    %98 = vst.msk [vmem:[#allocation2 + $0x50] sm:$0xff] %vm86, 0.0
    %99 = vst.msk [vmem:[#allocation2 + $0x58] sm:$0x3] %vm89, 0.0
    %100 = vst.msk [vmem:[#allocation2 + $0x60] sm:$0xff] %vm86, 0.0
    %101 = vst.msk [vmem:[#allocation2 + $0x68] sm:$0xff] %vm86, 0.0
    %102 = vst.msk [vmem:[#allocation2 + $0x70] sm:$0x3] %vm89, 0.0
    %103 = vst.msk [vmem:[#allocation2 + $0x78] sm:$0xff] %vm86, 0.0
    %104 = vst.msk [vmem:[#allocation2 + $0x80] sm:$0xff] %vm86, 0.0
    %105 = vst.msk [vmem:[#allocation2 + $0x88] sm:$0x3] %vm89, 0.0
    %106 = vst.msk [vmem:[#allocation2 + $0x90] sm:$0xff] %vm86, 0.0
    %107 = vst.msk [vmem:[#allocation2 + $0x98] sm:$0xff] %vm86, 0.0
    %108 = vst.msk [vmem:[#allocation2 + $0xa0] sm:$0x3] %vm89, 0.0
    %109 = vst.msk [vmem:[#allocation2 + $0xa8] sm:$0xff] %vm86, 0.0
    %110 = vst.msk [vmem:[#allocation2 + $0xb0] sm:$0xff] %vm86, 0.0
    %111 = vst.msk [vmem:[#allocation2 + $0xb8] sm:$0x3] %vm89, 0.0
    %112 = vst.msk [vmem:[#allocation2 + $0xc0] sm:$0xff] %vm86, 0.0
    %113 = vst.msk [vmem:[#allocation2 + $0xc8] sm:$0xff] %vm86, 0.0
    %114 = vst.msk [vmem:[#allocation2 + $0xd0] sm:$0x3] %vm89, 0.0
    %115 = vst.msk [vmem:[#allocation2 + $0xd8] sm:$0xff] %vm86, 0.0
    %116 = vst.msk [vmem:[#allocation2 + $0xe0] sm:$0xff] %vm86, 0.0
    %117 = vst.msk [vmem:[#allocation2 + $0xe8] sm:$0x3] %vm89, 0.0
    %118 = vst.msk [vmem:[#allocation2 + $0xf0] sm:$0xff] %vm86, 0.0
    %119 = vst.msk [vmem:[#allocation2 + $0xf8] sm:$0xff] %vm86, 0.0
    %120 = vst.msk [vmem:[#allocation2 + $0x100] sm:$0x3] %vm89, 0.0
    %121 = vst.msk [vmem:[#allocation2 + $0x108] sm:$0xff] %vm86, 0.0
    %122 = vst.msk [vmem:[#allocation2 + $0x110] sm:$0xff] %vm86, 0.0
    %123 = vst.msk [vmem:[#allocation2 + $0x118] sm:$0x3] %vm89, 0.0
    %124 = vst.msk [vmem:[#allocation2 + $0x120] sm:$0xff] %vm86, 0.0
    %125 = vst.msk [vmem:[#allocation2 + $0x128] sm:$0xff] %vm86, 0.0
    %126 = vst.msk [vmem:[#allocation2 + $0x130] sm:$0x3] %vm89, 0.0
    %127 = vst.msk [vmem:[#allocation2 + $0x138] sm:$0xff] %vm86, 0.0
    %128 = vst.msk [vmem:[#allocation2 + $0x140] sm:$0xff] %vm86, 0.0
    %129 = vst.msk [vmem:[#allocation2 + $0x148] sm:$0x3] %vm89, 0.0
    %130 = vst.msk [vmem:[#allocation2 + $0x150] sm:$0xff] %vm86, 0.0
    %131 = vst.msk [vmem:[#allocation2 + $0x158] sm:$0xff] %vm86, 0.0
    %132 = vst.msk [vmem:[#allocation2 + $0x160] sm:$0x3] %vm89, 0.0
    %133 = vst.msk [vmem:[#allocation2 + $0x168] sm:$0xff] %vm86, 0.0
    %134 = vst.msk [vmem:[#allocation2 + $0x170] sm:$0xff] %vm86, 0.0
    %135 = vst.msk [vmem:[#allocation2 + $0x178] sm:$0x3] %vm89, 0.0
    %136 = vst.msk [vmem:[#allocation2 + $0x180] sm:$0xff] %vm86, 0.0
    %137 = vst.msk [vmem:[#allocation2 + $0x188] sm:$0xff] %vm86, 0.0
    %138 = vst.msk [vmem:[#allocation2 + $0x190] sm:$0x3] %vm89, 0.0
    %139 = vst.msk [vmem:[#allocation2 + $0x198] sm:$0xff] %vm86, 0.0
    %140 = vst.msk [vmem:[#allocation2 + $0x1a0] sm:$0xff] %vm86, 0.0
    %141 = vst.msk [vmem:[#allocation2 + $0x1a8] sm:$0x3] %vm89, 0.0
    %142 = vst.msk [vmem:[#allocation2 + $0x1b0] sm:$0xff] %vm86, 0.0
    %143 = vst.msk [vmem:[#allocation2 + $0x1b8] sm:$0xff] %vm86, 0.0
    %144 = vst.msk [vmem:[#allocation2 + $0x1c0] sm:$0x3] %vm89, 0.0
    %145 = vst.msk [vmem:[#allocation2 + $0x1c8] sm:$0xff] %vm86, 0.0
    %146 = vst.msk [vmem:[#allocation2 + $0x1d0] sm:$0xff] %vm86, 0.0
    %147 = vst.msk [vmem:[#allocation2 + $0x1d8] sm:$0x3] %vm89, 0.0
    %148 = vst.msk [vmem:[#allocation2 + $0x1e0] sm:$0xff] %vm86, 0.0
    %149 = vst.msk [vmem:[#allocation2 + $0x1e8] sm:$0xff] %vm86, 0.0
    %150 = vst.msk [vmem:[#allocation2 + $0x1f0] sm:$0x3] %vm89, 0.0
    %151 = vst.msk [vmem:[#allocation2 + $0x1f8] sm:$0xff] %vm86, 0.0
    %152 = vst.msk [vmem:[#allocation2 + $0x200] sm:$0xff] %vm86, 0.0
    %153 = vst.msk [vmem:[#allocation2 + $0x208] sm:$0x3] %vm89, 0.0
    %154 = vst.msk [vmem:[#allocation2 + $0x210] sm:$0xff] %vm86, 0.0
    %155 = vst.msk [vmem:[#allocation2 + $0x218] sm:$0xff] %vm86, 0.0
    %156 = vst.msk [vmem:[#allocation2 + $0x220] sm:$0x3] %vm89, 0.0
    %157 = vst.msk [vmem:[#allocation2 + $0x228] sm:$0xff] %vm86, 0.0
    %158 = vst.msk [vmem:[#allocation2 + $0x230] sm:$0xff] %vm86, 0.0
    %159 = vst.msk [vmem:[#allocation2 + $0x238] sm:$0x3] %vm89, 0.0
    %160 = vst.msk [vmem:[#allocation2 + $0x240] sm:$0xff] %vm86, 0.0
    %161 = vst.msk [vmem:[#allocation2 + $0x248] sm:$0xff] %vm86, 0.0
    %162 = vst.msk [vmem:[#allocation2 + $0x250] sm:$0x3] %vm89, 0.0
    %163 = vst.msk [vmem:[#allocation2 + $0x258] sm:$0xff] %vm86, 0.0
    %164 = vst.msk [vmem:[#allocation2 + $0x260] sm:$0xff] %vm86, 0.0
    %165 = vst.msk [vmem:[#allocation2 + $0x268] sm:$0x3] %vm89, 0.0
    %166 = vst.msk [vmem:[#allocation2 + $0x270] sm:$0xff] %vm86, 0.0
    %167 = vst.msk [vmem:[#allocation2 + $0x278] sm:$0xff] %vm86, 0.0
    %168 = vst.msk [vmem:[#allocation2 + $0x280] sm:$0x3] %vm89, 0.0
    %169 = vst.msk [vmem:[#allocation2 + $0x288] sm:$0xff] %vm86, 0.0
    %170 = vst.msk [vmem:[#allocation2 + $0x290] sm:$0xff] %vm86, 0.0
    %171 = vst.msk [vmem:[#allocation2 + $0x298] sm:$0x3] %vm89, 0.0
    %172 = vst.msk [vmem:[#allocation2 + $0x2a0] sm:$0xff] %vm86, 0.0
    %173 = vst.msk [vmem:[#allocation2 + $0x2a8] sm:$0xff] %vm86, 0.0
    %174 = vst.msk [vmem:[#allocation2 + $0x2b0] sm:$0x3] %vm89, 0.0
    %175 = vst.msk [vmem:[#allocation2 + $0x2b8] sm:$0xff] %vm86, 0.0
    %176 = vst.msk [vmem:[#allocation2 + $0x2c0] sm:$0xff] %vm86, 0.0
    %177 = vst.msk [vmem:[#allocation2 + $0x2c8] sm:$0x3] %vm89, 0.0
    %178 = vst.msk [vmem:[#allocation2 + $0x2d0] sm:$0xff] %vm86, 0.0
    %179 = vst.msk [vmem:[#allocation2 + $0x2d8] sm:$0xff] %vm86, 0.0
    %180 = vst.msk [vmem:[#allocation2 + $0x2e0] sm:$0x3] %vm89, 0.0
    %181 = vst.msk [vmem:[#allocation2 + $0x2e8] sm:$0xff] %vm86, 0.0
    %182 = vst.msk [vmem:[#allocation2 + $0x2f0] sm:$0xff] %vm86, 0.0
    %183 = vst.msk [vmem:[#allocation2 + $0x2f8] sm:$0x3] %vm89, 0.0
    %184 = vst.msk [vmem:[#allocation2 + $0x300] sm:$0xff] %vm86, 0.0
    %185 = vst.msk [vmem:[#allocation2 + $0x308] sm:$0xff] %vm86, 0.0
    %186 = vst.msk [vmem:[#allocation2 + $0x310] sm:$0x3] %vm89, 0.0
    %187 = vst.msk [vmem:[#allocation2 + $0x318] sm:$0xff] %vm86, 0.0
    %188 = vst.msk [vmem:[#allocation2 + $0x320] sm:$0xff] %vm86, 0.0
    %189 = vst.msk [vmem:[#allocation2 + $0x328] sm:$0x3] %vm89, 0.0
    %190 = vst.msk [vmem:[#allocation2 + $0x330] sm:$0xff] %vm86, 0.0
    %191 = vst.msk [vmem:[#allocation2 + $0x338] sm:$0xff] %vm86, 0.0
    %192 = vst.msk [vmem:[#allocation2 + $0x340] sm:$0x3] %vm89, 0.0
    %193 = vst.msk [vmem:[#allocation2 + $0x348] sm:$0xff] %vm86, 0.0
    %194 = vst.msk [vmem:[#allocation2 + $0x350] sm:$0xff] %vm86, 0.0
    %195 = vst.msk [vmem:[#allocation2 + $0x358] sm:$0x3] %vm89, 0.0
    %s196 = scalar_lea.vmem [#allocation2], 24
    %197 = vst.msk [vmem:[%s196 + $0x1] sm:$0xff] %vm86, %v22
    %198 = vst.msk [vmem:[%s196 + $0x9] sm:$0xff] %vm86, %v23
    %199 = vst.msk [vmem:[%s196 + $0x19] sm:$0xff] %vm86, %v24
    %200 = vst.msk [vmem:[%s196 + $0x21] sm:$0xff] %vm86, %v25
    %201 = vst.msk [vmem:[%s196 + $0x31] sm:$0xff] %vm86, %v26
    %202 = vst.msk [vmem:[%s196 + $0x39] sm:$0xff] %vm86, %v27
    %203 = vst.msk [vmem:[%s196 + $0x49] sm:$0xff] %vm86, %v28
    %204 = vst.msk [vmem:[%s196 + $0x51] sm:$0xff] %vm86, %v29
    %205 = vst.msk [vmem:[%s196 + $0x61] sm:$0xff] %vm86, %v30
    %206 = vst.msk [vmem:[%s196 + $0x69] sm:$0xff] %vm86, %v31
    %207 = vst.msk [vmem:[%s196 + $0x79] sm:$0xff] %vm86, %v32
    %208 = vst.msk [vmem:[%s196 + $0x81] sm:$0xff] %vm86, %v33
    %209 = vst.msk [vmem:[%s196 + $0x91] sm:$0xff] %vm86, %v34
    %210 = vst.msk [vmem:[%s196 + $0x99] sm:$0xff] %vm86, %v35
    %211 = vst.msk [vmem:[%s196 + $0xa9] sm:$0xff] %vm86, %v36
    %212 = vst.msk [vmem:[%s196 + $0xb1] sm:$0xff] %vm86, %v37
    %213 = vst.msk [vmem:[%s196 + $0xc1] sm:$0xff] %vm86, %v38
    %214 = vst.msk [vmem:[%s196 + $0xc9] sm:$0xff] %vm86, %v39
    %215 = vst.msk [vmem:[%s196 + $0xd9] sm:$0xff] %vm86, %v40
    %216 = vst.msk [vmem:[%s196 + $0xe1] sm:$0xff] %vm86, %v41
    %217 = vst.msk [vmem:[%s196 + $0xf1] sm:$0xff] %vm86, %v42
    %218 = vst.msk [vmem:[%s196 + $0xf9] sm:$0xff] %vm86, %v43
    %219 = vst.msk [vmem:[%s196 + $0x109] sm:$0xff] %vm86, %v44
    %220 = vst.msk [vmem:[%s196 + $0x111] sm:$0xff] %vm86, %v45
    %221 = vst.msk [vmem:[%s196 + $0x121] sm:$0xff] %vm86, %v46
    %222 = vst.msk [vmem:[%s196 + $0x129] sm:$0xff] %vm86, %v47
    %223 = vst.msk [vmem:[%s196 + $0x139] sm:$0xff] %vm86, %v48
    %224 = vst.msk [vmem:[%s196 + $0x141] sm:$0xff] %vm86, %v49
    %225 = vst.msk [vmem:[%s196 + $0x151] sm:$0xff] %vm86, %v50
    %226 = vst.msk [vmem:[%s196 + $0x159] sm:$0xff] %vm86, %v51
    %227 = vst.msk [vmem:[%s196 + $0x169] sm:$0xff] %vm86, %v52
    %228 = vst.msk [vmem:[%s196 + $0x171] sm:$0xff] %vm86, %v53
    %229 = vst.msk [vmem:[%s196 + $0x1b1] sm:$0xff] %vm86, %v54
    %230 = vst.msk [vmem:[%s196 + $0x1b9] sm:$0xff] %vm86, %v55
    %231 = vst.msk [vmem:[%s196 + $0x1c9] sm:$0xff] %vm86, %v56
    %232 = vst.msk [vmem:[%s196 + $0x1d1] sm:$0xff] %vm86, %v57
    %233 = vst.msk [vmem:[%s196 + $0x1e1] sm:$0xff] %vm86, %v58
    %234 = vst.msk [vmem:[%s196 + $0x1e9] sm:$0xff] %vm86, %v59
    %235 = vst.msk [vmem:[%s196 + $0x1f9] sm:$0xff] %vm86, %v60
    %236 = vst.msk [vmem:[%s196 + $0x201] sm:$0xff] %vm86, %v61
    %237 = vst.msk [vmem:[%s196 + $0x211] sm:$0xff] %vm86, %v62
    %238 = vst.msk [vmem:[%s196 + $0x219] sm:$0xff] %vm86, %v63
    %239 = vst.msk [vmem:[%s196 + $0x229] sm:$0xff] %vm86, %v64
    %240 = vst.msk [vmem:[%s196 + $0x231] sm:$0xff] %vm86, %v65
    %241 = vst.msk [vmem:[%s196 + $0x241] sm:$0xff] %vm86, %v66
    %242 = vst.msk [vmem:[%s196 + $0x249] sm:$0xff] %vm86, %v67
    %243 = vst.msk [vmem:[%s196 + $0x259] sm:$0xff] %vm86, %v68
    %244 = vst.msk [vmem:[%s196 + $0x261] sm:$0xff] %vm86, %v69
    %245 = vst.msk [vmem:[%s196 + $0x271] sm:$0xff] %vm86, %v70
    %246 = vst.msk [vmem:[%s196 + $0x279] sm:$0xff] %vm86, %v71
    %247 = vst.msk [vmem:[%s196 + $0x289] sm:$0xff] %vm86, %v72
    %248 = vst.msk [vmem:[%s196 + $0x291] sm:$0xff] %vm86, %v73
    %249 = vst.msk [vmem:[%s196 + $0x2a1] sm:$0xff] %vm86, %v74
    %250 = vst.msk [vmem:[%s196 + $0x2a9] sm:$0xff] %vm86, %v75
    %251 = vst.msk [vmem:[%s196 + $0x2b9] sm:$0xff] %vm86, %v76
    %252 = vst.msk [vmem:[%s196 + $0x2c1] sm:$0xff] %vm86, %v77
    %253 = vst.msk [vmem:[%s196 + $0x2d1] sm:$0xff] %vm86, %v78
    %254 = vst.msk [vmem:[%s196 + $0x2d9] sm:$0xff] %vm86, %v79
    %255 = vst.msk [vmem:[%s196 + $0x2e9] sm:$0xff] %vm86, %v80
    %256 = vst.msk [vmem:[%s196 + $0x2f1] sm:$0xff] %vm86, %v81
    %257 = vst.msk [vmem:[%s196 + $0x301] sm:$0xff] %vm86, %v82
    %258 = vst.msk [vmem:[%s196 + $0x309] sm:$0xff] %vm86, %v83
    %259 = vst.msk [vmem:[%s196 + $0x319] sm:$0xff] %vm86, %v84
    %260 = vst.msk [vmem:[%s196 + $0x321] sm:$0xff] %vm86, %v85
    %v261 = vld [vmem:[#allocation2] sm:$0xff]
    %v262 = vld [vmem:[#allocation2 + $0x8] sm:$0xff]
    %v263 = vld [vmem:[#allocation2 + $0x10] sm:$0x3]
    %v264 = vld [vmem:[#allocation2 + $0x18] sm:$0xff]
    %v265 = vld [vmem:[#allocation2 + $0x20] sm:$0xff]
    %v266 = vld [vmem:[#allocation2 + $0x28] sm:$0x3]
    %v267 = vld [vmem:[#allocation2 + $0x30] sm:$0xff]
    %v268 = vld [vmem:[#allocation2 + $0x38] sm:$0xff]
    %v269 = vld [vmem:[#allocation2 + $0x40] sm:$0x3]
    %v270 = vld [vmem:[#allocation2 + $0x48] sm:$0xff]
    %v271 = vld [vmem:[#allocation2 + $0x50] sm:$0xff]
    %v272 = vld [vmem:[#allocation2 + $0x58] sm:$0x3]
    %v273 = vld [vmem:[#allocation2 + $0x60] sm:$0xff]
    %v274 = vld [vmem:[#allocation2 + $0x68] sm:$0xff]
    %v275 = vld [vmem:[#allocation2 + $0x70] sm:$0x3]
    %v276 = vld [vmem:[#allocation2 + $0x78] sm:$0xff]
    %v277 = vld [vmem:[#allocation2 + $0x80] sm:$0xff]
    %v278 = vld [vmem:[#allocation2 + $0x88] sm:$0x3]
    %v279 = vld [vmem:[#allocation2 + $0x90] sm:$0xff]
    %v280 = vld [vmem:[#allocation2 + $0x98] sm:$0xff]
    %v281 = vld [vmem:[#allocation2 + $0xa0] sm:$0x3]
    %v282 = vld [vmem:[#allocation2 + $0xa8] sm:$0xff]
    %v283 = vld [vmem:[#allocation2 + $0xb0] sm:$0xff]
    %v284 = vld [vmem:[#allocation2 + $0xb8] sm:$0x3]
    %v285 = vld [vmem:[#allocation2 + $0xc0] sm:$0xff]
    %v286 = vld [vmem:[#allocation2 + $0xc8] sm:$0xff]
    %v287 = vld [vmem:[#allocation2 + $0xd0] sm:$0x3]
    %v288 = vld [vmem:[#allocation2 + $0xd8] sm:$0xff]
    %v289 = vld [vmem:[#allocation2 + $0xe0] sm:$0xff]
    %v290 = vld [vmem:[#allocation2 + $0xe8] sm:$0x3]
    %v291 = vld [vmem:[#allocation2 + $0xf0] sm:$0xff]
    %v292 = vld [vmem:[#allocation2 + $0xf8] sm:$0xff]
    %v293 = vld [vmem:[#allocation2 + $0x100] sm:$0x3]
    %v294 = vld [vmem:[#allocation2 + $0x108] sm:$0xff]
    %v295 = vld [vmem:[#allocation2 + $0x110] sm:$0xff]
    %v296 = vld [vmem:[#allocation2 + $0x118] sm:$0x3]
    %v297 = vld [vmem:[#allocation2 + $0x120] sm:$0xff]
    %v298 = vld [vmem:[#allocation2 + $0x128] sm:$0xff]
    %v299 = vld [vmem:[#allocation2 + $0x130] sm:$0x3]
    %v300 = vld [vmem:[#allocation2 + $0x138] sm:$0xff]
    %v301 = vld [vmem:[#allocation2 + $0x140] sm:$0xff]
    %v302 = vld [vmem:[#allocation2 + $0x148] sm:$0x3]
    %v303 = vld [vmem:[#allocation2 + $0x150] sm:$0xff]
    %v304 = vld [vmem:[#allocation2 + $0x158] sm:$0xff]
    %v305 = vld [vmem:[#allocation2 + $0x160] sm:$0x3]
    %v306 = vld [vmem:[#allocation2 + $0x168] sm:$0xff]
    %v307 = vld [vmem:[#allocation2 + $0x170] sm:$0xff]
    %v308 = vld [vmem:[#allocation2 + $0x178] sm:$0x3]
    %v309 = vld [vmem:[#allocation2 + $0x180] sm:$0xff]
    %v310 = vld [vmem:[#allocation2 + $0x188] sm:$0xff]
    %v311 = vld [vmem:[#allocation2 + $0x190] sm:$0x3]
    %v312 = vld [vmem:[#allocation2 + $0x198] sm:$0xff]
    %v313 = vld [vmem:[#allocation2 + $0x1a0] sm:$0xff]
    %v314 = vld [vmem:[#allocation2 + $0x1a8] sm:$0x3]
    %v315 = vld [vmem:[#allocation2 + $0x1b0] sm:$0xff]
    %v316 = vld [vmem:[#allocation2 + $0x1b8] sm:$0xff]
    %v317 = vld [vmem:[#allocation2 + $0x1c0] sm:$0x3]
    %v318 = vld [vmem:[#allocation2 + $0x1c8] sm:$0xff]
    %v319 = vld [vmem:[#allocation2 + $0x1d0] sm:$0xff]
    %v320 = vld [vmem:[#allocation2 + $0x1d8] sm:$0x3]
    %v321 = vld [vmem:[#allocation2 + $0x1e0] sm:$0xff]
    %v322 = vld [vmem:[#allocation2 + $0x1e8] sm:$0xff]
    %v323 = vld [vmem:[#allocation2 + $0x1f0] sm:$0x3]
    %v324 = vld [vmem:[#allocation2 + $0x1f8] sm:$0xff]
    %v325 = vld [vmem:[#allocation2 + $0x200] sm:$0xff]
    %v326 = vld [vmem:[#allocation2 + $0x208] sm:$0x3]
    %v327 = vld [vmem:[#allocation2 + $0x210] sm:$0xff]
    %v328 = vld [vmem:[#allocation2 + $0x218] sm:$0xff]
    %v329 = vld [vmem:[#allocation2 + $0x220] sm:$0x3]
    %v330 = vld [vmem:[#allocation2 + $0x228] sm:$0xff]
    %v331 = vld [vmem:[#allocation2 + $0x230] sm:$0xff]
    %v332 = vld [vmem:[#allocation2 + $0x238] sm:$0x3]
    %v333 = vld [vmem:[#allocation2 + $0x240] sm:$0xff]
    %v334 = vld [vmem:[#allocation2 + $0x248] sm:$0xff]
    %v335 = vld [vmem:[#allocation2 + $0x250] sm:$0x3]
    %v336 = vld [vmem:[#allocation2 + $0x258] sm:$0xff]
    %v337 = vld [vmem:[#allocation2 + $0x260] sm:$0xff]
    %v338 = vld [vmem:[#allocation2 + $0x268] sm:$0x3]
    %v339 = vld [vmem:[#allocation2 + $0x270] sm:$0xff]
    %v340 = vld [vmem:[#allocation2 + $0x278] sm:$0xff]
    %v341 = vld [vmem:[#allocation2 + $0x280] sm:$0x3]
    %v342 = vld [vmem:[#allocation2 + $0x288] sm:$0xff]
    %v343 = vld [vmem:[#allocation2 + $0x290] sm:$0xff]
    %v344 = vld [vmem:[#allocation2 + $0x298] sm:$0x3]
    %v345 = vld [vmem:[#allocation2 + $0x2a0] sm:$0xff]
    %v346 = vld [vmem:[#allocation2 + $0x2a8] sm:$0xff]
    %v347 = vld [vmem:[#allocation2 + $0x2b0] sm:$0x3]
    %v348 = vld [vmem:[#allocation2 + $0x2b8] sm:$0xff]
    %v349 = vld [vmem:[#allocation2 + $0x2c0] sm:$0xff]
    %v350 = vld [vmem:[#allocation2 + $0x2c8] sm:$0x3]
    %v351 = vld [vmem:[#allocation2 + $0x2d0] sm:$0xff]
    %v352 = vld [vmem:[#allocation2 + $0x2d8] sm:$0xff]
    %v353 = vld [vmem:[#allocation2 + $0x2e0] sm:$0x3]
    %v354 = vld [vmem:[#allocation2 + $0x2e8] sm:$0xff]
    %v355 = vld [vmem:[#allocation2 + $0x2f0] sm:$0xff]
    %v356 = vld [vmem:[#allocation2 + $0x2f8] sm:$0x3]
    %v357 = vld [vmem:[#allocation2 + $0x300] sm:$0xff]
    %v358 = vld [vmem:[#allocation2 + $0x308] sm:$0xff]
    %v359 = vld [vmem:[#allocation2 + $0x310] sm:$0x3]
    %v360 = vld [vmem:[#allocation2 + $0x318] sm:$0xff]
    %v361 = vld [vmem:[#allocation2 + $0x320] sm:$0xff]
    %v362 = vld [vmem:[#allocation2 + $0x328] sm:$0x3]
    %v363 = vld [vmem:[#allocation2 + $0x330] sm:$0xff]
    %v364 = vld [vmem:[#allocation2 + $0x338] sm:$0xff]
    %v365 = vld [vmem:[#allocation2 + $0x340] sm:$0x3]
    %v366 = vld [vmem:[#allocation2 + $0x348] sm:$0xff]
    %v367 = vld [vmem:[#allocation2 + $0x350] sm:$0xff]
    %v368 = vld [vmem:[#allocation2 + $0x358] sm:$0x3]
    %vm465 = vcmask 1046528
    %v466 = vrot.slane %v261, 1
    %v467 = vrot.slane %v262, 1
    %v468 = vsel %vm465, %v466, %v467
    %v469 = vrot.slane %v263, 1
    %v470 = vsel %vm465, %v467, %v469
    %v471 = vrot.slane %v264, 1
    %v472 = vrot.slane %v265, 1
    %v473 = vsel %vm465, %v471, %v472
    %v474 = vrot.slane %v266, 1
    %v475 = vsel %vm465, %v472, %v474
    %v476 = vrot.slane %v267, 1
    %v477 = vrot.slane %v268, 1
    %v478 = vsel %vm465, %v476, %v477
    %v479 = vrot.slane %v269, 1
    %v480 = vsel %vm465, %v477, %v479
    %v481 = vrot.slane %v270, 1
    %v482 = vrot.slane %v271, 1
    %v483 = vsel %vm465, %v481, %v482
    %v484 = vrot.slane %v272, 1
    %v485 = vsel %vm465, %v482, %v484
    %v486 = vrot.slane %v273, 1
    %v487 = vrot.slane %v274, 1
    %v488 = vsel %vm465, %v486, %v487
    %v489 = vrot.slane %v275, 1
    %v490 = vsel %vm465, %v487, %v489
    %v491 = vrot.slane %v276, 1
    %v492 = vrot.slane %v277, 1
    %v493 = vsel %vm465, %v491, %v492
    %v494 = vrot.slane %v278, 1
    %v495 = vsel %vm465, %v492, %v494
    %v496 = vrot.slane %v279, 1
    %v497 = vrot.slane %v280, 1
    %v498 = vsel %vm465, %v496, %v497
    %v499 = vrot.slane %v281, 1
    %v500 = vsel %vm465, %v497, %v499
    %v501 = vrot.slane %v282, 1
    %v502 = vrot.slane %v283, 1
    %v503 = vsel %vm465, %v501, %v502
    %v504 = vrot.slane %v284, 1
    %v505 = vsel %vm465, %v502, %v504
    %v506 = vrot.slane %v285, 1
    %v507 = vrot.slane %v286, 1
    %v508 = vsel %vm465, %v506, %v507
    %v509 = vrot.slane %v287, 1
    %v510 = vsel %vm465, %v507, %v509
    %v511 = vrot.slane %v288, 1
    %v512 = vrot.slane %v289, 1
    %v513 = vsel %vm465, %v511, %v512
    %v514 = vrot.slane %v290, 1
    %v515 = vsel %vm465, %v512, %v514
    %v516 = vrot.slane %v291, 1
    %v517 = vrot.slane %v292, 1
    %v518 = vsel %vm465, %v516, %v517
    %v519 = vrot.slane %v293, 1
    %v520 = vsel %vm465, %v517, %v519
    %v521 = vrot.slane %v294, 1
    %v522 = vrot.slane %v295, 1
    %v523 = vsel %vm465, %v521, %v522
    %v524 = vrot.slane %v296, 1
    %v525 = vsel %vm465, %v522, %v524
    %v526 = vrot.slane %v297, 1
    %v527 = vrot.slane %v298, 1
    %v528 = vsel %vm465, %v526, %v527
    %v529 = vrot.slane %v299, 1
    %v530 = vsel %vm465, %v527, %v529
    %v531 = vrot.slane %v300, 1
    %v532 = vrot.slane %v301, 1
    %v533 = vsel %vm465, %v531, %v532
    %v534 = vrot.slane %v302, 1
    %v535 = vsel %vm465, %v532, %v534
    %v536 = vrot.slane %v303, 1
    %v537 = vrot.slane %v304, 1
    %v538 = vsel %vm465, %v536, %v537
    %v539 = vrot.slane %v305, 1
    %v540 = vsel %vm465, %v537, %v539
    %v541 = vrot.slane %v306, 1
    %v542 = vrot.slane %v307, 1
    %v543 = vsel %vm465, %v541, %v542
    %v544 = vrot.slane %v308, 1
    %v545 = vsel %vm465, %v542, %v544
    %v546 = vrot.slane %v315, 1
    %v547 = vrot.slane %v316, 1
    %v548 = vsel %vm465, %v546, %v547
    %v549 = vrot.slane %v317, 1
    %v550 = vsel %vm465, %v547, %v549
    %v551 = vrot.slane %v318, 1
    %v552 = vrot.slane %v319, 1
    %v553 = vsel %vm465, %v551, %v552
    %v554 = vrot.slane %v320, 1
    %v555 = vsel %vm465, %v552, %v554
    %v556 = vrot.slane %v321, 1
    %v557 = vrot.slane %v322, 1
    %v558 = vsel %vm465, %v556, %v557
    %v559 = vrot.slane %v323, 1
    %v560 = vsel %vm465, %v557, %v559
    %v561 = vrot.slane %v324, 1
    %v562 = vrot.slane %v325, 1
    %v563 = vsel %vm465, %v561, %v562
    %v564 = vrot.slane %v326, 1
    %v565 = vsel %vm465, %v562, %v564
    %v566 = vrot.slane %v327, 1
    %v567 = vrot.slane %v328, 1
    %v568 = vsel %vm465, %v566, %v567
    %v569 = vrot.slane %v329, 1
    %v570 = vsel %vm465, %v567, %v569
    %v571 = vrot.slane %v330, 1
    %v572 = vrot.slane %v331, 1
    %v573 = vsel %vm465, %v571, %v572
    %v574 = vrot.slane %v332, 1
    %v575 = vsel %vm465, %v572, %v574
    %v576 = vrot.slane %v333, 1
    %v577 = vrot.slane %v334, 1
    %v578 = vsel %vm465, %v576, %v577
    %v579 = vrot.slane %v335, 1
    %v580 = vsel %vm465, %v577, %v579
    %v581 = vrot.slane %v336, 1
    %v582 = vrot.slane %v337, 1
    %v583 = vsel %vm465, %v581, %v582
    %v584 = vrot.slane %v338, 1
    %v585 = vsel %vm465, %v582, %v584
    %v586 = vrot.slane %v339, 1
    %v587 = vrot.slane %v340, 1
    %v588 = vsel %vm465, %v586, %v587
    %v589 = vrot.slane %v341, 1
    %v590 = vsel %vm465, %v587, %v589
    %v591 = vrot.slane %v342, 1
    %v592 = vrot.slane %v343, 1
    %v593 = vsel %vm465, %v591, %v592
    %v594 = vrot.slane %v344, 1
    %v595 = vsel %vm465, %v592, %v594
    %v596 = vrot.slane %v345, 1
    %v597 = vrot.slane %v346, 1
    %v598 = vsel %vm465, %v596, %v597
    %v599 = vrot.slane %v347, 1
    %v600 = vsel %vm465, %v597, %v599
    %v601 = vrot.slane %v348, 1
    %v602 = vrot.slane %v349, 1
    %v603 = vsel %vm465, %v601, %v602
    %v604 = vrot.slane %v350, 1
    %v605 = vsel %vm465, %v602, %v604
    %v606 = vrot.slane %v351, 1
    %v607 = vrot.slane %v352, 1
    %v608 = vsel %vm465, %v606, %v607
    %v609 = vrot.slane %v353, 1
    %v610 = vsel %vm465, %v607, %v609
    %v611 = vrot.slane %v354, 1
    %v612 = vrot.slane %v355, 1
    %v613 = vsel %vm465, %v611, %v612
    %v614 = vrot.slane %v356, 1
    %v615 = vsel %vm465, %v612, %v614
    %v616 = vrot.slane %v357, 1
    %v617 = vrot.slane %v358, 1
    %v618 = vsel %vm465, %v616, %v617
    %v619 = vrot.slane %v359, 1
    %v620 = vsel %vm465, %v617, %v619
    %v621 = vrot.slane %v360, 1
    %v622 = vrot.slane %v361, 1
    %v623 = vsel %vm465, %v621, %v622
    %v624 = vrot.slane %v362, 1
    %v625 = vsel %vm465, %v622, %v624
    %vm626 = vcmask 1045504
    %v627 = vrot.slane %v261, 2
    %v628 = vrot.slane %v262, 2
    %v629 = vsel %vm626, %v627, %v628
    %v630 = vrot.slane %v263, 2
    %v631 = vsel %vm626, %v628, %v630
    %v632 = vrot.slane %v264, 2
    %v633 = vrot.slane %v265, 2
    %v634 = vsel %vm626, %v632, %v633
    %v635 = vrot.slane %v266, 2
    %v636 = vsel %vm626, %v633, %v635
    %v637 = vrot.slane %v267, 2
    %v638 = vrot.slane %v268, 2
    %v639 = vsel %vm626, %v637, %v638
    %v640 = vrot.slane %v269, 2
    %v641 = vsel %vm626, %v638, %v640
    %v642 = vrot.slane %v270, 2
    %v643 = vrot.slane %v271, 2
    %v644 = vsel %vm626, %v642, %v643
    %v645 = vrot.slane %v272, 2
    %v646 = vsel %vm626, %v643, %v645
    %v647 = vrot.slane %v273, 2
    %v648 = vrot.slane %v274, 2
    %v649 = vsel %vm626, %v647, %v648
    %v650 = vrot.slane %v275, 2
    %v651 = vsel %vm626, %v648, %v650
    %v652 = vrot.slane %v276, 2
    %v653 = vrot.slane %v277, 2
    %v654 = vsel %vm626, %v652, %v653
    %v655 = vrot.slane %v278, 2
    %v656 = vsel %vm626, %v653, %v655
    %v657 = vrot.slane %v279, 2
    %v658 = vrot.slane %v280, 2
    %v659 = vsel %vm626, %v657, %v658
    %v660 = vrot.slane %v281, 2
    %v661 = vsel %vm626, %v658, %v660
    %v662 = vrot.slane %v282, 2
    %v663 = vrot.slane %v283, 2
    %v664 = vsel %vm626, %v662, %v663
    %v665 = vrot.slane %v284, 2
    %v666 = vsel %vm626, %v663, %v665
    %v667 = vrot.slane %v285, 2
    %v668 = vrot.slane %v286, 2
    %v669 = vsel %vm626, %v667, %v668
    %v670 = vrot.slane %v287, 2
    %v671 = vsel %vm626, %v668, %v670
    %v672 = vrot.slane %v288, 2
    %v673 = vrot.slane %v289, 2
    %v674 = vsel %vm626, %v672, %v673
    %v675 = vrot.slane %v290, 2
    %v676 = vsel %vm626, %v673, %v675
    %v677 = vrot.slane %v291, 2
    %v678 = vrot.slane %v292, 2
    %v679 = vsel %vm626, %v677, %v678
    %v680 = vrot.slane %v293, 2
    %v681 = vsel %vm626, %v678, %v680
    %v682 = vrot.slane %v294, 2
    %v683 = vrot.slane %v295, 2
    %v684 = vsel %vm626, %v682, %v683
    %v685 = vrot.slane %v296, 2
    %v686 = vsel %vm626, %v683, %v685
    %v687 = vrot.slane %v297, 2
    %v688 = vrot.slane %v298, 2
    %v689 = vsel %vm626, %v687, %v688
    %v690 = vrot.slane %v299, 2
    %v691 = vsel %vm626, %v688, %v690
    %v692 = vrot.slane %v300, 2
    %v693 = vrot.slane %v301, 2
    %v694 = vsel %vm626, %v692, %v693
    %v695 = vrot.slane %v302, 2
    %v696 = vsel %vm626, %v693, %v695
    %v697 = vrot.slane %v303, 2
    %v698 = vrot.slane %v304, 2
    %v699 = vsel %vm626, %v697, %v698
    %v700 = vrot.slane %v305, 2
    %v701 = vsel %vm626, %v698, %v700
    %v702 = vrot.slane %v306, 2
    %v703 = vrot.slane %v307, 2
    %v704 = vsel %vm626, %v702, %v703
    %v705 = vrot.slane %v308, 2
    %v706 = vsel %vm626, %v703, %v705
    %v707 = vrot.slane %v315, 2
    %v708 = vrot.slane %v316, 2
    %v709 = vsel %vm626, %v707, %v708
    %v710 = vrot.slane %v317, 2
    %v711 = vsel %vm626, %v708, %v710
    %v712 = vrot.slane %v318, 2
    %v713 = vrot.slane %v319, 2
    %v714 = vsel %vm626, %v712, %v713
    %v715 = vrot.slane %v320, 2
    %v716 = vsel %vm626, %v713, %v715
    %v717 = vrot.slane %v321, 2
    %v718 = vrot.slane %v322, 2
    %v719 = vsel %vm626, %v717, %v718
    %v720 = vrot.slane %v323, 2
    %v721 = vsel %vm626, %v718, %v720
    %v722 = vrot.slane %v324, 2
    %v723 = vrot.slane %v325, 2
    %v724 = vsel %vm626, %v722, %v723
    %v725 = vrot.slane %v326, 2
    %v726 = vsel %vm626, %v723, %v725
    %v727 = vrot.slane %v327, 2
    %v728 = vrot.slane %v328, 2
    %v729 = vsel %vm626, %v727, %v728
    %v730 = vrot.slane %v329, 2
    %v731 = vsel %vm626, %v728, %v730
    %v732 = vrot.slane %v330, 2
    %v733 = vrot.slane %v331, 2
    %v734 = vsel %vm626, %v732, %v733
    %v735 = vrot.slane %v332, 2
    %v736 = vsel %vm626, %v733, %v735
    %v737 = vrot.slane %v333, 2
    %v738 = vrot.slane %v334, 2
    %v739 = vsel %vm626, %v737, %v738
    %v740 = vrot.slane %v335, 2
    %v741 = vsel %vm626, %v738, %v740
    %v742 = vrot.slane %v336, 2
    %v743 = vrot.slane %v337, 2
    %v744 = vsel %vm626, %v742, %v743
    %v745 = vrot.slane %v338, 2
    %v746 = vsel %vm626, %v743, %v745
    %v747 = vrot.slane %v339, 2
    %v748 = vrot.slane %v340, 2
    %v749 = vsel %vm626, %v747, %v748
    %v750 = vrot.slane %v341, 2
    %v751 = vsel %vm626, %v748, %v750
    %v752 = vrot.slane %v342, 2
    %v753 = vrot.slane %v343, 2
    %v754 = vsel %vm626, %v752, %v753
    %v755 = vrot.slane %v344, 2
    %v756 = vsel %vm626, %v753, %v755
    %v757 = vrot.slane %v345, 2
    %v758 = vrot.slane %v346, 2
    %v759 = vsel %vm626, %v757, %v758
    %v760 = vrot.slane %v347, 2
    %v761 = vsel %vm626, %v758, %v760
    %v762 = vrot.slane %v348, 2
    %v763 = vrot.slane %v349, 2
    %v764 = vsel %vm626, %v762, %v763
    %v765 = vrot.slane %v350, 2
    %v766 = vsel %vm626, %v763, %v765
    %v767 = vrot.slane %v351, 2
    %v768 = vrot.slane %v352, 2
    %v769 = vsel %vm626, %v767, %v768
    %v770 = vrot.slane %v353, 2
    %v771 = vsel %vm626, %v768, %v770
    %v772 = vrot.slane %v354, 2
    %v773 = vrot.slane %v355, 2
    %v774 = vsel %vm626, %v772, %v773
    %v775 = vrot.slane %v356, 2
    %v776 = vsel %vm626, %v773, %v775
    %v777 = vrot.slane %v357, 2
    %v778 = vrot.slane %v358, 2
    %v779 = vsel %vm626, %v777, %v778
    %v780 = vrot.slane %v359, 2
    %v781 = vsel %vm626, %v778, %v780
    %v782 = vrot.slane %v360, 2
    %v783 = vrot.slane %v361, 2
    %v784 = vsel %vm626, %v782, %v783
    %v785 = vrot.slane %v362, 2
    %v786 = vsel %vm626, %v783, %v785
    %v793 = vrot.slane %v309, 1
    %v794 = vrot.slane %v310, 1
    %v795 = vsel %vm465, %v793, %v794
    %v796 = vrot.slane %v311, 1
    %v797 = vsel %vm465, %v794, %v796
    %v798 = vrot.slane %v363, 1
    %v799 = vrot.slane %v364, 1
    %v800 = vsel %vm465, %v798, %v799
    %v801 = vrot.slane %v365, 1
    %v802 = vsel %vm465, %v799, %v801
    %v803 = vrot.slane %v309, 2
    %v804 = vrot.slane %v310, 2
    %v805 = vsel %vm626, %v803, %v804
    %v806 = vrot.slane %v311, 2
    %v807 = vsel %vm626, %v804, %v806
    %v808 = vrot.slane %v363, 2
    %v809 = vrot.slane %v364, 2
    %v810 = vsel %vm626, %v808, %v809
    %v811 = vrot.slane %v365, 2
    %v812 = vsel %vm626, %v809, %v811
    %v819 = vrot.slane %v312, 1
    %v820 = vrot.slane %v313, 1
    %v821 = vsel %vm465, %v819, %v820
    %v822 = vrot.slane %v314, 1
    %v823 = vsel %vm465, %v820, %v822
    %v824 = vrot.slane %v366, 1
    %v825 = vrot.slane %v367, 1
    %v826 = vsel %vm465, %v824, %v825
    %v827 = vrot.slane %v368, 1
    %v828 = vsel %vm465, %v825, %v827
    %v829 = vrot.slane %v312, 2
    %v830 = vrot.slane %v313, 2
    %v831 = vsel %vm626, %v829, %v830
    %v832 = vrot.slane %v314, 2
    %v833 = vsel %vm626, %v830, %v832
    %v834 = vrot.slane %v366, 2
    %v835 = vrot.slane %v367, 2
    %v836 = vsel %vm626, %v834, %v835
    %v837 = vrot.slane %v368, 2
    %v838 = vsel %vm626, %v835, %v837
    %839 = vrot.lane.b32.xlu0 %v468, 4
    %v840 = vpop.permute.xlu0 %839
    %841 = vrot.lane.b32.xlu0 %v470, 4
    %v842 = vpop.permute.xlu0 %841
    %843 = vrot.lane.b32.xlu0 %v473, 4
    %v844 = vpop.permute.xlu0 %843
    %845 = vrot.lane.b32.xlu0 %v475, 4
    %v846 = vpop.permute.xlu0 %845
    %847 = vrot.lane.b32.xlu0 %v478, 4
    %v848 = vpop.permute.xlu0 %847
    %849 = vrot.lane.b32.xlu0 %v480, 4
    %v850 = vpop.permute.xlu0 %849
    %851 = vrot.lane.b32.xlu0 %v483, 4
    %v852 = vpop.permute.xlu0 %851
    %853 = vrot.lane.b32.xlu0 %v485, 4
    %v854 = vpop.permute.xlu0 %853
    %855 = vrot.lane.b32.xlu0 %v488, 4
    %v856 = vpop.permute.xlu0 %855
    %857 = vrot.lane.b32.xlu0 %v490, 4
    %v858 = vpop.permute.xlu0 %857
    %859 = vrot.lane.b32.xlu0 %v493, 4
    %v860 = vpop.permute.xlu0 %859
    %861 = vrot.lane.b32.xlu0 %v495, 4
    %v862 = vpop.permute.xlu0 %861
    %863 = vrot.lane.b32.xlu0 %v498, 4
    %v864 = vpop.permute.xlu0 %863
    %865 = vrot.lane.b32.xlu0 %v500, 4
    %v866 = vpop.permute.xlu0 %865
    %867 = vrot.lane.b32.xlu0 %v503, 4
    %v868 = vpop.permute.xlu0 %867
    %869 = vrot.lane.b32.xlu0 %v505, 4
    %v870 = vpop.permute.xlu0 %869
    %871 = vrot.lane.b32.xlu0 %v508, 4
    %v872 = vpop.permute.xlu0 %871
    %873 = vrot.lane.b32.xlu0 %v510, 4
    %v874 = vpop.permute.xlu0 %873
    %875 = vrot.lane.b32.xlu0 %v513, 4
    %v876 = vpop.permute.xlu0 %875
    %877 = vrot.lane.b32.xlu0 %v515, 4
    %v878 = vpop.permute.xlu0 %877
    %879 = vrot.lane.b32.xlu0 %v518, 4
    %v880 = vpop.permute.xlu0 %879
    %881 = vrot.lane.b32.xlu0 %v520, 4
    %v882 = vpop.permute.xlu0 %881
    %883 = vrot.lane.b32.xlu0 %v523, 4
    %v884 = vpop.permute.xlu0 %883
    %885 = vrot.lane.b32.xlu0 %v525, 4
    %v886 = vpop.permute.xlu0 %885
    %887 = vrot.lane.b32.xlu0 %v528, 4
    %v888 = vpop.permute.xlu0 %887
    %889 = vrot.lane.b32.xlu0 %v530, 4
    %v890 = vpop.permute.xlu0 %889
    %891 = vrot.lane.b32.xlu0 %v533, 4
    %v892 = vpop.permute.xlu0 %891
    %893 = vrot.lane.b32.xlu0 %v535, 4
    %v894 = vpop.permute.xlu0 %893
    %895 = vrot.lane.b32.xlu0 %v538, 4
    %v896 = vpop.permute.xlu0 %895
    %897 = vrot.lane.b32.xlu0 %v540, 4
    %v898 = vpop.permute.xlu0 %897
    %899 = vrot.lane.b32.xlu0 %v543, 4
    %v900 = vpop.permute.xlu0 %899
    %901 = vrot.lane.b32.xlu0 %v545, 4
    %v902 = vpop.permute.xlu0 %901
    %903 = vrot.lane.b32.xlu0 %v548, 4
    %v904 = vpop.permute.xlu0 %903
    %905 = vrot.lane.b32.xlu0 %v550, 4
    %v906 = vpop.permute.xlu0 %905
    %907 = vrot.lane.b32.xlu0 %v553, 4
    %v908 = vpop.permute.xlu0 %907
    %909 = vrot.lane.b32.xlu0 %v555, 4
    %v910 = vpop.permute.xlu0 %909
    %911 = vrot.lane.b32.xlu0 %v558, 4
    %v912 = vpop.permute.xlu0 %911
    %913 = vrot.lane.b32.xlu0 %v560, 4
    %v914 = vpop.permute.xlu0 %913
    %915 = vrot.lane.b32.xlu0 %v563, 4
    %v916 = vpop.permute.xlu0 %915
    %917 = vrot.lane.b32.xlu0 %v565, 4
    %v918 = vpop.permute.xlu0 %917
    %919 = vrot.lane.b32.xlu0 %v568, 4
    %v920 = vpop.permute.xlu0 %919
    %921 = vrot.lane.b32.xlu0 %v570, 4
    %v922 = vpop.permute.xlu0 %921
    %923 = vrot.lane.b32.xlu0 %v573, 4
    %v924 = vpop.permute.xlu0 %923
    %925 = vrot.lane.b32.xlu0 %v575, 4
    %v926 = vpop.permute.xlu0 %925
    %927 = vrot.lane.b32.xlu0 %v578, 4
    %v928 = vpop.permute.xlu0 %927
    %929 = vrot.lane.b32.xlu0 %v580, 4
    %v930 = vpop.permute.xlu0 %929
    %931 = vrot.lane.b32.xlu0 %v583, 4
    %v932 = vpop.permute.xlu0 %931
    %933 = vrot.lane.b32.xlu0 %v585, 4
    %v934 = vpop.permute.xlu0 %933
    %935 = vrot.lane.b32.xlu0 %v588, 4
    %v936 = vpop.permute.xlu0 %935
    %937 = vrot.lane.b32.xlu0 %v590, 4
    %v938 = vpop.permute.xlu0 %937
    %939 = vrot.lane.b32.xlu0 %v593, 4
    %v940 = vpop.permute.xlu0 %939
    %941 = vrot.lane.b32.xlu0 %v595, 4
    %v942 = vpop.permute.xlu0 %941
    %943 = vrot.lane.b32.xlu0 %v598, 4
    %v944 = vpop.permute.xlu0 %943
    %945 = vrot.lane.b32.xlu0 %v600, 4
    %v946 = vpop.permute.xlu0 %945
    %947 = vrot.lane.b32.xlu0 %v603, 4
    %v948 = vpop.permute.xlu0 %947
    %949 = vrot.lane.b32.xlu0 %v605, 4
    %v950 = vpop.permute.xlu0 %949
    %951 = vrot.lane.b32.xlu0 %v608, 4
    %v952 = vpop.permute.xlu0 %951
    %953 = vrot.lane.b32.xlu0 %v610, 4
    %v954 = vpop.permute.xlu0 %953
    %955 = vrot.lane.b32.xlu0 %v613, 4
    %v956 = vpop.permute.xlu0 %955
    %957 = vrot.lane.b32.xlu0 %v615, 4
    %v958 = vpop.permute.xlu0 %957
    %959 = vrot.lane.b32.xlu0 %v618, 4
    %v960 = vpop.permute.xlu0 %959
    %961 = vrot.lane.b32.xlu0 %v620, 4
    %v962 = vpop.permute.xlu0 %961
    %963 = vrot.lane.b32.xlu0 %v623, 4
    %v964 = vpop.permute.xlu0 %963
    %965 = vrot.lane.b32.xlu0 %v625, 4
    %v966 = vpop.permute.xlu0 %965
    %1031 = vrot.lane.b32.xlu0 %v629, 8
    %v1032 = vpop.permute.xlu0 %1031
    %1033 = vrot.lane.b32.xlu0 %v631, 8
    %v1034 = vpop.permute.xlu0 %1033
    %1035 = vrot.lane.b32.xlu0 %v634, 8
    %v1036 = vpop.permute.xlu0 %1035
    %1037 = vrot.lane.b32.xlu0 %v636, 8
    %v1038 = vpop.permute.xlu0 %1037
    %1039 = vrot.lane.b32.xlu0 %v639, 8
    %v1040 = vpop.permute.xlu0 %1039
    %1041 = vrot.lane.b32.xlu0 %v641, 8
    %v1042 = vpop.permute.xlu0 %1041
    %1043 = vrot.lane.b32.xlu0 %v644, 8
    %v1044 = vpop.permute.xlu0 %1043
    %1045 = vrot.lane.b32.xlu0 %v646, 8
    %v1046 = vpop.permute.xlu0 %1045
    %1047 = vrot.lane.b32.xlu0 %v649, 8
    %v1048 = vpop.permute.xlu0 %1047
    %1049 = vrot.lane.b32.xlu0 %v651, 8
    %v1050 = vpop.permute.xlu0 %1049
    %1051 = vrot.lane.b32.xlu0 %v654, 8
    %v1052 = vpop.permute.xlu0 %1051
    %1053 = vrot.lane.b32.xlu0 %v656, 8
    %v1054 = vpop.permute.xlu0 %1053
    %1055 = vrot.lane.b32.xlu0 %v659, 8
    %v1056 = vpop.permute.xlu0 %1055
    %1057 = vrot.lane.b32.xlu0 %v661, 8
    %v1058 = vpop.permute.xlu0 %1057
    %1059 = vrot.lane.b32.xlu0 %v664, 8
    %v1060 = vpop.permute.xlu0 %1059
    %1061 = vrot.lane.b32.xlu0 %v666, 8
    %v1062 = vpop.permute.xlu0 %1061
    %1063 = vrot.lane.b32.xlu0 %v669, 8
    %v1064 = vpop.permute.xlu0 %1063
    %1065 = vrot.lane.b32.xlu0 %v671, 8
    %v1066 = vpop.permute.xlu0 %1065
    %1067 = vrot.lane.b32.xlu0 %v674, 8
    %v1068 = vpop.permute.xlu0 %1067
    %1069 = vrot.lane.b32.xlu0 %v676, 8
    %v1070 = vpop.permute.xlu0 %1069
    %1071 = vrot.lane.b32.xlu0 %v679, 8
    %v1072 = vpop.permute.xlu0 %1071
    %1073 = vrot.lane.b32.xlu0 %v681, 8
    %v1074 = vpop.permute.xlu0 %1073
    %1075 = vrot.lane.b32.xlu0 %v684, 8
    %v1076 = vpop.permute.xlu0 %1075
    %1077 = vrot.lane.b32.xlu0 %v686, 8
    %v1078 = vpop.permute.xlu0 %1077
    %1079 = vrot.lane.b32.xlu0 %v689, 8
    %v1080 = vpop.permute.xlu0 %1079
    %1081 = vrot.lane.b32.xlu0 %v691, 8
    %v1082 = vpop.permute.xlu0 %1081
    %1083 = vrot.lane.b32.xlu0 %v694, 8
    %v1084 = vpop.permute.xlu0 %1083
    %1085 = vrot.lane.b32.xlu0 %v696, 8
    %v1086 = vpop.permute.xlu0 %1085
    %1087 = vrot.lane.b32.xlu0 %v699, 8
    %v1088 = vpop.permute.xlu0 %1087
    %1089 = vrot.lane.b32.xlu0 %v701, 8
    %v1090 = vpop.permute.xlu0 %1089
    %1091 = vrot.lane.b32.xlu0 %v704, 8
    %v1092 = vpop.permute.xlu0 %1091
    %1093 = vrot.lane.b32.xlu0 %v706, 8
    %v1094 = vpop.permute.xlu0 %1093
    %1095 = vrot.lane.b32.xlu0 %v709, 8
    %v1096 = vpop.permute.xlu0 %1095
    %1097 = vrot.lane.b32.xlu0 %v711, 8
    %v1098 = vpop.permute.xlu0 %1097
    %1099 = vrot.lane.b32.xlu0 %v714, 8
    %v1100 = vpop.permute.xlu0 %1099
    %1101 = vrot.lane.b32.xlu0 %v716, 8
    %v1102 = vpop.permute.xlu0 %1101
    %1103 = vrot.lane.b32.xlu0 %v719, 8
    %v1104 = vpop.permute.xlu0 %1103
    %1105 = vrot.lane.b32.xlu0 %v721, 8
    %v1106 = vpop.permute.xlu0 %1105
    %1107 = vrot.lane.b32.xlu0 %v724, 8
    %v1108 = vpop.permute.xlu0 %1107
    %1109 = vrot.lane.b32.xlu0 %v726, 8
    %v1110 = vpop.permute.xlu0 %1109
    %1111 = vrot.lane.b32.xlu0 %v729, 8
    %v1112 = vpop.permute.xlu0 %1111
    %1113 = vrot.lane.b32.xlu0 %v731, 8
    %v1114 = vpop.permute.xlu0 %1113
    %1115 = vrot.lane.b32.xlu0 %v734, 8
    %v1116 = vpop.permute.xlu0 %1115
    %1117 = vrot.lane.b32.xlu0 %v736, 8
    %v1118 = vpop.permute.xlu0 %1117
    %1119 = vrot.lane.b32.xlu0 %v739, 8
    %v1120 = vpop.permute.xlu0 %1119
    %1121 = vrot.lane.b32.xlu0 %v741, 8
    %v1122 = vpop.permute.xlu0 %1121
    %1123 = vrot.lane.b32.xlu0 %v744, 8
    %v1124 = vpop.permute.xlu0 %1123
    %1125 = vrot.lane.b32.xlu0 %v746, 8
    %v1126 = vpop.permute.xlu0 %1125
    %1127 = vrot.lane.b32.xlu0 %v749, 8
    %v1128 = vpop.permute.xlu0 %1127
    %1129 = vrot.lane.b32.xlu0 %v751, 8
    %v1130 = vpop.permute.xlu0 %1129
    %1131 = vrot.lane.b32.xlu0 %v754, 8
    %v1132 = vpop.permute.xlu0 %1131
    %1133 = vrot.lane.b32.xlu0 %v756, 8
    %v1134 = vpop.permute.xlu0 %1133
    %1135 = vrot.lane.b32.xlu0 %v759, 8
    %v1136 = vpop.permute.xlu0 %1135
    %1137 = vrot.lane.b32.xlu0 %v761, 8
    %v1138 = vpop.permute.xlu0 %1137
    %1139 = vrot.lane.b32.xlu0 %v764, 8
    %v1140 = vpop.permute.xlu0 %1139
    %1141 = vrot.lane.b32.xlu0 %v766, 8
    %v1142 = vpop.permute.xlu0 %1141
    %1143 = vrot.lane.b32.xlu0 %v769, 8
    %v1144 = vpop.permute.xlu0 %1143
    %1145 = vrot.lane.b32.xlu0 %v771, 8
    %v1146 = vpop.permute.xlu0 %1145
    %1147 = vrot.lane.b32.xlu0 %v774, 8
    %v1148 = vpop.permute.xlu0 %1147
    %1149 = vrot.lane.b32.xlu0 %v776, 8
    %v1150 = vpop.permute.xlu0 %1149
    %1151 = vrot.lane.b32.xlu0 %v779, 8
    %v1152 = vpop.permute.xlu0 %1151
    %1153 = vrot.lane.b32.xlu0 %v781, 8
    %v1154 = vpop.permute.xlu0 %1153
    %1155 = vrot.lane.b32.xlu0 %v784, 8
    %v1156 = vpop.permute.xlu0 %1155
    %1157 = vrot.lane.b32.xlu0 %v786, 8
    %v1158 = vpop.permute.xlu0 %1157
    %1223 = vrot.lane.b32.xlu0 %v264, 12
    %v1224 = vpop.permute.xlu0 %1223
    %1225 = vrot.lane.b32.xlu0 %v265, 12
    %v1226 = vpop.permute.xlu0 %1225
    %1227 = vrot.lane.b32.xlu0 %v267, 12
    %v1228 = vpop.permute.xlu0 %1227
    %1229 = vrot.lane.b32.xlu0 %v268, 12
    %v1230 = vpop.permute.xlu0 %1229
    %1231 = vrot.lane.b32.xlu0 %v270, 12
    %v1232 = vpop.permute.xlu0 %1231
    %1233 = vrot.lane.b32.xlu0 %v271, 12
    %v1234 = vpop.permute.xlu0 %1233
    %1235 = vrot.lane.b32.xlu0 %v273, 12
    %v1236 = vpop.permute.xlu0 %1235
    %1237 = vrot.lane.b32.xlu0 %v274, 12
    %v1238 = vpop.permute.xlu0 %1237
    %1239 = vrot.lane.b32.xlu0 %v276, 12
    %v1240 = vpop.permute.xlu0 %1239
    %1241 = vrot.lane.b32.xlu0 %v277, 12
    %v1242 = vpop.permute.xlu0 %1241
    %1243 = vrot.lane.b32.xlu0 %v279, 12
    %v1244 = vpop.permute.xlu0 %1243
    %1245 = vrot.lane.b32.xlu0 %v280, 12
    %v1246 = vpop.permute.xlu0 %1245
    %1247 = vrot.lane.b32.xlu0 %v282, 12
    %v1248 = vpop.permute.xlu0 %1247
    %1249 = vrot.lane.b32.xlu0 %v283, 12
    %v1250 = vpop.permute.xlu0 %1249
    %1251 = vrot.lane.b32.xlu0 %v285, 12
    %v1252 = vpop.permute.xlu0 %1251
    %1253 = vrot.lane.b32.xlu0 %v286, 12
    %v1254 = vpop.permute.xlu0 %1253
    %1255 = vrot.lane.b32.xlu0 %v288, 12
    %v1256 = vpop.permute.xlu0 %1255
    %1257 = vrot.lane.b32.xlu0 %v289, 12
    %v1258 = vpop.permute.xlu0 %1257
    %1259 = vrot.lane.b32.xlu0 %v291, 12
    %v1260 = vpop.permute.xlu0 %1259
    %1261 = vrot.lane.b32.xlu0 %v292, 12
    %v1262 = vpop.permute.xlu0 %1261
    %1263 = vrot.lane.b32.xlu0 %v294, 12
    %v1264 = vpop.permute.xlu0 %1263
    %1265 = vrot.lane.b32.xlu0 %v295, 12
    %v1266 = vpop.permute.xlu0 %1265
    %1267 = vrot.lane.b32.xlu0 %v297, 12
    %v1268 = vpop.permute.xlu0 %1267
    %1269 = vrot.lane.b32.xlu0 %v298, 12
    %v1270 = vpop.permute.xlu0 %1269
    %1271 = vrot.lane.b32.xlu0 %v300, 12
    %v1272 = vpop.permute.xlu0 %1271
    %1273 = vrot.lane.b32.xlu0 %v301, 12
    %v1274 = vpop.permute.xlu0 %1273
    %1275 = vrot.lane.b32.xlu0 %v303, 12
    %v1276 = vpop.permute.xlu0 %1275
    %1277 = vrot.lane.b32.xlu0 %v304, 12
    %v1278 = vpop.permute.xlu0 %1277
    %1279 = vrot.lane.b32.xlu0 %v306, 12
    %v1280 = vpop.permute.xlu0 %1279
    %1281 = vrot.lane.b32.xlu0 %v307, 12
    %v1282 = vpop.permute.xlu0 %1281
    %1283 = vrot.lane.b32.xlu0 %v309, 12
    %v1284 = vpop.permute.xlu0 %1283
    %1285 = vrot.lane.b32.xlu0 %v310, 12
    %v1286 = vpop.permute.xlu0 %1285
    %1287 = vrot.lane.b32.xlu0 %v318, 12
    %v1288 = vpop.permute.xlu0 %1287
    %1289 = vrot.lane.b32.xlu0 %v319, 12
    %v1290 = vpop.permute.xlu0 %1289
    %1291 = vrot.lane.b32.xlu0 %v321, 12
    %v1292 = vpop.permute.xlu0 %1291
    %1293 = vrot.lane.b32.xlu0 %v322, 12
    %v1294 = vpop.permute.xlu0 %1293
    %1295 = vrot.lane.b32.xlu0 %v324, 12
    %v1296 = vpop.permute.xlu0 %1295
    %1297 = vrot.lane.b32.xlu0 %v325, 12
    %v1298 = vpop.permute.xlu0 %1297
    %1299 = vrot.lane.b32.xlu0 %v327, 12
    %v1300 = vpop.permute.xlu0 %1299
    %1301 = vrot.lane.b32.xlu0 %v328, 12
    %v1302 = vpop.permute.xlu0 %1301
    %1303 = vrot.lane.b32.xlu0 %v330, 12
    %v1304 = vpop.permute.xlu0 %1303
    %1305 = vrot.lane.b32.xlu0 %v331, 12
    %v1306 = vpop.permute.xlu0 %1305
    %1307 = vrot.lane.b32.xlu0 %v333, 12
    %v1308 = vpop.permute.xlu0 %1307
    %1309 = vrot.lane.b32.xlu0 %v334, 12
    %v1310 = vpop.permute.xlu0 %1309
    %1311 = vrot.lane.b32.xlu0 %v336, 12
    %v1312 = vpop.permute.xlu0 %1311
    %1313 = vrot.lane.b32.xlu0 %v337, 12
    %v1314 = vpop.permute.xlu0 %1313
    %1315 = vrot.lane.b32.xlu0 %v339, 12
    %v1316 = vpop.permute.xlu0 %1315
    %1317 = vrot.lane.b32.xlu0 %v340, 12
    %v1318 = vpop.permute.xlu0 %1317
    %1319 = vrot.lane.b32.xlu0 %v342, 12
    %v1320 = vpop.permute.xlu0 %1319
    %1321 = vrot.lane.b32.xlu0 %v343, 12
    %v1322 = vpop.permute.xlu0 %1321
    %1323 = vrot.lane.b32.xlu0 %v345, 12
    %v1324 = vpop.permute.xlu0 %1323
    %1325 = vrot.lane.b32.xlu0 %v346, 12
    %v1326 = vpop.permute.xlu0 %1325
    %1327 = vrot.lane.b32.xlu0 %v348, 12
    %v1328 = vpop.permute.xlu0 %1327
    %1329 = vrot.lane.b32.xlu0 %v349, 12
    %v1330 = vpop.permute.xlu0 %1329
    %1331 = vrot.lane.b32.xlu0 %v351, 12
    %v1332 = vpop.permute.xlu0 %1331
    %1333 = vrot.lane.b32.xlu0 %v352, 12
    %v1334 = vpop.permute.xlu0 %1333
    %1335 = vrot.lane.b32.xlu0 %v354, 12
    %v1336 = vpop.permute.xlu0 %1335
    %1337 = vrot.lane.b32.xlu0 %v355, 12
    %v1338 = vpop.permute.xlu0 %1337
    %1339 = vrot.lane.b32.xlu0 %v357, 12
    %v1340 = vpop.permute.xlu0 %1339
    %1341 = vrot.lane.b32.xlu0 %v358, 12
    %v1342 = vpop.permute.xlu0 %1341
    %1343 = vrot.lane.b32.xlu0 %v360, 12
    %v1344 = vpop.permute.xlu0 %1343
    %1345 = vrot.lane.b32.xlu0 %v361, 12
    %v1346 = vpop.permute.xlu0 %1345
    %1347 = vrot.lane.b32.xlu0 %v363, 12
    %v1348 = vpop.permute.xlu0 %1347
    %1349 = vrot.lane.b32.xlu0 %v364, 12
    %v1350 = vpop.permute.xlu0 %1349
    %1415 = vrot.lane.b32.xlu0 %v473, 16
    %v1416 = vpop.permute.xlu0 %1415
    %1417 = vrot.lane.b32.xlu0 %v475, 16
    %v1418 = vpop.permute.xlu0 %1417
    %1419 = vrot.lane.b32.xlu0 %v478, 16
    %v1420 = vpop.permute.xlu0 %1419
    %1421 = vrot.lane.b32.xlu0 %v480, 16
    %v1422 = vpop.permute.xlu0 %1421
    %1423 = vrot.lane.b32.xlu0 %v483, 16
    %v1424 = vpop.permute.xlu0 %1423
    %1425 = vrot.lane.b32.xlu0 %v485, 16
    %v1426 = vpop.permute.xlu0 %1425
    %1427 = vrot.lane.b32.xlu0 %v488, 16
    %v1428 = vpop.permute.xlu0 %1427
    %1429 = vrot.lane.b32.xlu0 %v490, 16
    %v1430 = vpop.permute.xlu0 %1429
    %1431 = vrot.lane.b32.xlu0 %v493, 16
    %v1432 = vpop.permute.xlu0 %1431
    %1433 = vrot.lane.b32.xlu0 %v495, 16
    %v1434 = vpop.permute.xlu0 %1433
    %1435 = vrot.lane.b32.xlu0 %v498, 16
    %v1436 = vpop.permute.xlu0 %1435
    %1437 = vrot.lane.b32.xlu0 %v500, 16
    %v1438 = vpop.permute.xlu0 %1437
    %1439 = vrot.lane.b32.xlu0 %v503, 16
    %v1440 = vpop.permute.xlu0 %1439
    %1441 = vrot.lane.b32.xlu0 %v505, 16
    %v1442 = vpop.permute.xlu0 %1441
    %1443 = vrot.lane.b32.xlu0 %v508, 16
    %v1444 = vpop.permute.xlu0 %1443
    %1445 = vrot.lane.b32.xlu0 %v510, 16
    %v1446 = vpop.permute.xlu0 %1445
    %1447 = vrot.lane.b32.xlu0 %v513, 16
    %v1448 = vpop.permute.xlu0 %1447
    %1449 = vrot.lane.b32.xlu0 %v515, 16
    %v1450 = vpop.permute.xlu0 %1449
    %1451 = vrot.lane.b32.xlu0 %v518, 16
    %v1452 = vpop.permute.xlu0 %1451
    %1453 = vrot.lane.b32.xlu0 %v520, 16
    %v1454 = vpop.permute.xlu0 %1453
    %1455 = vrot.lane.b32.xlu0 %v523, 16
    %v1456 = vpop.permute.xlu0 %1455
    %1457 = vrot.lane.b32.xlu0 %v525, 16
    %v1458 = vpop.permute.xlu0 %1457
    %1459 = vrot.lane.b32.xlu0 %v528, 16
    %v1460 = vpop.permute.xlu0 %1459
    %1461 = vrot.lane.b32.xlu0 %v530, 16
    %v1462 = vpop.permute.xlu0 %1461
    %1463 = vrot.lane.b32.xlu0 %v533, 16
    %v1464 = vpop.permute.xlu0 %1463
    %1465 = vrot.lane.b32.xlu0 %v535, 16
    %v1466 = vpop.permute.xlu0 %1465
    %1467 = vrot.lane.b32.xlu0 %v538, 16
    %v1468 = vpop.permute.xlu0 %1467
    %1469 = vrot.lane.b32.xlu0 %v540, 16
    %v1470 = vpop.permute.xlu0 %1469
    %1471 = vrot.lane.b32.xlu0 %v543, 16
    %v1472 = vpop.permute.xlu0 %1471
    %1473 = vrot.lane.b32.xlu0 %v545, 16
    %v1474 = vpop.permute.xlu0 %1473
    %1475 = vrot.lane.b32.xlu0 %v795, 16
    %v1476 = vpop.permute.xlu0 %1475
    %1477 = vrot.lane.b32.xlu0 %v797, 16
    %v1478 = vpop.permute.xlu0 %1477
    %1479 = vrot.lane.b32.xlu0 %v553, 16
    %v1480 = vpop.permute.xlu0 %1479
    %1481 = vrot.lane.b32.xlu0 %v555, 16
    %v1482 = vpop.permute.xlu0 %1481
    %1483 = vrot.lane.b32.xlu0 %v558, 16
    %v1484 = vpop.permute.xlu0 %1483
    %1485 = vrot.lane.b32.xlu0 %v560, 16
    %v1486 = vpop.permute.xlu0 %1485
    %1487 = vrot.lane.b32.xlu0 %v563, 16
    %v1488 = vpop.permute.xlu0 %1487
    %1489 = vrot.lane.b32.xlu0 %v565, 16
    %v1490 = vpop.permute.xlu0 %1489
    %1491 = vrot.lane.b32.xlu0 %v568, 16
    %v1492 = vpop.permute.xlu0 %1491
    %1493 = vrot.lane.b32.xlu0 %v570, 16
    %v1494 = vpop.permute.xlu0 %1493
    %1495 = vrot.lane.b32.xlu0 %v573, 16
    %v1496 = vpop.permute.xlu0 %1495
    %1497 = vrot.lane.b32.xlu0 %v575, 16
    %v1498 = vpop.permute.xlu0 %1497
    %1499 = vrot.lane.b32.xlu0 %v578, 16
    %v1500 = vpop.permute.xlu0 %1499
    %1501 = vrot.lane.b32.xlu0 %v580, 16
    %v1502 = vpop.permute.xlu0 %1501
    %1503 = vrot.lane.b32.xlu0 %v583, 16
    %v1504 = vpop.permute.xlu0 %1503
    %1505 = vrot.lane.b32.xlu0 %v585, 16
    %v1506 = vpop.permute.xlu0 %1505
    %1507 = vrot.lane.b32.xlu0 %v588, 16
    %v1508 = vpop.permute.xlu0 %1507
    %1509 = vrot.lane.b32.xlu0 %v590, 16
    %v1510 = vpop.permute.xlu0 %1509
    %1511 = vrot.lane.b32.xlu0 %v593, 16
    %v1512 = vpop.permute.xlu0 %1511
    %1513 = vrot.lane.b32.xlu0 %v595, 16
    %v1514 = vpop.permute.xlu0 %1513
    %1515 = vrot.lane.b32.xlu0 %v598, 16
    %v1516 = vpop.permute.xlu0 %1515
    %1517 = vrot.lane.b32.xlu0 %v600, 16
    %v1518 = vpop.permute.xlu0 %1517
    %1519 = vrot.lane.b32.xlu0 %v603, 16
    %v1520 = vpop.permute.xlu0 %1519
    %1521 = vrot.lane.b32.xlu0 %v605, 16
    %v1522 = vpop.permute.xlu0 %1521
    %1523 = vrot.lane.b32.xlu0 %v608, 16
    %v1524 = vpop.permute.xlu0 %1523
    %1525 = vrot.lane.b32.xlu0 %v610, 16
    %v1526 = vpop.permute.xlu0 %1525
    %1527 = vrot.lane.b32.xlu0 %v613, 16
    %v1528 = vpop.permute.xlu0 %1527
    %1529 = vrot.lane.b32.xlu0 %v615, 16
    %v1530 = vpop.permute.xlu0 %1529
    %1531 = vrot.lane.b32.xlu0 %v618, 16
    %v1532 = vpop.permute.xlu0 %1531
    %1533 = vrot.lane.b32.xlu0 %v620, 16
    %v1534 = vpop.permute.xlu0 %1533
    %1535 = vrot.lane.b32.xlu0 %v623, 16
    %v1536 = vpop.permute.xlu0 %1535
    %1537 = vrot.lane.b32.xlu0 %v625, 16
    %v1538 = vpop.permute.xlu0 %1537
    %1539 = vrot.lane.b32.xlu0 %v800, 16
    %v1540 = vpop.permute.xlu0 %1539
    %1541 = vrot.lane.b32.xlu0 %v802, 16
    %v1542 = vpop.permute.xlu0 %1541
    %1607 = vrot.lane.b32.xlu0 %v634, 20
    %v1608 = vpop.permute.xlu0 %1607
    %1609 = vrot.lane.b32.xlu0 %v636, 20
    %v1610 = vpop.permute.xlu0 %1609
    %1611 = vrot.lane.b32.xlu0 %v639, 20
    %v1612 = vpop.permute.xlu0 %1611
    %1613 = vrot.lane.b32.xlu0 %v641, 20
    %v1614 = vpop.permute.xlu0 %1613
    %1615 = vrot.lane.b32.xlu0 %v644, 20
    %v1616 = vpop.permute.xlu0 %1615
    %1617 = vrot.lane.b32.xlu0 %v646, 20
    %v1618 = vpop.permute.xlu0 %1617
    %1619 = vrot.lane.b32.xlu0 %v649, 20
    %v1620 = vpop.permute.xlu0 %1619
    %1621 = vrot.lane.b32.xlu0 %v651, 20
    %v1622 = vpop.permute.xlu0 %1621
    %1623 = vrot.lane.b32.xlu0 %v654, 20
    %v1624 = vpop.permute.xlu0 %1623
    %1625 = vrot.lane.b32.xlu0 %v656, 20
    %v1626 = vpop.permute.xlu0 %1625
    %1627 = vrot.lane.b32.xlu0 %v659, 20
    %v1628 = vpop.permute.xlu0 %1627
    %1629 = vrot.lane.b32.xlu0 %v661, 20
    %v1630 = vpop.permute.xlu0 %1629
    %1631 = vrot.lane.b32.xlu0 %v664, 20
    %v1632 = vpop.permute.xlu0 %1631
    %1633 = vrot.lane.b32.xlu0 %v666, 20
    %v1634 = vpop.permute.xlu0 %1633
    %1635 = vrot.lane.b32.xlu0 %v669, 20
    %v1636 = vpop.permute.xlu0 %1635
    %1637 = vrot.lane.b32.xlu0 %v671, 20
    %v1638 = vpop.permute.xlu0 %1637
    %1639 = vrot.lane.b32.xlu0 %v674, 20
    %v1640 = vpop.permute.xlu0 %1639
    %1641 = vrot.lane.b32.xlu0 %v676, 20
    %v1642 = vpop.permute.xlu0 %1641
    %1643 = vrot.lane.b32.xlu0 %v679, 20
    %v1644 = vpop.permute.xlu0 %1643
    %1645 = vrot.lane.b32.xlu0 %v681, 20
    %v1646 = vpop.permute.xlu0 %1645
    %1647 = vrot.lane.b32.xlu0 %v684, 20
    %v1648 = vpop.permute.xlu0 %1647
    %1649 = vrot.lane.b32.xlu0 %v686, 20
    %v1650 = vpop.permute.xlu0 %1649
    %1651 = vrot.lane.b32.xlu0 %v689, 20
    %v1652 = vpop.permute.xlu0 %1651
    %1653 = vrot.lane.b32.xlu0 %v691, 20
    %v1654 = vpop.permute.xlu0 %1653
    %1655 = vrot.lane.b32.xlu0 %v694, 20
    %v1656 = vpop.permute.xlu0 %1655
    %1657 = vrot.lane.b32.xlu0 %v696, 20
    %v1658 = vpop.permute.xlu0 %1657
    %1659 = vrot.lane.b32.xlu0 %v699, 20
    %v1660 = vpop.permute.xlu0 %1659
    %1661 = vrot.lane.b32.xlu0 %v701, 20
    %v1662 = vpop.permute.xlu0 %1661
    %1663 = vrot.lane.b32.xlu0 %v704, 20
    %v1664 = vpop.permute.xlu0 %1663
    %1665 = vrot.lane.b32.xlu0 %v706, 20
    %v1666 = vpop.permute.xlu0 %1665
    %1667 = vrot.lane.b32.xlu0 %v805, 20
    %v1668 = vpop.permute.xlu0 %1667
    %1669 = vrot.lane.b32.xlu0 %v807, 20
    %v1670 = vpop.permute.xlu0 %1669
    %1671 = vrot.lane.b32.xlu0 %v714, 20
    %v1672 = vpop.permute.xlu0 %1671
    %1673 = vrot.lane.b32.xlu0 %v716, 20
    %v1674 = vpop.permute.xlu0 %1673
    %1675 = vrot.lane.b32.xlu0 %v719, 20
    %v1676 = vpop.permute.xlu0 %1675
    %1677 = vrot.lane.b32.xlu0 %v721, 20
    %v1678 = vpop.permute.xlu0 %1677
    %1679 = vrot.lane.b32.xlu0 %v724, 20
    %v1680 = vpop.permute.xlu0 %1679
    %1681 = vrot.lane.b32.xlu0 %v726, 20
    %v1682 = vpop.permute.xlu0 %1681
    %1683 = vrot.lane.b32.xlu0 %v729, 20
    %v1684 = vpop.permute.xlu0 %1683
    %1685 = vrot.lane.b32.xlu0 %v731, 20
    %v1686 = vpop.permute.xlu0 %1685
    %1687 = vrot.lane.b32.xlu0 %v734, 20
    %v1688 = vpop.permute.xlu0 %1687
    %1689 = vrot.lane.b32.xlu0 %v736, 20
    %v1690 = vpop.permute.xlu0 %1689
    %1691 = vrot.lane.b32.xlu0 %v739, 20
    %v1692 = vpop.permute.xlu0 %1691
    %1693 = vrot.lane.b32.xlu0 %v741, 20
    %v1694 = vpop.permute.xlu0 %1693
    %1695 = vrot.lane.b32.xlu0 %v744, 20
    %v1696 = vpop.permute.xlu0 %1695
    %1697 = vrot.lane.b32.xlu0 %v746, 20
    %v1698 = vpop.permute.xlu0 %1697
    %1699 = vrot.lane.b32.xlu0 %v749, 20
    %v1700 = vpop.permute.xlu0 %1699
    %1701 = vrot.lane.b32.xlu0 %v751, 20
    %v1702 = vpop.permute.xlu0 %1701
    %1703 = vrot.lane.b32.xlu0 %v754, 20
    %v1704 = vpop.permute.xlu0 %1703
    %1705 = vrot.lane.b32.xlu0 %v756, 20
    %v1706 = vpop.permute.xlu0 %1705
    %1707 = vrot.lane.b32.xlu0 %v759, 20
    %v1708 = vpop.permute.xlu0 %1707
    %1709 = vrot.lane.b32.xlu0 %v761, 20
    %v1710 = vpop.permute.xlu0 %1709
    %1711 = vrot.lane.b32.xlu0 %v764, 20
    %v1712 = vpop.permute.xlu0 %1711
    %1713 = vrot.lane.b32.xlu0 %v766, 20
    %v1714 = vpop.permute.xlu0 %1713
    %1715 = vrot.lane.b32.xlu0 %v769, 20
    %v1716 = vpop.permute.xlu0 %1715
    %1717 = vrot.lane.b32.xlu0 %v771, 20
    %v1718 = vpop.permute.xlu0 %1717
    %1719 = vrot.lane.b32.xlu0 %v774, 20
    %v1720 = vpop.permute.xlu0 %1719
    %1721 = vrot.lane.b32.xlu0 %v776, 20
    %v1722 = vpop.permute.xlu0 %1721
    %1723 = vrot.lane.b32.xlu0 %v779, 20
    %v1724 = vpop.permute.xlu0 %1723
    %1725 = vrot.lane.b32.xlu0 %v781, 20
    %v1726 = vpop.permute.xlu0 %1725
    %1727 = vrot.lane.b32.xlu0 %v784, 20
    %v1728 = vpop.permute.xlu0 %1727
    %1729 = vrot.lane.b32.xlu0 %v786, 20
    %v1730 = vpop.permute.xlu0 %1729
    %1731 = vrot.lane.b32.xlu0 %v810, 20
    %v1732 = vpop.permute.xlu0 %1731
    %1733 = vrot.lane.b32.xlu0 %v812, 20
    %v1734 = vpop.permute.xlu0 %1733
    %1799 = vrot.lane.b32.xlu0 %v267, 24
    %v1800 = vpop.permute.xlu0 %1799
    %1801 = vrot.lane.b32.xlu0 %v268, 24
    %v1802 = vpop.permute.xlu0 %1801
    %1803 = vrot.lane.b32.xlu0 %v270, 24
    %v1804 = vpop.permute.xlu0 %1803
    %1805 = vrot.lane.b32.xlu0 %v271, 24
    %v1806 = vpop.permute.xlu0 %1805
    %1807 = vrot.lane.b32.xlu0 %v273, 24
    %v1808 = vpop.permute.xlu0 %1807
    %1809 = vrot.lane.b32.xlu0 %v274, 24
    %v1810 = vpop.permute.xlu0 %1809
    %1811 = vrot.lane.b32.xlu0 %v276, 24
    %v1812 = vpop.permute.xlu0 %1811
    %1813 = vrot.lane.b32.xlu0 %v277, 24
    %v1814 = vpop.permute.xlu0 %1813
    %1815 = vrot.lane.b32.xlu0 %v279, 24
    %v1816 = vpop.permute.xlu0 %1815
    %1817 = vrot.lane.b32.xlu0 %v280, 24
    %v1818 = vpop.permute.xlu0 %1817
    %1819 = vrot.lane.b32.xlu0 %v282, 24
    %v1820 = vpop.permute.xlu0 %1819
    %1821 = vrot.lane.b32.xlu0 %v283, 24
    %v1822 = vpop.permute.xlu0 %1821
    %1823 = vrot.lane.b32.xlu0 %v285, 24
    %v1824 = vpop.permute.xlu0 %1823
    %1825 = vrot.lane.b32.xlu0 %v286, 24
    %v1826 = vpop.permute.xlu0 %1825
    %1827 = vrot.lane.b32.xlu0 %v288, 24
    %v1828 = vpop.permute.xlu0 %1827
    %1829 = vrot.lane.b32.xlu0 %v289, 24
    %v1830 = vpop.permute.xlu0 %1829
    %1831 = vrot.lane.b32.xlu0 %v291, 24
    %v1832 = vpop.permute.xlu0 %1831
    %1833 = vrot.lane.b32.xlu0 %v292, 24
    %v1834 = vpop.permute.xlu0 %1833
    %1835 = vrot.lane.b32.xlu0 %v294, 24
    %v1836 = vpop.permute.xlu0 %1835
    %1837 = vrot.lane.b32.xlu0 %v295, 24
    %v1838 = vpop.permute.xlu0 %1837
    %1839 = vrot.lane.b32.xlu0 %v297, 24
    %v1840 = vpop.permute.xlu0 %1839
    %1841 = vrot.lane.b32.xlu0 %v298, 24
    %v1842 = vpop.permute.xlu0 %1841
    %1843 = vrot.lane.b32.xlu0 %v300, 24
    %v1844 = vpop.permute.xlu0 %1843
    %1845 = vrot.lane.b32.xlu0 %v301, 24
    %v1846 = vpop.permute.xlu0 %1845
    %1847 = vrot.lane.b32.xlu0 %v303, 24
    %v1848 = vpop.permute.xlu0 %1847
    %1849 = vrot.lane.b32.xlu0 %v304, 24
    %v1850 = vpop.permute.xlu0 %1849
    %1851 = vrot.lane.b32.xlu0 %v306, 24
    %v1852 = vpop.permute.xlu0 %1851
    %1853 = vrot.lane.b32.xlu0 %v307, 24
    %v1854 = vpop.permute.xlu0 %1853
    %1855 = vrot.lane.b32.xlu0 %v309, 24
    %v1856 = vpop.permute.xlu0 %1855
    %1857 = vrot.lane.b32.xlu0 %v310, 24
    %v1858 = vpop.permute.xlu0 %1857
    %1859 = vrot.lane.b32.xlu0 %v312, 24
    %v1860 = vpop.permute.xlu0 %1859
    %1861 = vrot.lane.b32.xlu0 %v313, 24
    %v1862 = vpop.permute.xlu0 %1861
    %1863 = vrot.lane.b32.xlu0 %v321, 24
    %v1864 = vpop.permute.xlu0 %1863
    %1865 = vrot.lane.b32.xlu0 %v322, 24
    %v1866 = vpop.permute.xlu0 %1865
    %1867 = vrot.lane.b32.xlu0 %v324, 24
    %v1868 = vpop.permute.xlu0 %1867
    %1869 = vrot.lane.b32.xlu0 %v325, 24
    %v1870 = vpop.permute.xlu0 %1869
    %1871 = vrot.lane.b32.xlu0 %v327, 24
    %v1872 = vpop.permute.xlu0 %1871
    %1873 = vrot.lane.b32.xlu0 %v328, 24
    %v1874 = vpop.permute.xlu0 %1873
    %1875 = vrot.lane.b32.xlu0 %v330, 24
    %v1876 = vpop.permute.xlu0 %1875
    %1877 = vrot.lane.b32.xlu0 %v331, 24
    %v1878 = vpop.permute.xlu0 %1877
    %1879 = vrot.lane.b32.xlu0 %v333, 24
    %v1880 = vpop.permute.xlu0 %1879
    %1881 = vrot.lane.b32.xlu0 %v334, 24
    %v1882 = vpop.permute.xlu0 %1881
    %1883 = vrot.lane.b32.xlu0 %v336, 24
    %v1884 = vpop.permute.xlu0 %1883
    %1885 = vrot.lane.b32.xlu0 %v337, 24
    %v1886 = vpop.permute.xlu0 %1885
    %1887 = vrot.lane.b32.xlu0 %v339, 24
    %v1888 = vpop.permute.xlu0 %1887
    %1889 = vrot.lane.b32.xlu0 %v340, 24
    %v1890 = vpop.permute.xlu0 %1889
    %1891 = vrot.lane.b32.xlu0 %v342, 24
    %v1892 = vpop.permute.xlu0 %1891
    %1893 = vrot.lane.b32.xlu0 %v343, 24
    %v1894 = vpop.permute.xlu0 %1893
    %1895 = vrot.lane.b32.xlu0 %v345, 24
    %v1896 = vpop.permute.xlu0 %1895
    %1897 = vrot.lane.b32.xlu0 %v346, 24
    %v1898 = vpop.permute.xlu0 %1897
    %1899 = vrot.lane.b32.xlu0 %v348, 24
    %v1900 = vpop.permute.xlu0 %1899
    %1901 = vrot.lane.b32.xlu0 %v349, 24
    %v1902 = vpop.permute.xlu0 %1901
    %1903 = vrot.lane.b32.xlu0 %v351, 24
    %v1904 = vpop.permute.xlu0 %1903
    %1905 = vrot.lane.b32.xlu0 %v352, 24
    %v1906 = vpop.permute.xlu0 %1905
    %1907 = vrot.lane.b32.xlu0 %v354, 24
    %v1908 = vpop.permute.xlu0 %1907
    %1909 = vrot.lane.b32.xlu0 %v355, 24
    %v1910 = vpop.permute.xlu0 %1909
    %1911 = vrot.lane.b32.xlu0 %v357, 24
    %v1912 = vpop.permute.xlu0 %1911
    %1913 = vrot.lane.b32.xlu0 %v358, 24
    %v1914 = vpop.permute.xlu0 %1913
    %1915 = vrot.lane.b32.xlu0 %v360, 24
    %v1916 = vpop.permute.xlu0 %1915
    %1917 = vrot.lane.b32.xlu0 %v361, 24
    %v1918 = vpop.permute.xlu0 %1917
    %1919 = vrot.lane.b32.xlu0 %v363, 24
    %v1920 = vpop.permute.xlu0 %1919
    %1921 = vrot.lane.b32.xlu0 %v364, 24
    %v1922 = vpop.permute.xlu0 %1921
    %1923 = vrot.lane.b32.xlu0 %v366, 24
    %v1924 = vpop.permute.xlu0 %1923
    %1925 = vrot.lane.b32.xlu0 %v367, 24
    %v1926 = vpop.permute.xlu0 %1925
    %1991 = vrot.lane.b32.xlu0 %v478, 28
    %v1992 = vpop.permute.xlu0 %1991
    %1993 = vrot.lane.b32.xlu0 %v480, 28
    %v1994 = vpop.permute.xlu0 %1993
    %1995 = vrot.lane.b32.xlu0 %v483, 28
    %v1996 = vpop.permute.xlu0 %1995
    %1997 = vrot.lane.b32.xlu0 %v485, 28
    %v1998 = vpop.permute.xlu0 %1997
    %1999 = vrot.lane.b32.xlu0 %v488, 28
    %v2000 = vpop.permute.xlu0 %1999
    %2001 = vrot.lane.b32.xlu0 %v490, 28
    %v2002 = vpop.permute.xlu0 %2001
    %2003 = vrot.lane.b32.xlu0 %v493, 28
    %v2004 = vpop.permute.xlu0 %2003
    %2005 = vrot.lane.b32.xlu0 %v495, 28
    %v2006 = vpop.permute.xlu0 %2005
    %2007 = vrot.lane.b32.xlu0 %v498, 28
    %v2008 = vpop.permute.xlu0 %2007
    %2009 = vrot.lane.b32.xlu0 %v500, 28
    %v2010 = vpop.permute.xlu0 %2009
    %2011 = vrot.lane.b32.xlu0 %v503, 28
    %v2012 = vpop.permute.xlu0 %2011
    %2013 = vrot.lane.b32.xlu0 %v505, 28
    %v2014 = vpop.permute.xlu0 %2013
    %2015 = vrot.lane.b32.xlu0 %v508, 28
    %v2016 = vpop.permute.xlu0 %2015
    %2017 = vrot.lane.b32.xlu0 %v510, 28
    %v2018 = vpop.permute.xlu0 %2017
    %2019 = vrot.lane.b32.xlu0 %v513, 28
    %v2020 = vpop.permute.xlu0 %2019
    %2021 = vrot.lane.b32.xlu0 %v515, 28
    %v2022 = vpop.permute.xlu0 %2021
    %2023 = vrot.lane.b32.xlu0 %v518, 28
    %v2024 = vpop.permute.xlu0 %2023
    %2025 = vrot.lane.b32.xlu0 %v520, 28
    %v2026 = vpop.permute.xlu0 %2025
    %2027 = vrot.lane.b32.xlu0 %v523, 28
    %v2028 = vpop.permute.xlu0 %2027
    %2029 = vrot.lane.b32.xlu0 %v525, 28
    %v2030 = vpop.permute.xlu0 %2029
    %2031 = vrot.lane.b32.xlu0 %v528, 28
    %v2032 = vpop.permute.xlu0 %2031
    %2033 = vrot.lane.b32.xlu0 %v530, 28
    %v2034 = vpop.permute.xlu0 %2033
    %2035 = vrot.lane.b32.xlu0 %v533, 28
    %v2036 = vpop.permute.xlu0 %2035
    %2037 = vrot.lane.b32.xlu0 %v535, 28
    %v2038 = vpop.permute.xlu0 %2037
    %2039 = vrot.lane.b32.xlu0 %v538, 28
    %v2040 = vpop.permute.xlu0 %2039
    %2041 = vrot.lane.b32.xlu0 %v540, 28
    %v2042 = vpop.permute.xlu0 %2041
    %2043 = vrot.lane.b32.xlu0 %v543, 28
    %v2044 = vpop.permute.xlu0 %2043
    %2045 = vrot.lane.b32.xlu0 %v545, 28
    %v2046 = vpop.permute.xlu0 %2045
    %2047 = vrot.lane.b32.xlu0 %v795, 28
    %v2048 = vpop.permute.xlu0 %2047
    %2049 = vrot.lane.b32.xlu0 %v797, 28
    %v2050 = vpop.permute.xlu0 %2049
    %2051 = vrot.lane.b32.xlu0 %v821, 28
    %v2052 = vpop.permute.xlu0 %2051
    %2053 = vrot.lane.b32.xlu0 %v823, 28
    %v2054 = vpop.permute.xlu0 %2053
    %2055 = vrot.lane.b32.xlu0 %v558, 28
    %v2056 = vpop.permute.xlu0 %2055
    %2057 = vrot.lane.b32.xlu0 %v560, 28
    %v2058 = vpop.permute.xlu0 %2057
    %2059 = vrot.lane.b32.xlu0 %v563, 28
    %v2060 = vpop.permute.xlu0 %2059
    %2061 = vrot.lane.b32.xlu0 %v565, 28
    %v2062 = vpop.permute.xlu0 %2061
    %2063 = vrot.lane.b32.xlu0 %v568, 28
    %v2064 = vpop.permute.xlu0 %2063
    %2065 = vrot.lane.b32.xlu0 %v570, 28
    %v2066 = vpop.permute.xlu0 %2065
    %2067 = vrot.lane.b32.xlu0 %v573, 28
    %v2068 = vpop.permute.xlu0 %2067
    %2069 = vrot.lane.b32.xlu0 %v575, 28
    %v2070 = vpop.permute.xlu0 %2069
    %2071 = vrot.lane.b32.xlu0 %v578, 28
    %v2072 = vpop.permute.xlu0 %2071
    %2073 = vrot.lane.b32.xlu0 %v580, 28
    %v2074 = vpop.permute.xlu0 %2073
    %2075 = vrot.lane.b32.xlu0 %v583, 28
    %v2076 = vpop.permute.xlu0 %2075
    %2077 = vrot.lane.b32.xlu0 %v585, 28
    %v2078 = vpop.permute.xlu0 %2077
    %2079 = vrot.lane.b32.xlu0 %v588, 28
    %v2080 = vpop.permute.xlu0 %2079
    %2081 = vrot.lane.b32.xlu0 %v590, 28
    %v2082 = vpop.permute.xlu0 %2081
    %2083 = vrot.lane.b32.xlu0 %v593, 28
    %v2084 = vpop.permute.xlu0 %2083
    %2085 = vrot.lane.b32.xlu0 %v595, 28
    %v2086 = vpop.permute.xlu0 %2085
    %2087 = vrot.lane.b32.xlu0 %v598, 28
    %v2088 = vpop.permute.xlu0 %2087
    %2089 = vrot.lane.b32.xlu0 %v600, 28
    %v2090 = vpop.permute.xlu0 %2089
    %2091 = vrot.lane.b32.xlu0 %v603, 28
    %v2092 = vpop.permute.xlu0 %2091
    %2093 = vrot.lane.b32.xlu0 %v605, 28
    %v2094 = vpop.permute.xlu0 %2093
    %2095 = vrot.lane.b32.xlu0 %v608, 28
    %v2096 = vpop.permute.xlu0 %2095
    %2097 = vrot.lane.b32.xlu0 %v610, 28
    %v2098 = vpop.permute.xlu0 %2097
    %2099 = vrot.lane.b32.xlu0 %v613, 28
    %v2100 = vpop.permute.xlu0 %2099
    %2101 = vrot.lane.b32.xlu0 %v615, 28
    %v2102 = vpop.permute.xlu0 %2101
    %2103 = vrot.lane.b32.xlu0 %v618, 28
    %v2104 = vpop.permute.xlu0 %2103
    %2105 = vrot.lane.b32.xlu0 %v620, 28
    %v2106 = vpop.permute.xlu0 %2105
    %2107 = vrot.lane.b32.xlu0 %v623, 28
    %v2108 = vpop.permute.xlu0 %2107
    %2109 = vrot.lane.b32.xlu0 %v625, 28
    %v2110 = vpop.permute.xlu0 %2109
    %2111 = vrot.lane.b32.xlu0 %v800, 28
    %v2112 = vpop.permute.xlu0 %2111
    %2113 = vrot.lane.b32.xlu0 %v802, 28
    %v2114 = vpop.permute.xlu0 %2113
    %2115 = vrot.lane.b32.xlu0 %v826, 28
    %v2116 = vpop.permute.xlu0 %2115
    %2117 = vrot.lane.b32.xlu0 %v828, 28
    %v2118 = vpop.permute.xlu0 %2117
    %2183 = vrot.lane.b32.xlu0 %v639, 32
    %v2184 = vpop.permute.xlu0 %2183
    %2185 = vrot.lane.b32.xlu0 %v641, 32
    %v2186 = vpop.permute.xlu0 %2185
    %2187 = vrot.lane.b32.xlu0 %v644, 32
    %v2188 = vpop.permute.xlu0 %2187
    %2189 = vrot.lane.b32.xlu0 %v646, 32
    %v2190 = vpop.permute.xlu0 %2189
    %2191 = vrot.lane.b32.xlu0 %v649, 32
    %v2192 = vpop.permute.xlu0 %2191
    %2193 = vrot.lane.b32.xlu0 %v651, 32
    %v2194 = vpop.permute.xlu0 %2193
    %2195 = vrot.lane.b32.xlu0 %v654, 32
    %v2196 = vpop.permute.xlu0 %2195
    %2197 = vrot.lane.b32.xlu0 %v656, 32
    %v2198 = vpop.permute.xlu0 %2197
    %2199 = vrot.lane.b32.xlu0 %v659, 32
    %v2200 = vpop.permute.xlu0 %2199
    %2201 = vrot.lane.b32.xlu0 %v661, 32
    %v2202 = vpop.permute.xlu0 %2201
    %2203 = vrot.lane.b32.xlu0 %v664, 32
    %v2204 = vpop.permute.xlu0 %2203
    %2205 = vrot.lane.b32.xlu0 %v666, 32
    %v2206 = vpop.permute.xlu0 %2205
    %2207 = vrot.lane.b32.xlu0 %v669, 32
    %v2208 = vpop.permute.xlu0 %2207
    %2209 = vrot.lane.b32.xlu0 %v671, 32
    %v2210 = vpop.permute.xlu0 %2209
    %2211 = vrot.lane.b32.xlu0 %v674, 32
    %v2212 = vpop.permute.xlu0 %2211
    %2213 = vrot.lane.b32.xlu0 %v676, 32
    %v2214 = vpop.permute.xlu0 %2213
    %2215 = vrot.lane.b32.xlu0 %v679, 32
    %v2216 = vpop.permute.xlu0 %2215
    %2217 = vrot.lane.b32.xlu0 %v681, 32
    %v2218 = vpop.permute.xlu0 %2217
    %2219 = vrot.lane.b32.xlu0 %v684, 32
    %v2220 = vpop.permute.xlu0 %2219
    %2221 = vrot.lane.b32.xlu0 %v686, 32
    %v2222 = vpop.permute.xlu0 %2221
    %2223 = vrot.lane.b32.xlu0 %v689, 32
    %v2224 = vpop.permute.xlu0 %2223
    %2225 = vrot.lane.b32.xlu0 %v691, 32
    %v2226 = vpop.permute.xlu0 %2225
    %2227 = vrot.lane.b32.xlu0 %v694, 32
    %v2228 = vpop.permute.xlu0 %2227
    %2229 = vrot.lane.b32.xlu0 %v696, 32
    %v2230 = vpop.permute.xlu0 %2229
    %2231 = vrot.lane.b32.xlu0 %v699, 32
    %v2232 = vpop.permute.xlu0 %2231
    %2233 = vrot.lane.b32.xlu0 %v701, 32
    %v2234 = vpop.permute.xlu0 %2233
    %2235 = vrot.lane.b32.xlu0 %v704, 32
    %v2236 = vpop.permute.xlu0 %2235
    %2237 = vrot.lane.b32.xlu0 %v706, 32
    %v2238 = vpop.permute.xlu0 %2237
    %2239 = vrot.lane.b32.xlu0 %v805, 32
    %v2240 = vpop.permute.xlu0 %2239
    %2241 = vrot.lane.b32.xlu0 %v807, 32
    %v2242 = vpop.permute.xlu0 %2241
    %2243 = vrot.lane.b32.xlu0 %v831, 32
    %v2244 = vpop.permute.xlu0 %2243
    %2245 = vrot.lane.b32.xlu0 %v833, 32
    %v2246 = vpop.permute.xlu0 %2245
    %2247 = vrot.lane.b32.xlu0 %v719, 32
    %v2248 = vpop.permute.xlu0 %2247
    %2249 = vrot.lane.b32.xlu0 %v721, 32
    %v2250 = vpop.permute.xlu0 %2249
    %2251 = vrot.lane.b32.xlu0 %v724, 32
    %v2252 = vpop.permute.xlu0 %2251
    %2253 = vrot.lane.b32.xlu0 %v726, 32
    %v2254 = vpop.permute.xlu0 %2253
    %2255 = vrot.lane.b32.xlu0 %v729, 32
    %v2256 = vpop.permute.xlu0 %2255
    %2257 = vrot.lane.b32.xlu0 %v731, 32
    %v2258 = vpop.permute.xlu0 %2257
    %2259 = vrot.lane.b32.xlu0 %v734, 32
    %v2260 = vpop.permute.xlu0 %2259
    %2261 = vrot.lane.b32.xlu0 %v736, 32
    %v2262 = vpop.permute.xlu0 %2261
    %2263 = vrot.lane.b32.xlu0 %v739, 32
    %v2264 = vpop.permute.xlu0 %2263
    %2265 = vrot.lane.b32.xlu0 %v741, 32
    %v2266 = vpop.permute.xlu0 %2265
    %2267 = vrot.lane.b32.xlu0 %v744, 32
    %v2268 = vpop.permute.xlu0 %2267
    %2269 = vrot.lane.b32.xlu0 %v746, 32
    %v2270 = vpop.permute.xlu0 %2269
    %2271 = vrot.lane.b32.xlu0 %v749, 32
    %v2272 = vpop.permute.xlu0 %2271
    %2273 = vrot.lane.b32.xlu0 %v751, 32
    %v2274 = vpop.permute.xlu0 %2273
    %2275 = vrot.lane.b32.xlu0 %v754, 32
    %v2276 = vpop.permute.xlu0 %2275
    %2277 = vrot.lane.b32.xlu0 %v756, 32
    %v2278 = vpop.permute.xlu0 %2277
    %2279 = vrot.lane.b32.xlu0 %v759, 32
    %v2280 = vpop.permute.xlu0 %2279
    %2281 = vrot.lane.b32.xlu0 %v761, 32
    %v2282 = vpop.permute.xlu0 %2281
    %2283 = vrot.lane.b32.xlu0 %v764, 32
    %v2284 = vpop.permute.xlu0 %2283
    %2285 = vrot.lane.b32.xlu0 %v766, 32
    %v2286 = vpop.permute.xlu0 %2285
    %2287 = vrot.lane.b32.xlu0 %v769, 32
    %v2288 = vpop.permute.xlu0 %2287
    %2289 = vrot.lane.b32.xlu0 %v771, 32
    %v2290 = vpop.permute.xlu0 %2289
    %2291 = vrot.lane.b32.xlu0 %v774, 32
    %v2292 = vpop.permute.xlu0 %2291
    %2293 = vrot.lane.b32.xlu0 %v776, 32
    %v2294 = vpop.permute.xlu0 %2293
    %2295 = vrot.lane.b32.xlu0 %v779, 32
    %v2296 = vpop.permute.xlu0 %2295
    %2297 = vrot.lane.b32.xlu0 %v781, 32
    %v2298 = vpop.permute.xlu0 %2297
    %2299 = vrot.lane.b32.xlu0 %v784, 32
    %v2300 = vpop.permute.xlu0 %2299
    %2301 = vrot.lane.b32.xlu0 %v786, 32
    %v2302 = vpop.permute.xlu0 %2301
    %2303 = vrot.lane.b32.xlu0 %v810, 32
    %v2304 = vpop.permute.xlu0 %2303
    %2305 = vrot.lane.b32.xlu0 %v812, 32
    %v2306 = vpop.permute.xlu0 %2305
    %2307 = vrot.lane.b32.xlu0 %v836, 32
    %v2308 = vpop.permute.xlu0 %2307
    %2309 = vrot.lane.b32.xlu0 %v838, 32
    %v2310 = vpop.permute.xlu0 %2309
    %v2375 = vsel %vm86, %v261, %v840
    %v2376 = vsel %vm86, %v262, %v842
    %v2377 = vsel %vm86, %v264, %v844
    %v2378 = vsel %vm86, %v265, %v846
    %v2379 = vsel %vm86, %v267, %v848
    %v2380 = vsel %vm86, %v268, %v850
    %v2381 = vsel %vm86, %v270, %v852
    %v2382 = vsel %vm86, %v271, %v854
    %v2383 = vsel %vm86, %v273, %v856
    %v2384 = vsel %vm86, %v274, %v858
    %v2385 = vsel %vm86, %v276, %v860
    %v2386 = vsel %vm86, %v277, %v862
    %v2387 = vsel %vm86, %v279, %v864
    %v2388 = vsel %vm86, %v280, %v866
    %v2389 = vsel %vm86, %v282, %v868
    %v2390 = vsel %vm86, %v283, %v870
    %v2391 = vsel %vm86, %v285, %v872
    %v2392 = vsel %vm86, %v286, %v874
    %v2393 = vsel %vm86, %v288, %v876
    %v2394 = vsel %vm86, %v289, %v878
    %v2395 = vsel %vm86, %v291, %v880
    %v2396 = vsel %vm86, %v292, %v882
    %v2397 = vsel %vm86, %v294, %v884
    %v2398 = vsel %vm86, %v295, %v886
    %v2399 = vsel %vm86, %v297, %v888
    %v2400 = vsel %vm86, %v298, %v890
    %v2401 = vsel %vm86, %v300, %v892
    %v2402 = vsel %vm86, %v301, %v894
    %v2403 = vsel %vm86, %v303, %v896
    %v2404 = vsel %vm86, %v304, %v898
    %v2405 = vsel %vm86, %v306, %v900
    %v2406 = vsel %vm86, %v307, %v902
    %v2407 = vsel %vm86, %v315, %v904
    %v2408 = vsel %vm86, %v316, %v906
    %v2409 = vsel %vm86, %v318, %v908
    %v2410 = vsel %vm86, %v319, %v910
    %v2411 = vsel %vm86, %v321, %v912
    %v2412 = vsel %vm86, %v322, %v914
    %v2413 = vsel %vm86, %v324, %v916
    %v2414 = vsel %vm86, %v325, %v918
    %v2415 = vsel %vm86, %v327, %v920
    %v2416 = vsel %vm86, %v328, %v922
    %v2417 = vsel %vm86, %v330, %v924
    %v2418 = vsel %vm86, %v331, %v926
    %v2419 = vsel %vm86, %v333, %v928
    %v2420 = vsel %vm86, %v334, %v930
    %v2421 = vsel %vm86, %v336, %v932
    %v2422 = vsel %vm86, %v337, %v934
    %v2423 = vsel %vm86, %v339, %v936
    %v2424 = vsel %vm86, %v340, %v938
    %v2425 = vsel %vm86, %v342, %v940
    %v2426 = vsel %vm86, %v343, %v942
    %v2427 = vsel %vm86, %v345, %v944
    %v2428 = vsel %vm86, %v346, %v946
    %v2429 = vsel %vm86, %v348, %v948
    %v2430 = vsel %vm86, %v349, %v950
    %v2431 = vsel %vm86, %v351, %v952
    %v2432 = vsel %vm86, %v352, %v954
    %v2433 = vsel %vm86, %v354, %v956
    %v2434 = vsel %vm86, %v355, %v958
    %v2435 = vsel %vm86, %v357, %v960
    %v2436 = vsel %vm86, %v358, %v962
    %v2437 = vsel %vm86, %v360, %v964
    %v2438 = vsel %vm86, %v361, %v966
    %vm2439 = vcmask 64512
    %v2440 = vsel %vm2439, %v2375, %v1032
    %v2441 = vsel %vm2439, %v2376, %v1034
    %v2442 = vsel %vm2439, %v2377, %v1036
    %v2443 = vsel %vm2439, %v2378, %v1038
    %v2444 = vsel %vm2439, %v2379, %v1040
    %v2445 = vsel %vm2439, %v2380, %v1042
    %v2446 = vsel %vm2439, %v2381, %v1044
    %v2447 = vsel %vm2439, %v2382, %v1046
    %v2448 = vsel %vm2439, %v2383, %v1048
    %v2449 = vsel %vm2439, %v2384, %v1050
    %v2450 = vsel %vm2439, %v2385, %v1052
    %v2451 = vsel %vm2439, %v2386, %v1054
    %v2452 = vsel %vm2439, %v2387, %v1056
    %v2453 = vsel %vm2439, %v2388, %v1058
    %v2454 = vsel %vm2439, %v2389, %v1060
    %v2455 = vsel %vm2439, %v2390, %v1062
    %v2456 = vsel %vm2439, %v2391, %v1064
    %v2457 = vsel %vm2439, %v2392, %v1066
    %v2458 = vsel %vm2439, %v2393, %v1068
    %v2459 = vsel %vm2439, %v2394, %v1070
    %v2460 = vsel %vm2439, %v2395, %v1072
    %v2461 = vsel %vm2439, %v2396, %v1074
    %v2462 = vsel %vm2439, %v2397, %v1076
    %v2463 = vsel %vm2439, %v2398, %v1078
    %v2464 = vsel %vm2439, %v2399, %v1080
    %v2465 = vsel %vm2439, %v2400, %v1082
    %v2466 = vsel %vm2439, %v2401, %v1084
    %v2467 = vsel %vm2439, %v2402, %v1086
    %v2468 = vsel %vm2439, %v2403, %v1088
    %v2469 = vsel %vm2439, %v2404, %v1090
    %v2470 = vsel %vm2439, %v2405, %v1092
    %v2471 = vsel %vm2439, %v2406, %v1094
    %v2472 = vsel %vm2439, %v2407, %v1096
    %v2473 = vsel %vm2439, %v2408, %v1098
    %v2474 = vsel %vm2439, %v2409, %v1100
    %v2475 = vsel %vm2439, %v2410, %v1102
    %v2476 = vsel %vm2439, %v2411, %v1104
    %v2477 = vsel %vm2439, %v2412, %v1106
    %v2478 = vsel %vm2439, %v2413, %v1108
    %v2479 = vsel %vm2439, %v2414, %v1110
    %v2480 = vsel %vm2439, %v2415, %v1112
    %v2481 = vsel %vm2439, %v2416, %v1114
    %v2482 = vsel %vm2439, %v2417, %v1116
    %v2483 = vsel %vm2439, %v2418, %v1118
    %v2484 = vsel %vm2439, %v2419, %v1120
    %v2485 = vsel %vm2439, %v2420, %v1122
    %v2486 = vsel %vm2439, %v2421, %v1124
    %v2487 = vsel %vm2439, %v2422, %v1126
    %v2488 = vsel %vm2439, %v2423, %v1128
    %v2489 = vsel %vm2439, %v2424, %v1130
    %v2490 = vsel %vm2439, %v2425, %v1132
    %v2491 = vsel %vm2439, %v2426, %v1134
    %v2492 = vsel %vm2439, %v2427, %v1136
    %v2493 = vsel %vm2439, %v2428, %v1138
    %v2494 = vsel %vm2439, %v2429, %v1140
    %v2495 = vsel %vm2439, %v2430, %v1142
    %v2496 = vsel %vm2439, %v2431, %v1144
    %v2497 = vsel %vm2439, %v2432, %v1146
    %v2498 = vsel %vm2439, %v2433, %v1148
    %v2499 = vsel %vm2439, %v2434, %v1150
    %v2500 = vsel %vm2439, %v2435, %v1152
    %v2501 = vsel %vm2439, %v2436, %v1154
    %v2502 = vsel %vm2439, %v2437, %v1156
    %v2503 = vsel %vm2439, %v2438, %v1158
    %vm2504 = vcmask 97280
    %v2505 = vsel %vm2504, %v2440, %v1224
    %v2506 = vsel %vm2504, %v2441, %v1226
    %v2507 = vsel %vm2504, %v2442, %v1228
    %v2508 = vsel %vm2504, %v2443, %v1230
    %v2509 = vsel %vm2504, %v2444, %v1232
    %v2510 = vsel %vm2504, %v2445, %v1234
    %v2511 = vsel %vm2504, %v2446, %v1236
    %v2512 = vsel %vm2504, %v2447, %v1238
    %v2513 = vsel %vm2504, %v2448, %v1240
    %v2514 = vsel %vm2504, %v2449, %v1242
    %v2515 = vsel %vm2504, %v2450, %v1244
    %v2516 = vsel %vm2504, %v2451, %v1246
    %v2517 = vsel %vm2504, %v2452, %v1248
    %v2518 = vsel %vm2504, %v2453, %v1250
    %v2519 = vsel %vm2504, %v2454, %v1252
    %v2520 = vsel %vm2504, %v2455, %v1254
    %v2521 = vsel %vm2504, %v2456, %v1256
    %v2522 = vsel %vm2504, %v2457, %v1258
    %v2523 = vsel %vm2504, %v2458, %v1260
    %v2524 = vsel %vm2504, %v2459, %v1262
    %v2525 = vsel %vm2504, %v2460, %v1264
    %v2526 = vsel %vm2504, %v2461, %v1266
    %v2527 = vsel %vm2504, %v2462, %v1268
    %v2528 = vsel %vm2504, %v2463, %v1270
    %v2529 = vsel %vm2504, %v2464, %v1272
    %v2530 = vsel %vm2504, %v2465, %v1274
    %v2531 = vsel %vm2504, %v2466, %v1276
    %v2532 = vsel %vm2504, %v2467, %v1278
    %v2533 = vsel %vm2504, %v2468, %v1280
    %v2534 = vsel %vm2504, %v2469, %v1282
    %v2535 = vsel %vm2504, %v2470, %v1284
    %v2536 = vsel %vm2504, %v2471, %v1286
    %v2537 = vsel %vm2504, %v2472, %v1288
    %v2538 = vsel %vm2504, %v2473, %v1290
    %v2539 = vsel %vm2504, %v2474, %v1292
    %v2540 = vsel %vm2504, %v2475, %v1294
    %v2541 = vsel %vm2504, %v2476, %v1296
    %v2542 = vsel %vm2504, %v2477, %v1298
    %v2543 = vsel %vm2504, %v2478, %v1300
    %v2544 = vsel %vm2504, %v2479, %v1302
    %v2545 = vsel %vm2504, %v2480, %v1304
    %v2546 = vsel %vm2504, %v2481, %v1306
    %v2547 = vsel %vm2504, %v2482, %v1308
    %v2548 = vsel %vm2504, %v2483, %v1310
    %v2549 = vsel %vm2504, %v2484, %v1312
    %v2550 = vsel %vm2504, %v2485, %v1314
    %v2551 = vsel %vm2504, %v2486, %v1316
    %v2552 = vsel %vm2504, %v2487, %v1318
    %v2553 = vsel %vm2504, %v2488, %v1320
    %v2554 = vsel %vm2504, %v2489, %v1322
    %v2555 = vsel %vm2504, %v2490, %v1324
    %v2556 = vsel %vm2504, %v2491, %v1326
    %v2557 = vsel %vm2504, %v2492, %v1328
    %v2558 = vsel %vm2504, %v2493, %v1330
    %v2559 = vsel %vm2504, %v2494, %v1332
    %v2560 = vsel %vm2504, %v2495, %v1334
    %v2561 = vsel %vm2504, %v2496, %v1336
    %v2562 = vsel %vm2504, %v2497, %v1338
    %v2563 = vsel %vm2504, %v2498, %v1340
    %v2564 = vsel %vm2504, %v2499, %v1342
    %v2565 = vsel %vm2504, %v2500, %v1344
    %v2566 = vsel %vm2504, %v2501, %v1346
    %v2567 = vsel %vm2504, %v2502, %v1348
    %v2568 = vsel %vm2504, %v2503, %v1350
    %vm2569 = vcmask 130048
    %v2570 = vsel %vm2569, %v2505, %v1416
    %v2571 = vsel %vm2569, %v2506, %v1418
    %v2572 = vsel %vm2569, %v2507, %v1420
    %v2573 = vsel %vm2569, %v2508, %v1422
    %v2574 = vsel %vm2569, %v2509, %v1424
    %v2575 = vsel %vm2569, %v2510, %v1426
    %v2576 = vsel %vm2569, %v2511, %v1428
    %v2577 = vsel %vm2569, %v2512, %v1430
    %v2578 = vsel %vm2569, %v2513, %v1432
    %v2579 = vsel %vm2569, %v2514, %v1434
    %v2580 = vsel %vm2569, %v2515, %v1436
    %v2581 = vsel %vm2569, %v2516, %v1438
    %v2582 = vsel %vm2569, %v2517, %v1440
    %v2583 = vsel %vm2569, %v2518, %v1442
    %v2584 = vsel %vm2569, %v2519, %v1444
    %v2585 = vsel %vm2569, %v2520, %v1446
    %v2586 = vsel %vm2569, %v2521, %v1448
    %v2587 = vsel %vm2569, %v2522, %v1450
    %v2588 = vsel %vm2569, %v2523, %v1452
    %v2589 = vsel %vm2569, %v2524, %v1454
    %v2590 = vsel %vm2569, %v2525, %v1456
    %v2591 = vsel %vm2569, %v2526, %v1458
    %v2592 = vsel %vm2569, %v2527, %v1460
    %v2593 = vsel %vm2569, %v2528, %v1462
    %v2594 = vsel %vm2569, %v2529, %v1464
    %v2595 = vsel %vm2569, %v2530, %v1466
    %v2596 = vsel %vm2569, %v2531, %v1468
    %v2597 = vsel %vm2569, %v2532, %v1470
    %v2598 = vsel %vm2569, %v2533, %v1472
    %v2599 = vsel %vm2569, %v2534, %v1474
    %v2600 = vsel %vm2569, %v2535, %v1476
    %v2601 = vsel %vm2569, %v2536, %v1478
    %v2602 = vsel %vm2569, %v2537, %v1480
    %v2603 = vsel %vm2569, %v2538, %v1482
    %v2604 = vsel %vm2569, %v2539, %v1484
    %v2605 = vsel %vm2569, %v2540, %v1486
    %v2606 = vsel %vm2569, %v2541, %v1488
    %v2607 = vsel %vm2569, %v2542, %v1490
    %v2608 = vsel %vm2569, %v2543, %v1492
    %v2609 = vsel %vm2569, %v2544, %v1494
    %v2610 = vsel %vm2569, %v2545, %v1496
    %v2611 = vsel %vm2569, %v2546, %v1498
    %v2612 = vsel %vm2569, %v2547, %v1500
    %v2613 = vsel %vm2569, %v2548, %v1502
    %v2614 = vsel %vm2569, %v2549, %v1504
    %v2615 = vsel %vm2569, %v2550, %v1506
    %v2616 = vsel %vm2569, %v2551, %v1508
    %v2617 = vsel %vm2569, %v2552, %v1510
    %v2618 = vsel %vm2569, %v2553, %v1512
    %v2619 = vsel %vm2569, %v2554, %v1514
    %v2620 = vsel %vm2569, %v2555, %v1516
    %v2621 = vsel %vm2569, %v2556, %v1518
    %v2622 = vsel %vm2569, %v2557, %v1520
    %v2623 = vsel %vm2569, %v2558, %v1522
    %v2624 = vsel %vm2569, %v2559, %v1524
    %v2625 = vsel %vm2569, %v2560, %v1526
    %v2626 = vsel %vm2569, %v2561, %v1528
    %v2627 = vsel %vm2569, %v2562, %v1530
    %v2628 = vsel %vm2569, %v2563, %v1532
    %v2629 = vsel %vm2569, %v2564, %v1534
    %v2630 = vsel %vm2569, %v2565, %v1536
    %v2631 = vsel %vm2569, %v2566, %v1538
    %v2632 = vsel %vm2569, %v2567, %v1540
    %v2633 = vsel %vm2569, %v2568, %v1542
    %vm2634 = vcmask 162816
    %v2635 = vsel %vm2634, %v2570, %v1608
    %v2636 = vsel %vm2634, %v2571, %v1610
    %v2637 = vsel %vm2634, %v2572, %v1612
    %v2638 = vsel %vm2634, %v2573, %v1614
    %v2639 = vsel %vm2634, %v2574, %v1616
    %v2640 = vsel %vm2634, %v2575, %v1618
    %v2641 = vsel %vm2634, %v2576, %v1620
    %v2642 = vsel %vm2634, %v2577, %v1622
    %v2643 = vsel %vm2634, %v2578, %v1624
    %v2644 = vsel %vm2634, %v2579, %v1626
    %v2645 = vsel %vm2634, %v2580, %v1628
    %v2646 = vsel %vm2634, %v2581, %v1630
    %v2647 = vsel %vm2634, %v2582, %v1632
    %v2648 = vsel %vm2634, %v2583, %v1634
    %v2649 = vsel %vm2634, %v2584, %v1636
    %v2650 = vsel %vm2634, %v2585, %v1638
    %v2651 = vsel %vm2634, %v2586, %v1640
    %v2652 = vsel %vm2634, %v2587, %v1642
    %v2653 = vsel %vm2634, %v2588, %v1644
    %v2654 = vsel %vm2634, %v2589, %v1646
    %v2655 = vsel %vm2634, %v2590, %v1648
    %v2656 = vsel %vm2634, %v2591, %v1650
    %v2657 = vsel %vm2634, %v2592, %v1652
    %v2658 = vsel %vm2634, %v2593, %v1654
    %v2659 = vsel %vm2634, %v2594, %v1656
    %v2660 = vsel %vm2634, %v2595, %v1658
    %v2661 = vsel %vm2634, %v2596, %v1660
    %v2662 = vsel %vm2634, %v2597, %v1662
    %v2663 = vsel %vm2634, %v2598, %v1664
    %v2664 = vsel %vm2634, %v2599, %v1666
    %v2665 = vsel %vm2634, %v2600, %v1668
    %v2666 = vsel %vm2634, %v2601, %v1670
    %v2667 = vsel %vm2634, %v2602, %v1672
    %v2668 = vsel %vm2634, %v2603, %v1674
    %v2669 = vsel %vm2634, %v2604, %v1676
    %v2670 = vsel %vm2634, %v2605, %v1678
    %v2671 = vsel %vm2634, %v2606, %v1680
    %v2672 = vsel %vm2634, %v2607, %v1682
    %v2673 = vsel %vm2634, %v2608, %v1684
    %v2674 = vsel %vm2634, %v2609, %v1686
    %v2675 = vsel %vm2634, %v2610, %v1688
    %v2676 = vsel %vm2634, %v2611, %v1690
    %v2677 = vsel %vm2634, %v2612, %v1692
    %v2678 = vsel %vm2634, %v2613, %v1694
    %v2679 = vsel %vm2634, %v2614, %v1696
    %v2680 = vsel %vm2634, %v2615, %v1698
    %v2681 = vsel %vm2634, %v2616, %v1700
    %v2682 = vsel %vm2634, %v2617, %v1702
    %v2683 = vsel %vm2634, %v2618, %v1704
    %v2684 = vsel %vm2634, %v2619, %v1706
    %v2685 = vsel %vm2634, %v2620, %v1708
    %v2686 = vsel %vm2634, %v2621, %v1710
    %v2687 = vsel %vm2634, %v2622, %v1712
    %v2688 = vsel %vm2634, %v2623, %v1714
    %v2689 = vsel %vm2634, %v2624, %v1716
    %v2690 = vsel %vm2634, %v2625, %v1718
    %v2691 = vsel %vm2634, %v2626, %v1720
    %v2692 = vsel %vm2634, %v2627, %v1722
    %v2693 = vsel %vm2634, %v2628, %v1724
    %v2694 = vsel %vm2634, %v2629, %v1726
    %v2695 = vsel %vm2634, %v2630, %v1728
    %v2696 = vsel %vm2634, %v2631, %v1730
    %v2697 = vsel %vm2634, %v2632, %v1732
    %v2698 = vsel %vm2634, %v2633, %v1734
    %vm2699 = vcmask 195584
    %v2700 = vsel %vm2699, %v2635, %v1800
    %v2701 = vsel %vm2699, %v2636, %v1802
    %v2702 = vsel %vm2699, %v2637, %v1804
    %v2703 = vsel %vm2699, %v2638, %v1806
    %v2704 = vsel %vm2699, %v2639, %v1808
    %v2705 = vsel %vm2699, %v2640, %v1810
    %v2706 = vsel %vm2699, %v2641, %v1812
    %v2707 = vsel %vm2699, %v2642, %v1814
    %v2708 = vsel %vm2699, %v2643, %v1816
    %v2709 = vsel %vm2699, %v2644, %v1818
    %v2710 = vsel %vm2699, %v2645, %v1820
    %v2711 = vsel %vm2699, %v2646, %v1822
    %v2712 = vsel %vm2699, %v2647, %v1824
    %v2713 = vsel %vm2699, %v2648, %v1826
    %v2714 = vsel %vm2699, %v2649, %v1828
    %v2715 = vsel %vm2699, %v2650, %v1830
    %v2716 = vsel %vm2699, %v2651, %v1832
    %v2717 = vsel %vm2699, %v2652, %v1834
    %v2718 = vsel %vm2699, %v2653, %v1836
    %v2719 = vsel %vm2699, %v2654, %v1838
    %v2720 = vsel %vm2699, %v2655, %v1840
    %v2721 = vsel %vm2699, %v2656, %v1842
    %v2722 = vsel %vm2699, %v2657, %v1844
    %v2723 = vsel %vm2699, %v2658, %v1846
    %v2724 = vsel %vm2699, %v2659, %v1848
    %v2725 = vsel %vm2699, %v2660, %v1850
    %v2726 = vsel %vm2699, %v2661, %v1852
    %v2727 = vsel %vm2699, %v2662, %v1854
    %v2728 = vsel %vm2699, %v2663, %v1856
    %v2729 = vsel %vm2699, %v2664, %v1858
    %v2730 = vsel %vm2699, %v2665, %v1860
    %v2731 = vsel %vm2699, %v2666, %v1862
    %v2732 = vsel %vm2699, %v2667, %v1864
    %v2733 = vsel %vm2699, %v2668, %v1866
    %v2734 = vsel %vm2699, %v2669, %v1868
    %v2735 = vsel %vm2699, %v2670, %v1870
    %v2736 = vsel %vm2699, %v2671, %v1872
    %v2737 = vsel %vm2699, %v2672, %v1874
    %v2738 = vsel %vm2699, %v2673, %v1876
    %v2739 = vsel %vm2699, %v2674, %v1878
    %v2740 = vsel %vm2699, %v2675, %v1880
    %v2741 = vsel %vm2699, %v2676, %v1882
    %v2742 = vsel %vm2699, %v2677, %v1884
    %v2743 = vsel %vm2699, %v2678, %v1886
    %v2744 = vsel %vm2699, %v2679, %v1888
    %v2745 = vsel %vm2699, %v2680, %v1890
    %v2746 = vsel %vm2699, %v2681, %v1892
    %v2747 = vsel %vm2699, %v2682, %v1894
    %v2748 = vsel %vm2699, %v2683, %v1896
    %v2749 = vsel %vm2699, %v2684, %v1898
    %v2750 = vsel %vm2699, %v2685, %v1900
    %v2751 = vsel %vm2699, %v2686, %v1902
    %v2752 = vsel %vm2699, %v2687, %v1904
    %v2753 = vsel %vm2699, %v2688, %v1906
    %v2754 = vsel %vm2699, %v2689, %v1908
    %v2755 = vsel %vm2699, %v2690, %v1910
    %v2756 = vsel %vm2699, %v2691, %v1912
    %v2757 = vsel %vm2699, %v2692, %v1914
    %v2758 = vsel %vm2699, %v2693, %v1916
    %v2759 = vsel %vm2699, %v2694, %v1918
    %v2760 = vsel %vm2699, %v2695, %v1920
    %v2761 = vsel %vm2699, %v2696, %v1922
    %v2762 = vsel %vm2699, %v2697, %v1924
    %v2763 = vsel %vm2699, %v2698, %v1926
    %vm2764 = vcmask 228352
    %v2765 = vsel %vm2764, %v2700, %v1992
    %v2766 = vsel %vm2764, %v2701, %v1994
    %v2767 = vsel %vm2764, %v2702, %v1996
    %v2768 = vsel %vm2764, %v2703, %v1998
    %v2769 = vsel %vm2764, %v2704, %v2000
    %v2770 = vsel %vm2764, %v2705, %v2002
    %v2771 = vsel %vm2764, %v2706, %v2004
    %v2772 = vsel %vm2764, %v2707, %v2006
    %v2773 = vsel %vm2764, %v2708, %v2008
    %v2774 = vsel %vm2764, %v2709, %v2010
    %v2775 = vsel %vm2764, %v2710, %v2012
    %v2776 = vsel %vm2764, %v2711, %v2014
    %v2777 = vsel %vm2764, %v2712, %v2016
    %v2778 = vsel %vm2764, %v2713, %v2018
    %v2779 = vsel %vm2764, %v2714, %v2020
    %v2780 = vsel %vm2764, %v2715, %v2022
    %v2781 = vsel %vm2764, %v2716, %v2024
    %v2782 = vsel %vm2764, %v2717, %v2026
    %v2783 = vsel %vm2764, %v2718, %v2028
    %v2784 = vsel %vm2764, %v2719, %v2030
    %v2785 = vsel %vm2764, %v2720, %v2032
    %v2786 = vsel %vm2764, %v2721, %v2034
    %v2787 = vsel %vm2764, %v2722, %v2036
    %v2788 = vsel %vm2764, %v2723, %v2038
    %v2789 = vsel %vm2764, %v2724, %v2040
    %v2790 = vsel %vm2764, %v2725, %v2042
    %v2791 = vsel %vm2764, %v2726, %v2044
    %v2792 = vsel %vm2764, %v2727, %v2046
    %v2793 = vsel %vm2764, %v2728, %v2048
    %v2794 = vsel %vm2764, %v2729, %v2050
    %v2795 = vsel %vm2764, %v2730, %v2052
    %v2796 = vsel %vm2764, %v2731, %v2054
    %v2797 = vsel %vm2764, %v2732, %v2056
    %v2798 = vsel %vm2764, %v2733, %v2058
    %v2799 = vsel %vm2764, %v2734, %v2060
    %v2800 = vsel %vm2764, %v2735, %v2062
    %v2801 = vsel %vm2764, %v2736, %v2064
    %v2802 = vsel %vm2764, %v2737, %v2066
    %v2803 = vsel %vm2764, %v2738, %v2068
    %v2804 = vsel %vm2764, %v2739, %v2070
    %v2805 = vsel %vm2764, %v2740, %v2072
    %v2806 = vsel %vm2764, %v2741, %v2074
    %v2807 = vsel %vm2764, %v2742, %v2076
    %v2808 = vsel %vm2764, %v2743, %v2078
    %v2809 = vsel %vm2764, %v2744, %v2080
    %v2810 = vsel %vm2764, %v2745, %v2082
    %v2811 = vsel %vm2764, %v2746, %v2084
    %v2812 = vsel %vm2764, %v2747, %v2086
    %v2813 = vsel %vm2764, %v2748, %v2088
    %v2814 = vsel %vm2764, %v2749, %v2090
    %v2815 = vsel %vm2764, %v2750, %v2092
    %v2816 = vsel %vm2764, %v2751, %v2094
    %v2817 = vsel %vm2764, %v2752, %v2096
    %v2818 = vsel %vm2764, %v2753, %v2098
    %v2819 = vsel %vm2764, %v2754, %v2100
    %v2820 = vsel %vm2764, %v2755, %v2102
    %v2821 = vsel %vm2764, %v2756, %v2104
    %v2822 = vsel %vm2764, %v2757, %v2106
    %v2823 = vsel %vm2764, %v2758, %v2108
    %v2824 = vsel %vm2764, %v2759, %v2110
    %v2825 = vsel %vm2764, %v2760, %v2112
    %v2826 = vsel %vm2764, %v2761, %v2114
    %v2827 = vsel %vm2764, %v2762, %v2116
    %v2828 = vsel %vm2764, %v2763, %v2118
    %vm2829 = vcmask 261120
    %v2830 = vsel %vm2829, %v2765, %v2184
    %v2831 = vsel %vm2829, %v2766, %v2186
    %v2832 = vsel %vm2829, %v2767, %v2188
    %v2833 = vsel %vm2829, %v2768, %v2190
    %v2834 = vsel %vm2829, %v2769, %v2192
    %v2835 = vsel %vm2829, %v2770, %v2194
    %v2836 = vsel %vm2829, %v2771, %v2196
    %v2837 = vsel %vm2829, %v2772, %v2198
    %v2838 = vsel %vm2829, %v2773, %v2200
    %v2839 = vsel %vm2829, %v2774, %v2202
    %v2840 = vsel %vm2829, %v2775, %v2204
    %v2841 = vsel %vm2829, %v2776, %v2206
    %v2842 = vsel %vm2829, %v2777, %v2208
    %v2843 = vsel %vm2829, %v2778, %v2210
    %v2844 = vsel %vm2829, %v2779, %v2212
    %v2845 = vsel %vm2829, %v2780, %v2214
    %v2846 = vsel %vm2829, %v2781, %v2216
    %v2847 = vsel %vm2829, %v2782, %v2218
    %v2848 = vsel %vm2829, %v2783, %v2220
    %v2849 = vsel %vm2829, %v2784, %v2222
    %v2850 = vsel %vm2829, %v2785, %v2224
    %v2851 = vsel %vm2829, %v2786, %v2226
    %v2852 = vsel %vm2829, %v2787, %v2228
    %v2853 = vsel %vm2829, %v2788, %v2230
    %v2854 = vsel %vm2829, %v2789, %v2232
    %v2855 = vsel %vm2829, %v2790, %v2234
    %v2856 = vsel %vm2829, %v2791, %v2236
    %v2857 = vsel %vm2829, %v2792, %v2238
    %v2858 = vsel %vm2829, %v2793, %v2240
    %v2859 = vsel %vm2829, %v2794, %v2242
    %v2860 = vsel %vm2829, %v2795, %v2244
    %v2861 = vsel %vm2829, %v2796, %v2246
    %v2862 = vsel %vm2829, %v2797, %v2248
    %v2863 = vsel %vm2829, %v2798, %v2250
    %v2864 = vsel %vm2829, %v2799, %v2252
    %v2865 = vsel %vm2829, %v2800, %v2254
    %v2866 = vsel %vm2829, %v2801, %v2256
    %v2867 = vsel %vm2829, %v2802, %v2258
    %v2868 = vsel %vm2829, %v2803, %v2260
    %v2869 = vsel %vm2829, %v2804, %v2262
    %v2870 = vsel %vm2829, %v2805, %v2264
    %v2871 = vsel %vm2829, %v2806, %v2266
    %v2872 = vsel %vm2829, %v2807, %v2268
    %v2873 = vsel %vm2829, %v2808, %v2270
    %v2874 = vsel %vm2829, %v2809, %v2272
    %v2875 = vsel %vm2829, %v2810, %v2274
    %v2876 = vsel %vm2829, %v2811, %v2276
    %v2877 = vsel %vm2829, %v2812, %v2278
    %v2878 = vsel %vm2829, %v2813, %v2280
    %v2879 = vsel %vm2829, %v2814, %v2282
    %v2880 = vsel %vm2829, %v2815, %v2284
    %v2881 = vsel %vm2829, %v2816, %v2286
    %v2882 = vsel %vm2829, %v2817, %v2288
    %v2883 = vsel %vm2829, %v2818, %v2290
    %v2884 = vsel %vm2829, %v2819, %v2292
    %v2885 = vsel %vm2829, %v2820, %v2294
    %v2886 = vsel %vm2829, %v2821, %v2296
    %v2887 = vsel %vm2829, %v2822, %v2298
    %v2888 = vsel %vm2829, %v2823, %v2300
    %v2889 = vsel %vm2829, %v2824, %v2302
    %v2890 = vsel %vm2829, %v2825, %v2304
    %v2891 = vsel %vm2829, %v2826, %v2306
    %v2892 = vsel %vm2829, %v2827, %v2308
    %v2893 = vsel %vm2829, %v2828, %v2310
    %v2894 = vld [vmem:[%s1] sm:$0xff]
    %v2895 = vld [vmem:[%s1 + $0x8] sm:$0xff]
    %v2896 = vld [vmem:[%s1 + $0x10] sm:$0xff]
    %v2897 = vld [vmem:[%s1 + $0x18] sm:$0xff]
    %v2898 = vld [vmem:[%s1 + $0x20] sm:$0xf]
    %vm2899 = vcmask 293888
    %v2901 = vsel %vm2899, %v2830, 0
    %v2904 = vsel %vm2899, %v2831, 0
    %v2907 = vsel %vm2899, %v2832, 0
    %v2910 = vsel %vm2899, %v2833, 0
    %v2913 = vsel %vm2899, %v2834, 0
    %v2916 = vsel %vm2899, %v2835, 0
    %v2919 = vsel %vm2899, %v2836, 0
    %v2922 = vsel %vm2899, %v2837, 0
    %v2925 = vsel %vm2899, %v2838, 0
    %v2928 = vsel %vm2899, %v2839, 0
    %v2931 = vsel %vm2899, %v2840, 0
    %v2934 = vsel %vm2899, %v2841, 0
    %v2937 = vsel %vm2899, %v2842, 0
    %v2940 = vsel %vm2899, %v2843, 0
    %v2943 = vsel %vm2899, %v2844, 0
    %v2946 = vsel %vm2899, %v2845, 0
    %v2949 = vsel %vm2899, %v2846, 0
    %v2952 = vsel %vm2899, %v2847, 0
    %v2955 = vsel %vm2899, %v2848, 0
    %v2958 = vsel %vm2899, %v2849, 0
    %v2961 = vsel %vm2899, %v2850, 0
    %v2964 = vsel %vm2899, %v2851, 0
    %v2967 = vsel %vm2899, %v2852, 0
    %v2970 = vsel %vm2899, %v2853, 0
    %v2973 = vsel %vm2899, %v2854, 0
    %v2976 = vsel %vm2899, %v2855, 0
    %v2979 = vsel %vm2899, %v2856, 0
    %v2982 = vsel %vm2899, %v2857, 0
    %v2985 = vsel %vm2899, %v2858, 0
    %v2988 = vsel %vm2899, %v2859, 0
    %v2991 = vsel %vm2899, %v2860, 0
    %v2994 = vsel %vm2899, %v2861, 0
    %v2997 = vsel %vm2899, %v2862, 0
    %v3000 = vsel %vm2899, %v2863, 0
    %v3003 = vsel %vm2899, %v2864, 0
    %v3006 = vsel %vm2899, %v2865, 0
    %v3009 = vsel %vm2899, %v2866, 0
    %v3012 = vsel %vm2899, %v2867, 0
    %v3015 = vsel %vm2899, %v2868, 0
    %v3018 = vsel %vm2899, %v2869, 0
    %v3021 = vsel %vm2899, %v2870, 0
    %v3024 = vsel %vm2899, %v2871, 0
    %v3027 = vsel %vm2899, %v2872, 0
    %v3030 = vsel %vm2899, %v2873, 0
    %v3033 = vsel %vm2899, %v2874, 0
    %v3036 = vsel %vm2899, %v2875, 0
    %v3039 = vsel %vm2899, %v2876, 0
    %v3042 = vsel %vm2899, %v2877, 0
    %v3045 = vsel %vm2899, %v2878, 0
    %v3048 = vsel %vm2899, %v2879, 0
    %v3051 = vsel %vm2899, %v2880, 0
    %v3054 = vsel %vm2899, %v2881, 0
    %v3057 = vsel %vm2899, %v2882, 0
    %v3060 = vsel %vm2899, %v2883, 0
    %v3063 = vsel %vm2899, %v2884, 0
    %v3066 = vsel %vm2899, %v2885, 0
    %v3069 = vsel %vm2899, %v2886, 0
    %v3072 = vsel %vm2899, %v2887, 0
    %v3075 = vsel %vm2899, %v2888, 0
    %v3078 = vsel %vm2899, %v2889, 0
    %v3081 = vsel %vm2899, %v2890, 0
    %v3084 = vsel %vm2899, %v2891, 0
    %v3087 = vsel %vm2899, %v2892, 0
    %v3090 = vsel %vm2899, %v2893, 0
    %vm3092 = vcmask 1043456
    %v3094 = vsel %vm3092, %v2898, 0
    %3096 = vmatprep.subr.mxu0 0.0
    %3097 = vmatpush1.msra.mxu0 %v2894
    %3098 = vmatprep.subr.mxu0 0.0
    %3099 = vmatpush1.msra.mxu0 %v2895
    %3100 = vmatprep.subr.mxu0 0.0
    %3101 = vmatpush1.msra.mxu0 %v2896
    %3102 = vmatprep.subr.mxu0 0.0
    %3103 = vmatpush1.msra.mxu0 %v2897
    %3104 = vmatprep.subr.mxu0 0.0
    %3105 = vmatpush1.msra.mxu0 %v3094
    %3106 = vmatprep.subr.mxu0 0.0
    %3107 = vmatpush1.msra.mxu0 0.0
    %3108 = vmatprep.subr.mxu0 0.0
    %3109 = vmatpush1.msra.mxu0 0.0
    %3110 = vmatprep.subr.mxu0 0.0
    %3111 = vmatpush1.msra.mxu0 0.0
    %3112 = vmatprep.subr.mxu0 0.0
    %3113 = vmatpush1.msra.mxu0 0.0
    %3114 = vmatprep.subr.mxu0 0.0
    %3115 = vmatpush1.msra.mxu0 0.0
    %3116 = vmatprep.subr.mxu0 0.0
    %3117 = vmatpush1.msra.mxu0 0.0
    %3118 = vmatprep.subr.mxu0 0.0
    %3119 = vmatpush1.msra.mxu0 0.0
    %3120 = vmatprep.subr.mxu0 0.0
    %3121 = vmatpush1.msra.mxu0 0.0
    %3122 = vmatprep.subr.mxu0 0.0
    %3123 = vmatpush1.msra.mxu0 0.0
    %3124 = vmatprep.subr.mxu0 0.0
    %3125 = vmatpush1.msra.mxu0 0.0
    %3126 = vmatprep.subr.mxu0 0.0
    %3127 = vmatpush1.msra.mxu0 0.0
    %3128 = vmatprep.subr.mxu0 0.0
    %3129 = vmatpush1.msra.mxu0 0.0
    %3130 = vmatprep.subr.mxu0 0.0
    %3131 = vmatpush1.msra.mxu0 0.0
    %3132 = vmatprep.subr.mxu0 0.0
    %3133 = vmatpush1.msra.mxu0 0.0
    %3134 = vmatprep.subr.mxu0 0.0
    %3135 = vmatpush1.msra.mxu0 0.0
    %3136 = vmatprep.subr.mxu0 0.0
    %3137 = vmatpush1.msra.mxu0 0.0
    %3138 = vmatprep.subr.mxu0 0.0
    %3139 = vmatpush1.msra.mxu0 0.0
    %3140 = vmatprep.subr.mxu0 0.0
    %3141 = vmatpush1.msra.mxu0 0.0
    %3142 = vmatprep.subr.mxu0 0.0
    %3143 = vmatpush1.msra.mxu0 0.0
    %3144 = vmatprep.subr.mxu0 0.0
    %3145 = vmatpush1.msra.mxu0 0.0
    %3146 = vmatprep.subr.mxu0 0.0
    %3147 = vmatpush1.msra.mxu0 0.0
    %3148 = vmatprep.subr.mxu0 0.0
    %3149 = vmatpush1.msra.mxu0 0.0
    %3150 = vmatprep.subr.mxu0 0.0
    %3151 = vmatpush1.msra.mxu0 0.0
    %3152 = vmatprep.subr.mxu0 0.0
    %3153 = vmatpush1.msra.mxu0 0.0
    %3154 = vmatprep.subr.mxu0 0.0
    %3155 = vmatpush1.msra.mxu0 0.0
    %3156 = vmatprep.subr.mxu0 0.0
    %3157 = vmatpush1.msra.mxu0 0.0
    %3158 = vmatprep.subr.mxu0 0.0
    %3159 = vmatpush1.msra.mxu0 0.0
    %3160 = vmatprep.mubr.f32.mxu0 0.0
    %3161 = vmatmul.mubr.f32.gmra.mrb[0].mxu0 %v2901
    %v3162 = vpop.f32.mrb[0].mxu0
    %v3163 = vadd.f32 0.0, %v3162
    %v3164 = vpop.f32.mrb[0].mxu0
    %3165 = vmatprep.mubr.f32.mxu0 0.0
    %3166 = vmatmul.mubr.f32.gmra.mrb[0].mxu0 %v2904
    %v3167 = vpop.f32.mrb[0].mxu0
    %v3168 = vadd.f32 0.0, %v3167
    %v3169 = vpop.f32.mrb[0].mxu0
    %3170 = vmatprep.mubr.f32.mxu0 0.0
    %3171 = vmatmul.mubr.f32.gmra.mrb[0].mxu0 %v2907
    %v3172 = vpop.f32.mrb[0].mxu0
    %v3173 = vadd.f32 0.0, %v3172
    %v3174 = vpop.f32.mrb[0].mxu0
    %3175 = vmatprep.mubr.f32.mxu0 0.0
    %3176 = vmatmul.mubr.f32.gmra.mrb[0].mxu0 %v2910
    %v3177 = vpop.f32.mrb[0].mxu0
    %v3178 = vadd.f32 0.0, %v3177
    %v3179 = vpop.f32.mrb[0].mxu0
    %3180 = vmatprep.mubr.f32.mxu0 0.0
    %3181 = vmatmul.mubr.f32.gmra.mrb[0].mxu0 %v2913
    %v3182 = vpop.f32.mrb[0].mxu0
    %v3183 = vadd.f32 0.0, %v3182
    %v3184 = vpop.f32.mrb[0].mxu0
    %3185 = vmatprep.mubr.f32.mxu0 0.0
    %3186 = vmatmul.mubr.f32.gmra.mrb[0].mxu0 %v2916
    %v3187 = vpop.f32.mrb[0].mxu0
    %v3188 = vadd.f32 0.0, %v3187
    %v3189 = vpop.f32.mrb[0].mxu0
    %3190 = vmatprep.mubr.f32.mxu0 0.0
    %3191 = vmatmul.mubr.f32.gmra.mrb[0].mxu0 %v2919
    %v3192 = vpop.f32.mrb[0].mxu0
    %v3193 = vadd.f32 0.0, %v3192
    %v3194 = vpop.f32.mrb[0].mxu0
    %3195 = vmatprep.mubr.f32.mxu0 0.0
    %3196 = vmatmul.mubr.f32.gmra.mrb[0].mxu0 %v2922
    %v3197 = vpop.f32.mrb[0].mxu0
    %v3198 = vadd.f32 0.0, %v3197
    %v3199 = vpop.f32.mrb[0].mxu0
    %3200 = vmatprep.mubr.f32.mxu0 0.0
    %3201 = vmatmul.mubr.f32.gmra.mrb[0].mxu0 %v2925
    %v3202 = vpop.f32.mrb[0].mxu0
    %v3203 = vadd.f32 0.0, %v3202
    %v3204 = vpop.f32.mrb[0].mxu0
    %3205 = vmatprep.mubr.f32.mxu0 0.0
    %3206 = vmatmul.mubr.f32.gmra.mrb[0].mxu0 %v2928
    %v3207 = vpop.f32.mrb[0].mxu0
    %v3208 = vadd.f32 0.0, %v3207
    %v3209 = vpop.f32.mrb[0].mxu0
    %3210 = vmatprep.mubr.f32.mxu0 0.0
    %3211 = vmatmul.mubr.f32.gmra.mrb[0].mxu0 %v2931
    %v3212 = vpop.f32.mrb[0].mxu0
    %v3213 = vadd.f32 0.0, %v3212
    %v3214 = vpop.f32.mrb[0].mxu0
    %3215 = vmatprep.mubr.f32.mxu0 0.0
    %3216 = vmatmul.mubr.f32.gmra.mrb[0].mxu0 %v2934
    %v3217 = vpop.f32.mrb[0].mxu0
    %v3218 = vadd.f32 0.0, %v3217
    %v3219 = vpop.f32.mrb[0].mxu0
    %3220 = vmatprep.mubr.f32.mxu0 0.0
    %3221 = vmatmul.mubr.f32.gmra.mrb[0].mxu0 %v2937
    %v3222 = vpop.f32.mrb[0].mxu0
    %v3223 = vadd.f32 0.0, %v3222
    %v3224 = vpop.f32.mrb[0].mxu0
    %3225 = vmatprep.mubr.f32.mxu0 0.0
    %3226 = vmatmul.mubr.f32.gmra.mrb[0].mxu0 %v2940
    %v3227 = vpop.f32.mrb[0].mxu0
    %v3228 = vadd.f32 0.0, %v3227
    %v3229 = vpop.f32.mrb[0].mxu0
    %3230 = vmatprep.mubr.f32.mxu0 0.0
    %3231 = vmatmul.mubr.f32.gmra.mrb[0].mxu0 %v2943
    %v3232 = vpop.f32.mrb[0].mxu0
    %v3233 = vadd.f32 0.0, %v3232
    %v3234 = vpop.f32.mrb[0].mxu0
    %3235 = vmatprep.mubr.f32.mxu0 0.0
    %3236 = vmatmul.mubr.f32.gmra.mrb[0].mxu0 %v2946
    %v3237 = vpop.f32.mrb[0].mxu0
    %v3238 = vadd.f32 0.0, %v3237
    %v3239 = vpop.f32.mrb[0].mxu0
    %3240 = vmatprep.mubr.f32.mxu0 0.0
    %3241 = vmatmul.mubr.f32.gmra.mrb[0].mxu0 %v2949
    %v3242 = vpop.f32.mrb[0].mxu0
    %v3243 = vadd.f32 0.0, %v3242
    %v3244 = vpop.f32.mrb[0].mxu0
    %3245 = vmatprep.mubr.f32.mxu0 0.0
    %3246 = vmatmul.mubr.f32.gmra.mrb[0].mxu0 %v2952
    %v3247 = vpop.f32.mrb[0].mxu0
    %v3248 = vadd.f32 0.0, %v3247
    %v3249 = vpop.f32.mrb[0].mxu0
    %3250 = vmatprep.mubr.f32.mxu0 0.0
    %3251 = vmatmul.mubr.f32.gmra.mrb[0].mxu0 %v2955
    %v3252 = vpop.f32.mrb[0].mxu0
    %v3253 = vadd.f32 0.0, %v3252
    %v3254 = vpop.f32.mrb[0].mxu0
    %3255 = vmatprep.mubr.f32.mxu0 0.0
    %3256 = vmatmul.mubr.f32.gmra.mrb[0].mxu0 %v2958
    %v3257 = vpop.f32.mrb[0].mxu0
    %v3258 = vadd.f32 0.0, %v3257
    %v3259 = vpop.f32.mrb[0].mxu0
    %3260 = vmatprep.mubr.f32.mxu0 0.0
    %3261 = vmatmul.mubr.f32.gmra.mrb[0].mxu0 %v2961
    %v3262 = vpop.f32.mrb[0].mxu0
    %v3263 = vadd.f32 0.0, %v3262
    %v3264 = vpop.f32.mrb[0].mxu0
    %3265 = vmatprep.mubr.f32.mxu0 0.0
    %3266 = vmatmul.mubr.f32.gmra.mrb[0].mxu0 %v2964
    %v3267 = vpop.f32.mrb[0].mxu0
    %v3268 = vadd.f32 0.0, %v3267
    %v3269 = vpop.f32.mrb[0].mxu0
    %3270 = vmatprep.mubr.f32.mxu0 0.0
    %3271 = vmatmul.mubr.f32.gmra.mrb[0].mxu0 %v2967
    %v3272 = vpop.f32.mrb[0].mxu0
    %v3273 = vadd.f32 0.0, %v3272
    %v3274 = vpop.f32.mrb[0].mxu0
    %3275 = vmatprep.mubr.f32.mxu0 0.0
    %3276 = vmatmul.mubr.f32.gmra.mrb[0].mxu0 %v2970
    %v3277 = vpop.f32.mrb[0].mxu0
    %v3278 = vadd.f32 0.0, %v3277
    %v3279 = vpop.f32.mrb[0].mxu0
    %3280 = vmatprep.mubr.f32.mxu0 0.0
    %3281 = vmatmul.mubr.f32.gmra.mrb[0].mxu0 %v2973
    %v3282 = vpop.f32.mrb[0].mxu0
    %v3283 = vadd.f32 0.0, %v3282
    %v3284 = vpop.f32.mrb[0].mxu0
    %3285 = vmatprep.mubr.f32.mxu0 0.0
    %3286 = vmatmul.mubr.f32.gmra.mrb[0].mxu0 %v2976
    %v3287 = vpop.f32.mrb[0].mxu0
    %v3288 = vadd.f32 0.0, %v3287
    %v3289 = vpop.f32.mrb[0].mxu0
    %3290 = vmatprep.mubr.f32.mxu0 0.0
    %3291 = vmatmul.mubr.f32.gmra.mrb[0].mxu0 %v2979
    %v3292 = vpop.f32.mrb[0].mxu0
    %v3293 = vadd.f32 0.0, %v3292
    %v3294 = vpop.f32.mrb[0].mxu0
    %3295 = vmatprep.mubr.f32.mxu0 0.0
    %3296 = vmatmul.mubr.f32.gmra.mrb[0].mxu0 %v2982
    %v3297 = vpop.f32.mrb[0].mxu0
    %v3298 = vadd.f32 0.0, %v3297
    %v3299 = vpop.f32.mrb[0].mxu0
    %3300 = vmatprep.mubr.f32.mxu0 0.0
    %3301 = vmatmul.mubr.f32.gmra.mrb[0].mxu0 %v2985
    %v3302 = vpop.f32.mrb[0].mxu0
    %v3303 = vadd.f32 0.0, %v3302
    %v3304 = vpop.f32.mrb[0].mxu0
    %3305 = vmatprep.mubr.f32.mxu0 0.0
    %3306 = vmatmul.mubr.f32.gmra.mrb[0].mxu0 %v2988
    %v3307 = vpop.f32.mrb[0].mxu0
    %v3308 = vadd.f32 0.0, %v3307
    %v3309 = vpop.f32.mrb[0].mxu0
    %3310 = vmatprep.mubr.f32.mxu0 0.0
    %3311 = vmatmul.mubr.f32.gmra.mrb[0].mxu0 %v2991
    %v3312 = vpop.f32.mrb[0].mxu0
    %v3313 = vadd.f32 0.0, %v3312
    %v3314 = vpop.f32.mrb[0].mxu0
    %3315 = vmatprep.mubr.f32.mxu0 0.0
    %3316 = vmatmul.mubr.f32.gmra.mrb[0].mxu0 %v2994
    %v3317 = vpop.f32.mrb[0].mxu0
    %v3318 = vadd.f32 0.0, %v3317
    %v3319 = vpop.f32.mrb[0].mxu0
    %3320 = vmatprep.mubr.f32.mxu0 0.0
    %3321 = vmatmul.mubr.f32.gmra.mrb[0].mxu0 %v2997
    %v3322 = vpop.f32.mrb[0].mxu0
    %v3323 = vadd.f32 0.0, %v3322
    %v3324 = vpop.f32.mrb[0].mxu0
    %3325 = vmatprep.mubr.f32.mxu0 0.0
    %3326 = vmatmul.mubr.f32.gmra.mrb[0].mxu0 %v3000
    %v3327 = vpop.f32.mrb[0].mxu0
    %v3328 = vadd.f32 0.0, %v3327
    %v3329 = vpop.f32.mrb[0].mxu0
    %3330 = vmatprep.mubr.f32.mxu0 0.0
    %3331 = vmatmul.mubr.f32.gmra.mrb[0].mxu0 %v3003
    %v3332 = vpop.f32.mrb[0].mxu0
    %v3333 = vadd.f32 0.0, %v3332
    %v3334 = vpop.f32.mrb[0].mxu0
    %3335 = vmatprep.mubr.f32.mxu0 0.0
    %3336 = vmatmul.mubr.f32.gmra.mrb[0].mxu0 %v3006
    %v3337 = vpop.f32.mrb[0].mxu0
    %v3338 = vadd.f32 0.0, %v3337
    %v3339 = vpop.f32.mrb[0].mxu0
    %3340 = vmatprep.mubr.f32.mxu0 0.0
    %3341 = vmatmul.mubr.f32.gmra.mrb[0].mxu0 %v3009
    %v3342 = vpop.f32.mrb[0].mxu0
    %v3343 = vadd.f32 0.0, %v3342
    %v3344 = vpop.f32.mrb[0].mxu0
    %3345 = vmatprep.mubr.f32.mxu0 0.0
    %3346 = vmatmul.mubr.f32.gmra.mrb[0].mxu0 %v3012
    %v3347 = vpop.f32.mrb[0].mxu0
    %v3348 = vadd.f32 0.0, %v3347
    %v3349 = vpop.f32.mrb[0].mxu0
    %3350 = vmatprep.mubr.f32.mxu0 0.0
    %3351 = vmatmul.mubr.f32.gmra.mrb[0].mxu0 %v3015
    %v3352 = vpop.f32.mrb[0].mxu0
    %v3353 = vadd.f32 0.0, %v3352
    %v3354 = vpop.f32.mrb[0].mxu0
    %3355 = vmatprep.mubr.f32.mxu0 0.0
    %3356 = vmatmul.mubr.f32.gmra.mrb[0].mxu0 %v3018
    %v3357 = vpop.f32.mrb[0].mxu0
    %v3358 = vadd.f32 0.0, %v3357
    %v3359 = vpop.f32.mrb[0].mxu0
    %3360 = vmatprep.mubr.f32.mxu0 0.0
    %3361 = vmatmul.mubr.f32.gmra.mrb[0].mxu0 %v3021
    %v3362 = vpop.f32.mrb[0].mxu0
    %v3363 = vadd.f32 0.0, %v3362
    %v3364 = vpop.f32.mrb[0].mxu0
    %3365 = vmatprep.mubr.f32.mxu0 0.0
    %3366 = vmatmul.mubr.f32.gmra.mrb[0].mxu0 %v3024
    %v3367 = vpop.f32.mrb[0].mxu0
    %v3368 = vadd.f32 0.0, %v3367
    %v3369 = vpop.f32.mrb[0].mxu0
    %3370 = vmatprep.mubr.f32.mxu0 0.0
    %3371 = vmatmul.mubr.f32.gmra.mrb[0].mxu0 %v3027
    %v3372 = vpop.f32.mrb[0].mxu0
    %v3373 = vadd.f32 0.0, %v3372
    %v3374 = vpop.f32.mrb[0].mxu0
    %3375 = vmatprep.mubr.f32.mxu0 0.0
    %3376 = vmatmul.mubr.f32.gmra.mrb[0].mxu0 %v3030
    %v3377 = vpop.f32.mrb[0].mxu0
    %v3378 = vadd.f32 0.0, %v3377
    %v3379 = vpop.f32.mrb[0].mxu0
    %3380 = vmatprep.mubr.f32.mxu0 0.0
    %3381 = vmatmul.mubr.f32.gmra.mrb[0].mxu0 %v3033
    %v3382 = vpop.f32.mrb[0].mxu0
    %v3383 = vadd.f32 0.0, %v3382
    %v3384 = vpop.f32.mrb[0].mxu0
    %3385 = vmatprep.mubr.f32.mxu0 0.0
    %3386 = vmatmul.mubr.f32.gmra.mrb[0].mxu0 %v3036
    %v3387 = vpop.f32.mrb[0].mxu0
    %v3388 = vadd.f32 0.0, %v3387
    %v3389 = vpop.f32.mrb[0].mxu0
    %3390 = vmatprep.mubr.f32.mxu0 0.0
    %3391 = vmatmul.mubr.f32.gmra.mrb[0].mxu0 %v3039
    %v3392 = vpop.f32.mrb[0].mxu0
    %v3393 = vadd.f32 0.0, %v3392
    %v3394 = vpop.f32.mrb[0].mxu0
    %3395 = vmatprep.mubr.f32.mxu0 0.0
    %3396 = vmatmul.mubr.f32.gmra.mrb[0].mxu0 %v3042
    %v3397 = vpop.f32.mrb[0].mxu0
    %v3398 = vadd.f32 0.0, %v3397
    %v3399 = vpop.f32.mrb[0].mxu0
    %3400 = vmatprep.mubr.f32.mxu0 0.0
    %3401 = vmatmul.mubr.f32.gmra.mrb[0].mxu0 %v3045
    %v3402 = vpop.f32.mrb[0].mxu0
    %v3403 = vadd.f32 0.0, %v3402
    %v3404 = vpop.f32.mrb[0].mxu0
    %3405 = vmatprep.mubr.f32.mxu0 0.0
    %3406 = vmatmul.mubr.f32.gmra.mrb[0].mxu0 %v3048
    %v3407 = vpop.f32.mrb[0].mxu0
    %v3408 = vadd.f32 0.0, %v3407
    %v3409 = vpop.f32.mrb[0].mxu0
    %3410 = vmatprep.mubr.f32.mxu0 0.0
    %3411 = vmatmul.mubr.f32.gmra.mrb[0].mxu0 %v3051
    %v3412 = vpop.f32.mrb[0].mxu0
    %v3413 = vadd.f32 0.0, %v3412
    %v3414 = vpop.f32.mrb[0].mxu0
    %3415 = vmatprep.mubr.f32.mxu0 0.0
    %3416 = vmatmul.mubr.f32.gmra.mrb[0].mxu0 %v3054
    %v3417 = vpop.f32.mrb[0].mxu0
    %v3418 = vadd.f32 0.0, %v3417
    %v3419 = vpop.f32.mrb[0].mxu0
    %3420 = vmatprep.mubr.f32.mxu0 0.0
    %3421 = vmatmul.mubr.f32.gmra.mrb[0].mxu0 %v3057
    %v3422 = vpop.f32.mrb[0].mxu0
    %v3423 = vadd.f32 0.0, %v3422
    %v3424 = vpop.f32.mrb[0].mxu0
    %3425 = vmatprep.mubr.f32.mxu0 0.0
    %3426 = vmatmul.mubr.f32.gmra.mrb[0].mxu0 %v3060
    %v3427 = vpop.f32.mrb[0].mxu0
    %v3428 = vadd.f32 0.0, %v3427
    %v3429 = vpop.f32.mrb[0].mxu0
    %3430 = vmatprep.mubr.f32.mxu0 0.0
    %3431 = vmatmul.mubr.f32.gmra.mrb[0].mxu0 %v3063
    %v3432 = vpop.f32.mrb[0].mxu0
    %v3433 = vadd.f32 0.0, %v3432
    %v3434 = vpop.f32.mrb[0].mxu0
    %3435 = vmatprep.mubr.f32.mxu0 0.0
    %3436 = vmatmul.mubr.f32.gmra.mrb[0].mxu0 %v3066
    %v3437 = vpop.f32.mrb[0].mxu0
    %v3438 = vadd.f32 0.0, %v3437
    %v3439 = vpop.f32.mrb[0].mxu0
    %3440 = vmatprep.mubr.f32.mxu0 0.0
    %3441 = vmatmul.mubr.f32.gmra.mrb[0].mxu0 %v3069
    %v3442 = vpop.f32.mrb[0].mxu0
    %v3443 = vadd.f32 0.0, %v3442
    %v3444 = vpop.f32.mrb[0].mxu0
    %3445 = vmatprep.mubr.f32.mxu0 0.0
    %3446 = vmatmul.mubr.f32.gmra.mrb[0].mxu0 %v3072
    %v3447 = vpop.f32.mrb[0].mxu0
    %v3448 = vadd.f32 0.0, %v3447
    %v3449 = vpop.f32.mrb[0].mxu0
    %3450 = vmatprep.mubr.f32.mxu0 0.0
    %3451 = vmatmul.mubr.f32.gmra.mrb[0].mxu0 %v3075
    %v3452 = vpop.f32.mrb[0].mxu0
    %v3453 = vadd.f32 0.0, %v3452
    %v3454 = vpop.f32.mrb[0].mxu0
    %3455 = vmatprep.mubr.f32.mxu0 0.0
    %3456 = vmatmul.mubr.f32.gmra.mrb[0].mxu0 %v3078
    %v3457 = vpop.f32.mrb[0].mxu0
    %v3458 = vadd.f32 0.0, %v3457
    %v3459 = vpop.f32.mrb[0].mxu0
    %3460 = vmatprep.mubr.f32.mxu0 0.0
    %3461 = vmatmul.mubr.f32.gmra.mrb[0].mxu0 %v3081
    %v3462 = vpop.f32.mrb[0].mxu0
    %v3463 = vadd.f32 0.0, %v3462
    %v3464 = vpop.f32.mrb[0].mxu0
    %3465 = vmatprep.mubr.f32.mxu0 0.0
    %3466 = vmatmul.mubr.f32.gmra.mrb[0].mxu0 %v3084
    %v3467 = vpop.f32.mrb[0].mxu0
    %v3468 = vadd.f32 0.0, %v3467
    %v3469 = vpop.f32.mrb[0].mxu0
    %3470 = vmatprep.mubr.f32.mxu0 0.0
    %3471 = vmatmul.mubr.f32.gmra.mrb[0].mxu0 %v3087
    %v3472 = vpop.f32.mrb[0].mxu0
    %v3473 = vadd.f32 0.0, %v3472
    %v3474 = vpop.f32.mrb[0].mxu0
    %3475 = vmatprep.mubr.f32.mxu0 0.0
    %3476 = vmatmul.mubr.f32.gmra.mrb[0].mxu0 %v3090
    %v3477 = vpop.f32.mrb[0].mxu0
    %v3478 = vadd.f32 0.0, %v3477
    %v3479 = vpop.f32.mrb[0].mxu0
    %3480 = vdwg.mxu0
    %3481 = vst.msk [vmem:[%s3] sm:$0xff] %vm2439, %v3163
    %3482 = vst.msk [vmem:[%s3 + $0x8] sm:$0xff] %vm2439, %v3168
    %3483 = vst.msk [vmem:[%s3 + $0x10] sm:$0xff] %vm2439, %v3173
    %3484 = vst.msk [vmem:[%s3 + $0x18] sm:$0xff] %vm2439, %v3178
    %3485 = vst.msk [vmem:[%s3 + $0x20] sm:$0xff] %vm2439, %v3183
    %3486 = vst.msk [vmem:[%s3 + $0x28] sm:$0xff] %vm2439, %v3188
    %3487 = vst.msk [vmem:[%s3 + $0x30] sm:$0xff] %vm2439, %v3193
    %3488 = vst.msk [vmem:[%s3 + $0x38] sm:$0xff] %vm2439, %v3198
    %3489 = vst.msk [vmem:[%s3 + $0x40] sm:$0xff] %vm2439, %v3203
    %3490 = vst.msk [vmem:[%s3 + $0x48] sm:$0xff] %vm2439, %v3208
    %3491 = vst.msk [vmem:[%s3 + $0x50] sm:$0xff] %vm2439, %v3213
    %3492 = vst.msk [vmem:[%s3 + $0x58] sm:$0xff] %vm2439, %v3218
    %3493 = vst.msk [vmem:[%s3 + $0x60] sm:$0xff] %vm2439, %v3223
    %3494 = vst.msk [vmem:[%s3 + $0x68] sm:$0xff] %vm2439, %v3228
    %3495 = vst.msk [vmem:[%s3 + $0x70] sm:$0xff] %vm2439, %v3233
    %3496 = vst.msk [vmem:[%s3 + $0x78] sm:$0xff] %vm2439, %v3238
    %3497 = vst.msk [vmem:[%s3 + $0x80] sm:$0xff] %vm2439, %v3243
    %3498 = vst.msk [vmem:[%s3 + $0x88] sm:$0xff] %vm2439, %v3248
    %3499 = vst.msk [vmem:[%s3 + $0x90] sm:$0xff] %vm2439, %v3253
    %3500 = vst.msk [vmem:[%s3 + $0x98] sm:$0xff] %vm2439, %v3258
    %3501 = vst.msk [vmem:[%s3 + $0xa0] sm:$0xff] %vm2439, %v3263
    %3502 = vst.msk [vmem:[%s3 + $0xa8] sm:$0xff] %vm2439, %v3268
    %3503 = vst.msk [vmem:[%s3 + $0xb0] sm:$0xff] %vm2439, %v3273
    %3504 = vst.msk [vmem:[%s3 + $0xb8] sm:$0xff] %vm2439, %v3278
    %3505 = vst.msk [vmem:[%s3 + $0xc0] sm:$0xff] %vm2439, %v3283
    %3506 = vst.msk [vmem:[%s3 + $0xc8] sm:$0xff] %vm2439, %v3288
    %3507 = vst.msk [vmem:[%s3 + $0xd0] sm:$0xff] %vm2439, %v3293
    %3508 = vst.msk [vmem:[%s3 + $0xd8] sm:$0xff] %vm2439, %v3298
    %3509 = vst.msk [vmem:[%s3 + $0xe0] sm:$0xff] %vm2439, %v3303
    %3510 = vst.msk [vmem:[%s3 + $0xe8] sm:$0xff] %vm2439, %v3308
    %3511 = vst.msk [vmem:[%s3 + $0xf0] sm:$0xff] %vm2439, %v3313
    %3512 = vst.msk [vmem:[%s3 + $0xf8] sm:$0xff] %vm2439, %v3318
    %3513 = vst.msk [vmem:[%s3 + $0x100] sm:$0xff] %vm2439, %v3323
    %3514 = vst.msk [vmem:[%s3 + $0x108] sm:$0xff] %vm2439, %v3328
    %3515 = vst.msk [vmem:[%s3 + $0x110] sm:$0xff] %vm2439, %v3333
    %3516 = vst.msk [vmem:[%s3 + $0x118] sm:$0xff] %vm2439, %v3338
    %3517 = vst.msk [vmem:[%s3 + $0x120] sm:$0xff] %vm2439, %v3343
    %3518 = vst.msk [vmem:[%s3 + $0x128] sm:$0xff] %vm2439, %v3348
    %3519 = vst.msk [vmem:[%s3 + $0x130] sm:$0xff] %vm2439, %v3353
    %3520 = vst.msk [vmem:[%s3 + $0x138] sm:$0xff] %vm2439, %v3358
    %3521 = vst.msk [vmem:[%s3 + $0x140] sm:$0xff] %vm2439, %v3363
    %3522 = vst.msk [vmem:[%s3 + $0x148] sm:$0xff] %vm2439, %v3368
    %3523 = vst.msk [vmem:[%s3 + $0x150] sm:$0xff] %vm2439, %v3373
    %3524 = vst.msk [vmem:[%s3 + $0x158] sm:$0xff] %vm2439, %v3378
    %3525 = vst.msk [vmem:[%s3 + $0x160] sm:$0xff] %vm2439, %v3383
    %3526 = vst.msk [vmem:[%s3 + $0x168] sm:$0xff] %vm2439, %v3388
    %3527 = vst.msk [vmem:[%s3 + $0x170] sm:$0xff] %vm2439, %v3393
    %3528 = vst.msk [vmem:[%s3 + $0x178] sm:$0xff] %vm2439, %v3398
    %3529 = vst.msk [vmem:[%s3 + $0x180] sm:$0xff] %vm2439, %v3403
    %3530 = vst.msk [vmem:[%s3 + $0x188] sm:$0xff] %vm2439, %v3408
    %3531 = vst.msk [vmem:[%s3 + $0x190] sm:$0xff] %vm2439, %v3413
    %3532 = vst.msk [vmem:[%s3 + $0x198] sm:$0xff] %vm2439, %v3418
    %3533 = vst.msk [vmem:[%s3 + $0x1a0] sm:$0xff] %vm2439, %v3423
    %3534 = vst.msk [vmem:[%s3 + $0x1a8] sm:$0xff] %vm2439, %v3428
    %3535 = vst.msk [vmem:[%s3 + $0x1b0] sm:$0xff] %vm2439, %v3433
    %3536 = vst.msk [vmem:[%s3 + $0x1b8] sm:$0xff] %vm2439, %v3438
    %3537 = vst.msk [vmem:[%s3 + $0x1c0] sm:$0xff] %vm2439, %v3443
    %3538 = vst.msk [vmem:[%s3 + $0x1c8] sm:$0xff] %vm2439, %v3448
    %3539 = vst.msk [vmem:[%s3 + $0x1d0] sm:$0xff] %vm2439, %v3453
    %3540 = vst.msk [vmem:[%s3 + $0x1d8] sm:$0xff] %vm2439, %v3458
    %3541 = vst.msk [vmem:[%s3 + $0x1e0] sm:$0xff] %vm2439, %v3463
    %3542 = vst.msk [vmem:[%s3 + $0x1e8] sm:$0xff] %vm2439, %v3468
    %3543 = vst.msk [vmem:[%s3 + $0x1f0] sm:$0xff] %vm2439, %v3473
    %3544 = vst.msk [vmem:[%s3 + $0x1f8] sm:$0xff] %vm2439, %v3478
    %v3545 = vsel %vm2439, %v3163, 0.0
    %v3546 = vsel %vm2439, %v3168, 0.0
    %v3547 = vadd.f32 %v3545, %v3546
    %v3548 = vsel %vm2439, %v3173, 0.0
    %v3549 = vadd.f32 %v3547, %v3548
    %v3550 = vsel %vm2439, %v3178, 0.0
    %v3551 = vadd.f32 %v3549, %v3550
    %v3552 = vsel %vm2439, %v3183, 0.0
    %v3553 = vadd.f32 %v3551, %v3552
    %v3554 = vsel %vm2439, %v3188, 0.0
    %v3555 = vadd.f32 %v3553, %v3554
    %v3556 = vsel %vm2439, %v3193, 0.0
    %v3557 = vadd.f32 %v3555, %v3556
    %v3558 = vsel %vm2439, %v3198, 0.0
    %v3559 = vadd.f32 %v3557, %v3558
    %v3560 = vsel %vm2439, %v3203, 0.0
    %v3561 = vadd.f32 %v3559, %v3560
    %v3562 = vsel %vm2439, %v3208, 0.0
    %v3563 = vadd.f32 %v3561, %v3562
    %v3564 = vsel %vm2439, %v3213, 0.0
    %v3565 = vadd.f32 %v3563, %v3564
    %v3566 = vsel %vm2439, %v3218, 0.0
    %v3567 = vadd.f32 %v3565, %v3566
    %v3568 = vsel %vm2439, %v3223, 0.0
    %v3569 = vadd.f32 %v3567, %v3568
    %v3570 = vsel %vm2439, %v3228, 0.0
    %v3571 = vadd.f32 %v3569, %v3570
    %v3572 = vsel %vm2439, %v3233, 0.0
    %v3573 = vadd.f32 %v3571, %v3572
    %v3574 = vsel %vm2439, %v3238, 0.0
    %v3575 = vadd.f32 %v3573, %v3574
    %v3576 = vsel %vm2439, %v3243, 0.0
    %v3577 = vadd.f32 %v3575, %v3576
    %v3578 = vsel %vm2439, %v3248, 0.0
    %v3579 = vadd.f32 %v3577, %v3578
    %v3580 = vsel %vm2439, %v3253, 0.0
    %v3581 = vadd.f32 %v3579, %v3580
    %v3582 = vsel %vm2439, %v3258, 0.0
    %v3583 = vadd.f32 %v3581, %v3582
    %v3584 = vsel %vm2439, %v3263, 0.0
    %v3585 = vadd.f32 %v3583, %v3584
    %v3586 = vsel %vm2439, %v3268, 0.0
    %v3587 = vadd.f32 %v3585, %v3586
    %v3588 = vsel %vm2439, %v3273, 0.0
    %v3589 = vadd.f32 %v3587, %v3588
    %v3590 = vsel %vm2439, %v3278, 0.0
    %v3591 = vadd.f32 %v3589, %v3590
    %v3592 = vsel %vm2439, %v3283, 0.0
    %v3593 = vadd.f32 %v3591, %v3592
    %v3594 = vsel %vm2439, %v3288, 0.0
    %v3595 = vadd.f32 %v3593, %v3594
    %v3596 = vsel %vm2439, %v3293, 0.0
    %v3597 = vadd.f32 %v3595, %v3596
    %v3598 = vsel %vm2439, %v3298, 0.0
    %v3599 = vadd.f32 %v3597, %v3598
    %v3600 = vsel %vm2439, %v3303, 0.0
    %v3601 = vadd.f32 %v3599, %v3600
    %v3602 = vsel %vm2439, %v3308, 0.0
    %v3603 = vadd.f32 %v3601, %v3602
    %v3604 = vsel %vm2439, %v3313, 0.0
    %v3605 = vadd.f32 %v3603, %v3604
    %v3606 = vsel %vm2439, %v3318, 0.0
    %v3607 = vadd.f32 %v3605, %v3606
    %v3608 = vsel %vm2439, %v3323, 0.0
    %v3609 = vadd.f32 %v3607, %v3608
    %v3610 = vsel %vm2439, %v3328, 0.0
    %v3611 = vadd.f32 %v3609, %v3610
    %v3612 = vsel %vm2439, %v3333, 0.0
    %v3613 = vadd.f32 %v3611, %v3612
    %v3614 = vsel %vm2439, %v3338, 0.0
    %v3615 = vadd.f32 %v3613, %v3614
    %v3616 = vsel %vm2439, %v3343, 0.0
    %v3617 = vadd.f32 %v3615, %v3616
    %v3618 = vsel %vm2439, %v3348, 0.0
    %v3619 = vadd.f32 %v3617, %v3618
    %v3620 = vsel %vm2439, %v3353, 0.0
    %v3621 = vadd.f32 %v3619, %v3620
    %v3622 = vsel %vm2439, %v3358, 0.0
    %v3623 = vadd.f32 %v3621, %v3622
    %v3624 = vsel %vm2439, %v3363, 0.0
    %v3625 = vadd.f32 %v3623, %v3624
    %v3626 = vsel %vm2439, %v3368, 0.0
    %v3627 = vadd.f32 %v3625, %v3626
    %v3628 = vsel %vm2439, %v3373, 0.0
    %v3629 = vadd.f32 %v3627, %v3628
    %v3630 = vsel %vm2439, %v3378, 0.0
    %v3631 = vadd.f32 %v3629, %v3630
    %v3632 = vsel %vm2439, %v3383, 0.0
    %v3633 = vadd.f32 %v3631, %v3632
    %v3634 = vsel %vm2439, %v3388, 0.0
    %v3635 = vadd.f32 %v3633, %v3634
    %v3636 = vsel %vm2439, %v3393, 0.0
    %v3637 = vadd.f32 %v3635, %v3636
    %v3638 = vsel %vm2439, %v3398, 0.0
    %v3639 = vadd.f32 %v3637, %v3638
    %v3640 = vsel %vm2439, %v3403, 0.0
    %v3641 = vadd.f32 %v3639, %v3640
    %v3642 = vsel %vm2439, %v3408, 0.0
    %v3643 = vadd.f32 %v3641, %v3642
    %v3644 = vsel %vm2439, %v3413, 0.0
    %v3645 = vadd.f32 %v3643, %v3644
    %v3646 = vsel %vm2439, %v3418, 0.0
    %v3647 = vadd.f32 %v3645, %v3646
    %v3648 = vsel %vm2439, %v3423, 0.0
    %v3649 = vadd.f32 %v3647, %v3648
    %v3650 = vsel %vm2439, %v3428, 0.0
    %v3651 = vadd.f32 %v3649, %v3650
    %v3652 = vsel %vm2439, %v3433, 0.0
    %v3653 = vadd.f32 %v3651, %v3652
    %v3654 = vsel %vm2439, %v3438, 0.0
    %v3655 = vadd.f32 %v3653, %v3654
    %v3656 = vsel %vm2439, %v3443, 0.0
    %v3657 = vadd.f32 %v3655, %v3656
    %v3658 = vsel %vm2439, %v3448, 0.0
    %v3659 = vadd.f32 %v3657, %v3658
    %v3660 = vsel %vm2439, %v3453, 0.0
    %v3661 = vadd.f32 %v3659, %v3660
    %v3662 = vsel %vm2439, %v3458, 0.0
    %v3663 = vadd.f32 %v3661, %v3662
    %v3664 = vsel %vm2439, %v3463, 0.0
    %v3665 = vadd.f32 %v3663, %v3664
    %v3666 = vsel %vm2439, %v3468, 0.0
    %v3667 = vadd.f32 %v3665, %v3666
    %v3668 = vsel %vm2439, %v3473, 0.0
    %v3669 = vadd.f32 %v3667, %v3668
    %v3670 = vsel %vm2439, %v3478, 0.0
    %v3671 = vadd.f32 %v3669, %v3670
    %v3672 = vrot.slane %v3671, 4
    %v3673 = vadd.f32 %v3671, %v3672
    %v3674 = vrot.slane %v3673, 2
    %v3675 = vadd.f32 %v3673, %v3674
    %v3676 = vrot.slane %v3675, 1
    %v3677 = vadd.f32 %v3675, %v3676
    %vm3678 = vcmask 57344
    %3679 = vst.msk [vmem:[#allocation3] sm:$0x1] %vm3678, %v3677
    %v3680 = vmul.f32 %v3163, %v3163
    %v3681 = vmul.f32 %v3168, %v3168
    %v3682 = vmul.f32 %v3173, %v3173
    %v3683 = vmul.f32 %v3178, %v3178
    %v3684 = vmul.f32 %v3183, %v3183
    %v3685 = vmul.f32 %v3188, %v3188
    %v3686 = vmul.f32 %v3193, %v3193
    %v3687 = vmul.f32 %v3198, %v3198
    %v3688 = vmul.f32 %v3203, %v3203
    %v3689 = vmul.f32 %v3208, %v3208
    %v3690 = vmul.f32 %v3213, %v3213
    %v3691 = vmul.f32 %v3218, %v3218
    %v3692 = vmul.f32 %v3223, %v3223
    %v3693 = vmul.f32 %v3228, %v3228
    %v3694 = vmul.f32 %v3233, %v3233
    %v3695 = vmul.f32 %v3238, %v3238
    %v3696 = vmul.f32 %v3243, %v3243
    %v3697 = vmul.f32 %v3248, %v3248
    %v3698 = vmul.f32 %v3253, %v3253
    %v3699 = vmul.f32 %v3258, %v3258
    %v3700 = vmul.f32 %v3263, %v3263
    %v3701 = vmul.f32 %v3268, %v3268
    %v3702 = vmul.f32 %v3273, %v3273
    %v3703 = vmul.f32 %v3278, %v3278
    %v3704 = vmul.f32 %v3283, %v3283
    %v3705 = vmul.f32 %v3288, %v3288
    %v3706 = vmul.f32 %v3293, %v3293
    %v3707 = vmul.f32 %v3298, %v3298
    %v3708 = vmul.f32 %v3303, %v3303
    %v3709 = vmul.f32 %v3308, %v3308
    %v3710 = vmul.f32 %v3313, %v3313
    %v3711 = vmul.f32 %v3318, %v3318
    %v3712 = vmul.f32 %v3323, %v3323
    %v3713 = vmul.f32 %v3328, %v3328
    %v3714 = vmul.f32 %v3333, %v3333
    %v3715 = vmul.f32 %v3338, %v3338
    %v3716 = vmul.f32 %v3343, %v3343
    %v3717 = vmul.f32 %v3348, %v3348
    %v3718 = vmul.f32 %v3353, %v3353
    %v3719 = vmul.f32 %v3358, %v3358
    %v3720 = vmul.f32 %v3363, %v3363
    %v3721 = vmul.f32 %v3368, %v3368
    %v3722 = vmul.f32 %v3373, %v3373
    %v3723 = vmul.f32 %v3378, %v3378
    %v3724 = vmul.f32 %v3383, %v3383
    %v3725 = vmul.f32 %v3388, %v3388
    %v3726 = vmul.f32 %v3393, %v3393
    %v3727 = vmul.f32 %v3398, %v3398
    %v3728 = vmul.f32 %v3403, %v3403
    %v3729 = vmul.f32 %v3408, %v3408
    %v3730 = vmul.f32 %v3413, %v3413
    %v3731 = vmul.f32 %v3418, %v3418
    %v3732 = vmul.f32 %v3423, %v3423
    %v3733 = vmul.f32 %v3428, %v3428
    %v3734 = vmul.f32 %v3433, %v3433
    %v3735 = vmul.f32 %v3438, %v3438
    %v3736 = vmul.f32 %v3443, %v3443
    %v3737 = vmul.f32 %v3448, %v3448
    %v3738 = vmul.f32 %v3453, %v3453
    %v3739 = vmul.f32 %v3458, %v3458
    %v3740 = vmul.f32 %v3463, %v3463
    %v3741 = vmul.f32 %v3468, %v3468
    %v3742 = vmul.f32 %v3473, %v3473
    %v3743 = vmul.f32 %v3478, %v3478
    %v3744 = vsel %vm2439, %v3680, 0.0
    %v3745 = vsel %vm2439, %v3681, 0.0
    %v3746 = vadd.f32 %v3744, %v3745
    %v3747 = vsel %vm2439, %v3682, 0.0
    %v3748 = vadd.f32 %v3746, %v3747
    %v3749 = vsel %vm2439, %v3683, 0.0
    %v3750 = vadd.f32 %v3748, %v3749
    %v3751 = vsel %vm2439, %v3684, 0.0
    %v3752 = vadd.f32 %v3750, %v3751
    %v3753 = vsel %vm2439, %v3685, 0.0
    %v3754 = vadd.f32 %v3752, %v3753
    %v3755 = vsel %vm2439, %v3686, 0.0
    %v3756 = vadd.f32 %v3754, %v3755
    %v3757 = vsel %vm2439, %v3687, 0.0
    %v3758 = vadd.f32 %v3756, %v3757
    %v3759 = vsel %vm2439, %v3688, 0.0
    %v3760 = vadd.f32 %v3758, %v3759
    %v3761 = vsel %vm2439, %v3689, 0.0
    %v3762 = vadd.f32 %v3760, %v3761
    %v3763 = vsel %vm2439, %v3690, 0.0
    %v3764 = vadd.f32 %v3762, %v3763
    %v3765 = vsel %vm2439, %v3691, 0.0
    %v3766 = vadd.f32 %v3764, %v3765
    %v3767 = vsel %vm2439, %v3692, 0.0
    %v3768 = vadd.f32 %v3766, %v3767
    %v3769 = vsel %vm2439, %v3693, 0.0
    %v3770 = vadd.f32 %v3768, %v3769
    %v3771 = vsel %vm2439, %v3694, 0.0
    %v3772 = vadd.f32 %v3770, %v3771
    %v3773 = vsel %vm2439, %v3695, 0.0
    %v3774 = vadd.f32 %v3772, %v3773
    %v3775 = vsel %vm2439, %v3696, 0.0
    %v3776 = vadd.f32 %v3774, %v3775
    %v3777 = vsel %vm2439, %v3697, 0.0
    %v3778 = vadd.f32 %v3776, %v3777
    %v3779 = vsel %vm2439, %v3698, 0.0
    %v3780 = vadd.f32 %v3778, %v3779
    %v3781 = vsel %vm2439, %v3699, 0.0
    %v3782 = vadd.f32 %v3780, %v3781
    %v3783 = vsel %vm2439, %v3700, 0.0
    %v3784 = vadd.f32 %v3782, %v3783
    %v3785 = vsel %vm2439, %v3701, 0.0
    %v3786 = vadd.f32 %v3784, %v3785
    %v3787 = vsel %vm2439, %v3702, 0.0
    %v3788 = vadd.f32 %v3786, %v3787
    %v3789 = vsel %vm2439, %v3703, 0.0
    %v3790 = vadd.f32 %v3788, %v3789
    %v3791 = vsel %vm2439, %v3704, 0.0
    %v3792 = vadd.f32 %v3790, %v3791
    %v3793 = vsel %vm2439, %v3705, 0.0
    %v3794 = vadd.f32 %v3792, %v3793
    %v3795 = vsel %vm2439, %v3706, 0.0
    %v3796 = vadd.f32 %v3794, %v3795
    %v3797 = vsel %vm2439, %v3707, 0.0
    %v3798 = vadd.f32 %v3796, %v3797
    %v3799 = vsel %vm2439, %v3708, 0.0
    %v3800 = vadd.f32 %v3798, %v3799
    %v3801 = vsel %vm2439, %v3709, 0.0
    %v3802 = vadd.f32 %v3800, %v3801
    %v3803 = vsel %vm2439, %v3710, 0.0
    %v3804 = vadd.f32 %v3802, %v3803
    %v3805 = vsel %vm2439, %v3711, 0.0
    %v3806 = vadd.f32 %v3804, %v3805
    %v3807 = vsel %vm2439, %v3712, 0.0
    %v3808 = vadd.f32 %v3806, %v3807
    %v3809 = vsel %vm2439, %v3713, 0.0
    %v3810 = vadd.f32 %v3808, %v3809
    %v3811 = vsel %vm2439, %v3714, 0.0
    %v3812 = vadd.f32 %v3810, %v3811
    %v3813 = vsel %vm2439, %v3715, 0.0
    %v3814 = vadd.f32 %v3812, %v3813
    %v3815 = vsel %vm2439, %v3716, 0.0
    %v3816 = vadd.f32 %v3814, %v3815
    %v3817 = vsel %vm2439, %v3717, 0.0
    %v3818 = vadd.f32 %v3816, %v3817
    %v3819 = vsel %vm2439, %v3718, 0.0
    %v3820 = vadd.f32 %v3818, %v3819
    %v3821 = vsel %vm2439, %v3719, 0.0
    %v3822 = vadd.f32 %v3820, %v3821
    %v3823 = vsel %vm2439, %v3720, 0.0
    %v3824 = vadd.f32 %v3822, %v3823
    %v3825 = vsel %vm2439, %v3721, 0.0
    %v3826 = vadd.f32 %v3824, %v3825
    %v3827 = vsel %vm2439, %v3722, 0.0
    %v3828 = vadd.f32 %v3826, %v3827
    %v3829 = vsel %vm2439, %v3723, 0.0
    %v3830 = vadd.f32 %v3828, %v3829
    %v3831 = vsel %vm2439, %v3724, 0.0
    %v3832 = vadd.f32 %v3830, %v3831
    %v3833 = vsel %vm2439, %v3725, 0.0
    %v3834 = vadd.f32 %v3832, %v3833
    %v3835 = vsel %vm2439, %v3726, 0.0
    %v3836 = vadd.f32 %v3834, %v3835
    %v3837 = vsel %vm2439, %v3727, 0.0
    %v3838 = vadd.f32 %v3836, %v3837
    %v3839 = vsel %vm2439, %v3728, 0.0
    %v3840 = vadd.f32 %v3838, %v3839
    %v3841 = vsel %vm2439, %v3729, 0.0
    %v3842 = vadd.f32 %v3840, %v3841
    %v3843 = vsel %vm2439, %v3730, 0.0
    %v3844 = vadd.f32 %v3842, %v3843
    %v3845 = vsel %vm2439, %v3731, 0.0
    %v3846 = vadd.f32 %v3844, %v3845
    %v3847 = vsel %vm2439, %v3732, 0.0
    %v3848 = vadd.f32 %v3846, %v3847
    %v3849 = vsel %vm2439, %v3733, 0.0
    %v3850 = vadd.f32 %v3848, %v3849
    %v3851 = vsel %vm2439, %v3734, 0.0
    %v3852 = vadd.f32 %v3850, %v3851
    %v3853 = vsel %vm2439, %v3735, 0.0
    %v3854 = vadd.f32 %v3852, %v3853
    %v3855 = vsel %vm2439, %v3736, 0.0
    %v3856 = vadd.f32 %v3854, %v3855
    %v3857 = vsel %vm2439, %v3737, 0.0
    %v3858 = vadd.f32 %v3856, %v3857
    %v3859 = vsel %vm2439, %v3738, 0.0
    %v3860 = vadd.f32 %v3858, %v3859
    %v3861 = vsel %vm2439, %v3739, 0.0
    %v3862 = vadd.f32 %v3860, %v3861
    %v3863 = vsel %vm2439, %v3740, 0.0
    %v3864 = vadd.f32 %v3862, %v3863
    %v3865 = vsel %vm2439, %v3741, 0.0
    %v3866 = vadd.f32 %v3864, %v3865
    %v3867 = vsel %vm2439, %v3742, 0.0
    %v3868 = vadd.f32 %v3866, %v3867
    %v3869 = vsel %vm2439, %v3743, 0.0
    %v3870 = vadd.f32 %v3868, %v3869
    %v3871 = vrot.slane %v3870, 4
    %v3872 = vadd.f32 %v3870, %v3871
    %v3873 = vrot.slane %v3872, 2
    %v3874 = vadd.f32 %v3872, %v3873
    %v3875 = vrot.slane %v3874, 1
    %v3876 = vadd.f32 %v3874, %v3875
    %3877 = vst.msk [vmem:[#allocation5] sm:$0x1] %vm3678, %v3876
    %v3878 = vld [vmem:[%s2] sm:$0xf]
    %v3880 = vsel %vm86, %v22, 0
    %v3883 = vsel %vm86, %v23, 0
    %v3886 = vsel %vm86, %v24, 0
    %v3889 = vsel %vm86, %v25, 0
    %v3892 = vsel %vm86, %v26, 0
    %v3895 = vsel %vm86, %v27, 0
    %v3898 = vsel %vm86, %v28, 0
    %v3901 = vsel %vm86, %v29, 0
    %v3904 = vsel %vm86, %v30, 0
    %v3907 = vsel %vm86, %v31, 0
    %v3910 = vsel %vm86, %v32, 0
    %v3913 = vsel %vm86, %v33, 0
    %v3916 = vsel %vm86, %v34, 0
    %v3919 = vsel %vm86, %v35, 0
    %v3922 = vsel %vm86, %v36, 0
    %v3925 = vsel %vm86, %v37, 0
    %v3928 = vsel %vm86, %v38, 0
    %v3931 = vsel %vm86, %v39, 0
    %v3934 = vsel %vm86, %v40, 0
    %v3937 = vsel %vm86, %v41, 0
    %v3940 = vsel %vm86, %v42, 0
    %v3943 = vsel %vm86, %v43, 0
    %v3946 = vsel %vm86, %v44, 0
    %v3949 = vsel %vm86, %v45, 0
    %v3952 = vsel %vm86, %v46, 0
    %v3955 = vsel %vm86, %v47, 0
    %v3958 = vsel %vm86, %v48, 0
    %v3961 = vsel %vm86, %v49, 0
    %v3964 = vsel %vm86, %v50, 0
    %v3967 = vsel %vm86, %v51, 0
    %v3970 = vsel %vm86, %v52, 0
    %v3973 = vsel %vm86, %v53, 0
    %v3976 = vsel %vm86, %v54, 0
    %v3979 = vsel %vm86, %v55, 0
    %v3982 = vsel %vm86, %v56, 0
    %v3985 = vsel %vm86, %v57, 0
    %v3988 = vsel %vm86, %v58, 0
    %v3991 = vsel %vm86, %v59, 0
    %v3994 = vsel %vm86, %v60, 0
    %v3997 = vsel %vm86, %v61, 0
    %v4000 = vsel %vm86, %v62, 0
    %v4003 = vsel %vm86, %v63, 0
    %v4006 = vsel %vm86, %v64, 0
    %v4009 = vsel %vm86, %v65, 0
    %v4012 = vsel %vm86, %v66, 0
    %v4015 = vsel %vm86, %v67, 0
    %v4018 = vsel %vm86, %v68, 0
    %v4021 = vsel %vm86, %v69, 0
    %v4024 = vsel %vm86, %v70, 0
    %v4027 = vsel %vm86, %v71, 0
    %v4030 = vsel %vm86, %v72, 0
    %v4033 = vsel %vm86, %v73, 0
    %v4036 = vsel %vm86, %v74, 0
    %v4039 = vsel %vm86, %v75, 0
    %v4042 = vsel %vm86, %v76, 0
    %v4045 = vsel %vm86, %v77, 0
    %v4048 = vsel %vm86, %v78, 0
    %v4051 = vsel %vm86, %v79, 0
    %v4054 = vsel %vm86, %v80, 0
    %v4057 = vsel %vm86, %v81, 0
    %v4060 = vsel %vm86, %v82, 0
    %v4063 = vsel %vm86, %v83, 0
    %v4066 = vsel %vm86, %v84, 0
    %v4069 = vsel %vm86, %v85, 0
    %v4072 = vsel %vm3092, %v3878, 0
    %4074 = vmatprep.subr.mxu0 0.0
    %4075 = vmatpush1.msra.mxu0 %v4072
    %4076 = vmatprep.subr.mxu0 0.0
    %4077 = vmatpush1.msra.mxu0 0.0
    %4078 = vmatprep.subr.mxu0 0.0
    %4079 = vmatpush1.msra.mxu0 0.0
    %4080 = vmatprep.subr.mxu0 0.0
    %4081 = vmatpush1.msra.mxu0 0.0
    %4082 = vmatprep.subr.mxu0 0.0
    %4083 = vmatpush1.msra.mxu0 0.0
    %4084 = vmatprep.subr.mxu0 0.0
    %4085 = vmatpush1.msra.mxu0 0.0
    %4086 = vmatprep.subr.mxu0 0.0
    %4087 = vmatpush1.msra.mxu0 0.0
    %4088 = vmatprep.subr.mxu0 0.0
    %4089 = vmatpush1.msra.mxu0 0.0
    %4090 = vmatprep.subr.mxu0 0.0
    %4091 = vmatpush1.msra.mxu0 0.0
    %4092 = vmatprep.subr.mxu0 0.0
    %4093 = vmatpush1.msra.mxu0 0.0
    %4094 = vmatprep.subr.mxu0 0.0
    %4095 = vmatpush1.msra.mxu0 0.0
    %4096 = vmatprep.subr.mxu0 0.0
    %4097 = vmatpush1.msra.mxu0 0.0
    %4098 = vmatprep.subr.mxu0 0.0
    %4099 = vmatpush1.msra.mxu0 0.0
    %4100 = vmatprep.subr.mxu0 0.0
    %4101 = vmatpush1.msra.mxu0 0.0
    %4102 = vmatprep.subr.mxu0 0.0
    %4103 = vmatpush1.msra.mxu0 0.0
    %4104 = vmatprep.subr.mxu0 0.0
    %4105 = vmatpush1.msra.mxu0 0.0
    %4106 = vmatprep.subr.mxu0 0.0
    %4107 = vmatpush1.msra.mxu0 0.0
    %4108 = vmatprep.subr.mxu0 0.0
    %4109 = vmatpush1.msra.mxu0 0.0
    %4110 = vmatprep.subr.mxu0 0.0
    %4111 = vmatpush1.msra.mxu0 0.0
    %4112 = vmatprep.subr.mxu0 0.0
    %4113 = vmatpush1.msra.mxu0 0.0
    %4114 = vmatprep.subr.mxu0 0.0
    %4115 = vmatpush1.msra.mxu0 0.0
    %4116 = vmatprep.subr.mxu0 0.0
    %4117 = vmatpush1.msra.mxu0 0.0
    %4118 = vmatprep.subr.mxu0 0.0
    %4119 = vmatpush1.msra.mxu0 0.0
    %4120 = vmatprep.subr.mxu0 0.0
    %4121 = vmatpush1.msra.mxu0 0.0
    %4122 = vmatprep.subr.mxu0 0.0
    %4123 = vmatpush1.msra.mxu0 0.0
    %4124 = vmatprep.subr.mxu0 0.0
    %4125 = vmatpush1.msra.mxu0 0.0
    %4126 = vmatprep.subr.mxu0 0.0
    %4127 = vmatpush1.msra.mxu0 0.0
    %4128 = vmatprep.subr.mxu0 0.0
    %4129 = vmatpush1.msra.mxu0 0.0
    %4130 = vmatprep.subr.mxu0 0.0
    %4131 = vmatpush1.msra.mxu0 0.0
    %4132 = vmatprep.subr.mxu0 0.0
    %4133 = vmatpush1.msra.mxu0 0.0
    %4134 = vmatprep.subr.mxu0 0.0
    %4135 = vmatpush1.msra.mxu0 0.0
    %4136 = vmatprep.subr.mxu0 0.0
    %4137 = vmatpush1.msra.mxu0 0.0
    %4138 = vmatprep.mubr.f32.mxu0 0.0
    %4139 = vmatmul.mubr.f32.gmra.mrb[0].mxu0 %v3880
    %v4140 = vpop.f32.mrb[0].mxu0
    %v4141 = vadd.f32 0.0, %v4140
    %v4142 = vpop.f32.mrb[0].mxu0
    %4143 = vmatprep.mubr.f32.mxu0 0.0
    %4144 = vmatmul.mubr.f32.gmra.mrb[0].mxu0 %v3883
    %v4145 = vpop.f32.mrb[0].mxu0
    %v4146 = vadd.f32 0.0, %v4145
    %v4147 = vpop.f32.mrb[0].mxu0
    %4148 = vmatprep.mubr.f32.mxu0 0.0
    %4149 = vmatmul.mubr.f32.gmra.mrb[0].mxu0 %v3886
    %v4150 = vpop.f32.mrb[0].mxu0
    %v4151 = vadd.f32 0.0, %v4150
    %v4152 = vpop.f32.mrb[0].mxu0
    %4153 = vmatprep.mubr.f32.mxu0 0.0
    %4154 = vmatmul.mubr.f32.gmra.mrb[0].mxu0 %v3889
    %v4155 = vpop.f32.mrb[0].mxu0
    %v4156 = vadd.f32 0.0, %v4155
    %v4157 = vpop.f32.mrb[0].mxu0
    %4158 = vmatprep.mubr.f32.mxu0 0.0
    %4159 = vmatmul.mubr.f32.gmra.mrb[0].mxu0 %v3892
    %v4160 = vpop.f32.mrb[0].mxu0
    %v4161 = vadd.f32 0.0, %v4160
    %v4162 = vpop.f32.mrb[0].mxu0
    %4163 = vmatprep.mubr.f32.mxu0 0.0
    %4164 = vmatmul.mubr.f32.gmra.mrb[0].mxu0 %v3895
    %v4165 = vpop.f32.mrb[0].mxu0
    %v4166 = vadd.f32 0.0, %v4165
    %v4167 = vpop.f32.mrb[0].mxu0
    %4168 = vmatprep.mubr.f32.mxu0 0.0
    %4169 = vmatmul.mubr.f32.gmra.mrb[0].mxu0 %v3898
    %v4170 = vpop.f32.mrb[0].mxu0
    %v4171 = vadd.f32 0.0, %v4170
    %v4172 = vpop.f32.mrb[0].mxu0
    %4173 = vmatprep.mubr.f32.mxu0 0.0
    %4174 = vmatmul.mubr.f32.gmra.mrb[0].mxu0 %v3901
    %v4175 = vpop.f32.mrb[0].mxu0
    %v4176 = vadd.f32 0.0, %v4175
    %v4177 = vpop.f32.mrb[0].mxu0
    %4178 = vmatprep.mubr.f32.mxu0 0.0
    %4179 = vmatmul.mubr.f32.gmra.mrb[0].mxu0 %v3904
    %v4180 = vpop.f32.mrb[0].mxu0
    %v4181 = vadd.f32 0.0, %v4180
    %v4182 = vpop.f32.mrb[0].mxu0
    %4183 = vmatprep.mubr.f32.mxu0 0.0
    %4184 = vmatmul.mubr.f32.gmra.mrb[0].mxu0 %v3907
    %v4185 = vpop.f32.mrb[0].mxu0
    %v4186 = vadd.f32 0.0, %v4185
    %v4187 = vpop.f32.mrb[0].mxu0
    %4188 = vmatprep.mubr.f32.mxu0 0.0
    %4189 = vmatmul.mubr.f32.gmra.mrb[0].mxu0 %v3910
    %v4190 = vpop.f32.mrb[0].mxu0
    %v4191 = vadd.f32 0.0, %v4190
    %v4192 = vpop.f32.mrb[0].mxu0
    %4193 = vmatprep.mubr.f32.mxu0 0.0
    %4194 = vmatmul.mubr.f32.gmra.mrb[0].mxu0 %v3913
    %v4195 = vpop.f32.mrb[0].mxu0
    %v4196 = vadd.f32 0.0, %v4195
    %v4197 = vpop.f32.mrb[0].mxu0
    %4198 = vmatprep.mubr.f32.mxu0 0.0
    %4199 = vmatmul.mubr.f32.gmra.mrb[0].mxu0 %v3916
    %v4200 = vpop.f32.mrb[0].mxu0
    %v4201 = vadd.f32 0.0, %v4200
    %v4202 = vpop.f32.mrb[0].mxu0
    %4203 = vmatprep.mubr.f32.mxu0 0.0
    %4204 = vmatmul.mubr.f32.gmra.mrb[0].mxu0 %v3919
    %v4205 = vpop.f32.mrb[0].mxu0
    %v4206 = vadd.f32 0.0, %v4205
    %v4207 = vpop.f32.mrb[0].mxu0
    %4208 = vmatprep.mubr.f32.mxu0 0.0
    %4209 = vmatmul.mubr.f32.gmra.mrb[0].mxu0 %v3922
    %v4210 = vpop.f32.mrb[0].mxu0
    %v4211 = vadd.f32 0.0, %v4210
    %v4212 = vpop.f32.mrb[0].mxu0
    %4213 = vmatprep.mubr.f32.mxu0 0.0
    %4214 = vmatmul.mubr.f32.gmra.mrb[0].mxu0 %v3925
    %v4215 = vpop.f32.mrb[0].mxu0
    %v4216 = vadd.f32 0.0, %v4215
    %v4217 = vpop.f32.mrb[0].mxu0
    %4218 = vmatprep.mubr.f32.mxu0 0.0
    %4219 = vmatmul.mubr.f32.gmra.mrb[0].mxu0 %v3928
    %v4220 = vpop.f32.mrb[0].mxu0
    %v4221 = vadd.f32 0.0, %v4220
    %v4222 = vpop.f32.mrb[0].mxu0
    %4223 = vmatprep.mubr.f32.mxu0 0.0
    %4224 = vmatmul.mubr.f32.gmra.mrb[0].mxu0 %v3931
    %v4225 = vpop.f32.mrb[0].mxu0
    %v4226 = vadd.f32 0.0, %v4225
    %v4227 = vpop.f32.mrb[0].mxu0
    %4228 = vmatprep.mubr.f32.mxu0 0.0
    %4229 = vmatmul.mubr.f32.gmra.mrb[0].mxu0 %v3934
    %v4230 = vpop.f32.mrb[0].mxu0
    %v4231 = vadd.f32 0.0, %v4230
    %v4232 = vpop.f32.mrb[0].mxu0
    %4233 = vmatprep.mubr.f32.mxu0 0.0
    %4234 = vmatmul.mubr.f32.gmra.mrb[0].mxu0 %v3937
    %v4235 = vpop.f32.mrb[0].mxu0
    %v4236 = vadd.f32 0.0, %v4235
    %v4237 = vpop.f32.mrb[0].mxu0
    %4238 = vmatprep.mubr.f32.mxu0 0.0
    %4239 = vmatmul.mubr.f32.gmra.mrb[0].mxu0 %v3940
    %v4240 = vpop.f32.mrb[0].mxu0
    %v4241 = vadd.f32 0.0, %v4240
    %v4242 = vpop.f32.mrb[0].mxu0
    %4243 = vmatprep.mubr.f32.mxu0 0.0
    %4244 = vmatmul.mubr.f32.gmra.mrb[0].mxu0 %v3943
    %v4245 = vpop.f32.mrb[0].mxu0
    %v4246 = vadd.f32 0.0, %v4245
    %v4247 = vpop.f32.mrb[0].mxu0
    %4248 = vmatprep.mubr.f32.mxu0 0.0
    %4249 = vmatmul.mubr.f32.gmra.mrb[0].mxu0 %v3946
    %v4250 = vpop.f32.mrb[0].mxu0
    %v4251 = vadd.f32 0.0, %v4250
    %v4252 = vpop.f32.mrb[0].mxu0
    %4253 = vmatprep.mubr.f32.mxu0 0.0
    %4254 = vmatmul.mubr.f32.gmra.mrb[0].mxu0 %v3949
    %v4255 = vpop.f32.mrb[0].mxu0
    %v4256 = vadd.f32 0.0, %v4255
    %v4257 = vpop.f32.mrb[0].mxu0
    %4258 = vmatprep.mubr.f32.mxu0 0.0
    %4259 = vmatmul.mubr.f32.gmra.mrb[0].mxu0 %v3952
    %v4260 = vpop.f32.mrb[0].mxu0
    %v4261 = vadd.f32 0.0, %v4260
    %v4262 = vpop.f32.mrb[0].mxu0
    %4263 = vmatprep.mubr.f32.mxu0 0.0
    %4264 = vmatmul.mubr.f32.gmra.mrb[0].mxu0 %v3955
    %v4265 = vpop.f32.mrb[0].mxu0
    %v4266 = vadd.f32 0.0, %v4265
    %v4267 = vpop.f32.mrb[0].mxu0
    %4268 = vmatprep.mubr.f32.mxu0 0.0
    %4269 = vmatmul.mubr.f32.gmra.mrb[0].mxu0 %v3958
    %v4270 = vpop.f32.mrb[0].mxu0
    %v4271 = vadd.f32 0.0, %v4270
    %v4272 = vpop.f32.mrb[0].mxu0
    %4273 = vmatprep.mubr.f32.mxu0 0.0
    %4274 = vmatmul.mubr.f32.gmra.mrb[0].mxu0 %v3961
    %v4275 = vpop.f32.mrb[0].mxu0
    %v4276 = vadd.f32 0.0, %v4275
    %v4277 = vpop.f32.mrb[0].mxu0
    %4278 = vmatprep.mubr.f32.mxu0 0.0
    %4279 = vmatmul.mubr.f32.gmra.mrb[0].mxu0 %v3964
    %v4280 = vpop.f32.mrb[0].mxu0
    %v4281 = vadd.f32 0.0, %v4280
    %v4282 = vpop.f32.mrb[0].mxu0
    %4283 = vmatprep.mubr.f32.mxu0 0.0
    %4284 = vmatmul.mubr.f32.gmra.mrb[0].mxu0 %v3967
    %v4285 = vpop.f32.mrb[0].mxu0
    %v4286 = vadd.f32 0.0, %v4285
    %v4287 = vpop.f32.mrb[0].mxu0
    %4288 = vmatprep.mubr.f32.mxu0 0.0
    %4289 = vmatmul.mubr.f32.gmra.mrb[0].mxu0 %v3970
    %v4290 = vpop.f32.mrb[0].mxu0
    %v4291 = vadd.f32 0.0, %v4290
    %v4292 = vpop.f32.mrb[0].mxu0
    %4293 = vmatprep.mubr.f32.mxu0 0.0
    %4294 = vmatmul.mubr.f32.gmra.mrb[0].mxu0 %v3973
    %v4295 = vpop.f32.mrb[0].mxu0
    %v4296 = vadd.f32 0.0, %v4295
    %v4297 = vpop.f32.mrb[0].mxu0
    %4298 = vmatprep.mubr.f32.mxu0 0.0
    %4299 = vmatmul.mubr.f32.gmra.mrb[0].mxu0 %v3976
    %v4300 = vpop.f32.mrb[0].mxu0
    %v4301 = vadd.f32 0.0, %v4300
    %v4302 = vpop.f32.mrb[0].mxu0
    %4303 = vmatprep.mubr.f32.mxu0 0.0
    %4304 = vmatmul.mubr.f32.gmra.mrb[0].mxu0 %v3979
    %v4305 = vpop.f32.mrb[0].mxu0
    %v4306 = vadd.f32 0.0, %v4305
    %v4307 = vpop.f32.mrb[0].mxu0
    %4308 = vmatprep.mubr.f32.mxu0 0.0
    %4309 = vmatmul.mubr.f32.gmra.mrb[0].mxu0 %v3982
    %v4310 = vpop.f32.mrb[0].mxu0
    %v4311 = vadd.f32 0.0, %v4310
    %v4312 = vpop.f32.mrb[0].mxu0
    %4313 = vmatprep.mubr.f32.mxu0 0.0
    %4314 = vmatmul.mubr.f32.gmra.mrb[0].mxu0 %v3985
    %v4315 = vpop.f32.mrb[0].mxu0
    %v4316 = vadd.f32 0.0, %v4315
    %v4317 = vpop.f32.mrb[0].mxu0
    %4318 = vmatprep.mubr.f32.mxu0 0.0
    %4319 = vmatmul.mubr.f32.gmra.mrb[0].mxu0 %v3988
    %v4320 = vpop.f32.mrb[0].mxu0
    %v4321 = vadd.f32 0.0, %v4320
    %v4322 = vpop.f32.mrb[0].mxu0
    %4323 = vmatprep.mubr.f32.mxu0 0.0
    %4324 = vmatmul.mubr.f32.gmra.mrb[0].mxu0 %v3991
    %v4325 = vpop.f32.mrb[0].mxu0
    %v4326 = vadd.f32 0.0, %v4325
    %v4327 = vpop.f32.mrb[0].mxu0
    %4328 = vmatprep.mubr.f32.mxu0 0.0
    %4329 = vmatmul.mubr.f32.gmra.mrb[0].mxu0 %v3994
    %v4330 = vpop.f32.mrb[0].mxu0
    %v4331 = vadd.f32 0.0, %v4330
    %v4332 = vpop.f32.mrb[0].mxu0
    %4333 = vmatprep.mubr.f32.mxu0 0.0
    %4334 = vmatmul.mubr.f32.gmra.mrb[0].mxu0 %v3997
    %v4335 = vpop.f32.mrb[0].mxu0
    %v4336 = vadd.f32 0.0, %v4335
    %v4337 = vpop.f32.mrb[0].mxu0
    %4338 = vmatprep.mubr.f32.mxu0 0.0
    %4339 = vmatmul.mubr.f32.gmra.mrb[0].mxu0 %v4000
    %v4340 = vpop.f32.mrb[0].mxu0
    %v4341 = vadd.f32 0.0, %v4340
    %v4342 = vpop.f32.mrb[0].mxu0
    %4343 = vmatprep.mubr.f32.mxu0 0.0
    %4344 = vmatmul.mubr.f32.gmra.mrb[0].mxu0 %v4003
    %v4345 = vpop.f32.mrb[0].mxu0
    %v4346 = vadd.f32 0.0, %v4345
    %v4347 = vpop.f32.mrb[0].mxu0
    %4348 = vmatprep.mubr.f32.mxu0 0.0
    %4349 = vmatmul.mubr.f32.gmra.mrb[0].mxu0 %v4006
    %v4350 = vpop.f32.mrb[0].mxu0
    %v4351 = vadd.f32 0.0, %v4350
    %v4352 = vpop.f32.mrb[0].mxu0
    %4353 = vmatprep.mubr.f32.mxu0 0.0
    %4354 = vmatmul.mubr.f32.gmra.mrb[0].mxu0 %v4009
    %v4355 = vpop.f32.mrb[0].mxu0
    %v4356 = vadd.f32 0.0, %v4355
    %v4357 = vpop.f32.mrb[0].mxu0
    %4358 = vmatprep.mubr.f32.mxu0 0.0
    %4359 = vmatmul.mubr.f32.gmra.mrb[0].mxu0 %v4012
    %v4360 = vpop.f32.mrb[0].mxu0
    %v4361 = vadd.f32 0.0, %v4360
    %v4362 = vpop.f32.mrb[0].mxu0
    %4363 = vmatprep.mubr.f32.mxu0 0.0
    %4364 = vmatmul.mubr.f32.gmra.mrb[0].mxu0 %v4015
    %v4365 = vpop.f32.mrb[0].mxu0
    %v4366 = vadd.f32 0.0, %v4365
    %v4367 = vpop.f32.mrb[0].mxu0
    %4368 = vmatprep.mubr.f32.mxu0 0.0
    %4369 = vmatmul.mubr.f32.gmra.mrb[0].mxu0 %v4018
    %v4370 = vpop.f32.mrb[0].mxu0
    %v4371 = vadd.f32 0.0, %v4370
    %v4372 = vpop.f32.mrb[0].mxu0
    %4373 = vmatprep.mubr.f32.mxu0 0.0
    %4374 = vmatmul.mubr.f32.gmra.mrb[0].mxu0 %v4021
    %v4375 = vpop.f32.mrb[0].mxu0
    %v4376 = vadd.f32 0.0, %v4375
    %v4377 = vpop.f32.mrb[0].mxu0
    %4378 = vmatprep.mubr.f32.mxu0 0.0
    %4379 = vmatmul.mubr.f32.gmra.mrb[0].mxu0 %v4024
    %v4380 = vpop.f32.mrb[0].mxu0
    %v4381 = vadd.f32 0.0, %v4380
    %v4382 = vpop.f32.mrb[0].mxu0
    %4383 = vmatprep.mubr.f32.mxu0 0.0
    %4384 = vmatmul.mubr.f32.gmra.mrb[0].mxu0 %v4027
    %v4385 = vpop.f32.mrb[0].mxu0
    %v4386 = vadd.f32 0.0, %v4385
    %v4387 = vpop.f32.mrb[0].mxu0
    %4388 = vmatprep.mubr.f32.mxu0 0.0
    %4389 = vmatmul.mubr.f32.gmra.mrb[0].mxu0 %v4030
    %v4390 = vpop.f32.mrb[0].mxu0
    %v4391 = vadd.f32 0.0, %v4390
    %v4392 = vpop.f32.mrb[0].mxu0
    %4393 = vmatprep.mubr.f32.mxu0 0.0
    %4394 = vmatmul.mubr.f32.gmra.mrb[0].mxu0 %v4033
    %v4395 = vpop.f32.mrb[0].mxu0
    %v4396 = vadd.f32 0.0, %v4395
    %v4397 = vpop.f32.mrb[0].mxu0
    %4398 = vmatprep.mubr.f32.mxu0 0.0
    %4399 = vmatmul.mubr.f32.gmra.mrb[0].mxu0 %v4036
    %v4400 = vpop.f32.mrb[0].mxu0
    %v4401 = vadd.f32 0.0, %v4400
    %v4402 = vpop.f32.mrb[0].mxu0
    %4403 = vmatprep.mubr.f32.mxu0 0.0
    %4404 = vmatmul.mubr.f32.gmra.mrb[0].mxu0 %v4039
    %v4405 = vpop.f32.mrb[0].mxu0
    %v4406 = vadd.f32 0.0, %v4405
    %v4407 = vpop.f32.mrb[0].mxu0
    %4408 = vmatprep.mubr.f32.mxu0 0.0
    %4409 = vmatmul.mubr.f32.gmra.mrb[0].mxu0 %v4042
    %v4410 = vpop.f32.mrb[0].mxu0
    %v4411 = vadd.f32 0.0, %v4410
    %v4412 = vpop.f32.mrb[0].mxu0
    %4413 = vmatprep.mubr.f32.mxu0 0.0
    %4414 = vmatmul.mubr.f32.gmra.mrb[0].mxu0 %v4045
    %v4415 = vpop.f32.mrb[0].mxu0
    %v4416 = vadd.f32 0.0, %v4415
    %v4417 = vpop.f32.mrb[0].mxu0
    %4418 = vmatprep.mubr.f32.mxu0 0.0
    %4419 = vmatmul.mubr.f32.gmra.mrb[0].mxu0 %v4048
    %v4420 = vpop.f32.mrb[0].mxu0
    %v4421 = vadd.f32 0.0, %v4420
    %v4422 = vpop.f32.mrb[0].mxu0
    %4423 = vmatprep.mubr.f32.mxu0 0.0
    %4424 = vmatmul.mubr.f32.gmra.mrb[0].mxu0 %v4051
    %v4425 = vpop.f32.mrb[0].mxu0
    %v4426 = vadd.f32 0.0, %v4425
    %v4427 = vpop.f32.mrb[0].mxu0
    %4428 = vmatprep.mubr.f32.mxu0 0.0
    %4429 = vmatmul.mubr.f32.gmra.mrb[0].mxu0 %v4054
    %v4430 = vpop.f32.mrb[0].mxu0
    %v4431 = vadd.f32 0.0, %v4430
    %v4432 = vpop.f32.mrb[0].mxu0
    %4433 = vmatprep.mubr.f32.mxu0 0.0
    %4434 = vmatmul.mubr.f32.gmra.mrb[0].mxu0 %v4057
    %v4435 = vpop.f32.mrb[0].mxu0
    %v4436 = vadd.f32 0.0, %v4435
    %v4437 = vpop.f32.mrb[0].mxu0
    %4438 = vmatprep.mubr.f32.mxu0 0.0
    %4439 = vmatmul.mubr.f32.gmra.mrb[0].mxu0 %v4060
    %v4440 = vpop.f32.mrb[0].mxu0
    %v4441 = vadd.f32 0.0, %v4440
    %v4442 = vpop.f32.mrb[0].mxu0
    %4443 = vmatprep.mubr.f32.mxu0 0.0
    %4444 = vmatmul.mubr.f32.gmra.mrb[0].mxu0 %v4063
    %v4445 = vpop.f32.mrb[0].mxu0
    %v4446 = vadd.f32 0.0, %v4445
    %v4447 = vpop.f32.mrb[0].mxu0
    %4448 = vmatprep.mubr.f32.mxu0 0.0
    %4449 = vmatmul.mubr.f32.gmra.mrb[0].mxu0 %v4066
    %v4450 = vpop.f32.mrb[0].mxu0
    %v4451 = vadd.f32 0.0, %v4450
    %v4452 = vpop.f32.mrb[0].mxu0
    %4453 = vmatprep.mubr.f32.mxu0 0.0
    %4454 = vmatmul.mubr.f32.gmra.mrb[0].mxu0 %v4069
    %v4455 = vpop.f32.mrb[0].mxu0
    %v4456 = vadd.f32 0.0, %v4455
    %v4457 = vpop.f32.mrb[0].mxu0
    %4458 = vdwg.mxu0
    %v4459 = vsel %vm2439, %v4141, 0.0
    %v4460 = vsel %vm2439, %v4146, 0.0
    %v4461 = vadd.f32 %v4459, %v4460
    %v4462 = vsel %vm2439, %v4151, 0.0
    %v4463 = vadd.f32 %v4461, %v4462
    %v4464 = vsel %vm2439, %v4156, 0.0
    %v4465 = vadd.f32 %v4463, %v4464
    %v4466 = vsel %vm2439, %v4161, 0.0
    %v4467 = vadd.f32 %v4465, %v4466
    %v4468 = vsel %vm2439, %v4166, 0.0
    %v4469 = vadd.f32 %v4467, %v4468
    %v4470 = vsel %vm2439, %v4171, 0.0
    %v4471 = vadd.f32 %v4469, %v4470
    %v4472 = vsel %vm2439, %v4176, 0.0
    %v4473 = vadd.f32 %v4471, %v4472
    %v4474 = vsel %vm2439, %v4181, 0.0
    %v4475 = vadd.f32 %v4473, %v4474
    %v4476 = vsel %vm2439, %v4186, 0.0
    %v4477 = vadd.f32 %v4475, %v4476
    %v4478 = vsel %vm2439, %v4191, 0.0
    %v4479 = vadd.f32 %v4477, %v4478
    %v4480 = vsel %vm2439, %v4196, 0.0
    %v4481 = vadd.f32 %v4479, %v4480
    %v4482 = vsel %vm2439, %v4201, 0.0
    %v4483 = vadd.f32 %v4481, %v4482
    %v4484 = vsel %vm2439, %v4206, 0.0
    %v4485 = vadd.f32 %v4483, %v4484
    %v4486 = vsel %vm2439, %v4211, 0.0
    %v4487 = vadd.f32 %v4485, %v4486
    %v4488 = vsel %vm2439, %v4216, 0.0
    %v4489 = vadd.f32 %v4487, %v4488
    %v4490 = vsel %vm2439, %v4221, 0.0
    %v4491 = vadd.f32 %v4489, %v4490
    %v4492 = vsel %vm2439, %v4226, 0.0
    %v4493 = vadd.f32 %v4491, %v4492
    %v4494 = vsel %vm2439, %v4231, 0.0
    %v4495 = vadd.f32 %v4493, %v4494
    %v4496 = vsel %vm2439, %v4236, 0.0
    %v4497 = vadd.f32 %v4495, %v4496
    %v4498 = vsel %vm2439, %v4241, 0.0
    %v4499 = vadd.f32 %v4497, %v4498
    %v4500 = vsel %vm2439, %v4246, 0.0
    %v4501 = vadd.f32 %v4499, %v4500
    %v4502 = vsel %vm2439, %v4251, 0.0
    %v4503 = vadd.f32 %v4501, %v4502
    %v4504 = vsel %vm2439, %v4256, 0.0
    %v4505 = vadd.f32 %v4503, %v4504
    %v4506 = vsel %vm2439, %v4261, 0.0
    %v4507 = vadd.f32 %v4505, %v4506
    %v4508 = vsel %vm2439, %v4266, 0.0
    %v4509 = vadd.f32 %v4507, %v4508
    %v4510 = vsel %vm2439, %v4271, 0.0
    %v4511 = vadd.f32 %v4509, %v4510
    %v4512 = vsel %vm2439, %v4276, 0.0
    %v4513 = vadd.f32 %v4511, %v4512
    %v4514 = vsel %vm2439, %v4281, 0.0
    %v4515 = vadd.f32 %v4513, %v4514
    %v4516 = vsel %vm2439, %v4286, 0.0
    %v4517 = vadd.f32 %v4515, %v4516
    %v4518 = vsel %vm2439, %v4291, 0.0
    %v4519 = vadd.f32 %v4517, %v4518
    %v4520 = vsel %vm2439, %v4296, 0.0
    %v4521 = vadd.f32 %v4519, %v4520
    %v4522 = vsel %vm2439, %v4301, 0.0
    %v4523 = vadd.f32 %v4521, %v4522
    %v4524 = vsel %vm2439, %v4306, 0.0
    %v4525 = vadd.f32 %v4523, %v4524
    %v4526 = vsel %vm2439, %v4311, 0.0
    %v4527 = vadd.f32 %v4525, %v4526
    %v4528 = vsel %vm2439, %v4316, 0.0
    %v4529 = vadd.f32 %v4527, %v4528
    %v4530 = vsel %vm2439, %v4321, 0.0
    %v4531 = vadd.f32 %v4529, %v4530
    %v4532 = vsel %vm2439, %v4326, 0.0
    %v4533 = vadd.f32 %v4531, %v4532
    %v4534 = vsel %vm2439, %v4331, 0.0
    %v4535 = vadd.f32 %v4533, %v4534
    %v4536 = vsel %vm2439, %v4336, 0.0
    %v4537 = vadd.f32 %v4535, %v4536
    %v4538 = vsel %vm2439, %v4341, 0.0
    %v4539 = vadd.f32 %v4537, %v4538
    %v4540 = vsel %vm2439, %v4346, 0.0
    %v4541 = vadd.f32 %v4539, %v4540
    %v4542 = vsel %vm2439, %v4351, 0.0
    %v4543 = vadd.f32 %v4541, %v4542
    %v4544 = vsel %vm2439, %v4356, 0.0
    %v4545 = vadd.f32 %v4543, %v4544
    %v4546 = vsel %vm2439, %v4361, 0.0
    %v4547 = vadd.f32 %v4545, %v4546
    %v4548 = vsel %vm2439, %v4366, 0.0
    %v4549 = vadd.f32 %v4547, %v4548
    %v4550 = vsel %vm2439, %v4371, 0.0
    %v4551 = vadd.f32 %v4549, %v4550
    %v4552 = vsel %vm2439, %v4376, 0.0
    %v4553 = vadd.f32 %v4551, %v4552
    %v4554 = vsel %vm2439, %v4381, 0.0
    %v4555 = vadd.f32 %v4553, %v4554
    %v4556 = vsel %vm2439, %v4386, 0.0
    %v4557 = vadd.f32 %v4555, %v4556
    %v4558 = vsel %vm2439, %v4391, 0.0
    %v4559 = vadd.f32 %v4557, %v4558
    %v4560 = vsel %vm2439, %v4396, 0.0
    %v4561 = vadd.f32 %v4559, %v4560
    %v4562 = vsel %vm2439, %v4401, 0.0
    %v4563 = vadd.f32 %v4561, %v4562
    %v4564 = vsel %vm2439, %v4406, 0.0
    %v4565 = vadd.f32 %v4563, %v4564
    %v4566 = vsel %vm2439, %v4411, 0.0
    %v4567 = vadd.f32 %v4565, %v4566
    %v4568 = vsel %vm2439, %v4416, 0.0
    %v4569 = vadd.f32 %v4567, %v4568
    %v4570 = vsel %vm2439, %v4421, 0.0
    %v4571 = vadd.f32 %v4569, %v4570
    %v4572 = vsel %vm2439, %v4426, 0.0
    %v4573 = vadd.f32 %v4571, %v4572
    %v4574 = vsel %vm2439, %v4431, 0.0
    %v4575 = vadd.f32 %v4573, %v4574
    %v4576 = vsel %vm2439, %v4436, 0.0
    %v4577 = vadd.f32 %v4575, %v4576
    %v4578 = vsel %vm2439, %v4441, 0.0
    %v4579 = vadd.f32 %v4577, %v4578
    %v4580 = vsel %vm2439, %v4446, 0.0
    %v4581 = vadd.f32 %v4579, %v4580
    %v4582 = vsel %vm2439, %v4451, 0.0
    %v4583 = vadd.f32 %v4581, %v4582
    %v4584 = vsel %vm2439, %v4456, 0.0
    %v4585 = vadd.f32 %v4583, %v4584
    %v4586 = vrot.slane %v4585, 4
    %v4587 = vadd.f32 %v4585, %v4586
    %v4588 = vrot.slane %v4587, 2
    %v4589 = vadd.f32 %v4587, %v4588
    %v4590 = vrot.slane %v4589, 1
    %v4591 = vadd.f32 %v4589, %v4590
    %4592 = vst.msk [vmem:[#allocation7] sm:$0x1] %vm3678, %v4591
    %v4593 = vmul.f32 %v4141, %v4141
    %v4594 = vmul.f32 %v4146, %v4146
    %v4595 = vmul.f32 %v4151, %v4151
    %v4596 = vmul.f32 %v4156, %v4156
    %v4597 = vmul.f32 %v4161, %v4161
    %v4598 = vmul.f32 %v4166, %v4166
    %v4599 = vmul.f32 %v4171, %v4171
    %v4600 = vmul.f32 %v4176, %v4176
    %v4601 = vmul.f32 %v4181, %v4181
    %v4602 = vmul.f32 %v4186, %v4186
    %v4603 = vmul.f32 %v4191, %v4191
    %v4604 = vmul.f32 %v4196, %v4196
    %v4605 = vmul.f32 %v4201, %v4201
    %v4606 = vmul.f32 %v4206, %v4206
    %v4607 = vmul.f32 %v4211, %v4211
    %v4608 = vmul.f32 %v4216, %v4216
    %v4609 = vmul.f32 %v4221, %v4221
    %v4610 = vmul.f32 %v4226, %v4226
    %v4611 = vmul.f32 %v4231, %v4231
    %v4612 = vmul.f32 %v4236, %v4236
    %v4613 = vmul.f32 %v4241, %v4241
    %v4614 = vmul.f32 %v4246, %v4246
    %v4615 = vmul.f32 %v4251, %v4251
    %v4616 = vmul.f32 %v4256, %v4256
    %v4617 = vmul.f32 %v4261, %v4261
    %v4618 = vmul.f32 %v4266, %v4266
    %v4619 = vmul.f32 %v4271, %v4271
    %v4620 = vmul.f32 %v4276, %v4276
    %v4621 = vmul.f32 %v4281, %v4281
    %v4622 = vmul.f32 %v4286, %v4286
    %v4623 = vmul.f32 %v4291, %v4291
    %v4624 = vmul.f32 %v4296, %v4296
    %v4625 = vmul.f32 %v4301, %v4301
    %v4626 = vmul.f32 %v4306, %v4306
    %v4627 = vmul.f32 %v4311, %v4311
    %v4628 = vmul.f32 %v4316, %v4316
    %v4629 = vmul.f32 %v4321, %v4321
    %v4630 = vmul.f32 %v4326, %v4326
    %v4631 = vmul.f32 %v4331, %v4331
    %v4632 = vmul.f32 %v4336, %v4336
    %v4633 = vmul.f32 %v4341, %v4341
    %v4634 = vmul.f32 %v4346, %v4346
    %v4635 = vmul.f32 %v4351, %v4351
    %v4636 = vmul.f32 %v4356, %v4356
    %v4637 = vmul.f32 %v4361, %v4361
    %v4638 = vmul.f32 %v4366, %v4366
    %v4639 = vmul.f32 %v4371, %v4371
    %v4640 = vmul.f32 %v4376, %v4376
    %v4641 = vmul.f32 %v4381, %v4381
    %v4642 = vmul.f32 %v4386, %v4386
    %v4643 = vmul.f32 %v4391, %v4391
    %v4644 = vmul.f32 %v4396, %v4396
    %v4645 = vmul.f32 %v4401, %v4401
    %v4646 = vmul.f32 %v4406, %v4406
    %v4647 = vmul.f32 %v4411, %v4411
    %v4648 = vmul.f32 %v4416, %v4416
    %v4649 = vmul.f32 %v4421, %v4421
    %v4650 = vmul.f32 %v4426, %v4426
    %v4651 = vmul.f32 %v4431, %v4431
    %v4652 = vmul.f32 %v4436, %v4436
    %v4653 = vmul.f32 %v4441, %v4441
    %v4654 = vmul.f32 %v4446, %v4446
    %v4655 = vmul.f32 %v4451, %v4451
    %v4656 = vmul.f32 %v4456, %v4456
    %v4657 = vsel %vm2439, %v4593, 0.0
    %v4658 = vsel %vm2439, %v4594, 0.0
    %v4659 = vadd.f32 %v4657, %v4658
    %v4660 = vsel %vm2439, %v4595, 0.0
    %v4661 = vadd.f32 %v4659, %v4660
    %v4662 = vsel %vm2439, %v4596, 0.0
    %v4663 = vadd.f32 %v4661, %v4662
    %v4664 = vsel %vm2439, %v4597, 0.0
    %v4665 = vadd.f32 %v4663, %v4664
    %v4666 = vsel %vm2439, %v4598, 0.0
    %v4667 = vadd.f32 %v4665, %v4666
    %v4668 = vsel %vm2439, %v4599, 0.0
    %v4669 = vadd.f32 %v4667, %v4668
    %v4670 = vsel %vm2439, %v4600, 0.0
    %v4671 = vadd.f32 %v4669, %v4670
    %v4672 = vsel %vm2439, %v4601, 0.0
    %v4673 = vadd.f32 %v4671, %v4672
    %v4674 = vsel %vm2439, %v4602, 0.0
    %v4675 = vadd.f32 %v4673, %v4674
    %v4676 = vsel %vm2439, %v4603, 0.0
    %v4677 = vadd.f32 %v4675, %v4676
    %v4678 = vsel %vm2439, %v4604, 0.0
    %v4679 = vadd.f32 %v4677, %v4678
    %v4680 = vsel %vm2439, %v4605, 0.0
    %v4681 = vadd.f32 %v4679, %v4680
    %v4682 = vsel %vm2439, %v4606, 0.0
    %v4683 = vadd.f32 %v4681, %v4682
    %v4684 = vsel %vm2439, %v4607, 0.0
    %v4685 = vadd.f32 %v4683, %v4684
    %v4686 = vsel %vm2439, %v4608, 0.0
    %v4687 = vadd.f32 %v4685, %v4686
    %v4688 = vsel %vm2439, %v4609, 0.0
    %v4689 = vadd.f32 %v4687, %v4688
    %v4690 = vsel %vm2439, %v4610, 0.0
    %v4691 = vadd.f32 %v4689, %v4690
    %v4692 = vsel %vm2439, %v4611, 0.0
    %v4693 = vadd.f32 %v4691, %v4692
    %v4694 = vsel %vm2439, %v4612, 0.0
    %v4695 = vadd.f32 %v4693, %v4694
    %v4696 = vsel %vm2439, %v4613, 0.0
    %v4697 = vadd.f32 %v4695, %v4696
    %v4698 = vsel %vm2439, %v4614, 0.0
    %v4699 = vadd.f32 %v4697, %v4698
    %v4700 = vsel %vm2439, %v4615, 0.0
    %v4701 = vadd.f32 %v4699, %v4700
    %v4702 = vsel %vm2439, %v4616, 0.0
    %v4703 = vadd.f32 %v4701, %v4702
    %v4704 = vsel %vm2439, %v4617, 0.0
    %v4705 = vadd.f32 %v4703, %v4704
    %v4706 = vsel %vm2439, %v4618, 0.0
    %v4707 = vadd.f32 %v4705, %v4706
    %v4708 = vsel %vm2439, %v4619, 0.0
    %v4709 = vadd.f32 %v4707, %v4708
    %v4710 = vsel %vm2439, %v4620, 0.0
    %v4711 = vadd.f32 %v4709, %v4710
    %v4712 = vsel %vm2439, %v4621, 0.0
    %v4713 = vadd.f32 %v4711, %v4712
    %v4714 = vsel %vm2439, %v4622, 0.0
    %v4715 = vadd.f32 %v4713, %v4714
    %v4716 = vsel %vm2439, %v4623, 0.0
    %v4717 = vadd.f32 %v4715, %v4716
    %v4718 = vsel %vm2439, %v4624, 0.0
    %v4719 = vadd.f32 %v4717, %v4718
    %v4720 = vsel %vm2439, %v4625, 0.0
    %v4721 = vadd.f32 %v4719, %v4720
    %v4722 = vsel %vm2439, %v4626, 0.0
    %v4723 = vadd.f32 %v4721, %v4722
    %v4724 = vsel %vm2439, %v4627, 0.0
    %v4725 = vadd.f32 %v4723, %v4724
    %v4726 = vsel %vm2439, %v4628, 0.0
    %v4727 = vadd.f32 %v4725, %v4726
    %v4728 = vsel %vm2439, %v4629, 0.0
    %v4729 = vadd.f32 %v4727, %v4728
    %v4730 = vsel %vm2439, %v4630, 0.0
    %v4731 = vadd.f32 %v4729, %v4730
    %v4732 = vsel %vm2439, %v4631, 0.0
    %v4733 = vadd.f32 %v4731, %v4732
    %v4734 = vsel %vm2439, %v4632, 0.0
    %v4735 = vadd.f32 %v4733, %v4734
    %v4736 = vsel %vm2439, %v4633, 0.0
    %v4737 = vadd.f32 %v4735, %v4736
    %v4738 = vsel %vm2439, %v4634, 0.0
    %v4739 = vadd.f32 %v4737, %v4738
    %v4740 = vsel %vm2439, %v4635, 0.0
    %v4741 = vadd.f32 %v4739, %v4740
    %v4742 = vsel %vm2439, %v4636, 0.0
    %v4743 = vadd.f32 %v4741, %v4742
    %v4744 = vsel %vm2439, %v4637, 0.0
    %v4745 = vadd.f32 %v4743, %v4744
    %v4746 = vsel %vm2439, %v4638, 0.0
    %v4747 = vadd.f32 %v4745, %v4746
    %v4748 = vsel %vm2439, %v4639, 0.0
    %v4749 = vadd.f32 %v4747, %v4748
    %v4750 = vsel %vm2439, %v4640, 0.0
    %v4751 = vadd.f32 %v4749, %v4750
    %v4752 = vsel %vm2439, %v4641, 0.0
    %v4753 = vadd.f32 %v4751, %v4752
    %v4754 = vsel %vm2439, %v4642, 0.0
    %v4755 = vadd.f32 %v4753, %v4754
    %v4756 = vsel %vm2439, %v4643, 0.0
    %v4757 = vadd.f32 %v4755, %v4756
    %v4758 = vsel %vm2439, %v4644, 0.0
    %v4759 = vadd.f32 %v4757, %v4758
    %v4760 = vsel %vm2439, %v4645, 0.0
    %v4761 = vadd.f32 %v4759, %v4760
    %v4762 = vsel %vm2439, %v4646, 0.0
    %v4763 = vadd.f32 %v4761, %v4762
    %v4764 = vsel %vm2439, %v4647, 0.0
    %v4765 = vadd.f32 %v4763, %v4764
    %v4766 = vsel %vm2439, %v4648, 0.0
    %v4767 = vadd.f32 %v4765, %v4766
    %v4768 = vsel %vm2439, %v4649, 0.0
    %v4769 = vadd.f32 %v4767, %v4768
    %v4770 = vsel %vm2439, %v4650, 0.0
    %v4771 = vadd.f32 %v4769, %v4770
    %v4772 = vsel %vm2439, %v4651, 0.0
    %v4773 = vadd.f32 %v4771, %v4772
    %v4774 = vsel %vm2439, %v4652, 0.0
    %v4775 = vadd.f32 %v4773, %v4774
    %v4776 = vsel %vm2439, %v4653, 0.0
    %v4777 = vadd.f32 %v4775, %v4776
    %v4778 = vsel %vm2439, %v4654, 0.0
    %v4779 = vadd.f32 %v4777, %v4778
    %v4780 = vsel %vm2439, %v4655, 0.0
    %v4781 = vadd.f32 %v4779, %v4780
    %v4782 = vsel %vm2439, %v4656, 0.0
    %v4783 = vadd.f32 %v4781, %v4782
    %v4784 = vrot.slane %v4783, 4
    %v4785 = vadd.f32 %v4783, %v4784
    %v4786 = vrot.slane %v4785, 2
    %v4787 = vadd.f32 %v4785, %v4786
    %v4788 = vrot.slane %v4787, 1
    %v4789 = vadd.f32 %v4787, %v4788
    %4790 = vst.msk [vmem:[#allocation8] sm:$0x1] %vm3678, %v4789
    // Predicated region
    $region14: #{tpu_custom_call.1} parent=1 // pred_check
      _
    $region15: #{tpu_custom_call.1} parent=1 // pred_check_branch
      %4792 = sbr.rel (0) target = $region17
    $region16: #{tpu_custom_call.1} parent=1 // pred_region
      _
    $region17: #{tpu_custom_call.1} parent=1 // pred_fallthru
      _
    // Predicated region
    $region18: #{tpu_custom_call.1} parent=1 // pred_check
      _
    $region19: #{tpu_custom_call.1} parent=1 // pred_check_branch
      %4794 = sbr.rel (0) target = $region21
    $region20: #{tpu_custom_call.1} parent=1 // pred_region
      %s4796 = ssub.s32 16, 16
      %4797 = vsyncadd [#allocation4], %s4796
      %s4799 = sshll.u32 [#allocation3], 4
      %s4800 = int_to_ptr.vmem [resolvable:$true] %s4799
      %4802 = dma.vmem_to_hbm [thread:$0]  %s4800, 16, %s4, [#allocation4]
    $region21: #{tpu_custom_call.1} parent=1 // pred_fallthru
      _
    // Predicated region
    $region22: #{tpu_custom_call.1} parent=1 // pred_check
      _
    $region23: #{tpu_custom_call.1} parent=1 // pred_check_branch
      %4804 = sbr.rel (0) target = $region25
    $region24: #{tpu_custom_call.1} parent=1 // pred_region
      %s4806 = ssub.s32 16, 16
      %4807 = vsyncadd [#allocation6], %s4806
      %s4809 = sshll.u32 [#allocation5], 4
      %s4810 = int_to_ptr.vmem [resolvable:$true] %s4809
      %4812 = dma.vmem_to_hbm [thread:$0]  %s4810, 16, %s5, [#allocation6]
    $region25: #{tpu_custom_call.1} parent=1 // pred_fallthru
      _
    // Predicated region
    $region26: #{tpu_custom_call.1} parent=1 // pred_check
      _
    $region27: #{tpu_custom_call.1} parent=1 // pred_check_branch
      %4814 = sbr.rel (0) target = $region29
    $region28: #{tpu_custom_call.1} parent=1 // pred_region
      %s4816 = ssub.s32 16, 16
      %4817 = vsyncadd [#allocation6], %s4816
      %s4819 = sshll.u32 [#allocation7], 4
      %s4820 = int_to_ptr.vmem [resolvable:$true] %s4819
      %4822 = dma.vmem_to_hbm [thread:$0]  %s4820, 16, %s6, [#allocation6]
    $region29: #{tpu_custom_call.1} parent=1 // pred_fallthru
      _
    // Predicated region
    $region30: #{tpu_custom_call.1} parent=1 // pred_check
      _
    $region31: #{tpu_custom_call.1} parent=1 // pred_check_branch
      %4824 = sbr.rel (0) target = $region33
    $region32: #{tpu_custom_call.1} parent=1 // pred_region
      %s4826 = ssub.s32 16, 16
      %4827 = vsyncadd [#allocation9], %s4826
      %s4829 = sshll.u32 [#allocation8], 4
      %s4830 = int_to_ptr.vmem [resolvable:$true] %s4829
      %4832 = dma.vmem_to_hbm [thread:$0]  %s4830, 16, %s7, [#allocation9]
    $region33: #{tpu_custom_call.1} parent=1 // pred_fallthru
      _
    // Predicated region
    $region34: #{tpu_custom_call.1} parent=1 // pred_check
      _
    $region35: #{tpu_custom_call.1} parent=1 // pred_check_branch
      %4834 = sbr.rel (0) target = $region37
    $region36: #{tpu_custom_call.1} parent=1 // pred_region
      _
    $region37: #{tpu_custom_call.1} parent=1 // pred_fallthru
      _
    // Predicated region
    $region38: #{tpu_custom_call.1} parent=1 // pred_check
      _
    $region39: #{tpu_custom_call.1} parent=1 // pred_check_branch
      %4836 = sbr.rel (0) target = $region41
    $region40: #{tpu_custom_call.1} parent=1 // pred_region
      %4837 = dma.done [#allocation4], 16
    $region41: #{tpu_custom_call.1} parent=1 // pred_fallthru
      _
    // Predicated region
    $region42: #{tpu_custom_call.1} parent=1 // pred_check
      _
    $region43: #{tpu_custom_call.1} parent=1 // pred_check_branch
      %4839 = sbr.rel (0) target = $region45
    $region44: #{tpu_custom_call.1} parent=1 // pred_region
      %4840 = dma.done [#allocation6], 16
    $region45: #{tpu_custom_call.1} parent=1 // pred_fallthru
      _
    // Predicated region
    $region46: #{tpu_custom_call.1} parent=1 // pred_check
      _
    $region47: #{tpu_custom_call.1} parent=1 // pred_check_branch
      %4842 = sbr.rel (0) target = $region49
    $region48: #{tpu_custom_call.1} parent=1 // pred_region
      %4843 = dma.done [#allocation6], 16
    $region49: #{tpu_custom_call.1} parent=1 // pred_fallthru
      _
    // Predicated region
    $region50: #{tpu_custom_call.1} parent=1 // pred_check
      _
    $region51: #{tpu_custom_call.1} parent=1 // pred_check_branch
      %4845 = sbr.rel (0) target = $region53
    $region52: #{tpu_custom_call.1} parent=1 // pred_region
      %4846 = dma.done [#allocation9], 16
    $region53: #{tpu_custom_call.1} parent=1 // pred_fallthru
      _
    %4847 = vsyncpa [#allocation4], 1
    %4848 = vsyncpa [#allocation6], 1
    %4849 = vsyncpa [#allocation9], 1

// kernel: tpu_custom_call.1
$region0: #{tpu_custom_call.1}
  #allocation0 [shape = 'u32[]', space=smem, size = 0x4, offset = 0x4, fixed_abs, tag = 'smem constant byte address 0x4 - core index']
  #allocation1 [shape = 'u32[144,128]{1,0:T(1,128)}', space=vmem, size = 0x12000, scoped, tag = 'internal scratch']
  #allocation2 [shape = 'f32[2,18,18,4]{3,2,1,0:T(8,128)}', space=vmem, size = 0x6c000, scoped, tag = 'scratch operand']
  %s0 = inlined_call_operand.vmem [shape: f32[2,16,16,4], index: 0, kind: input, shape index: {}]
  %s1 = inlined_call_operand.vmem [shape: f32[9,4,8], index: 1, kind: input, shape index: {}]
  %s2 = inlined_call_operand.vmem [shape: f32[4,8], index: 2, kind: input, shape index: {}]
  %s3 = inlined_call_operand.vmem [shape: f32[2,16,16,8], index: 3, kind: output, shape index: {0}]
  %s4 = inlined_call_operand.hbm [shape: f32[1,1,8], index: 4, kind: output, shape index: {1}]
  %s5 = inlined_call_operand.hbm [shape: f32[1,1,8], index: 5, kind: output, shape index: {2}]
  %s6 = inlined_call_operand.hbm [shape: f32[1,1,8], index: 6, kind: output, shape index: {3}]
  %s7 = inlined_call_operand.hbm [shape: f32[1,1,8], index: 7, kind: output, shape index: {4}]
  %8 = xla_tuple %s3, %s4, %s5, %s6, %s7
  %s9 = sld [smem:[#allocation0]]
  $region54: #{tpu_custom_call.1} parent=0
    _
  %s11 = ssub.s32 1, %s9
  %s12 = scalar_select 0, %s11, %s9
  $region1: #{tpu_custom_call.1} parent=0
    #allocation3 [shape = 'u8[512]{0}', space=vmem, size = 0x400, scoped, tag = 'output window, operand 1, single buffered']
    #allocation4 [shape = 's32[1]{0}', space=sflag, size = 0x4, scoped, tag = 'scoped memory for tpu_custom_call.1']
    #allocation5 [shape = 'u8[512]{0}', space=vmem, size = 0x400, scoped, tag = 'output window, operand 2, single buffered']
    #allocation6 [shape = 's32[1]{0}', space=sflag, size = 0x4, scoped, tag = 'scoped memory for tpu_custom_call.1']
    #allocation7 [shape = 'u8[512]{0}', space=vmem, size = 0x400, scoped, tag = 'output window, operand 3, single buffered']
    #allocation8 [shape = 'u8[512]{0}', space=vmem, size = 0x400, scoped, tag = 'output window, operand 4, single buffered']
    #allocation9 [shape = 's32[1]{0}', space=sflag, size = 0x4, scoped, tag = 'scoped memory for tpu_custom_call.1']
    %13 = vsyncpa [#allocation4], 0
    %14 = vsyncpa [#allocation6], 0
    %15 = vsyncpa [#allocation9], 0
    // Predicated region
    $region2: #{tpu_custom_call.1} parent=1 // pred_check
      _
    $region3: #{tpu_custom_call.1} parent=1 // pred_check_branch
      %17 = sbr.rel (0) target = $region5
    $region4: #{tpu_custom_call.1} parent=1 // pred_region
      _
    $region5: #{tpu_custom_call.1} parent=1 // pred_fallthru
      _
    // Predicated region
    $region6: #{tpu_custom_call.1} parent=1 // pred_check
      _
    $region7: #{tpu_custom_call.1} parent=1 // pred_check_branch
      %19 = sbr.rel (0) target = $region9
    $region8: #{tpu_custom_call.1} parent=1 // pred_region
      _
    $region9: #{tpu_custom_call.1} parent=1 // pred_fallthru
      _
    // Predicated region
    $region10: #{tpu_custom_call.1} parent=1 // pred_check
      _
    $region11: #{tpu_custom_call.1} parent=1 // pred_check_branch
      %21 = sbr.rel (0) target = $region13
    $region12: #{tpu_custom_call.1} parent=1 // pred_region
      _
    $region13: #{tpu_custom_call.1} parent=1 // pred_fallthru
      _
    %v22 = vld [vmem:[%s0] sm:$0xff]
    %v23 = vld [vmem:[%s0 + $0x8] sm:$0xff]
    %v24 = vld [vmem:[%s0 + $0x10] sm:$0xff]
    %v25 = vld [vmem:[%s0 + $0x18] sm:$0xff]
    %v26 = vld [vmem:[%s0 + $0x20] sm:$0xff]
    %v27 = vld [vmem:[%s0 + $0x28] sm:$0xff]
    %v28 = vld [vmem:[%s0 + $0x30] sm:$0xff]
    %v29 = vld [vmem:[%s0 + $0x38] sm:$0xff]
    %v30 = vld [vmem:[%s0 + $0x40] sm:$0xff]
    %v31 = vld [vmem:[%s0 + $0x48] sm:$0xff]
    %v32 = vld [vmem:[%s0 + $0x50] sm:$0xff]
    %v33 = vld [vmem:[%s0 + $0x58] sm:$0xff]
    %v34 = vld [vmem:[%s0 + $0x60] sm:$0xff]
    %v35 = vld [vmem:[%s0 + $0x68] sm:$0xff]
    %v36 = vld [vmem:[%s0 + $0x70] sm:$0xff]
    %v37 = vld [vmem:[%s0 + $0x78] sm:$0xff]
    %v38 = vld [vmem:[%s0 + $0x80] sm:$0xff]
    %v39 = vld [vmem:[%s0 + $0x88] sm:$0xff]
    %v40 = vld [vmem:[%s0 + $0x90] sm:$0xff]
    %v41 = vld [vmem:[%s0 + $0x98] sm:$0xff]
    %v42 = vld [vmem:[%s0 + $0xa0] sm:$0xff]
    %v43 = vld [vmem:[%s0 + $0xa8] sm:$0xff]
    %v44 = vld [vmem:[%s0 + $0xb0] sm:$0xff]
    %v45 = vld [vmem:[%s0 + $0xb8] sm:$0xff]
    %v46 = vld [vmem:[%s0 + $0xc0] sm:$0xff]
    %v47 = vld [vmem:[%s0 + $0xc8] sm:$0xff]
    %v48 = vld [vmem:[%s0 + $0xd0] sm:$0xff]
    %v49 = vld [vmem:[%s0 + $0xd8] sm:$0xff]
    %v50 = vld [vmem:[%s0 + $0xe0] sm:$0xff]
    %v51 = vld [vmem:[%s0 + $0xe8] sm:$0xff]
    %v52 = vld [vmem:[%s0 + $0xf0] sm:$0xff]
    %v53 = vld [vmem:[%s0 + $0xf8] sm:$0xff]
    %v54 = vld [vmem:[%s0 + $0x100] sm:$0xff]
    %v55 = vld [vmem:[%s0 + $0x108] sm:$0xff]
    %v56 = vld [vmem:[%s0 + $0x110] sm:$0xff]
    %v57 = vld [vmem:[%s0 + $0x118] sm:$0xff]
    %v58 = vld [vmem:[%s0 + $0x120] sm:$0xff]
    %v59 = vld [vmem:[%s0 + $0x128] sm:$0xff]
    %v60 = vld [vmem:[%s0 + $0x130] sm:$0xff]
    %v61 = vld [vmem:[%s0 + $0x138] sm:$0xff]
    %v62 = vld [vmem:[%s0 + $0x140] sm:$0xff]
    %v63 = vld [vmem:[%s0 + $0x148] sm:$0xff]
    %v64 = vld [vmem:[%s0 + $0x150] sm:$0xff]
    %v65 = vld [vmem:[%s0 + $0x158] sm:$0xff]
    %v66 = vld [vmem:[%s0 + $0x160] sm:$0xff]
    %v67 = vld [vmem:[%s0 + $0x168] sm:$0xff]
    %v68 = vld [vmem:[%s0 + $0x170] sm:$0xff]
    %v69 = vld [vmem:[%s0 + $0x178] sm:$0xff]
    %v70 = vld [vmem:[%s0 + $0x180] sm:$0xff]
    %v71 = vld [vmem:[%s0 + $0x188] sm:$0xff]
    %v72 = vld [vmem:[%s0 + $0x190] sm:$0xff]
    %v73 = vld [vmem:[%s0 + $0x198] sm:$0xff]
    %v74 = vld [vmem:[%s0 + $0x1a0] sm:$0xff]
    %v75 = vld [vmem:[%s0 + $0x1a8] sm:$0xff]
    %v76 = vld [vmem:[%s0 + $0x1b0] sm:$0xff]
    %v77 = vld [vmem:[%s0 + $0x1b8] sm:$0xff]
    %v78 = vld [vmem:[%s0 + $0x1c0] sm:$0xff]
    %v79 = vld [vmem:[%s0 + $0x1c8] sm:$0xff]
    %v80 = vld [vmem:[%s0 + $0x1d0] sm:$0xff]
    %v81 = vld [vmem:[%s0 + $0x1d8] sm:$0xff]
    %v82 = vld [vmem:[%s0 + $0x1e0] sm:$0xff]
    %v83 = vld [vmem:[%s0 + $0x1e8] sm:$0xff]
    %v84 = vld [vmem:[%s0 + $0x1f0] sm:$0xff]
    %v85 = vld [vmem:[%s0 + $0x1f8] sm:$0xff]
    %vm86 = vcmask 31744
    %87 = vst.msk [vmem:[#allocation2] sm:$0xff] %vm86, 0.0
    %88 = vst.msk [vmem:[#allocation2 + $0x8] sm:$0xff] %vm86, 0.0
    %vm89 = vcmask 25600
    %90 = vst.msk [vmem:[#allocation2 + $0x10] sm:$0x3] %vm89, 0.0
    %91 = vst.msk [vmem:[#allocation2 + $0x18] sm:$0xff] %vm86, 0.0
    %92 = vst.msk [vmem:[#allocation2 + $0x20] sm:$0xff] %vm86, 0.0
    %93 = vst.msk [vmem:[#allocation2 + $0x28] sm:$0x3] %vm89, 0.0
    %94 = vst.msk [vmem:[#allocation2 + $0x30] sm:$0xff] %vm86, 0.0
    %95 = vst.msk [vmem:[#allocation2 + $0x38] sm:$0xff] %vm86, 0.0
    %96 = vst.msk [vmem:[#allocation2 + $0x40] sm:$0x3] %vm89, 0.0
    %97 = vst.msk [vmem:[#allocation2 + $0x48] sm:$0xff] %vm86, 0.0
    %98 = vst.msk [vmem:[#allocation2 + $0x50] sm:$0xff] %vm86, 0.0
    %99 = vst.msk [vmem:[#allocation2 + $0x58] sm:$0x3] %vm89, 0.0
    %100 = vst.msk [vmem:[#allocation2 + $0x60] sm:$0xff] %vm86, 0.0
    %101 = vst.msk [vmem:[#allocation2 + $0x68] sm:$0xff] %vm86, 0.0
    %102 = vst.msk [vmem:[#allocation2 + $0x70] sm:$0x3] %vm89, 0.0
    %103 = vst.msk [vmem:[#allocation2 + $0x78] sm:$0xff] %vm86, 0.0
    %104 = vst.msk [vmem:[#allocation2 + $0x80] sm:$0xff] %vm86, 0.0
    %105 = vst.msk [vmem:[#allocation2 + $0x88] sm:$0x3] %vm89, 0.0
    %106 = vst.msk [vmem:[#allocation2 + $0x90] sm:$0xff] %vm86, 0.0
    %107 = vst.msk [vmem:[#allocation2 + $0x98] sm:$0xff] %vm86, 0.0
    %108 = vst.msk [vmem:[#allocation2 + $0xa0] sm:$0x3] %vm89, 0.0
    %109 = vst.msk [vmem:[#allocation2 + $0xa8] sm:$0xff] %vm86, 0.0
    %110 = vst.msk [vmem:[#allocation2 + $0xb0] sm:$0xff] %vm86, 0.0
    %111 = vst.msk [vmem:[#allocation2 + $0xb8] sm:$0x3] %vm89, 0.0
    %112 = vst.msk [vmem:[#allocation2 + $0xc0] sm:$0xff] %vm86, 0.0
    %113 = vst.msk [vmem:[#allocation2 + $0xc8] sm:$0xff] %vm86, 0.0
    %114 = vst.msk [vmem:[#allocation2 + $0xd0] sm:$0x3] %vm89, 0.0
    %115 = vst.msk [vmem:[#allocation2 + $0xd8] sm:$0xff] %vm86, 0.0
    %116 = vst.msk [vmem:[#allocation2 + $0xe0] sm:$0xff] %vm86, 0.0
    %117 = vst.msk [vmem:[#allocation2 + $0xe8] sm:$0x3] %vm89, 0.0
    %118 = vst.msk [vmem:[#allocation2 + $0xf0] sm:$0xff] %vm86, 0.0
    %119 = vst.msk [vmem:[#allocation2 + $0xf8] sm:$0xff] %vm86, 0.0
    %120 = vst.msk [vmem:[#allocation2 + $0x100] sm:$0x3] %vm89, 0.0
    %121 = vst.msk [vmem:[#allocation2 + $0x108] sm:$0xff] %vm86, 0.0
    %122 = vst.msk [vmem:[#allocation2 + $0x110] sm:$0xff] %vm86, 0.0
    %123 = vst.msk [vmem:[#allocation2 + $0x118] sm:$0x3] %vm89, 0.0
    %124 = vst.msk [vmem:[#allocation2 + $0x120] sm:$0xff] %vm86, 0.0
    %125 = vst.msk [vmem:[#allocation2 + $0x128] sm:$0xff] %vm86, 0.0
    %126 = vst.msk [vmem:[#allocation2 + $0x130] sm:$0x3] %vm89, 0.0
    %127 = vst.msk [vmem:[#allocation2 + $0x138] sm:$0xff] %vm86, 0.0
    %128 = vst.msk [vmem:[#allocation2 + $0x140] sm:$0xff] %vm86, 0.0
    %129 = vst.msk [vmem:[#allocation2 + $0x148] sm:$0x3] %vm89, 0.0
    %130 = vst.msk [vmem:[#allocation2 + $0x150] sm:$0xff] %vm86, 0.0
    %131 = vst.msk [vmem:[#allocation2 + $0x158] sm:$0xff] %vm86, 0.0
    %132 = vst.msk [vmem:[#allocation2 + $0x160] sm:$0x3] %vm89, 0.0
    %133 = vst.msk [vmem:[#allocation2 + $0x168] sm:$0xff] %vm86, 0.0
    %134 = vst.msk [vmem:[#allocation2 + $0x170] sm:$0xff] %vm86, 0.0
    %135 = vst.msk [vmem:[#allocation2 + $0x178] sm:$0x3] %vm89, 0.0
    %136 = vst.msk [vmem:[#allocation2 + $0x180] sm:$0xff] %vm86, 0.0
    %137 = vst.msk [vmem:[#allocation2 + $0x188] sm:$0xff] %vm86, 0.0
    %138 = vst.msk [vmem:[#allocation2 + $0x190] sm:$0x3] %vm89, 0.0
    %139 = vst.msk [vmem:[#allocation2 + $0x198] sm:$0xff] %vm86, 0.0
    %140 = vst.msk [vmem:[#allocation2 + $0x1a0] sm:$0xff] %vm86, 0.0
    %141 = vst.msk [vmem:[#allocation2 + $0x1a8] sm:$0x3] %vm89, 0.0
    %142 = vst.msk [vmem:[#allocation2 + $0x1b0] sm:$0xff] %vm86, 0.0
    %143 = vst.msk [vmem:[#allocation2 + $0x1b8] sm:$0xff] %vm86, 0.0
    %144 = vst.msk [vmem:[#allocation2 + $0x1c0] sm:$0x3] %vm89, 0.0
    %145 = vst.msk [vmem:[#allocation2 + $0x1c8] sm:$0xff] %vm86, 0.0
    %146 = vst.msk [vmem:[#allocation2 + $0x1d0] sm:$0xff] %vm86, 0.0
    %147 = vst.msk [vmem:[#allocation2 + $0x1d8] sm:$0x3] %vm89, 0.0
    %148 = vst.msk [vmem:[#allocation2 + $0x1e0] sm:$0xff] %vm86, 0.0
    %149 = vst.msk [vmem:[#allocation2 + $0x1e8] sm:$0xff] %vm86, 0.0
    %150 = vst.msk [vmem:[#allocation2 + $0x1f0] sm:$0x3] %vm89, 0.0
    %151 = vst.msk [vmem:[#allocation2 + $0x1f8] sm:$0xff] %vm86, 0.0
    %152 = vst.msk [vmem:[#allocation2 + $0x200] sm:$0xff] %vm86, 0.0
    %153 = vst.msk [vmem:[#allocation2 + $0x208] sm:$0x3] %vm89, 0.0
    %154 = vst.msk [vmem:[#allocation2 + $0x210] sm:$0xff] %vm86, 0.0
    %155 = vst.msk [vmem:[#allocation2 + $0x218] sm:$0xff] %vm86, 0.0
    %156 = vst.msk [vmem:[#allocation2 + $0x220] sm:$0x3] %vm89, 0.0
    %157 = vst.msk [vmem:[#allocation2 + $0x228] sm:$0xff] %vm86, 0.0
    %158 = vst.msk [vmem:[#allocation2 + $0x230] sm:$0xff] %vm86, 0.0
    %159 = vst.msk [vmem:[#allocation2 + $0x238] sm:$0x3] %vm89, 0.0
    %160 = vst.msk [vmem:[#allocation2 + $0x240] sm:$0xff] %vm86, 0.0
    %161 = vst.msk [vmem:[#allocation2 + $0x248] sm:$0xff] %vm86, 0.0
    %162 = vst.msk [vmem:[#allocation2 + $0x250] sm:$0x3] %vm89, 0.0
    %163 = vst.msk [vmem:[#allocation2 + $0x258] sm:$0xff] %vm86, 0.0
    %164 = vst.msk [vmem:[#allocation2 + $0x260] sm:$0xff] %vm86, 0.0
    %165 = vst.msk [vmem:[#allocation2 + $0x268] sm:$0x3] %vm89, 0.0
    %166 = vst.msk [vmem:[#allocation2 + $0x270] sm:$0xff] %vm86, 0.0
    %167 = vst.msk [vmem:[#allocation2 + $0x278] sm:$0xff] %vm86, 0.0
    %168 = vst.msk [vmem:[#allocation2 + $0x280] sm:$0x3] %vm89, 0.0
    %169 = vst.msk [vmem:[#allocation2 + $0x288] sm:$0xff] %vm86, 0.0
    %170 = vst.msk [vmem:[#allocation2 + $0x290] sm:$0xff] %vm86, 0.0
    %171 = vst.msk [vmem:[#allocation2 + $0x298] sm:$0x3] %vm89, 0.0
    %172 = vst.msk [vmem:[#allocation2 + $0x2a0] sm:$0xff] %vm86, 0.0
    %173 = vst.msk [vmem:[#allocation2 + $0x2a8] sm:$0xff] %vm86, 0.0
    %174 = vst.msk [vmem:[#allocation2 + $0x2b0] sm:$0x3] %vm89, 0.0
    %175 = vst.msk [vmem:[#allocation2 + $0x2b8] sm:$0xff] %vm86, 0.0
    %176 = vst.msk [vmem:[#allocation2 + $0x2c0] sm:$0xff] %vm86, 0.0
    %177 = vst.msk [vmem:[#allocation2 + $0x2c8] sm:$0x3] %vm89, 0.0
    %178 = vst.msk [vmem:[#allocation2 + $0x2d0] sm:$0xff] %vm86, 0.0
    %179 = vst.msk [vmem:[#allocation2 + $0x2d8] sm:$0xff] %vm86, 0.0
    %180 = vst.msk [vmem:[#allocation2 + $0x2e0] sm:$0x3] %vm89, 0.0
    %181 = vst.msk [vmem:[#allocation2 + $0x2e8] sm:$0xff] %vm86, 0.0
    %182 = vst.msk [vmem:[#allocation2 + $0x2f0] sm:$0xff] %vm86, 0.0
    %183 = vst.msk [vmem:[#allocation2 + $0x2f8] sm:$0x3] %vm89, 0.0
    %184 = vst.msk [vmem:[#allocation2 + $0x300] sm:$0xff] %vm86, 0.0
    %185 = vst.msk [vmem:[#allocation2 + $0x308] sm:$0xff] %vm86, 0.0
    %186 = vst.msk [vmem:[#allocation2 + $0x310] sm:$0x3] %vm89, 0.0
    %187 = vst.msk [vmem:[#allocation2 + $0x318] sm:$0xff] %vm86, 0.0
    %188 = vst.msk [vmem:[#allocation2 + $0x320] sm:$0xff] %vm86, 0.0
    %189 = vst.msk [vmem:[#allocation2 + $0x328] sm:$0x3] %vm89, 0.0
    %190 = vst.msk [vmem:[#allocation2 + $0x330] sm:$0xff] %vm86, 0.0
    %191 = vst.msk [vmem:[#allocation2 + $0x338] sm:$0xff] %vm86, 0.0
    %192 = vst.msk [vmem:[#allocation2 + $0x340] sm:$0x3] %vm89, 0.0
    %193 = vst.msk [vmem:[#allocation2 + $0x348] sm:$0xff] %vm86, 0.0
    %194 = vst.msk [vmem:[#allocation2 + $0x350] sm:$0xff] %vm86, 0.0
    %195 = vst.msk [vmem:[#allocation2 + $0x358] sm:$0x3] %vm89, 0.0
    %s196 = scalar_lea.vmem [#allocation2], 24
    %197 = vst.msk [vmem:[%s196 + $0x1] sm:$0xff] %vm86, %v22
    %198 = vst.msk [vmem:[%s196 + $0x9] sm:$0xff] %vm86, %v23
    %199 = vst.msk [vmem:[%s196 + $0x19] sm:$0xff] %vm86, %v24
    %200 = vst.msk [vmem:[%s196 + $0x21] sm:$0xff] %vm86, %v25
    %201 = vst.msk [vmem:[%s196 + $0x31] sm:$0xff] %vm86, %v26
    %202 = vst.msk [vmem:[%s196 + $0x39] sm:$0xff] %vm86, %v27
    %203 = vst.msk [vmem:[%s196 + $0x49] sm:$0xff] %vm86, %v28
    %204 = vst.msk [vmem:[%s196 + $0x51] sm:$0xff] %vm86, %v29
    %205 = vst.msk [vmem:[%s196 + $0x61] sm:$0xff] %vm86, %v30
    %206 = vst.msk [vmem:[%s196 + $0x69] sm:$0xff] %vm86, %v31
    %207 = vst.msk [vmem:[%s196 + $0x79] sm:$0xff] %vm86, %v32
    %208 = vst.msk [vmem:[%s196 + $0x81] sm:$0xff] %vm86, %v33
    %209 = vst.msk [vmem:[%s196 + $0x91] sm:$0xff] %vm86, %v34
    %210 = vst.msk [vmem:[%s196 + $0x99] sm:$0xff] %vm86, %v35
    %211 = vst.msk [vmem:[%s196 + $0xa9] sm:$0xff] %vm86, %v36
    %212 = vst.msk [vmem:[%s196 + $0xb1] sm:$0xff] %vm86, %v37
    %213 = vst.msk [vmem:[%s196 + $0xc1] sm:$0xff] %vm86, %v38
    %214 = vst.msk [vmem:[%s196 + $0xc9] sm:$0xff] %vm86, %v39
    %215 = vst.msk [vmem:[%s196 + $0xd9] sm:$0xff] %vm86, %v40
    %216 = vst.msk [vmem:[%s196 + $0xe1] sm:$0xff] %vm86, %v41
    %217 = vst.msk [vmem:[%s196 + $0xf1] sm:$0xff] %vm86, %v42
    %218 = vst.msk [vmem:[%s196 + $0xf9] sm:$0xff] %vm86, %v43
    %219 = vst.msk [vmem:[%s196 + $0x109] sm:$0xff] %vm86, %v44
    %220 = vst.msk [vmem:[%s196 + $0x111] sm:$0xff] %vm86, %v45
    %221 = vst.msk [vmem:[%s196 + $0x121] sm:$0xff] %vm86, %v46
    %222 = vst.msk [vmem:[%s196 + $0x129] sm:$0xff] %vm86, %v47
    %223 = vst.msk [vmem:[%s196 + $0x139] sm:$0xff] %vm86, %v48
    %224 = vst.msk [vmem:[%s196 + $0x141] sm:$0xff] %vm86, %v49
    %225 = vst.msk [vmem:[%s196 + $0x151] sm:$0xff] %vm86, %v50
    %226 = vst.msk [vmem:[%s196 + $0x159] sm:$0xff] %vm86, %v51
    %227 = vst.msk [vmem:[%s196 + $0x169] sm:$0xff] %vm86, %v52
    %228 = vst.msk [vmem:[%s196 + $0x171] sm:$0xff] %vm86, %v53
    %229 = vst.msk [vmem:[%s196 + $0x1b1] sm:$0xff] %vm86, %v54
    %230 = vst.msk [vmem:[%s196 + $0x1b9] sm:$0xff] %vm86, %v55
    %231 = vst.msk [vmem:[%s196 + $0x1c9] sm:$0xff] %vm86, %v56
    %232 = vst.msk [vmem:[%s196 + $0x1d1] sm:$0xff] %vm86, %v57
    %233 = vst.msk [vmem:[%s196 + $0x1e1] sm:$0xff] %vm86, %v58
    %234 = vst.msk [vmem:[%s196 + $0x1e9] sm:$0xff] %vm86, %v59
    %235 = vst.msk [vmem:[%s196 + $0x1f9] sm:$0xff] %vm86, %v60
    %236 = vst.msk [vmem:[%s196 + $0x201] sm:$0xff] %vm86, %v61
    %237 = vst.msk [vmem:[%s196 + $0x211] sm:$0xff] %vm86, %v62
    %238 = vst.msk [vmem:[%s196 + $0x219] sm:$0xff] %vm86, %v63
    %239 = vst.msk [vmem:[%s196 + $0x229] sm:$0xff] %vm86, %v64
    %240 = vst.msk [vmem:[%s196 + $0x231] sm:$0xff] %vm86, %v65
    %241 = vst.msk [vmem:[%s196 + $0x241] sm:$0xff] %vm86, %v66
    %242 = vst.msk [vmem:[%s196 + $0x249] sm:$0xff] %vm86, %v67
    %243 = vst.msk [vmem:[%s196 + $0x259] sm:$0xff] %vm86, %v68
    %244 = vst.msk [vmem:[%s196 + $0x261] sm:$0xff] %vm86, %v69
    %245 = vst.msk [vmem:[%s196 + $0x271] sm:$0xff] %vm86, %v70
    %246 = vst.msk [vmem:[%s196 + $0x279] sm:$0xff] %vm86, %v71
    %247 = vst.msk [vmem:[%s196 + $0x289] sm:$0xff] %vm86, %v72
    %248 = vst.msk [vmem:[%s196 + $0x291] sm:$0xff] %vm86, %v73
    %249 = vst.msk [vmem:[%s196 + $0x2a1] sm:$0xff] %vm86, %v74
    %250 = vst.msk [vmem:[%s196 + $0x2a9] sm:$0xff] %vm86, %v75
    %251 = vst.msk [vmem:[%s196 + $0x2b9] sm:$0xff] %vm86, %v76
    %252 = vst.msk [vmem:[%s196 + $0x2c1] sm:$0xff] %vm86, %v77
    %253 = vst.msk [vmem:[%s196 + $0x2d1] sm:$0xff] %vm86, %v78
    %254 = vst.msk [vmem:[%s196 + $0x2d9] sm:$0xff] %vm86, %v79
    %255 = vst.msk [vmem:[%s196 + $0x2e9] sm:$0xff] %vm86, %v80
    %256 = vst.msk [vmem:[%s196 + $0x2f1] sm:$0xff] %vm86, %v81
    %257 = vst.msk [vmem:[%s196 + $0x301] sm:$0xff] %vm86, %v82
    %258 = vst.msk [vmem:[%s196 + $0x309] sm:$0xff] %vm86, %v83
    %259 = vst.msk [vmem:[%s196 + $0x319] sm:$0xff] %vm86, %v84
    %260 = vst.msk [vmem:[%s196 + $0x321] sm:$0xff] %vm86, %v85
    %v261 = vld [vmem:[#allocation2] sm:$0xff]
    %v262 = vld [vmem:[#allocation2 + $0x8] sm:$0xff]
    %v263 = vld [vmem:[#allocation2 + $0x10] sm:$0x3]
    %v264 = vld [vmem:[#allocation2 + $0x18] sm:$0xff]
    %v265 = vld [vmem:[#allocation2 + $0x20] sm:$0xff]
    %v266 = vld [vmem:[#allocation2 + $0x28] sm:$0x3]
    %v267 = vld [vmem:[#allocation2 + $0x30] sm:$0xff]
    %v268 = vld [vmem:[#allocation2 + $0x38] sm:$0xff]
    %v269 = vld [vmem:[#allocation2 + $0x40] sm:$0x3]
    %v270 = vld [vmem:[#allocation2 + $0x48] sm:$0xff]
    %v271 = vld [vmem:[#allocation2 + $0x50] sm:$0xff]
    %v272 = vld [vmem:[#allocation2 + $0x58] sm:$0x3]
    %v273 = vld [vmem:[#allocation2 + $0x60] sm:$0xff]
    %v274 = vld [vmem:[#allocation2 + $0x68] sm:$0xff]
    %v275 = vld [vmem:[#allocation2 + $0x70] sm:$0x3]
    %v276 = vld [vmem:[#allocation2 + $0x78] sm:$0xff]
    %v277 = vld [vmem:[#allocation2 + $0x80] sm:$0xff]
    %v278 = vld [vmem:[#allocation2 + $0x88] sm:$0x3]
    %v279 = vld [vmem:[#allocation2 + $0x90] sm:$0xff]
    %v280 = vld [vmem:[#allocation2 + $0x98] sm:$0xff]
    %v281 = vld [vmem:[#allocation2 + $0xa0] sm:$0x3]
    %v282 = vld [vmem:[#allocation2 + $0xa8] sm:$0xff]
    %v283 = vld [vmem:[#allocation2 + $0xb0] sm:$0xff]
    %v284 = vld [vmem:[#allocation2 + $0xb8] sm:$0x3]
    %v285 = vld [vmem:[#allocation2 + $0xc0] sm:$0xff]
    %v286 = vld [vmem:[#allocation2 + $0xc8] sm:$0xff]
    %v287 = vld [vmem:[#allocation2 + $0xd0] sm:$0x3]
    %v288 = vld [vmem:[#allocation2 + $0xd8] sm:$0xff]
    %v289 = vld [vmem:[#allocation2 + $0xe0] sm:$0xff]
    %v290 = vld [vmem:[#allocation2 + $0xe8] sm:$0x3]
    %v291 = vld [vmem:[#allocation2 + $0xf0] sm:$0xff]
    %v292 = vld [vmem:[#allocation2 + $0xf8] sm:$0xff]
    %v293 = vld [vmem:[#allocation2 + $0x100] sm:$0x3]
    %v294 = vld [vmem:[#allocation2 + $0x108] sm:$0xff]
    %v295 = vld [vmem:[#allocation2 + $0x110] sm:$0xff]
    %v296 = vld [vmem:[#allocation2 + $0x118] sm:$0x3]
    %v297 = vld [vmem:[#allocation2 + $0x120] sm:$0xff]
    %v298 = vld [vmem:[#allocation2 + $0x128] sm:$0xff]
    %v299 = vld [vmem:[#allocation2 + $0x130] sm:$0x3]
    %v300 = vld [vmem:[#allocation2 + $0x138] sm:$0xff]
    %v301 = vld [vmem:[#allocation2 + $0x140] sm:$0xff]
    %v302 = vld [vmem:[#allocation2 + $0x148] sm:$0x3]
    %v303 = vld [vmem:[#allocation2 + $0x150] sm:$0xff]
    %v304 = vld [vmem:[#allocation2 + $0x158] sm:$0xff]
    %v305 = vld [vmem:[#allocation2 + $0x160] sm:$0x3]
    %v306 = vld [vmem:[#allocation2 + $0x168] sm:$0xff]
    %v307 = vld [vmem:[#allocation2 + $0x170] sm:$0xff]
    %v308 = vld [vmem:[#allocation2 + $0x178] sm:$0x3]
    %v309 = vld [vmem:[#allocation2 + $0x180] sm:$0xff]
    %v310 = vld [vmem:[#allocation2 + $0x188] sm:$0xff]
    %v311 = vld [vmem:[#allocation2 + $0x190] sm:$0x3]
    %v312 = vld [vmem:[#allocation2 + $0x198] sm:$0xff]
    %v313 = vld [vmem:[#allocation2 + $0x1a0] sm:$0xff]
    %v314 = vld [vmem:[#allocation2 + $0x1a8] sm:$0x3]
    %v315 = vld [vmem:[#allocation2 + $0x1b0] sm:$0xff]
    %v316 = vld [vmem:[#allocation2 + $0x1b8] sm:$0xff]
    %v317 = vld [vmem:[#allocation2 + $0x1c0] sm:$0x3]
    %v318 = vld [vmem:[#allocation2 + $0x1c8] sm:$0xff]
    %v319 = vld [vmem:[#allocation2 + $0x1d0] sm:$0xff]
    %v320 = vld [vmem:[#allocation2 + $0x1d8] sm:$0x3]
    %v321 = vld [vmem:[#allocation2 + $0x1e0] sm:$0xff]
    %v322 = vld [vmem:[#allocation2 + $0x1e8] sm:$0xff]
    %v323 = vld [vmem:[#allocation2 + $0x1f0] sm:$0x3]
    %v324 = vld [vmem:[#allocation2 + $0x1f8] sm:$0xff]
    %v325 = vld [vmem:[#allocation2 + $0x200] sm:$0xff]
    %v326 = vld [vmem:[#allocation2 + $0x208] sm:$0x3]
    %v327 = vld [vmem:[#allocation2 + $0x210] sm:$0xff]
    %v328 = vld [vmem:[#allocation2 + $0x218] sm:$0xff]
    %v329 = vld [vmem:[#allocation2 + $0x220] sm:$0x3]
    %v330 = vld [vmem:[#allocation2 + $0x228] sm:$0xff]
    %v331 = vld [vmem:[#allocation2 + $0x230] sm:$0xff]
    %v332 = vld [vmem:[#allocation2 + $0x238] sm:$0x3]
    %v333 = vld [vmem:[#allocation2 + $0x240] sm:$0xff]
    %v334 = vld [vmem:[#allocation2 + $0x248] sm:$0xff]
    %v335 = vld [vmem:[#allocation2 + $0x250] sm:$0x3]
    %v336 = vld [vmem:[#allocation2 + $0x258] sm:$0xff]
    %v337 = vld [vmem:[#allocation2 + $0x260] sm:$0xff]
    %v338 = vld [vmem:[#allocation2 + $0x268] sm:$0x3]
    %v339 = vld [vmem:[#allocation2 + $0x270] sm:$0xff]
    %v340 = vld [vmem:[#allocation2 + $0x278] sm:$0xff]
    %v341 = vld [vmem:[#allocation2 + $0x280] sm:$0x3]
    %v342 = vld [vmem:[#allocation2 + $0x288] sm:$0xff]
    %v343 = vld [vmem:[#allocation2 + $0x290] sm:$0xff]
    %v344 = vld [vmem:[#allocation2 + $0x298] sm:$0x3]
    %v345 = vld [vmem:[#allocation2 + $0x2a0] sm:$0xff]
    %v346 = vld [vmem:[#allocation2 + $0x2a8] sm:$0xff]
    %v347 = vld [vmem:[#allocation2 + $0x2b0] sm:$0x3]
    %v348 = vld [vmem:[#allocation2 + $0x2b8] sm:$0xff]
    %v349 = vld [vmem:[#allocation2 + $0x2c0] sm:$0xff]
    %v350 = vld [vmem:[#allocation2 + $0x2c8] sm:$0x3]
    %v351 = vld [vmem:[#allocation2 + $0x2d0] sm:$0xff]
    %v352 = vld [vmem:[#allocation2 + $0x2d8] sm:$0xff]
    %v353 = vld [vmem:[#allocation2 + $0x2e0] sm:$0x3]
    %v354 = vld [vmem:[#allocation2 + $0x2e8] sm:$0xff]
    %v355 = vld [vmem:[#allocation2 + $0x2f0] sm:$0xff]
    %v356 = vld [vmem:[#allocation2 + $0x2f8] sm:$0x3]
    %v357 = vld [vmem:[#allocation2 + $0x300] sm:$0xff]
    %v358 = vld [vmem:[#allocation2 + $0x308] sm:$0xff]
    %v359 = vld [vmem:[#allocation2 + $0x310] sm:$0x3]
    %v360 = vld [vmem:[#allocation2 + $0x318] sm:$0xff]
    %v361 = vld [vmem:[#allocation2 + $0x320] sm:$0xff]
    %v362 = vld [vmem:[#allocation2 + $0x328] sm:$0x3]
    %v363 = vld [vmem:[#allocation2 + $0x330] sm:$0xff]
    %v364 = vld [vmem:[#allocation2 + $0x338] sm:$0xff]
    %v365 = vld [vmem:[#allocation2 + $0x340] sm:$0x3]
    %v366 = vld [vmem:[#allocation2 + $0x348] sm:$0xff]
    %v367 = vld [vmem:[#allocation2 + $0x350] sm:$0xff]
    %v368 = vld [vmem:[#allocation2 + $0x358] sm:$0x3]
    %vm465 = vcmask 1046528
    %v466 = vrot.slane %v261, 1
    %v467 = vrot.slane %v262, 1
    %v468 = vsel %vm465, %v466, %v467
    %v469 = vrot.slane %v263, 1
    %v470 = vsel %vm465, %v467, %v469
    %v471 = vrot.slane %v264, 1
    %v472 = vrot.slane %v265, 1
    %v473 = vsel %vm465, %v471, %v472
    %v474 = vrot.slane %v266, 1
    %v475 = vsel %vm465, %v472, %v474
    %v476 = vrot.slane %v267, 1
    %v477 = vrot.slane %v268, 1
    %v478 = vsel %vm465, %v476, %v477
    %v479 = vrot.slane %v269, 1
    %v480 = vsel %vm465, %v477, %v479
    %v481 = vrot.slane %v270, 1
    %v482 = vrot.slane %v271, 1
    %v483 = vsel %vm465, %v481, %v482
    %v484 = vrot.slane %v272, 1
    %v485 = vsel %vm465, %v482, %v484
    %v486 = vrot.slane %v273, 1
    %v487 = vrot.slane %v274, 1
    %v488 = vsel %vm465, %v486, %v487
    %v489 = vrot.slane %v275, 1
    %v490 = vsel %vm465, %v487, %v489
    %v491 = vrot.slane %v276, 1
    %v492 = vrot.slane %v277, 1
    %v493 = vsel %vm465, %v491, %v492
    %v494 = vrot.slane %v278, 1
    %v495 = vsel %vm465, %v492, %v494
    %v496 = vrot.slane %v279, 1
    %v497 = vrot.slane %v280, 1
    %v498 = vsel %vm465, %v496, %v497
    %v499 = vrot.slane %v281, 1
    %v500 = vsel %vm465, %v497, %v499
    %v501 = vrot.slane %v282, 1
    %v502 = vrot.slane %v283, 1
    %v503 = vsel %vm465, %v501, %v502
    %v504 = vrot.slane %v284, 1
    %v505 = vsel %vm465, %v502, %v504
    %v506 = vrot.slane %v285, 1
    %v507 = vrot.slane %v286, 1
    %v508 = vsel %vm465, %v506, %v507
    %v509 = vrot.slane %v287, 1
    %v510 = vsel %vm465, %v507, %v509
    %v511 = vrot.slane %v288, 1
    %v512 = vrot.slane %v289, 1
    %v513 = vsel %vm465, %v511, %v512
    %v514 = vrot.slane %v290, 1
    %v515 = vsel %vm465, %v512, %v514
    %v516 = vrot.slane %v291, 1
    %v517 = vrot.slane %v292, 1
    %v518 = vsel %vm465, %v516, %v517
    %v519 = vrot.slane %v293, 1
    %v520 = vsel %vm465, %v517, %v519
    %v521 = vrot.slane %v294, 1
    %v522 = vrot.slane %v295, 1
    %v523 = vsel %vm465, %v521, %v522
    %v524 = vrot.slane %v296, 1
    %v525 = vsel %vm465, %v522, %v524
    %v526 = vrot.slane %v297, 1
    %v527 = vrot.slane %v298, 1
    %v528 = vsel %vm465, %v526, %v527
    %v529 = vrot.slane %v299, 1
    %v530 = vsel %vm465, %v527, %v529
    %v531 = vrot.slane %v300, 1
    %v532 = vrot.slane %v301, 1
    %v533 = vsel %vm465, %v531, %v532
    %v534 = vrot.slane %v302, 1
    %v535 = vsel %vm465, %v532, %v534
    %v536 = vrot.slane %v303, 1
    %v537 = vrot.slane %v304, 1
    %v538 = vsel %vm465, %v536, %v537
    %v539 = vrot.slane %v305, 1
    %v540 = vsel %vm465, %v537, %v539
    %v541 = vrot.slane %v306, 1
    %v542 = vrot.slane %v307, 1
    %v543 = vsel %vm465, %v541, %v542
    %v544 = vrot.slane %v308, 1
    %v545 = vsel %vm465, %v542, %v544
    %v546 = vrot.slane %v315, 1
    %v547 = vrot.slane %v316, 1
    %v548 = vsel %vm465, %v546, %v547
    %v549 = vrot.slane %v317, 1
    %v550 = vsel %vm465, %v547, %v549
    %v551 = vrot.slane %v318, 1
    %v552 = vrot.slane %v319, 1
    %v553 = vsel %vm465, %v551, %v552
    %v554 = vrot.slane %v320, 1
    %v555 = vsel %vm465, %v552, %v554
    %v556 = vrot.slane %v321, 1
    %v557 = vrot.slane %v322, 1
    %v558 = vsel %vm465, %v556, %v557
    %v559 = vrot.slane %v323, 1
    %v560 = vsel %vm465, %v557, %v559
    %v561 = vrot.slane %v324, 1
    %v562 = vrot.slane %v325, 1
    %v563 = vsel %vm465, %v561, %v562
    %v564 = vrot.slane %v326, 1
    %v565 = vsel %vm465, %v562, %v564
    %v566 = vrot.slane %v327, 1
    %v567 = vrot.slane %v328, 1
    %v568 = vsel %vm465, %v566, %v567
    %v569 = vrot.slane %v329, 1
    %v570 = vsel %vm465, %v567, %v569
    %v571 = vrot.slane %v330, 1
    %v572 = vrot.slane %v331, 1
    %v573 = vsel %vm465, %v571, %v572
    %v574 = vrot.slane %v332, 1
    %v575 = vsel %vm465, %v572, %v574
    %v576 = vrot.slane %v333, 1
    %v577 = vrot.slane %v334, 1
    %v578 = vsel %vm465, %v576, %v577
    %v579 = vrot.slane %v335, 1
    %v580 = vsel %vm465, %v577, %v579
    %v581 = vrot.slane %v336, 1
    %v582 = vrot.slane %v337, 1
    %v583 = vsel %vm465, %v581, %v582
    %v584 = vrot.slane %v338, 1
    %v585 = vsel %vm465, %v582, %v584
    %v586 = vrot.slane %v339, 1
    %v587 = vrot.slane %v340, 1
    %v588 = vsel %vm465, %v586, %v587
    %v589 = vrot.slane %v341, 1
    %v590 = vsel %vm465, %v587, %v589
    %v591 = vrot.slane %v342, 1
    %v592 = vrot.slane %v343, 1
    %v593 = vsel %vm465, %v591, %v592
    %v594 = vrot.slane %v344, 1
    %v595 = vsel %vm465, %v592, %v594
    %v596 = vrot.slane %v345, 1
    %v597 = vrot.slane %v346, 1
    %v598 = vsel %vm465, %v596, %v597
    %v599 = vrot.slane %v347, 1
    %v600 = vsel %vm465, %v597, %v599
    %v601 = vrot.slane %v348, 1
    %v602 = vrot.slane %v349, 1
    %v603 = vsel %vm465, %v601, %v602
    %v604 = vrot.slane %v350, 1
    %v605 = vsel %vm465, %v602, %v604
    %v606 = vrot.slane %v351, 1
    %v607 = vrot.slane %v352, 1
    %v608 = vsel %vm465, %v606, %v607
    %v609 = vrot.slane %v353, 1
    %v610 = vsel %vm465, %v607, %v609
    %v611 = vrot.slane %v354, 1
    %v612 = vrot.slane %v355, 1
    %v613 = vsel %vm465, %v611, %v612
    %v614 = vrot.slane %v356, 1
    %v615 = vsel %vm465, %v612, %v614
    %v616 = vrot.slane %v357, 1
    %v617 = vrot.slane %v358, 1
    %v618 = vsel %vm465, %v616, %v617
    %v619 = vrot.slane %v359, 1
    %v620 = vsel %vm465, %v617, %v619
    %v621 = vrot.slane %v360, 1
    %v622 = vrot.slane %v361, 1
    %v623 = vsel %vm465, %v621, %v622
    %v624 = vrot.slane %v362, 1
    %v625 = vsel %vm465, %v622, %v624
    %vm626 = vcmask 1045504
    %v627 = vrot.slane %v261, 2
    %v628 = vrot.slane %v262, 2
    %v629 = vsel %vm626, %v627, %v628
    %v630 = vrot.slane %v263, 2
    %v631 = vsel %vm626, %v628, %v630
    %v632 = vrot.slane %v264, 2
    %v633 = vrot.slane %v265, 2
    %v634 = vsel %vm626, %v632, %v633
    %v635 = vrot.slane %v266, 2
    %v636 = vsel %vm626, %v633, %v635
    %v637 = vrot.slane %v267, 2
    %v638 = vrot.slane %v268, 2
    %v639 = vsel %vm626, %v637, %v638
    %v640 = vrot.slane %v269, 2
    %v641 = vsel %vm626, %v638, %v640
    %v642 = vrot.slane %v270, 2
    %v643 = vrot.slane %v271, 2
    %v644 = vsel %vm626, %v642, %v643
    %v645 = vrot.slane %v272, 2
    %v646 = vsel %vm626, %v643, %v645
    %v647 = vrot.slane %v273, 2
    %v648 = vrot.slane %v274, 2
    %v649 = vsel %vm626, %v647, %v648
    %v650 = vrot.slane %v275, 2
    %v651 = vsel %vm626, %v648, %v650
    %v652 = vrot.slane %v276, 2
    %v653 = vrot.slane %v277, 2
    %v654 = vsel %vm626, %v652, %v653
    %v655 = vrot.slane %v278, 2
    %v656 = vsel %vm626, %v653, %v655
    %v657 = vrot.slane %v279, 2
    %v658 = vrot.slane %v280, 2
    %v659 = vsel %vm626, %v657, %v658
    %v660 = vrot.slane %v281, 2
    %v661 = vsel %vm626, %v658, %v660
    %v662 = vrot.slane %v282, 2
    %v663 = vrot.slane %v283, 2
    %v664 = vsel %vm626, %v662, %v663
    %v665 = vrot.slane %v284, 2
    %v666 = vsel %vm626, %v663, %v665
    %v667 = vrot.slane %v285, 2
    %v668 = vrot.slane %v286, 2
    %v669 = vsel %vm626, %v667, %v668
    %v670 = vrot.slane %v287, 2
    %v671 = vsel %vm626, %v668, %v670
    %v672 = vrot.slane %v288, 2
    %v673 = vrot.slane %v289, 2
    %v674 = vsel %vm626, %v672, %v673
    %v675 = vrot.slane %v290, 2
    %v676 = vsel %vm626, %v673, %v675
    %v677 = vrot.slane %v291, 2
    %v678 = vrot.slane %v292, 2
    %v679 = vsel %vm626, %v677, %v678
    %v680 = vrot.slane %v293, 2
    %v681 = vsel %vm626, %v678, %v680
    %v682 = vrot.slane %v294, 2
    %v683 = vrot.slane %v295, 2
    %v684 = vsel %vm626, %v682, %v683
    %v685 = vrot.slane %v296, 2
    %v686 = vsel %vm626, %v683, %v685
    %v687 = vrot.slane %v297, 2
    %v688 = vrot.slane %v298, 2
    %v689 = vsel %vm626, %v687, %v688
    %v690 = vrot.slane %v299, 2
    %v691 = vsel %vm626, %v688, %v690
    %v692 = vrot.slane %v300, 2
    %v693 = vrot.slane %v301, 2
    %v694 = vsel %vm626, %v692, %v693
    %v695 = vrot.slane %v302, 2
    %v696 = vsel %vm626, %v693, %v695
    %v697 = vrot.slane %v303, 2
    %v698 = vrot.slane %v304, 2
    %v699 = vsel %vm626, %v697, %v698
    %v700 = vrot.slane %v305, 2
    %v701 = vsel %vm626, %v698, %v700
    %v702 = vrot.slane %v306, 2
    %v703 = vrot.slane %v307, 2
    %v704 = vsel %vm626, %v702, %v703
    %v705 = vrot.slane %v308, 2
    %v706 = vsel %vm626, %v703, %v705
    %v707 = vrot.slane %v315, 2
    %v708 = vrot.slane %v316, 2
    %v709 = vsel %vm626, %v707, %v708
    %v710 = vrot.slane %v317, 2
    %v711 = vsel %vm626, %v708, %v710
    %v712 = vrot.slane %v318, 2
    %v713 = vrot.slane %v319, 2
    %v714 = vsel %vm626, %v712, %v713
    %v715 = vrot.slane %v320, 2
    %v716 = vsel %vm626, %v713, %v715
    %v717 = vrot.slane %v321, 2
    %v718 = vrot.slane %v322, 2
    %v719 = vsel %vm626, %v717, %v718
    %v720 = vrot.slane %v323, 2
    %v721 = vsel %vm626, %v718, %v720
    %v722 = vrot.slane %v324, 2
    %v723 = vrot.slane %v325, 2
    %v724 = vsel %vm626, %v722, %v723
    %v725 = vrot.slane %v326, 2
    %v726 = vsel %vm626, %v723, %v725
    %v727 = vrot.slane %v327, 2
    %v728 = vrot.slane %v328, 2
    %v729 = vsel %vm626, %v727, %v728
    %v730 = vrot.slane %v329, 2
    %v731 = vsel %vm626, %v728, %v730
    %v732 = vrot.slane %v330, 2
    %v733 = vrot.slane %v331, 2
    %v734 = vsel %vm626, %v732, %v733
    %v735 = vrot.slane %v332, 2
    %v736 = vsel %vm626, %v733, %v735
    %v737 = vrot.slane %v333, 2
    %v738 = vrot.slane %v334, 2
    %v739 = vsel %vm626, %v737, %v738
    %v740 = vrot.slane %v335, 2
    %v741 = vsel %vm626, %v738, %v740
    %v742 = vrot.slane %v336, 2
    %v743 = vrot.slane %v337, 2
    %v744 = vsel %vm626, %v742, %v743
    %v745 = vrot.slane %v338, 2
    %v746 = vsel %vm626, %v743, %v745
    %v747 = vrot.slane %v339, 2
    %v748 = vrot.slane %v340, 2
    %v749 = vsel %vm626, %v747, %v748
    %v750 = vrot.slane %v341, 2
    %v751 = vsel %vm626, %v748, %v750
    %v752 = vrot.slane %v342, 2
    %v753 = vrot.slane %v343, 2
    %v754 = vsel %vm626, %v752, %v753
    %v755 = vrot.slane %v344, 2
    %v756 = vsel %vm626, %v753, %v755
    %v757 = vrot.slane %v345, 2
    %v758 = vrot.slane %v346, 2
    %v759 = vsel %vm626, %v757, %v758
    %v760 = vrot.slane %v347, 2
    %v761 = vsel %vm626, %v758, %v760
    %v762 = vrot.slane %v348, 2
    %v763 = vrot.slane %v349, 2
    %v764 = vsel %vm626, %v762, %v763
    %v765 = vrot.slane %v350, 2
    %v766 = vsel %vm626, %v763, %v765
    %v767 = vrot.slane %v351, 2
    %v768 = vrot.slane %v352, 2
    %v769 = vsel %vm626, %v767, %v768
    %v770 = vrot.slane %v353, 2
    %v771 = vsel %vm626, %v768, %v770
    %v772 = vrot.slane %v354, 2
    %v773 = vrot.slane %v355, 2
    %v774 = vsel %vm626, %v772, %v773
    %v775 = vrot.slane %v356, 2
    %v776 = vsel %vm626, %v773, %v775
    %v777 = vrot.slane %v357, 2
    %v778 = vrot.slane %v358, 2
    %v779 = vsel %vm626, %v777, %v778
    %v780 = vrot.slane %v359, 2
    %v781 = vsel %vm626, %v778, %v780
    %v782 = vrot.slane %v360, 2
    %v783 = vrot.slane %v361, 2
    %v784 = vsel %vm626, %v782, %v783
    %v785 = vrot.slane %v362, 2
    %v786 = vsel %vm626, %v783, %v785
    %v793 = vrot.slane %v309, 1
    %v794 = vrot.slane %v310, 1
    %v795 = vsel %vm465, %v793, %v794
    %v796 = vrot.slane %v311, 1
    %v797 = vsel %vm465, %v794, %v796
    %v798 = vrot.slane %v363, 1
    %v799 = vrot.slane %v364, 1
    %v800 = vsel %vm465, %v798, %v799
    %v801 = vrot.slane %v365, 1
    %v802 = vsel %vm465, %v799, %v801
    %v803 = vrot.slane %v309, 2
    %v804 = vrot.slane %v310, 2
    %v805 = vsel %vm626, %v803, %v804
    %v806 = vrot.slane %v311, 2
    %v807 = vsel %vm626, %v804, %v806
    %v808 = vrot.slane %v363, 2
    %v809 = vrot.slane %v364, 2
    %v810 = vsel %vm626, %v808, %v809
    %v811 = vrot.slane %v365, 2
    %v812 = vsel %vm626, %v809, %v811
    %v819 = vrot.slane %v312, 1
    %v820 = vrot.slane %v313, 1
    %v821 = vsel %vm465, %v819, %v820
    %v822 = vrot.slane %v314, 1
    %v823 = vsel %vm465, %v820, %v822
    %v824 = vrot.slane %v366, 1
    %v825 = vrot.slane %v367, 1
    %v826 = vsel %vm465, %v824, %v825
    %v827 = vrot.slane %v368, 1
    %v828 = vsel %vm465, %v825, %v827
    %v829 = vrot.slane %v312, 2
    %v830 = vrot.slane %v313, 2
    %v831 = vsel %vm626, %v829, %v830
    %v832 = vrot.slane %v314, 2
    %v833 = vsel %vm626, %v830, %v832
    %v834 = vrot.slane %v366, 2
    %v835 = vrot.slane %v367, 2
    %v836 = vsel %vm626, %v834, %v835
    %v837 = vrot.slane %v368, 2
    %v838 = vsel %vm626, %v835, %v837
    %v839 = vld [vmem:[%s1] sm:$0xf]
    %s840 = scalar_lea.vmem %s1, 4
    %v841 = vld [vmem:[%s840] sm:$0xf]
    %v842 = vsel %vm86, %v468, 0
    %v844 = vsel %vm86, %v470, 0
    %v846 = vsel %vm86, %v473, 0
    %v848 = vsel %vm86, %v475, 0
    %v850 = vsel %vm86, %v478, 0
    %v852 = vsel %vm86, %v480, 0
    %v854 = vsel %vm86, %v483, 0
    %v856 = vsel %vm86, %v485, 0
    %v858 = vsel %vm86, %v488, 0
    %v860 = vsel %vm86, %v490, 0
    %v862 = vsel %vm86, %v493, 0
    %v864 = vsel %vm86, %v495, 0
    %v866 = vsel %vm86, %v498, 0
    %v868 = vsel %vm86, %v500, 0
    %v870 = vsel %vm86, %v503, 0
    %v872 = vsel %vm86, %v505, 0
    %v874 = vsel %vm86, %v508, 0
    %v876 = vsel %vm86, %v510, 0
    %v878 = vsel %vm86, %v513, 0
    %v880 = vsel %vm86, %v515, 0
    %v882 = vsel %vm86, %v518, 0
    %v884 = vsel %vm86, %v520, 0
    %v886 = vsel %vm86, %v523, 0
    %v888 = vsel %vm86, %v525, 0
    %v890 = vsel %vm86, %v528, 0
    %v892 = vsel %vm86, %v530, 0
    %v894 = vsel %vm86, %v533, 0
    %v896 = vsel %vm86, %v535, 0
    %v898 = vsel %vm86, %v538, 0
    %v900 = vsel %vm86, %v540, 0
    %v902 = vsel %vm86, %v543, 0
    %v904 = vsel %vm86, %v545, 0
    %v906 = vsel %vm86, %v548, 0
    %v908 = vsel %vm86, %v550, 0
    %v910 = vsel %vm86, %v553, 0
    %v912 = vsel %vm86, %v555, 0
    %v914 = vsel %vm86, %v558, 0
    %v916 = vsel %vm86, %v560, 0
    %v918 = vsel %vm86, %v563, 0
    %v920 = vsel %vm86, %v565, 0
    %v922 = vsel %vm86, %v568, 0
    %v924 = vsel %vm86, %v570, 0
    %v926 = vsel %vm86, %v573, 0
    %v928 = vsel %vm86, %v575, 0
    %v930 = vsel %vm86, %v578, 0
    %v932 = vsel %vm86, %v580, 0
    %v934 = vsel %vm86, %v583, 0
    %v936 = vsel %vm86, %v585, 0
    %v938 = vsel %vm86, %v588, 0
    %v940 = vsel %vm86, %v590, 0
    %v942 = vsel %vm86, %v593, 0
    %v944 = vsel %vm86, %v595, 0
    %v946 = vsel %vm86, %v598, 0
    %v948 = vsel %vm86, %v600, 0
    %v950 = vsel %vm86, %v603, 0
    %v952 = vsel %vm86, %v605, 0
    %v954 = vsel %vm86, %v608, 0
    %v956 = vsel %vm86, %v610, 0
    %v958 = vsel %vm86, %v613, 0
    %v960 = vsel %vm86, %v615, 0
    %v962 = vsel %vm86, %v618, 0
    %v964 = vsel %vm86, %v620, 0
    %v966 = vsel %vm86, %v623, 0
    %v968 = vsel %vm86, %v625, 0
    %vm970 = vcmask 1043456
    %v972 = vsel %vm970, %v841, 0
    %974 = vmatprep.subr.mxu0 0.0
    %975 = vmatpush1.msra.mxu0 %v972
    %976 = vmatprep.subr.mxu0 0.0
    %977 = vmatpush1.msra.mxu0 0.0
    %978 = vmatprep.subr.mxu0 0.0
    %979 = vmatpush1.msra.mxu0 0.0
    %980 = vmatprep.subr.mxu0 0.0
    %981 = vmatpush1.msra.mxu0 0.0
    %982 = vmatprep.subr.mxu0 0.0
    %983 = vmatpush1.msra.mxu0 0.0
    %984 = vmatprep.subr.mxu0 0.0
    %985 = vmatpush1.msra.mxu0 0.0
    %986 = vmatprep.subr.mxu0 0.0
    %987 = vmatpush1.msra.mxu0 0.0
    %988 = vmatprep.subr.mxu0 0.0
    %989 = vmatpush1.msra.mxu0 0.0
    %990 = vmatprep.subr.mxu0 0.0
    %991 = vmatpush1.msra.mxu0 0.0
    %992 = vmatprep.subr.mxu0 0.0
    %993 = vmatpush1.msra.mxu0 0.0
    %994 = vmatprep.subr.mxu0 0.0
    %995 = vmatpush1.msra.mxu0 0.0
    %996 = vmatprep.subr.mxu0 0.0
    %997 = vmatpush1.msra.mxu0 0.0
    %998 = vmatprep.subr.mxu0 0.0
    %999 = vmatpush1.msra.mxu0 0.0
    %1000 = vmatprep.subr.mxu0 0.0
    %1001 = vmatpush1.msra.mxu0 0.0
    %1002 = vmatprep.subr.mxu0 0.0
    %1003 = vmatpush1.msra.mxu0 0.0
    %1004 = vmatprep.subr.mxu0 0.0
    %1005 = vmatpush1.msra.mxu0 0.0
    %1006 = vmatprep.subr.mxu0 0.0
    %1007 = vmatpush1.msra.mxu0 0.0
    %1008 = vmatprep.subr.mxu0 0.0
    %1009 = vmatpush1.msra.mxu0 0.0
    %1010 = vmatprep.subr.mxu0 0.0
    %1011 = vmatpush1.msra.mxu0 0.0
    %1012 = vmatprep.subr.mxu0 0.0
    %1013 = vmatpush1.msra.mxu0 0.0
    %1014 = vmatprep.subr.mxu0 0.0
    %1015 = vmatpush1.msra.mxu0 0.0
    %1016 = vmatprep.subr.mxu0 0.0
    %1017 = vmatpush1.msra.mxu0 0.0
    %1018 = vmatprep.subr.mxu0 0.0
    %1019 = vmatpush1.msra.mxu0 0.0
    %1020 = vmatprep.subr.mxu0 0.0
    %1021 = vmatpush1.msra.mxu0 0.0
    %1022 = vmatprep.subr.mxu0 0.0
    %1023 = vmatpush1.msra.mxu0 0.0
    %1024 = vmatprep.subr.mxu0 0.0
    %1025 = vmatpush1.msra.mxu0 0.0
    %1026 = vmatprep.subr.mxu0 0.0
    %1027 = vmatpush1.msra.mxu0 0.0
    %1028 = vmatprep.subr.mxu0 0.0
    %1029 = vmatpush1.msra.mxu0 0.0
    %1030 = vmatprep.subr.mxu0 0.0
    %1031 = vmatpush1.msra.mxu0 0.0
    %1032 = vmatprep.subr.mxu0 0.0
    %1033 = vmatpush1.msra.mxu0 0.0
    %1034 = vmatprep.subr.mxu0 0.0
    %1035 = vmatpush1.msra.mxu0 0.0
    %1036 = vmatprep.subr.mxu0 0.0
    %1037 = vmatpush1.msra.mxu0 0.0
    %1038 = vmatprep.mubr.f32.mxu0 0.0
    %1039 = vmatmul.mubr.f32.gmra.mrb[0].mxu0 %v842
    %v1040 = vpop.f32.mrb[0].mxu0
    %v1041 = vadd.f32 0.0, %v1040
    %v1042 = vpop.f32.mrb[0].mxu0
    %1043 = vmatprep.mubr.f32.mxu0 0.0
    %1044 = vmatmul.mubr.f32.gmra.mrb[0].mxu0 %v844
    %v1045 = vpop.f32.mrb[0].mxu0
    %v1046 = vadd.f32 0.0, %v1045
    %v1047 = vpop.f32.mrb[0].mxu0
    %1048 = vmatprep.mubr.f32.mxu0 0.0
    %1049 = vmatmul.mubr.f32.gmra.mrb[0].mxu0 %v846
    %v1050 = vpop.f32.mrb[0].mxu0
    %v1051 = vadd.f32 0.0, %v1050
    %v1052 = vpop.f32.mrb[0].mxu0
    %1053 = vmatprep.mubr.f32.mxu0 0.0
    %1054 = vmatmul.mubr.f32.gmra.mrb[0].mxu0 %v848
    %v1055 = vpop.f32.mrb[0].mxu0
    %v1056 = vadd.f32 0.0, %v1055
    %v1057 = vpop.f32.mrb[0].mxu0
    %1058 = vmatprep.mubr.f32.mxu0 0.0
    %1059 = vmatmul.mubr.f32.gmra.mrb[0].mxu0 %v850
    %v1060 = vpop.f32.mrb[0].mxu0
    %v1061 = vadd.f32 0.0, %v1060
    %v1062 = vpop.f32.mrb[0].mxu0
    %1063 = vmatprep.mubr.f32.mxu0 0.0
    %1064 = vmatmul.mubr.f32.gmra.mrb[0].mxu0 %v852
    %v1065 = vpop.f32.mrb[0].mxu0
    %v1066 = vadd.f32 0.0, %v1065
    %v1067 = vpop.f32.mrb[0].mxu0
    %1068 = vmatprep.mubr.f32.mxu0 0.0
    %1069 = vmatmul.mubr.f32.gmra.mrb[0].mxu0 %v854
    %v1070 = vpop.f32.mrb[0].mxu0
    %v1071 = vadd.f32 0.0, %v1070
    %v1072 = vpop.f32.mrb[0].mxu0
    %1073 = vmatprep.mubr.f32.mxu0 0.0
    %1074 = vmatmul.mubr.f32.gmra.mrb[0].mxu0 %v856
    %v1075 = vpop.f32.mrb[0].mxu0
    %v1076 = vadd.f32 0.0, %v1075
    %v1077 = vpop.f32.mrb[0].mxu0
    %1078 = vmatprep.mubr.f32.mxu0 0.0
    %1079 = vmatmul.mubr.f32.gmra.mrb[0].mxu0 %v858
    %v1080 = vpop.f32.mrb[0].mxu0
    %v1081 = vadd.f32 0.0, %v1080
    %v1082 = vpop.f32.mrb[0].mxu0
    %1083 = vmatprep.mubr.f32.mxu0 0.0
    %1084 = vmatmul.mubr.f32.gmra.mrb[0].mxu0 %v860
    %v1085 = vpop.f32.mrb[0].mxu0
    %v1086 = vadd.f32 0.0, %v1085
    %v1087 = vpop.f32.mrb[0].mxu0
    %1088 = vmatprep.mubr.f32.mxu0 0.0
    %1089 = vmatmul.mubr.f32.gmra.mrb[0].mxu0 %v862
    %v1090 = vpop.f32.mrb[0].mxu0
    %v1091 = vadd.f32 0.0, %v1090
    %v1092 = vpop.f32.mrb[0].mxu0
    %1093 = vmatprep.mubr.f32.mxu0 0.0
    %1094 = vmatmul.mubr.f32.gmra.mrb[0].mxu0 %v864
    %v1095 = vpop.f32.mrb[0].mxu0
    %v1096 = vadd.f32 0.0, %v1095
    %v1097 = vpop.f32.mrb[0].mxu0
    %1098 = vmatprep.mubr.f32.mxu0 0.0
    %1099 = vmatmul.mubr.f32.gmra.mrb[0].mxu0 %v866
    %v1100 = vpop.f32.mrb[0].mxu0
    %v1101 = vadd.f32 0.0, %v1100
    %v1102 = vpop.f32.mrb[0].mxu0
    %1103 = vmatprep.mubr.f32.mxu0 0.0
    %1104 = vmatmul.mubr.f32.gmra.mrb[0].mxu0 %v868
    %v1105 = vpop.f32.mrb[0].mxu0
    %v1106 = vadd.f32 0.0, %v1105
    %v1107 = vpop.f32.mrb[0].mxu0
    %1108 = vmatprep.mubr.f32.mxu0 0.0
    %1109 = vmatmul.mubr.f32.gmra.mrb[0].mxu0 %v870
    %v1110 = vpop.f32.mrb[0].mxu0
    %v1111 = vadd.f32 0.0, %v1110
    %v1112 = vpop.f32.mrb[0].mxu0
    %1113 = vmatprep.mubr.f32.mxu0 0.0
    %1114 = vmatmul.mubr.f32.gmra.mrb[0].mxu0 %v872
    %v1115 = vpop.f32.mrb[0].mxu0
    %v1116 = vadd.f32 0.0, %v1115
    %v1117 = vpop.f32.mrb[0].mxu0
    %1118 = vmatprep.mubr.f32.mxu0 0.0
    %1119 = vmatmul.mubr.f32.gmra.mrb[0].mxu0 %v874
    %v1120 = vpop.f32.mrb[0].mxu0
    %v1121 = vadd.f32 0.0, %v1120
    %v1122 = vpop.f32.mrb[0].mxu0
    %1123 = vmatprep.mubr.f32.mxu0 0.0
    %1124 = vmatmul.mubr.f32.gmra.mrb[0].mxu0 %v876
    %v1125 = vpop.f32.mrb[0].mxu0
    %v1126 = vadd.f32 0.0, %v1125
    %v1127 = vpop.f32.mrb[0].mxu0
    %1128 = vmatprep.mubr.f32.mxu0 0.0
    %1129 = vmatmul.mubr.f32.gmra.mrb[0].mxu0 %v878
    %v1130 = vpop.f32.mrb[0].mxu0
    %v1131 = vadd.f32 0.0, %v1130
    %v1132 = vpop.f32.mrb[0].mxu0
    %1133 = vmatprep.mubr.f32.mxu0 0.0
    %1134 = vmatmul.mubr.f32.gmra.mrb[0].mxu0 %v880
    %v1135 = vpop.f32.mrb[0].mxu0
    %v1136 = vadd.f32 0.0, %v1135
    %v1137 = vpop.f32.mrb[0].mxu0
    %1138 = vmatprep.mubr.f32.mxu0 0.0
    %1139 = vmatmul.mubr.f32.gmra.mrb[0].mxu0 %v882
    %v1140 = vpop.f32.mrb[0].mxu0
    %v1141 = vadd.f32 0.0, %v1140
    %v1142 = vpop.f32.mrb[0].mxu0
    %1143 = vmatprep.mubr.f32.mxu0 0.0
    %1144 = vmatmul.mubr.f32.gmra.mrb[0].mxu0 %v884
    %v1145 = vpop.f32.mrb[0].mxu0
    %v1146 = vadd.f32 0.0, %v1145
    %v1147 = vpop.f32.mrb[0].mxu0
    %1148 = vmatprep.mubr.f32.mxu0 0.0
    %1149 = vmatmul.mubr.f32.gmra.mrb[0].mxu0 %v886
    %v1150 = vpop.f32.mrb[0].mxu0
    %v1151 = vadd.f32 0.0, %v1150
    %v1152 = vpop.f32.mrb[0].mxu0
    %1153 = vmatprep.mubr.f32.mxu0 0.0
    %1154 = vmatmul.mubr.f32.gmra.mrb[0].mxu0 %v888
    %v1155 = vpop.f32.mrb[0].mxu0
    %v1156 = vadd.f32 0.0, %v1155
    %v1157 = vpop.f32.mrb[0].mxu0
    %1158 = vmatprep.mubr.f32.mxu0 0.0
    %1159 = vmatmul.mubr.f32.gmra.mrb[0].mxu0 %v890
    %v1160 = vpop.f32.mrb[0].mxu0
    %v1161 = vadd.f32 0.0, %v1160
    %v1162 = vpop.f32.mrb[0].mxu0
    %1163 = vmatprep.mubr.f32.mxu0 0.0
    %1164 = vmatmul.mubr.f32.gmra.mrb[0].mxu0 %v892
    %v1165 = vpop.f32.mrb[0].mxu0
    %v1166 = vadd.f32 0.0, %v1165
    %v1167 = vpop.f32.mrb[0].mxu0
    %1168 = vmatprep.mubr.f32.mxu0 0.0
    %1169 = vmatmul.mubr.f32.gmra.mrb[0].mxu0 %v894
    %v1170 = vpop.f32.mrb[0].mxu0
    %v1171 = vadd.f32 0.0, %v1170
    %v1172 = vpop.f32.mrb[0].mxu0
    %1173 = vmatprep.mubr.f32.mxu0 0.0
    %1174 = vmatmul.mubr.f32.gmra.mrb[0].mxu0 %v896
    %v1175 = vpop.f32.mrb[0].mxu0
    %v1176 = vadd.f32 0.0, %v1175
    %v1177 = vpop.f32.mrb[0].mxu0
    %1178 = vmatprep.mubr.f32.mxu0 0.0
    %1179 = vmatmul.mubr.f32.gmra.mrb[0].mxu0 %v898
    %v1180 = vpop.f32.mrb[0].mxu0
    %v1181 = vadd.f32 0.0, %v1180
    %v1182 = vpop.f32.mrb[0].mxu0
    %1183 = vmatprep.mubr.f32.mxu0 0.0
    %1184 = vmatmul.mubr.f32.gmra.mrb[0].mxu0 %v900
    %v1185 = vpop.f32.mrb[0].mxu0
    %v1186 = vadd.f32 0.0, %v1185
    %v1187 = vpop.f32.mrb[0].mxu0
    %1188 = vmatprep.mubr.f32.mxu0 0.0
    %1189 = vmatmul.mubr.f32.gmra.mrb[0].mxu0 %v902
    %v1190 = vpop.f32.mrb[0].mxu0
    %v1191 = vadd.f32 0.0, %v1190
    %v1192 = vpop.f32.mrb[0].mxu0
    %1193 = vmatprep.mubr.f32.mxu0 0.0
    %1194 = vmatmul.mubr.f32.gmra.mrb[0].mxu0 %v904
    %v1195 = vpop.f32.mrb[0].mxu0
    %v1196 = vadd.f32 0.0, %v1195
    %v1197 = vpop.f32.mrb[0].mxu0
    %1198 = vmatprep.mubr.f32.mxu0 0.0
    %1199 = vmatmul.mubr.f32.gmra.mrb[0].mxu0 %v906
    %v1200 = vpop.f32.mrb[0].mxu0
    %v1201 = vadd.f32 0.0, %v1200
    %v1202 = vpop.f32.mrb[0].mxu0
    %1203 = vmatprep.mubr.f32.mxu0 0.0
    %1204 = vmatmul.mubr.f32.gmra.mrb[0].mxu0 %v908
    %v1205 = vpop.f32.mrb[0].mxu0
    %v1206 = vadd.f32 0.0, %v1205
    %v1207 = vpop.f32.mrb[0].mxu0
    %1208 = vmatprep.mubr.f32.mxu0 0.0
    %1209 = vmatmul.mubr.f32.gmra.mrb[0].mxu0 %v910
    %v1210 = vpop.f32.mrb[0].mxu0
    %v1211 = vadd.f32 0.0, %v1210
    %v1212 = vpop.f32.mrb[0].mxu0
    %1213 = vmatprep.mubr.f32.mxu0 0.0
    %1214 = vmatmul.mubr.f32.gmra.mrb[0].mxu0 %v912
    %v1215 = vpop.f32.mrb[0].mxu0
    %v1216 = vadd.f32 0.0, %v1215
    %v1217 = vpop.f32.mrb[0].mxu0
    %1218 = vmatprep.mubr.f32.mxu0 0.0
    %1219 = vmatmul.mubr.f32.gmra.mrb[0].mxu0 %v914
    %v1220 = vpop.f32.mrb[0].mxu0
    %v1221 = vadd.f32 0.0, %v1220
    %v1222 = vpop.f32.mrb[0].mxu0
    %1223 = vmatprep.mubr.f32.mxu0 0.0
    %1224 = vmatmul.mubr.f32.gmra.mrb[0].mxu0 %v916
    %v1225 = vpop.f32.mrb[0].mxu0
    %v1226 = vadd.f32 0.0, %v1225
    %v1227 = vpop.f32.mrb[0].mxu0
    %1228 = vmatprep.mubr.f32.mxu0 0.0
    %1229 = vmatmul.mubr.f32.gmra.mrb[0].mxu0 %v918
    %v1230 = vpop.f32.mrb[0].mxu0
    %v1231 = vadd.f32 0.0, %v1230
    %v1232 = vpop.f32.mrb[0].mxu0
    %1233 = vmatprep.mubr.f32.mxu0 0.0
    %1234 = vmatmul.mubr.f32.gmra.mrb[0].mxu0 %v920
    %v1235 = vpop.f32.mrb[0].mxu0
    %v1236 = vadd.f32 0.0, %v1235
    %v1237 = vpop.f32.mrb[0].mxu0
    %1238 = vmatprep.mubr.f32.mxu0 0.0
    %1239 = vmatmul.mubr.f32.gmra.mrb[0].mxu0 %v922
    %v1240 = vpop.f32.mrb[0].mxu0
    %v1241 = vadd.f32 0.0, %v1240
    %v1242 = vpop.f32.mrb[0].mxu0
    %1243 = vmatprep.mubr.f32.mxu0 0.0
    %1244 = vmatmul.mubr.f32.gmra.mrb[0].mxu0 %v924
    %v1245 = vpop.f32.mrb[0].mxu0
    %v1246 = vadd.f32 0.0, %v1245
    %v1247 = vpop.f32.mrb[0].mxu0
    %1248 = vmatprep.mubr.f32.mxu0 0.0
    %1249 = vmatmul.mubr.f32.gmra.mrb[0].mxu0 %v926
    %v1250 = vpop.f32.mrb[0].mxu0
    %v1251 = vadd.f32 0.0, %v1250
    %v1252 = vpop.f32.mrb[0].mxu0
    %1253 = vmatprep.mubr.f32.mxu0 0.0
    %1254 = vmatmul.mubr.f32.gmra.mrb[0].mxu0 %v928
    %v1255 = vpop.f32.mrb[0].mxu0
    %v1256 = vadd.f32 0.0, %v1255
    %v1257 = vpop.f32.mrb[0].mxu0
    %1258 = vmatprep.mubr.f32.mxu0 0.0
    %1259 = vmatmul.mubr.f32.gmra.mrb[0].mxu0 %v930
    %v1260 = vpop.f32.mrb[0].mxu0
    %v1261 = vadd.f32 0.0, %v1260
    %v1262 = vpop.f32.mrb[0].mxu0
    %1263 = vmatprep.mubr.f32.mxu0 0.0
    %1264 = vmatmul.mubr.f32.gmra.mrb[0].mxu0 %v932
    %v1265 = vpop.f32.mrb[0].mxu0
    %v1266 = vadd.f32 0.0, %v1265
    %v1267 = vpop.f32.mrb[0].mxu0
    %1268 = vmatprep.mubr.f32.mxu0 0.0
    %1269 = vmatmul.mubr.f32.gmra.mrb[0].mxu0 %v934
    %v1270 = vpop.f32.mrb[0].mxu0
    %v1271 = vadd.f32 0.0, %v1270
    %v1272 = vpop.f32.mrb[0].mxu0
    %1273 = vmatprep.mubr.f32.mxu0 0.0
    %1274 = vmatmul.mubr.f32.gmra.mrb[0].mxu0 %v936
    %v1275 = vpop.f32.mrb[0].mxu0
    %v1276 = vadd.f32 0.0, %v1275
    %v1277 = vpop.f32.mrb[0].mxu0
    %1278 = vmatprep.mubr.f32.mxu0 0.0
    %1279 = vmatmul.mubr.f32.gmra.mrb[0].mxu0 %v938
    %v1280 = vpop.f32.mrb[0].mxu0
    %v1281 = vadd.f32 0.0, %v1280
    %v1282 = vpop.f32.mrb[0].mxu0
    %1283 = vmatprep.mubr.f32.mxu0 0.0
    %1284 = vmatmul.mubr.f32.gmra.mrb[0].mxu0 %v940
    %v1285 = vpop.f32.mrb[0].mxu0
    %v1286 = vadd.f32 0.0, %v1285
    %v1287 = vpop.f32.mrb[0].mxu0
    %1288 = vmatprep.mubr.f32.mxu0 0.0
    %1289 = vmatmul.mubr.f32.gmra.mrb[0].mxu0 %v942
    %v1290 = vpop.f32.mrb[0].mxu0
    %v1291 = vadd.f32 0.0, %v1290
    %v1292 = vpop.f32.mrb[0].mxu0
    %1293 = vmatprep.mubr.f32.mxu0 0.0
    %1294 = vmatmul.mubr.f32.gmra.mrb[0].mxu0 %v944
    %v1295 = vpop.f32.mrb[0].mxu0
    %v1296 = vadd.f32 0.0, %v1295
    %v1297 = vpop.f32.mrb[0].mxu0
    %1298 = vmatprep.mubr.f32.mxu0 0.0
    %1299 = vmatmul.mubr.f32.gmra.mrb[0].mxu0 %v946
    %v1300 = vpop.f32.mrb[0].mxu0
    %v1301 = vadd.f32 0.0, %v1300
    %v1302 = vpop.f32.mrb[0].mxu0
    %1303 = vmatprep.mubr.f32.mxu0 0.0
    %1304 = vmatmul.mubr.f32.gmra.mrb[0].mxu0 %v948
    %v1305 = vpop.f32.mrb[0].mxu0
    %v1306 = vadd.f32 0.0, %v1305
    %v1307 = vpop.f32.mrb[0].mxu0
    %1308 = vmatprep.mubr.f32.mxu0 0.0
    %1309 = vmatmul.mubr.f32.gmra.mrb[0].mxu0 %v950
    %v1310 = vpop.f32.mrb[0].mxu0
    %v1311 = vadd.f32 0.0, %v1310
    %v1312 = vpop.f32.mrb[0].mxu0
    %1313 = vmatprep.mubr.f32.mxu0 0.0
    %1314 = vmatmul.mubr.f32.gmra.mrb[0].mxu0 %v952
    %v1315 = vpop.f32.mrb[0].mxu0
    %v1316 = vadd.f32 0.0, %v1315
    %v1317 = vpop.f32.mrb[0].mxu0
    %1318 = vmatprep.mubr.f32.mxu0 0.0
    %1319 = vmatmul.mubr.f32.gmra.mrb[0].mxu0 %v954
    %v1320 = vpop.f32.mrb[0].mxu0
    %v1321 = vadd.f32 0.0, %v1320
    %v1322 = vpop.f32.mrb[0].mxu0
    %1323 = vmatprep.mubr.f32.mxu0 0.0
    %1324 = vmatmul.mubr.f32.gmra.mrb[0].mxu0 %v956
    %v1325 = vpop.f32.mrb[0].mxu0
    %v1326 = vadd.f32 0.0, %v1325
    %v1327 = vpop.f32.mrb[0].mxu0
    %1328 = vmatprep.mubr.f32.mxu0 0.0
    %1329 = vmatmul.mubr.f32.gmra.mrb[0].mxu0 %v958
    %v1330 = vpop.f32.mrb[0].mxu0
    %v1331 = vadd.f32 0.0, %v1330
    %v1332 = vpop.f32.mrb[0].mxu0
    %1333 = vmatprep.mubr.f32.mxu0 0.0
    %1334 = vmatmul.mubr.f32.gmra.mrb[0].mxu0 %v960
    %v1335 = vpop.f32.mrb[0].mxu0
    %v1336 = vadd.f32 0.0, %v1335
    %v1337 = vpop.f32.mrb[0].mxu0
    %1338 = vmatprep.mubr.f32.mxu0 0.0
    %1339 = vmatmul.mubr.f32.gmra.mrb[0].mxu0 %v962
    %v1340 = vpop.f32.mrb[0].mxu0
    %v1341 = vadd.f32 0.0, %v1340
    %v1342 = vpop.f32.mrb[0].mxu0
    %1343 = vmatprep.mubr.f32.mxu0 0.0
    %1344 = vmatmul.mubr.f32.gmra.mrb[0].mxu0 %v964
    %v1345 = vpop.f32.mrb[0].mxu0
    %v1346 = vadd.f32 0.0, %v1345
    %v1347 = vpop.f32.mrb[0].mxu0
    %1348 = vmatprep.mubr.f32.mxu0 0.0
    %1349 = vmatmul.mubr.f32.gmra.mrb[0].mxu0 %v966
    %v1350 = vpop.f32.mrb[0].mxu0
    %v1351 = vadd.f32 0.0, %v1350
    %v1352 = vpop.f32.mrb[0].mxu0
    %1353 = vmatprep.mubr.f32.mxu0 0.0
    %1354 = vmatmul.mubr.f32.gmra.mrb[0].mxu0 %v968
    %v1355 = vpop.f32.mrb[0].mxu0
    %v1356 = vadd.f32 0.0, %v1355
    %v1357 = vpop.f32.mrb[0].mxu0
    %1358 = vdwg.mxu0
    %v1359 = vsel %vm86, %v261, 0
    %v1361 = vsel %vm86, %v262, 0
    %v1363 = vsel %vm86, %v264, 0
    %v1365 = vsel %vm86, %v265, 0
    %v1367 = vsel %vm86, %v267, 0
    %v1369 = vsel %vm86, %v268, 0
    %v1371 = vsel %vm86, %v270, 0
    %v1373 = vsel %vm86, %v271, 0
    %v1375 = vsel %vm86, %v273, 0
    %v1377 = vsel %vm86, %v274, 0
    %v1379 = vsel %vm86, %v276, 0
    %v1381 = vsel %vm86, %v277, 0
    %v1383 = vsel %vm86, %v279, 0
    %v1385 = vsel %vm86, %v280, 0
    %v1387 = vsel %vm86, %v282, 0
    %v1389 = vsel %vm86, %v283, 0
    %v1391 = vsel %vm86, %v285, 0
    %v1393 = vsel %vm86, %v286, 0
    %v1395 = vsel %vm86, %v288, 0
    %v1397 = vsel %vm86, %v289, 0
    %v1399 = vsel %vm86, %v291, 0
    %v1401 = vsel %vm86, %v292, 0
    %v1403 = vsel %vm86, %v294, 0
    %v1405 = vsel %vm86, %v295, 0
    %v1407 = vsel %vm86, %v297, 0
    %v1409 = vsel %vm86, %v298, 0
    %v1411 = vsel %vm86, %v300, 0
    %v1413 = vsel %vm86, %v301, 0
    %v1415 = vsel %vm86, %v303, 0
    %v1417 = vsel %vm86, %v304, 0
    %v1419 = vsel %vm86, %v306, 0
    %v1421 = vsel %vm86, %v307, 0
    %v1423 = vsel %vm86, %v315, 0
    %v1425 = vsel %vm86, %v316, 0
    %v1427 = vsel %vm86, %v318, 0
    %v1429 = vsel %vm86, %v319, 0
    %v1431 = vsel %vm86, %v321, 0
    %v1433 = vsel %vm86, %v322, 0
    %v1435 = vsel %vm86, %v324, 0
    %v1437 = vsel %vm86, %v325, 0
    %v1439 = vsel %vm86, %v327, 0
    %v1441 = vsel %vm86, %v328, 0
    %v1443 = vsel %vm86, %v330, 0
    %v1445 = vsel %vm86, %v331, 0
    %v1447 = vsel %vm86, %v333, 0
    %v1449 = vsel %vm86, %v334, 0
    %v1451 = vsel %vm86, %v336, 0
    %v1453 = vsel %vm86, %v337, 0
    %v1455 = vsel %vm86, %v339, 0
    %v1457 = vsel %vm86, %v340, 0
    %v1459 = vsel %vm86, %v342, 0
    %v1461 = vsel %vm86, %v343, 0
    %v1463 = vsel %vm86, %v345, 0
    %v1465 = vsel %vm86, %v346, 0
    %v1467 = vsel %vm86, %v348, 0
    %v1469 = vsel %vm86, %v349, 0
    %v1471 = vsel %vm86, %v351, 0
    %v1473 = vsel %vm86, %v352, 0
    %v1475 = vsel %vm86, %v354, 0
    %v1477 = vsel %vm86, %v355, 0
    %v1479 = vsel %vm86, %v357, 0
    %v1481 = vsel %vm86, %v358, 0
    %v1483 = vsel %vm86, %v360, 0
    %v1485 = vsel %vm86, %v361, 0
    %v1488 = vsel %vm970, %v839, 0
    %1490 = vmatprep.subr.mxu0 0.0
    %1491 = vmatpush1.msra.mxu0 %v1488
    %1492 = vmatprep.subr.mxu0 0.0
    %1493 = vmatpush1.msra.mxu0 0.0
    %1494 = vmatprep.subr.mxu0 0.0
    %1495 = vmatpush1.msra.mxu0 0.0
    %1496 = vmatprep.subr.mxu0 0.0
    %1497 = vmatpush1.msra.mxu0 0.0
    %1498 = vmatprep.subr.mxu0 0.0
    %1499 = vmatpush1.msra.mxu0 0.0
    %1500 = vmatprep.subr.mxu0 0.0
    %1501 = vmatpush1.msra.mxu0 0.0
    %1502 = vmatprep.subr.mxu0 0.0
    %1503 = vmatpush1.msra.mxu0 0.0
    %1504 = vmatprep.subr.mxu0 0.0
    %1505 = vmatpush1.msra.mxu0 0.0
    %1506 = vmatprep.subr.mxu0 0.0
    %1507 = vmatpush1.msra.mxu0 0.0
    %1508 = vmatprep.subr.mxu0 0.0
    %1509 = vmatpush1.msra.mxu0 0.0
    %1510 = vmatprep.subr.mxu0 0.0
    %1511 = vmatpush1.msra.mxu0 0.0
    %1512 = vmatprep.subr.mxu0 0.0
    %1513 = vmatpush1.msra.mxu0 0.0
    %1514 = vmatprep.subr.mxu0 0.0
    %1515 = vmatpush1.msra.mxu0 0.0
    %1516 = vmatprep.subr.mxu0 0.0
    %1517 = vmatpush1.msra.mxu0 0.0
    %1518 = vmatprep.subr.mxu0 0.0
    %1519 = vmatpush1.msra.mxu0 0.0
    %1520 = vmatprep.subr.mxu0 0.0
    %1521 = vmatpush1.msra.mxu0 0.0
    %1522 = vmatprep.subr.mxu0 0.0
    %1523 = vmatpush1.msra.mxu0 0.0
    %1524 = vmatprep.subr.mxu0 0.0
    %1525 = vmatpush1.msra.mxu0 0.0
    %1526 = vmatprep.subr.mxu0 0.0
    %1527 = vmatpush1.msra.mxu0 0.0
    %1528 = vmatprep.subr.mxu0 0.0
    %1529 = vmatpush1.msra.mxu0 0.0
    %1530 = vmatprep.subr.mxu0 0.0
    %1531 = vmatpush1.msra.mxu0 0.0
    %1532 = vmatprep.subr.mxu0 0.0
    %1533 = vmatpush1.msra.mxu0 0.0
    %1534 = vmatprep.subr.mxu0 0.0
    %1535 = vmatpush1.msra.mxu0 0.0
    %1536 = vmatprep.subr.mxu0 0.0
    %1537 = vmatpush1.msra.mxu0 0.0
    %1538 = vmatprep.subr.mxu0 0.0
    %1539 = vmatpush1.msra.mxu0 0.0
    %1540 = vmatprep.subr.mxu0 0.0
    %1541 = vmatpush1.msra.mxu0 0.0
    %1542 = vmatprep.subr.mxu0 0.0
    %1543 = vmatpush1.msra.mxu0 0.0
    %1544 = vmatprep.subr.mxu0 0.0
    %1545 = vmatpush1.msra.mxu0 0.0
    %1546 = vmatprep.subr.mxu0 0.0
    %1547 = vmatpush1.msra.mxu0 0.0
    %1548 = vmatprep.subr.mxu0 0.0
    %1549 = vmatpush1.msra.mxu0 0.0
    %1550 = vmatprep.subr.mxu0 0.0
    %1551 = vmatpush1.msra.mxu0 0.0
    %1552 = vmatprep.subr.mxu0 0.0
    %1553 = vmatpush1.msra.mxu0 0.0
    %1554 = vmatprep.mubr.f32.mxu0 0.0
    %1555 = vmatmul.mubr.f32.gmra.mrb[0].mxu0 %v1359
    %v1556 = vpop.f32.mrb[0].mxu0
    %v1557 = vadd.f32 %v1041, %v1556
    %v1558 = vpop.f32.mrb[0].mxu0
    %1559 = vmatprep.mubr.f32.mxu0 0.0
    %1560 = vmatmul.mubr.f32.gmra.mrb[0].mxu0 %v1361
    %v1561 = vpop.f32.mrb[0].mxu0
    %v1562 = vadd.f32 %v1046, %v1561
    %v1563 = vpop.f32.mrb[0].mxu0
    %1564 = vmatprep.mubr.f32.mxu0 0.0
    %1565 = vmatmul.mubr.f32.gmra.mrb[0].mxu0 %v1363
    %v1566 = vpop.f32.mrb[0].mxu0
    %v1567 = vadd.f32 %v1051, %v1566
    %v1568 = vpop.f32.mrb[0].mxu0
    %1569 = vmatprep.mubr.f32.mxu0 0.0
    %1570 = vmatmul.mubr.f32.gmra.mrb[0].mxu0 %v1365
    %v1571 = vpop.f32.mrb[0].mxu0
    %v1572 = vadd.f32 %v1056, %v1571
    %v1573 = vpop.f32.mrb[0].mxu0
    %1574 = vmatprep.mubr.f32.mxu0 0.0
    %1575 = vmatmul.mubr.f32.gmra.mrb[0].mxu0 %v1367
    %v1576 = vpop.f32.mrb[0].mxu0
    %v1577 = vadd.f32 %v1061, %v1576
    %v1578 = vpop.f32.mrb[0].mxu0
    %1579 = vmatprep.mubr.f32.mxu0 0.0
    %1580 = vmatmul.mubr.f32.gmra.mrb[0].mxu0 %v1369
    %v1581 = vpop.f32.mrb[0].mxu0
    %v1582 = vadd.f32 %v1066, %v1581
    %v1583 = vpop.f32.mrb[0].mxu0
    %1584 = vmatprep.mubr.f32.mxu0 0.0
    %1585 = vmatmul.mubr.f32.gmra.mrb[0].mxu0 %v1371
    %v1586 = vpop.f32.mrb[0].mxu0
    %v1587 = vadd.f32 %v1071, %v1586
    %v1588 = vpop.f32.mrb[0].mxu0
    %1589 = vmatprep.mubr.f32.mxu0 0.0
    %1590 = vmatmul.mubr.f32.gmra.mrb[0].mxu0 %v1373
    %v1591 = vpop.f32.mrb[0].mxu0
    %v1592 = vadd.f32 %v1076, %v1591
    %v1593 = vpop.f32.mrb[0].mxu0
    %1594 = vmatprep.mubr.f32.mxu0 0.0
    %1595 = vmatmul.mubr.f32.gmra.mrb[0].mxu0 %v1375
    %v1596 = vpop.f32.mrb[0].mxu0
    %v1597 = vadd.f32 %v1081, %v1596
    %v1598 = vpop.f32.mrb[0].mxu0
    %1599 = vmatprep.mubr.f32.mxu0 0.0
    %1600 = vmatmul.mubr.f32.gmra.mrb[0].mxu0 %v1377
    %v1601 = vpop.f32.mrb[0].mxu0
    %v1602 = vadd.f32 %v1086, %v1601
    %v1603 = vpop.f32.mrb[0].mxu0
    %1604 = vmatprep.mubr.f32.mxu0 0.0
    %1605 = vmatmul.mubr.f32.gmra.mrb[0].mxu0 %v1379
    %v1606 = vpop.f32.mrb[0].mxu0
    %v1607 = vadd.f32 %v1091, %v1606
    %v1608 = vpop.f32.mrb[0].mxu0
    %1609 = vmatprep.mubr.f32.mxu0 0.0
    %1610 = vmatmul.mubr.f32.gmra.mrb[0].mxu0 %v1381
    %v1611 = vpop.f32.mrb[0].mxu0
    %v1612 = vadd.f32 %v1096, %v1611
    %v1613 = vpop.f32.mrb[0].mxu0
    %1614 = vmatprep.mubr.f32.mxu0 0.0
    %1615 = vmatmul.mubr.f32.gmra.mrb[0].mxu0 %v1383
    %v1616 = vpop.f32.mrb[0].mxu0
    %v1617 = vadd.f32 %v1101, %v1616
    %v1618 = vpop.f32.mrb[0].mxu0
    %1619 = vmatprep.mubr.f32.mxu0 0.0
    %1620 = vmatmul.mubr.f32.gmra.mrb[0].mxu0 %v1385
    %v1621 = vpop.f32.mrb[0].mxu0
    %v1622 = vadd.f32 %v1106, %v1621
    %v1623 = vpop.f32.mrb[0].mxu0
    %1624 = vmatprep.mubr.f32.mxu0 0.0
    %1625 = vmatmul.mubr.f32.gmra.mrb[0].mxu0 %v1387
    %v1626 = vpop.f32.mrb[0].mxu0
    %v1627 = vadd.f32 %v1111, %v1626
    %v1628 = vpop.f32.mrb[0].mxu0
    %1629 = vmatprep.mubr.f32.mxu0 0.0
    %1630 = vmatmul.mubr.f32.gmra.mrb[0].mxu0 %v1389
    %v1631 = vpop.f32.mrb[0].mxu0
    %v1632 = vadd.f32 %v1116, %v1631
    %v1633 = vpop.f32.mrb[0].mxu0
    %1634 = vmatprep.mubr.f32.mxu0 0.0
    %1635 = vmatmul.mubr.f32.gmra.mrb[0].mxu0 %v1391
    %v1636 = vpop.f32.mrb[0].mxu0
    %v1637 = vadd.f32 %v1121, %v1636
    %v1638 = vpop.f32.mrb[0].mxu0
    %1639 = vmatprep.mubr.f32.mxu0 0.0
    %1640 = vmatmul.mubr.f32.gmra.mrb[0].mxu0 %v1393
    %v1641 = vpop.f32.mrb[0].mxu0
    %v1642 = vadd.f32 %v1126, %v1641
    %v1643 = vpop.f32.mrb[0].mxu0
    %1644 = vmatprep.mubr.f32.mxu0 0.0
    %1645 = vmatmul.mubr.f32.gmra.mrb[0].mxu0 %v1395
    %v1646 = vpop.f32.mrb[0].mxu0
    %v1647 = vadd.f32 %v1131, %v1646
    %v1648 = vpop.f32.mrb[0].mxu0
    %1649 = vmatprep.mubr.f32.mxu0 0.0
    %1650 = vmatmul.mubr.f32.gmra.mrb[0].mxu0 %v1397
    %v1651 = vpop.f32.mrb[0].mxu0
    %v1652 = vadd.f32 %v1136, %v1651
    %v1653 = vpop.f32.mrb[0].mxu0
    %1654 = vmatprep.mubr.f32.mxu0 0.0
    %1655 = vmatmul.mubr.f32.gmra.mrb[0].mxu0 %v1399
    %v1656 = vpop.f32.mrb[0].mxu0
    %v1657 = vadd.f32 %v1141, %v1656
    %v1658 = vpop.f32.mrb[0].mxu0
    %1659 = vmatprep.mubr.f32.mxu0 0.0
    %1660 = vmatmul.mubr.f32.gmra.mrb[0].mxu0 %v1401
    %v1661 = vpop.f32.mrb[0].mxu0
    %v1662 = vadd.f32 %v1146, %v1661
    %v1663 = vpop.f32.mrb[0].mxu0
    %1664 = vmatprep.mubr.f32.mxu0 0.0
    %1665 = vmatmul.mubr.f32.gmra.mrb[0].mxu0 %v1403
    %v1666 = vpop.f32.mrb[0].mxu0
    %v1667 = vadd.f32 %v1151, %v1666
    %v1668 = vpop.f32.mrb[0].mxu0
    %1669 = vmatprep.mubr.f32.mxu0 0.0
    %1670 = vmatmul.mubr.f32.gmra.mrb[0].mxu0 %v1405
    %v1671 = vpop.f32.mrb[0].mxu0
    %v1672 = vadd.f32 %v1156, %v1671
    %v1673 = vpop.f32.mrb[0].mxu0
    %1674 = vmatprep.mubr.f32.mxu0 0.0
    %1675 = vmatmul.mubr.f32.gmra.mrb[0].mxu0 %v1407
    %v1676 = vpop.f32.mrb[0].mxu0
    %v1677 = vadd.f32 %v1161, %v1676
    %v1678 = vpop.f32.mrb[0].mxu0
    %1679 = vmatprep.mubr.f32.mxu0 0.0
    %1680 = vmatmul.mubr.f32.gmra.mrb[0].mxu0 %v1409
    %v1681 = vpop.f32.mrb[0].mxu0
    %v1682 = vadd.f32 %v1166, %v1681
    %v1683 = vpop.f32.mrb[0].mxu0
    %1684 = vmatprep.mubr.f32.mxu0 0.0
    %1685 = vmatmul.mubr.f32.gmra.mrb[0].mxu0 %v1411
    %v1686 = vpop.f32.mrb[0].mxu0
    %v1687 = vadd.f32 %v1171, %v1686
    %v1688 = vpop.f32.mrb[0].mxu0
    %1689 = vmatprep.mubr.f32.mxu0 0.0
    %1690 = vmatmul.mubr.f32.gmra.mrb[0].mxu0 %v1413
    %v1691 = vpop.f32.mrb[0].mxu0
    %v1692 = vadd.f32 %v1176, %v1691
    %v1693 = vpop.f32.mrb[0].mxu0
    %1694 = vmatprep.mubr.f32.mxu0 0.0
    %1695 = vmatmul.mubr.f32.gmra.mrb[0].mxu0 %v1415
    %v1696 = vpop.f32.mrb[0].mxu0
    %v1697 = vadd.f32 %v1181, %v1696
    %v1698 = vpop.f32.mrb[0].mxu0
    %1699 = vmatprep.mubr.f32.mxu0 0.0
    %1700 = vmatmul.mubr.f32.gmra.mrb[0].mxu0 %v1417
    %v1701 = vpop.f32.mrb[0].mxu0
    %v1702 = vadd.f32 %v1186, %v1701
    %v1703 = vpop.f32.mrb[0].mxu0
    %1704 = vmatprep.mubr.f32.mxu0 0.0
    %1705 = vmatmul.mubr.f32.gmra.mrb[0].mxu0 %v1419
    %v1706 = vpop.f32.mrb[0].mxu0
    %v1707 = vadd.f32 %v1191, %v1706
    %v1708 = vpop.f32.mrb[0].mxu0
    %1709 = vmatprep.mubr.f32.mxu0 0.0
    %1710 = vmatmul.mubr.f32.gmra.mrb[0].mxu0 %v1421
    %v1711 = vpop.f32.mrb[0].mxu0
    %v1712 = vadd.f32 %v1196, %v1711
    %v1713 = vpop.f32.mrb[0].mxu0
    %1714 = vmatprep.mubr.f32.mxu0 0.0
    %1715 = vmatmul.mubr.f32.gmra.mrb[0].mxu0 %v1423
    %v1716 = vpop.f32.mrb[0].mxu0
    %v1717 = vadd.f32 %v1201, %v1716
    %v1718 = vpop.f32.mrb[0].mxu0
    %1719 = vmatprep.mubr.f32.mxu0 0.0
    %1720 = vmatmul.mubr.f32.gmra.mrb[0].mxu0 %v1425
    %v1721 = vpop.f32.mrb[0].mxu0
    %v1722 = vadd.f32 %v1206, %v1721
    %v1723 = vpop.f32.mrb[0].mxu0
    %1724 = vmatprep.mubr.f32.mxu0 0.0
    %1725 = vmatmul.mubr.f32.gmra.mrb[0].mxu0 %v1427
    %v1726 = vpop.f32.mrb[0].mxu0
    %v1727 = vadd.f32 %v1211, %v1726
    %v1728 = vpop.f32.mrb[0].mxu0
    %1729 = vmatprep.mubr.f32.mxu0 0.0
    %1730 = vmatmul.mubr.f32.gmra.mrb[0].mxu0 %v1429
    %v1731 = vpop.f32.mrb[0].mxu0
    %v1732 = vadd.f32 %v1216, %v1731
    %v1733 = vpop.f32.mrb[0].mxu0
    %1734 = vmatprep.mubr.f32.mxu0 0.0
    %1735 = vmatmul.mubr.f32.gmra.mrb[0].mxu0 %v1431
    %v1736 = vpop.f32.mrb[0].mxu0
    %v1737 = vadd.f32 %v1221, %v1736
    %v1738 = vpop.f32.mrb[0].mxu0
    %1739 = vmatprep.mubr.f32.mxu0 0.0
    %1740 = vmatmul.mubr.f32.gmra.mrb[0].mxu0 %v1433
    %v1741 = vpop.f32.mrb[0].mxu0
    %v1742 = vadd.f32 %v1226, %v1741
    %v1743 = vpop.f32.mrb[0].mxu0
    %1744 = vmatprep.mubr.f32.mxu0 0.0
    %1745 = vmatmul.mubr.f32.gmra.mrb[0].mxu0 %v1435
    %v1746 = vpop.f32.mrb[0].mxu0
    %v1747 = vadd.f32 %v1231, %v1746
    %v1748 = vpop.f32.mrb[0].mxu0
    %1749 = vmatprep.mubr.f32.mxu0 0.0
    %1750 = vmatmul.mubr.f32.gmra.mrb[0].mxu0 %v1437
    %v1751 = vpop.f32.mrb[0].mxu0
    %v1752 = vadd.f32 %v1236, %v1751
    %v1753 = vpop.f32.mrb[0].mxu0
    %1754 = vmatprep.mubr.f32.mxu0 0.0
    %1755 = vmatmul.mubr.f32.gmra.mrb[0].mxu0 %v1439
    %v1756 = vpop.f32.mrb[0].mxu0
    %v1757 = vadd.f32 %v1241, %v1756
    %v1758 = vpop.f32.mrb[0].mxu0
    %1759 = vmatprep.mubr.f32.mxu0 0.0
    %1760 = vmatmul.mubr.f32.gmra.mrb[0].mxu0 %v1441
    %v1761 = vpop.f32.mrb[0].mxu0
    %v1762 = vadd.f32 %v1246, %v1761
    %v1763 = vpop.f32.mrb[0].mxu0
    %1764 = vmatprep.mubr.f32.mxu0 0.0
    %1765 = vmatmul.mubr.f32.gmra.mrb[0].mxu0 %v1443
    %v1766 = vpop.f32.mrb[0].mxu0
    %v1767 = vadd.f32 %v1251, %v1766
    %v1768 = vpop.f32.mrb[0].mxu0
    %1769 = vmatprep.mubr.f32.mxu0 0.0
    %1770 = vmatmul.mubr.f32.gmra.mrb[0].mxu0 %v1445
    %v1771 = vpop.f32.mrb[0].mxu0
    %v1772 = vadd.f32 %v1256, %v1771
    %v1773 = vpop.f32.mrb[0].mxu0
    %1774 = vmatprep.mubr.f32.mxu0 0.0
    %1775 = vmatmul.mubr.f32.gmra.mrb[0].mxu0 %v1447
    %v1776 = vpop.f32.mrb[0].mxu0
    %v1777 = vadd.f32 %v1261, %v1776
    %v1778 = vpop.f32.mrb[0].mxu0
    %1779 = vmatprep.mubr.f32.mxu0 0.0
    %1780 = vmatmul.mubr.f32.gmra.mrb[0].mxu0 %v1449
    %v1781 = vpop.f32.mrb[0].mxu0
    %v1782 = vadd.f32 %v1266, %v1781
    %v1783 = vpop.f32.mrb[0].mxu0
    %1784 = vmatprep.mubr.f32.mxu0 0.0
    %1785 = vmatmul.mubr.f32.gmra.mrb[0].mxu0 %v1451
    %v1786 = vpop.f32.mrb[0].mxu0
    %v1787 = vadd.f32 %v1271, %v1786
    %v1788 = vpop.f32.mrb[0].mxu0
    %1789 = vmatprep.mubr.f32.mxu0 0.0
    %1790 = vmatmul.mubr.f32.gmra.mrb[0].mxu0 %v1453
    %v1791 = vpop.f32.mrb[0].mxu0
    %v1792 = vadd.f32 %v1276, %v1791
    %v1793 = vpop.f32.mrb[0].mxu0
    %1794 = vmatprep.mubr.f32.mxu0 0.0
    %1795 = vmatmul.mubr.f32.gmra.mrb[0].mxu0 %v1455
    %v1796 = vpop.f32.mrb[0].mxu0
    %v1797 = vadd.f32 %v1281, %v1796
    %v1798 = vpop.f32.mrb[0].mxu0
    %1799 = vmatprep.mubr.f32.mxu0 0.0
    %1800 = vmatmul.mubr.f32.gmra.mrb[0].mxu0 %v1457
    %v1801 = vpop.f32.mrb[0].mxu0
    %v1802 = vadd.f32 %v1286, %v1801
    %v1803 = vpop.f32.mrb[0].mxu0
    %1804 = vmatprep.mubr.f32.mxu0 0.0
    %1805 = vmatmul.mubr.f32.gmra.mrb[0].mxu0 %v1459
    %v1806 = vpop.f32.mrb[0].mxu0
    %v1807 = vadd.f32 %v1291, %v1806
    %v1808 = vpop.f32.mrb[0].mxu0
    %1809 = vmatprep.mubr.f32.mxu0 0.0
    %1810 = vmatmul.mubr.f32.gmra.mrb[0].mxu0 %v1461
    %v1811 = vpop.f32.mrb[0].mxu0
    %v1812 = vadd.f32 %v1296, %v1811
    %v1813 = vpop.f32.mrb[0].mxu0
    %1814 = vmatprep.mubr.f32.mxu0 0.0
    %1815 = vmatmul.mubr.f32.gmra.mrb[0].mxu0 %v1463
    %v1816 = vpop.f32.mrb[0].mxu0
    %v1817 = vadd.f32 %v1301, %v1816
    %v1818 = vpop.f32.mrb[0].mxu0
    %1819 = vmatprep.mubr.f32.mxu0 0.0
    %1820 = vmatmul.mubr.f32.gmra.mrb[0].mxu0 %v1465
    %v1821 = vpop.f32.mrb[0].mxu0
    %v1822 = vadd.f32 %v1306, %v1821
    %v1823 = vpop.f32.mrb[0].mxu0
    %1824 = vmatprep.mubr.f32.mxu0 0.0
    %1825 = vmatmul.mubr.f32.gmra.mrb[0].mxu0 %v1467
    %v1826 = vpop.f32.mrb[0].mxu0
    %v1827 = vadd.f32 %v1311, %v1826
    %v1828 = vpop.f32.mrb[0].mxu0
    %1829 = vmatprep.mubr.f32.mxu0 0.0
    %1830 = vmatmul.mubr.f32.gmra.mrb[0].mxu0 %v1469
    %v1831 = vpop.f32.mrb[0].mxu0
    %v1832 = vadd.f32 %v1316, %v1831
    %v1833 = vpop.f32.mrb[0].mxu0
    %1834 = vmatprep.mubr.f32.mxu0 0.0
    %1835 = vmatmul.mubr.f32.gmra.mrb[0].mxu0 %v1471
    %v1836 = vpop.f32.mrb[0].mxu0
    %v1837 = vadd.f32 %v1321, %v1836
    %v1838 = vpop.f32.mrb[0].mxu0
    %1839 = vmatprep.mubr.f32.mxu0 0.0
    %1840 = vmatmul.mubr.f32.gmra.mrb[0].mxu0 %v1473
    %v1841 = vpop.f32.mrb[0].mxu0
    %v1842 = vadd.f32 %v1326, %v1841
    %v1843 = vpop.f32.mrb[0].mxu0
    %1844 = vmatprep.mubr.f32.mxu0 0.0
    %1845 = vmatmul.mubr.f32.gmra.mrb[0].mxu0 %v1475
    %v1846 = vpop.f32.mrb[0].mxu0
    %v1847 = vadd.f32 %v1331, %v1846
    %v1848 = vpop.f32.mrb[0].mxu0
    %1849 = vmatprep.mubr.f32.mxu0 0.0
    %1850 = vmatmul.mubr.f32.gmra.mrb[0].mxu0 %v1477
    %v1851 = vpop.f32.mrb[0].mxu0
    %v1852 = vadd.f32 %v1336, %v1851
    %v1853 = vpop.f32.mrb[0].mxu0
    %1854 = vmatprep.mubr.f32.mxu0 0.0
    %1855 = vmatmul.mubr.f32.gmra.mrb[0].mxu0 %v1479
    %v1856 = vpop.f32.mrb[0].mxu0
    %v1857 = vadd.f32 %v1341, %v1856
    %v1858 = vpop.f32.mrb[0].mxu0
    %1859 = vmatprep.mubr.f32.mxu0 0.0
    %1860 = vmatmul.mubr.f32.gmra.mrb[0].mxu0 %v1481
    %v1861 = vpop.f32.mrb[0].mxu0
    %v1862 = vadd.f32 %v1346, %v1861
    %v1863 = vpop.f32.mrb[0].mxu0
    %1864 = vmatprep.mubr.f32.mxu0 0.0
    %1865 = vmatmul.mubr.f32.gmra.mrb[0].mxu0 %v1483
    %v1866 = vpop.f32.mrb[0].mxu0
    %v1867 = vadd.f32 %v1351, %v1866
    %v1868 = vpop.f32.mrb[0].mxu0
    %1869 = vmatprep.mubr.f32.mxu0 0.0
    %1870 = vmatmul.mubr.f32.gmra.mrb[0].mxu0 %v1485
    %v1871 = vpop.f32.mrb[0].mxu0
    %v1872 = vadd.f32 %v1356, %v1871
    %v1873 = vpop.f32.mrb[0].mxu0
    %1874 = vdwg.mxu0
    %s1875 = scalar_lea.vmem %s1, 8
    %v1876 = vld [vmem:[%s1875] sm:$0xf]
    %v1877 = vsel %vm86, %v629, 0
    %v1879 = vsel %vm86, %v631, 0
    %v1881 = vsel %vm86, %v634, 0
    %v1883 = vsel %vm86, %v636, 0
    %v1885 = vsel %vm86, %v639, 0
    %v1887 = vsel %vm86, %v641, 0
    %v1889 = vsel %vm86, %v644, 0
    %v1891 = vsel %vm86, %v646, 0
    %v1893 = vsel %vm86, %v649, 0
    %v1895 = vsel %vm86, %v651, 0
    %v1897 = vsel %vm86, %v654, 0
    %v1899 = vsel %vm86, %v656, 0
    %v1901 = vsel %vm86, %v659, 0
    %v1903 = vsel %vm86, %v661, 0
    %v1905 = vsel %vm86, %v664, 0
    %v1907 = vsel %vm86, %v666, 0
    %v1909 = vsel %vm86, %v669, 0
    %v1911 = vsel %vm86, %v671, 0
    %v1913 = vsel %vm86, %v674, 0
    %v1915 = vsel %vm86, %v676, 0
    %v1917 = vsel %vm86, %v679, 0
    %v1919 = vsel %vm86, %v681, 0
    %v1921 = vsel %vm86, %v684, 0
    %v1923 = vsel %vm86, %v686, 0
    %v1925 = vsel %vm86, %v689, 0
    %v1927 = vsel %vm86, %v691, 0
    %v1929 = vsel %vm86, %v694, 0
    %v1931 = vsel %vm86, %v696, 0
    %v1933 = vsel %vm86, %v699, 0
    %v1935 = vsel %vm86, %v701, 0
    %v1937 = vsel %vm86, %v704, 0
    %v1939 = vsel %vm86, %v706, 0
    %v1941 = vsel %vm86, %v709, 0
    %v1943 = vsel %vm86, %v711, 0
    %v1945 = vsel %vm86, %v714, 0
    %v1947 = vsel %vm86, %v716, 0
    %v1949 = vsel %vm86, %v719, 0
    %v1951 = vsel %vm86, %v721, 0
    %v1953 = vsel %vm86, %v724, 0
    %v1955 = vsel %vm86, %v726, 0
    %v1957 = vsel %vm86, %v729, 0
    %v1959 = vsel %vm86, %v731, 0
    %v1961 = vsel %vm86, %v734, 0
    %v1963 = vsel %vm86, %v736, 0
    %v1965 = vsel %vm86, %v739, 0
    %v1967 = vsel %vm86, %v741, 0
    %v1969 = vsel %vm86, %v744, 0
    %v1971 = vsel %vm86, %v746, 0
    %v1973 = vsel %vm86, %v749, 0
    %v1975 = vsel %vm86, %v751, 0
    %v1977 = vsel %vm86, %v754, 0
    %v1979 = vsel %vm86, %v756, 0
    %v1981 = vsel %vm86, %v759, 0
    %v1983 = vsel %vm86, %v761, 0
    %v1985 = vsel %vm86, %v764, 0
    %v1987 = vsel %vm86, %v766, 0
    %v1989 = vsel %vm86, %v769, 0
    %v1991 = vsel %vm86, %v771, 0
    %v1993 = vsel %vm86, %v774, 0
    %v1995 = vsel %vm86, %v776, 0
    %v1997 = vsel %vm86, %v779, 0
    %v1999 = vsel %vm86, %v781, 0
    %v2001 = vsel %vm86, %v784, 0
    %v2003 = vsel %vm86, %v786, 0
    %v2006 = vsel %vm970, %v1876, 0
    %2008 = vmatprep.subr.mxu0 0.0
    %2009 = vmatpush1.msra.mxu0 %v2006
    %2010 = vmatprep.subr.mxu0 0.0
    %2011 = vmatpush1.msra.mxu0 0.0
    %2012 = vmatprep.subr.mxu0 0.0
    %2013 = vmatpush1.msra.mxu0 0.0
    %2014 = vmatprep.subr.mxu0 0.0
    %2015 = vmatpush1.msra.mxu0 0.0
    %2016 = vmatprep.subr.mxu0 0.0
    %2017 = vmatpush1.msra.mxu0 0.0
    %2018 = vmatprep.subr.mxu0 0.0
    %2019 = vmatpush1.msra.mxu0 0.0
    %2020 = vmatprep.subr.mxu0 0.0
    %2021 = vmatpush1.msra.mxu0 0.0
    %2022 = vmatprep.subr.mxu0 0.0
    %2023 = vmatpush1.msra.mxu0 0.0
    %2024 = vmatprep.subr.mxu0 0.0
    %2025 = vmatpush1.msra.mxu0 0.0
    %2026 = vmatprep.subr.mxu0 0.0
    %2027 = vmatpush1.msra.mxu0 0.0
    %2028 = vmatprep.subr.mxu0 0.0
    %2029 = vmatpush1.msra.mxu0 0.0
    %2030 = vmatprep.subr.mxu0 0.0
    %2031 = vmatpush1.msra.mxu0 0.0
    %2032 = vmatprep.subr.mxu0 0.0
    %2033 = vmatpush1.msra.mxu0 0.0
    %2034 = vmatprep.subr.mxu0 0.0
    %2035 = vmatpush1.msra.mxu0 0.0
    %2036 = vmatprep.subr.mxu0 0.0
    %2037 = vmatpush1.msra.mxu0 0.0
    %2038 = vmatprep.subr.mxu0 0.0
    %2039 = vmatpush1.msra.mxu0 0.0
    %2040 = vmatprep.subr.mxu0 0.0
    %2041 = vmatpush1.msra.mxu0 0.0
    %2042 = vmatprep.subr.mxu0 0.0
    %2043 = vmatpush1.msra.mxu0 0.0
    %2044 = vmatprep.subr.mxu0 0.0
    %2045 = vmatpush1.msra.mxu0 0.0
    %2046 = vmatprep.subr.mxu0 0.0
    %2047 = vmatpush1.msra.mxu0 0.0
    %2048 = vmatprep.subr.mxu0 0.0
    %2049 = vmatpush1.msra.mxu0 0.0
    %2050 = vmatprep.subr.mxu0 0.0
    %2051 = vmatpush1.msra.mxu0 0.0
    %2052 = vmatprep.subr.mxu0 0.0
    %2053 = vmatpush1.msra.mxu0 0.0
    %2054 = vmatprep.subr.mxu0 0.0
    %2055 = vmatpush1.msra.mxu0 0.0
    %2056 = vmatprep.subr.mxu0 0.0
    %2057 = vmatpush1.msra.mxu0 0.0
    %2058 = vmatprep.subr.mxu0 0.0
    %2059 = vmatpush1.msra.mxu0 0.0
    %2060 = vmatprep.subr.mxu0 0.0
    %2061 = vmatpush1.msra.mxu0 0.0
    %2062 = vmatprep.subr.mxu0 0.0
    %2063 = vmatpush1.msra.mxu0 0.0
    %2064 = vmatprep.subr.mxu0 0.0
    %2065 = vmatpush1.msra.mxu0 0.0
    %2066 = vmatprep.subr.mxu0 0.0
    %2067 = vmatpush1.msra.mxu0 0.0
    %2068 = vmatprep.subr.mxu0 0.0
    %2069 = vmatpush1.msra.mxu0 0.0
    %2070 = vmatprep.subr.mxu0 0.0
    %2071 = vmatpush1.msra.mxu0 0.0
    %2072 = vmatprep.mubr.f32.mxu0 0.0
    %2073 = vmatmul.mubr.f32.gmra.mrb[0].mxu0 %v1877
    %v2074 = vpop.f32.mrb[0].mxu0
    %v2075 = vadd.f32 0.0, %v2074
    %v2076 = vpop.f32.mrb[0].mxu0
    %2077 = vmatprep.mubr.f32.mxu0 0.0
    %2078 = vmatmul.mubr.f32.gmra.mrb[0].mxu0 %v1879
    %v2079 = vpop.f32.mrb[0].mxu0
    %v2080 = vadd.f32 0.0, %v2079
    %v2081 = vpop.f32.mrb[0].mxu0
    %2082 = vmatprep.mubr.f32.mxu0 0.0
    %2083 = vmatmul.mubr.f32.gmra.mrb[0].mxu0 %v1881
    %v2084 = vpop.f32.mrb[0].mxu0
    %v2085 = vadd.f32 0.0, %v2084
    %v2086 = vpop.f32.mrb[0].mxu0
    %2087 = vmatprep.mubr.f32.mxu0 0.0
    %2088 = vmatmul.mubr.f32.gmra.mrb[0].mxu0 %v1883
    %v2089 = vpop.f32.mrb[0].mxu0
    %v2090 = vadd.f32 0.0, %v2089
    %v2091 = vpop.f32.mrb[0].mxu0
    %2092 = vmatprep.mubr.f32.mxu0 0.0
    %2093 = vmatmul.mubr.f32.gmra.mrb[0].mxu0 %v1885
    %v2094 = vpop.f32.mrb[0].mxu0
    %v2095 = vadd.f32 0.0, %v2094
    %v2096 = vpop.f32.mrb[0].mxu0
    %2097 = vmatprep.mubr.f32.mxu0 0.0
    %2098 = vmatmul.mubr.f32.gmra.mrb[0].mxu0 %v1887
    %v2099 = vpop.f32.mrb[0].mxu0
    %v2100 = vadd.f32 0.0, %v2099
    %v2101 = vpop.f32.mrb[0].mxu0
    %2102 = vmatprep.mubr.f32.mxu0 0.0
    %2103 = vmatmul.mubr.f32.gmra.mrb[0].mxu0 %v1889
    %v2104 = vpop.f32.mrb[0].mxu0
    %v2105 = vadd.f32 0.0, %v2104
    %v2106 = vpop.f32.mrb[0].mxu0
    %2107 = vmatprep.mubr.f32.mxu0 0.0
    %2108 = vmatmul.mubr.f32.gmra.mrb[0].mxu0 %v1891
    %v2109 = vpop.f32.mrb[0].mxu0
    %v2110 = vadd.f32 0.0, %v2109
    %v2111 = vpop.f32.mrb[0].mxu0
    %2112 = vmatprep.mubr.f32.mxu0 0.0
    %2113 = vmatmul.mubr.f32.gmra.mrb[0].mxu0 %v1893
    %v2114 = vpop.f32.mrb[0].mxu0
    %v2115 = vadd.f32 0.0, %v2114
    %v2116 = vpop.f32.mrb[0].mxu0
    %2117 = vmatprep.mubr.f32.mxu0 0.0
    %2118 = vmatmul.mubr.f32.gmra.mrb[0].mxu0 %v1895
    %v2119 = vpop.f32.mrb[0].mxu0
    %v2120 = vadd.f32 0.0, %v2119
    %v2121 = vpop.f32.mrb[0].mxu0
    %2122 = vmatprep.mubr.f32.mxu0 0.0
    %2123 = vmatmul.mubr.f32.gmra.mrb[0].mxu0 %v1897
    %v2124 = vpop.f32.mrb[0].mxu0
    %v2125 = vadd.f32 0.0, %v2124
    %v2126 = vpop.f32.mrb[0].mxu0
    %2127 = vmatprep.mubr.f32.mxu0 0.0
    %2128 = vmatmul.mubr.f32.gmra.mrb[0].mxu0 %v1899
    %v2129 = vpop.f32.mrb[0].mxu0
    %v2130 = vadd.f32 0.0, %v2129
    %v2131 = vpop.f32.mrb[0].mxu0
    %2132 = vmatprep.mubr.f32.mxu0 0.0
    %2133 = vmatmul.mubr.f32.gmra.mrb[0].mxu0 %v1901
    %v2134 = vpop.f32.mrb[0].mxu0
    %v2135 = vadd.f32 0.0, %v2134
    %v2136 = vpop.f32.mrb[0].mxu0
    %2137 = vmatprep.mubr.f32.mxu0 0.0
    %2138 = vmatmul.mubr.f32.gmra.mrb[0].mxu0 %v1903
    %v2139 = vpop.f32.mrb[0].mxu0
    %v2140 = vadd.f32 0.0, %v2139
    %v2141 = vpop.f32.mrb[0].mxu0
    %2142 = vmatprep.mubr.f32.mxu0 0.0
    %2143 = vmatmul.mubr.f32.gmra.mrb[0].mxu0 %v1905
    %v2144 = vpop.f32.mrb[0].mxu0
    %v2145 = vadd.f32 0.0, %v2144
    %v2146 = vpop.f32.mrb[0].mxu0
    %2147 = vmatprep.mubr.f32.mxu0 0.0
    %2148 = vmatmul.mubr.f32.gmra.mrb[0].mxu0 %v1907
    %v2149 = vpop.f32.mrb[0].mxu0
    %v2150 = vadd.f32 0.0, %v2149
    %v2151 = vpop.f32.mrb[0].mxu0
    %2152 = vmatprep.mubr.f32.mxu0 0.0
    %2153 = vmatmul.mubr.f32.gmra.mrb[0].mxu0 %v1909
    %v2154 = vpop.f32.mrb[0].mxu0
    %v2155 = vadd.f32 0.0, %v2154
    %v2156 = vpop.f32.mrb[0].mxu0
    %2157 = vmatprep.mubr.f32.mxu0 0.0
    %2158 = vmatmul.mubr.f32.gmra.mrb[0].mxu0 %v1911
    %v2159 = vpop.f32.mrb[0].mxu0
    %v2160 = vadd.f32 0.0, %v2159
    %v2161 = vpop.f32.mrb[0].mxu0
    %2162 = vmatprep.mubr.f32.mxu0 0.0
    %2163 = vmatmul.mubr.f32.gmra.mrb[0].mxu0 %v1913
    %v2164 = vpop.f32.mrb[0].mxu0
    %v2165 = vadd.f32 0.0, %v2164
    %v2166 = vpop.f32.mrb[0].mxu0
    %2167 = vmatprep.mubr.f32.mxu0 0.0
    %2168 = vmatmul.mubr.f32.gmra.mrb[0].mxu0 %v1915
    %v2169 = vpop.f32.mrb[0].mxu0
    %v2170 = vadd.f32 0.0, %v2169
    %v2171 = vpop.f32.mrb[0].mxu0
    %2172 = vmatprep.mubr.f32.mxu0 0.0
    %2173 = vmatmul.mubr.f32.gmra.mrb[0].mxu0 %v1917
    %v2174 = vpop.f32.mrb[0].mxu0
    %v2175 = vadd.f32 0.0, %v2174
    %v2176 = vpop.f32.mrb[0].mxu0
    %2177 = vmatprep.mubr.f32.mxu0 0.0
    %2178 = vmatmul.mubr.f32.gmra.mrb[0].mxu0 %v1919
    %v2179 = vpop.f32.mrb[0].mxu0
    %v2180 = vadd.f32 0.0, %v2179
    %v2181 = vpop.f32.mrb[0].mxu0
    %2182 = vmatprep.mubr.f32.mxu0 0.0
    %2183 = vmatmul.mubr.f32.gmra.mrb[0].mxu0 %v1921
    %v2184 = vpop.f32.mrb[0].mxu0
    %v2185 = vadd.f32 0.0, %v2184
    %v2186 = vpop.f32.mrb[0].mxu0
    %2187 = vmatprep.mubr.f32.mxu0 0.0
    %2188 = vmatmul.mubr.f32.gmra.mrb[0].mxu0 %v1923
    %v2189 = vpop.f32.mrb[0].mxu0
    %v2190 = vadd.f32 0.0, %v2189
    %v2191 = vpop.f32.mrb[0].mxu0
    %2192 = vmatprep.mubr.f32.mxu0 0.0
    %2193 = vmatmul.mubr.f32.gmra.mrb[0].mxu0 %v1925
    %v2194 = vpop.f32.mrb[0].mxu0
    %v2195 = vadd.f32 0.0, %v2194
    %v2196 = vpop.f32.mrb[0].mxu0
    %2197 = vmatprep.mubr.f32.mxu0 0.0
    %2198 = vmatmul.mubr.f32.gmra.mrb[0].mxu0 %v1927
    %v2199 = vpop.f32.mrb[0].mxu0
    %v2200 = vadd.f32 0.0, %v2199
    %v2201 = vpop.f32.mrb[0].mxu0
    %2202 = vmatprep.mubr.f32.mxu0 0.0
    %2203 = vmatmul.mubr.f32.gmra.mrb[0].mxu0 %v1929
    %v2204 = vpop.f32.mrb[0].mxu0
    %v2205 = vadd.f32 0.0, %v2204
    %v2206 = vpop.f32.mrb[0].mxu0
    %2207 = vmatprep.mubr.f32.mxu0 0.0
    %2208 = vmatmul.mubr.f32.gmra.mrb[0].mxu0 %v1931
    %v2209 = vpop.f32.mrb[0].mxu0
    %v2210 = vadd.f32 0.0, %v2209
    %v2211 = vpop.f32.mrb[0].mxu0
    %2212 = vmatprep.mubr.f32.mxu0 0.0
    %2213 = vmatmul.mubr.f32.gmra.mrb[0].mxu0 %v1933
    %v2214 = vpop.f32.mrb[0].mxu0
    %v2215 = vadd.f32 0.0, %v2214
    %v2216 = vpop.f32.mrb[0].mxu0
    %2217 = vmatprep.mubr.f32.mxu0 0.0
    %2218 = vmatmul.mubr.f32.gmra.mrb[0].mxu0 %v1935
    %v2219 = vpop.f32.mrb[0].mxu0
    %v2220 = vadd.f32 0.0, %v2219
    %v2221 = vpop.f32.mrb[0].mxu0
    %2222 = vmatprep.mubr.f32.mxu0 0.0
    %2223 = vmatmul.mubr.f32.gmra.mrb[0].mxu0 %v1937
    %v2224 = vpop.f32.mrb[0].mxu0
    %v2225 = vadd.f32 0.0, %v2224
    %v2226 = vpop.f32.mrb[0].mxu0
    %2227 = vmatprep.mubr.f32.mxu0 0.0
    %2228 = vmatmul.mubr.f32.gmra.mrb[0].mxu0 %v1939
    %v2229 = vpop.f32.mrb[0].mxu0
    %v2230 = vadd.f32 0.0, %v2229
    %v2231 = vpop.f32.mrb[0].mxu0
    %2232 = vmatprep.mubr.f32.mxu0 0.0
    %2233 = vmatmul.mubr.f32.gmra.mrb[0].mxu0 %v1941
    %v2234 = vpop.f32.mrb[0].mxu0
    %v2235 = vadd.f32 0.0, %v2234
    %v2236 = vpop.f32.mrb[0].mxu0
    %2237 = vmatprep.mubr.f32.mxu0 0.0
    %2238 = vmatmul.mubr.f32.gmra.mrb[0].mxu0 %v1943
    %v2239 = vpop.f32.mrb[0].mxu0
    %v2240 = vadd.f32 0.0, %v2239
    %v2241 = vpop.f32.mrb[0].mxu0
    %2242 = vmatprep.mubr.f32.mxu0 0.0
    %2243 = vmatmul.mubr.f32.gmra.mrb[0].mxu0 %v1945
    %v2244 = vpop.f32.mrb[0].mxu0
    %v2245 = vadd.f32 0.0, %v2244
    %v2246 = vpop.f32.mrb[0].mxu0
    %2247 = vmatprep.mubr.f32.mxu0 0.0
    %2248 = vmatmul.mubr.f32.gmra.mrb[0].mxu0 %v1947
    %v2249 = vpop.f32.mrb[0].mxu0
    %v2250 = vadd.f32 0.0, %v2249
    %v2251 = vpop.f32.mrb[0].mxu0
    %2252 = vmatprep.mubr.f32.mxu0 0.0
    %2253 = vmatmul.mubr.f32.gmra.mrb[0].mxu0 %v1949
    %v2254 = vpop.f32.mrb[0].mxu0
    %v2255 = vadd.f32 0.0, %v2254
    %v2256 = vpop.f32.mrb[0].mxu0
    %2257 = vmatprep.mubr.f32.mxu0 0.0
    %2258 = vmatmul.mubr.f32.gmra.mrb[0].mxu0 %v1951
    %v2259 = vpop.f32.mrb[0].mxu0
    %v2260 = vadd.f32 0.0, %v2259
    %v2261 = vpop.f32.mrb[0].mxu0
    %2262 = vmatprep.mubr.f32.mxu0 0.0
    %2263 = vmatmul.mubr.f32.gmra.mrb[0].mxu0 %v1953
    %v2264 = vpop.f32.mrb[0].mxu0
    %v2265 = vadd.f32 0.0, %v2264
    %v2266 = vpop.f32.mrb[0].mxu0
    %2267 = vmatprep.mubr.f32.mxu0 0.0
    %2268 = vmatmul.mubr.f32.gmra.mrb[0].mxu0 %v1955
    %v2269 = vpop.f32.mrb[0].mxu0
    %v2270 = vadd.f32 0.0, %v2269
    %v2271 = vpop.f32.mrb[0].mxu0
    %2272 = vmatprep.mubr.f32.mxu0 0.0
    %2273 = vmatmul.mubr.f32.gmra.mrb[0].mxu0 %v1957
    %v2274 = vpop.f32.mrb[0].mxu0
    %v2275 = vadd.f32 0.0, %v2274
    %v2276 = vpop.f32.mrb[0].mxu0
    %2277 = vmatprep.mubr.f32.mxu0 0.0
    %2278 = vmatmul.mubr.f32.gmra.mrb[0].mxu0 %v1959
    %v2279 = vpop.f32.mrb[0].mxu0
    %v2280 = vadd.f32 0.0, %v2279
    %v2281 = vpop.f32.mrb[0].mxu0
    %2282 = vmatprep.mubr.f32.mxu0 0.0
    %2283 = vmatmul.mubr.f32.gmra.mrb[0].mxu0 %v1961
    %v2284 = vpop.f32.mrb[0].mxu0
    %v2285 = vadd.f32 0.0, %v2284
    %v2286 = vpop.f32.mrb[0].mxu0
    %2287 = vmatprep.mubr.f32.mxu0 0.0
    %2288 = vmatmul.mubr.f32.gmra.mrb[0].mxu0 %v1963
    %v2289 = vpop.f32.mrb[0].mxu0
    %v2290 = vadd.f32 0.0, %v2289
    %v2291 = vpop.f32.mrb[0].mxu0
    %2292 = vmatprep.mubr.f32.mxu0 0.0
    %2293 = vmatmul.mubr.f32.gmra.mrb[0].mxu0 %v1965
    %v2294 = vpop.f32.mrb[0].mxu0
    %v2295 = vadd.f32 0.0, %v2294
    %v2296 = vpop.f32.mrb[0].mxu0
    %2297 = vmatprep.mubr.f32.mxu0 0.0
    %2298 = vmatmul.mubr.f32.gmra.mrb[0].mxu0 %v1967
    %v2299 = vpop.f32.mrb[0].mxu0
    %v2300 = vadd.f32 0.0, %v2299
    %v2301 = vpop.f32.mrb[0].mxu0
    %2302 = vmatprep.mubr.f32.mxu0 0.0
    %2303 = vmatmul.mubr.f32.gmra.mrb[0].mxu0 %v1969
    %v2304 = vpop.f32.mrb[0].mxu0
    %v2305 = vadd.f32 0.0, %v2304
    %v2306 = vpop.f32.mrb[0].mxu0
    %2307 = vmatprep.mubr.f32.mxu0 0.0
    %2308 = vmatmul.mubr.f32.gmra.mrb[0].mxu0 %v1971
    %v2309 = vpop.f32.mrb[0].mxu0
    %v2310 = vadd.f32 0.0, %v2309
    %v2311 = vpop.f32.mrb[0].mxu0
    %2312 = vmatprep.mubr.f32.mxu0 0.0
    %2313 = vmatmul.mubr.f32.gmra.mrb[0].mxu0 %v1973
    %v2314 = vpop.f32.mrb[0].mxu0
    %v2315 = vadd.f32 0.0, %v2314
    %v2316 = vpop.f32.mrb[0].mxu0
    %2317 = vmatprep.mubr.f32.mxu0 0.0
    %2318 = vmatmul.mubr.f32.gmra.mrb[0].mxu0 %v1975
    %v2319 = vpop.f32.mrb[0].mxu0
    %v2320 = vadd.f32 0.0, %v2319
    %v2321 = vpop.f32.mrb[0].mxu0
    %2322 = vmatprep.mubr.f32.mxu0 0.0
    %2323 = vmatmul.mubr.f32.gmra.mrb[0].mxu0 %v1977
    %v2324 = vpop.f32.mrb[0].mxu0
    %v2325 = vadd.f32 0.0, %v2324
    %v2326 = vpop.f32.mrb[0].mxu0
    %2327 = vmatprep.mubr.f32.mxu0 0.0
    %2328 = vmatmul.mubr.f32.gmra.mrb[0].mxu0 %v1979
    %v2329 = vpop.f32.mrb[0].mxu0
    %v2330 = vadd.f32 0.0, %v2329
    %v2331 = vpop.f32.mrb[0].mxu0
    %2332 = vmatprep.mubr.f32.mxu0 0.0
    %2333 = vmatmul.mubr.f32.gmra.mrb[0].mxu0 %v1981
    %v2334 = vpop.f32.mrb[0].mxu0
    %v2335 = vadd.f32 0.0, %v2334
    %v2336 = vpop.f32.mrb[0].mxu0
    %2337 = vmatprep.mubr.f32.mxu0 0.0
    %2338 = vmatmul.mubr.f32.gmra.mrb[0].mxu0 %v1983
    %v2339 = vpop.f32.mrb[0].mxu0
    %v2340 = vadd.f32 0.0, %v2339
    %v2341 = vpop.f32.mrb[0].mxu0
    %2342 = vmatprep.mubr.f32.mxu0 0.0
    %2343 = vmatmul.mubr.f32.gmra.mrb[0].mxu0 %v1985
    %v2344 = vpop.f32.mrb[0].mxu0
    %v2345 = vadd.f32 0.0, %v2344
    %v2346 = vpop.f32.mrb[0].mxu0
    %2347 = vmatprep.mubr.f32.mxu0 0.0
    %2348 = vmatmul.mubr.f32.gmra.mrb[0].mxu0 %v1987
    %v2349 = vpop.f32.mrb[0].mxu0
    %v2350 = vadd.f32 0.0, %v2349
    %v2351 = vpop.f32.mrb[0].mxu0
    %2352 = vmatprep.mubr.f32.mxu0 0.0
    %2353 = vmatmul.mubr.f32.gmra.mrb[0].mxu0 %v1989
    %v2354 = vpop.f32.mrb[0].mxu0
    %v2355 = vadd.f32 0.0, %v2354
    %v2356 = vpop.f32.mrb[0].mxu0
    %2357 = vmatprep.mubr.f32.mxu0 0.0
    %2358 = vmatmul.mubr.f32.gmra.mrb[0].mxu0 %v1991
    %v2359 = vpop.f32.mrb[0].mxu0
    %v2360 = vadd.f32 0.0, %v2359
    %v2361 = vpop.f32.mrb[0].mxu0
    %2362 = vmatprep.mubr.f32.mxu0 0.0
    %2363 = vmatmul.mubr.f32.gmra.mrb[0].mxu0 %v1993
    %v2364 = vpop.f32.mrb[0].mxu0
    %v2365 = vadd.f32 0.0, %v2364
    %v2366 = vpop.f32.mrb[0].mxu0
    %2367 = vmatprep.mubr.f32.mxu0 0.0
    %2368 = vmatmul.mubr.f32.gmra.mrb[0].mxu0 %v1995
    %v2369 = vpop.f32.mrb[0].mxu0
    %v2370 = vadd.f32 0.0, %v2369
    %v2371 = vpop.f32.mrb[0].mxu0
    %2372 = vmatprep.mubr.f32.mxu0 0.0
    %2373 = vmatmul.mubr.f32.gmra.mrb[0].mxu0 %v1997
    %v2374 = vpop.f32.mrb[0].mxu0
    %v2375 = vadd.f32 0.0, %v2374
    %v2376 = vpop.f32.mrb[0].mxu0
    %2377 = vmatprep.mubr.f32.mxu0 0.0
    %2378 = vmatmul.mubr.f32.gmra.mrb[0].mxu0 %v1999
    %v2379 = vpop.f32.mrb[0].mxu0
    %v2380 = vadd.f32 0.0, %v2379
    %v2381 = vpop.f32.mrb[0].mxu0
    %2382 = vmatprep.mubr.f32.mxu0 0.0
    %2383 = vmatmul.mubr.f32.gmra.mrb[0].mxu0 %v2001
    %v2384 = vpop.f32.mrb[0].mxu0
    %v2385 = vadd.f32 0.0, %v2384
    %v2386 = vpop.f32.mrb[0].mxu0
    %2387 = vmatprep.mubr.f32.mxu0 0.0
    %2388 = vmatmul.mubr.f32.gmra.mrb[0].mxu0 %v2003
    %v2389 = vpop.f32.mrb[0].mxu0
    %v2390 = vadd.f32 0.0, %v2389
    %v2391 = vpop.f32.mrb[0].mxu0
    %2392 = vdwg.mxu0
    %v2393 = vadd.f32 %v1557, %v2075
    %v2394 = vadd.f32 %v1562, %v2080
    %v2395 = vadd.f32 %v1567, %v2085
    %v2396 = vadd.f32 %v1572, %v2090
    %v2397 = vadd.f32 %v1577, %v2095
    %v2398 = vadd.f32 %v1582, %v2100
    %v2399 = vadd.f32 %v1587, %v2105
    %v2400 = vadd.f32 %v1592, %v2110
    %v2401 = vadd.f32 %v1597, %v2115
    %v2402 = vadd.f32 %v1602, %v2120
    %v2403 = vadd.f32 %v1607, %v2125
    %v2404 = vadd.f32 %v1612, %v2130
    %v2405 = vadd.f32 %v1617, %v2135
    %v2406 = vadd.f32 %v1622, %v2140
    %v2407 = vadd.f32 %v1627, %v2145
    %v2408 = vadd.f32 %v1632, %v2150
    %v2409 = vadd.f32 %v1637, %v2155
    %v2410 = vadd.f32 %v1642, %v2160
    %v2411 = vadd.f32 %v1647, %v2165
    %v2412 = vadd.f32 %v1652, %v2170
    %v2413 = vadd.f32 %v1657, %v2175
    %v2414 = vadd.f32 %v1662, %v2180
    %v2415 = vadd.f32 %v1667, %v2185
    %v2416 = vadd.f32 %v1672, %v2190
    %v2417 = vadd.f32 %v1677, %v2195
    %v2418 = vadd.f32 %v1682, %v2200
    %v2419 = vadd.f32 %v1687, %v2205
    %v2420 = vadd.f32 %v1692, %v2210
    %v2421 = vadd.f32 %v1697, %v2215
    %v2422 = vadd.f32 %v1702, %v2220
    %v2423 = vadd.f32 %v1707, %v2225
    %v2424 = vadd.f32 %v1712, %v2230
    %v2425 = vadd.f32 %v1717, %v2235
    %v2426 = vadd.f32 %v1722, %v2240
    %v2427 = vadd.f32 %v1727, %v2245
    %v2428 = vadd.f32 %v1732, %v2250
    %v2429 = vadd.f32 %v1737, %v2255
    %v2430 = vadd.f32 %v1742, %v2260
    %v2431 = vadd.f32 %v1747, %v2265
    %v2432 = vadd.f32 %v1752, %v2270
    %v2433 = vadd.f32 %v1757, %v2275
    %v2434 = vadd.f32 %v1762, %v2280
    %v2435 = vadd.f32 %v1767, %v2285
    %v2436 = vadd.f32 %v1772, %v2290
    %v2437 = vadd.f32 %v1777, %v2295
    %v2438 = vadd.f32 %v1782, %v2300
    %v2439 = vadd.f32 %v1787, %v2305
    %v2440 = vadd.f32 %v1792, %v2310
    %v2441 = vadd.f32 %v1797, %v2315
    %v2442 = vadd.f32 %v1802, %v2320
    %v2443 = vadd.f32 %v1807, %v2325
    %v2444 = vadd.f32 %v1812, %v2330
    %v2445 = vadd.f32 %v1817, %v2335
    %v2446 = vadd.f32 %v1822, %v2340
    %v2447 = vadd.f32 %v1827, %v2345
    %v2448 = vadd.f32 %v1832, %v2350
    %v2449 = vadd.f32 %v1837, %v2355
    %v2450 = vadd.f32 %v1842, %v2360
    %v2451 = vadd.f32 %v1847, %v2365
    %v2452 = vadd.f32 %v1852, %v2370
    %v2453 = vadd.f32 %v1857, %v2375
    %v2454 = vadd.f32 %v1862, %v2380
    %v2455 = vadd.f32 %v1867, %v2385
    %v2456 = vadd.f32 %v1872, %v2390
    %s2457 = scalar_lea.vmem %s1, 12
    %v2458 = vld [vmem:[%s2457] sm:$0xf]
    %v2459 = vsel %vm86, %v309, 0
    %v2461 = vsel %vm86, %v310, 0
    %v2463 = vsel %vm86, %v363, 0
    %v2465 = vsel %vm86, %v364, 0
    %v2468 = vsel %vm970, %v2458, 0
    %2470 = vmatprep.subr.mxu0 0.0
    %2471 = vmatpush1.msra.mxu0 %v2468
    %2472 = vmatprep.subr.mxu0 0.0
    %2473 = vmatpush1.msra.mxu0 0.0
    %2474 = vmatprep.subr.mxu0 0.0
    %2475 = vmatpush1.msra.mxu0 0.0
    %2476 = vmatprep.subr.mxu0 0.0
    %2477 = vmatpush1.msra.mxu0 0.0
    %2478 = vmatprep.subr.mxu0 0.0
    %2479 = vmatpush1.msra.mxu0 0.0
    %2480 = vmatprep.subr.mxu0 0.0
    %2481 = vmatpush1.msra.mxu0 0.0
    %2482 = vmatprep.subr.mxu0 0.0
    %2483 = vmatpush1.msra.mxu0 0.0
    %2484 = vmatprep.subr.mxu0 0.0
    %2485 = vmatpush1.msra.mxu0 0.0
    %2486 = vmatprep.subr.mxu0 0.0
    %2487 = vmatpush1.msra.mxu0 0.0
    %2488 = vmatprep.subr.mxu0 0.0
    %2489 = vmatpush1.msra.mxu0 0.0
    %2490 = vmatprep.subr.mxu0 0.0
    %2491 = vmatpush1.msra.mxu0 0.0
    %2492 = vmatprep.subr.mxu0 0.0
    %2493 = vmatpush1.msra.mxu0 0.0
    %2494 = vmatprep.subr.mxu0 0.0
    %2495 = vmatpush1.msra.mxu0 0.0
    %2496 = vmatprep.subr.mxu0 0.0
    %2497 = vmatpush1.msra.mxu0 0.0
    %2498 = vmatprep.subr.mxu0 0.0
    %2499 = vmatpush1.msra.mxu0 0.0
    %2500 = vmatprep.subr.mxu0 0.0
    %2501 = vmatpush1.msra.mxu0 0.0
    %2502 = vmatprep.subr.mxu0 0.0
    %2503 = vmatpush1.msra.mxu0 0.0
    %2504 = vmatprep.subr.mxu0 0.0
    %2505 = vmatpush1.msra.mxu0 0.0
    %2506 = vmatprep.subr.mxu0 0.0
    %2507 = vmatpush1.msra.mxu0 0.0
    %2508 = vmatprep.subr.mxu0 0.0
    %2509 = vmatpush1.msra.mxu0 0.0
    %2510 = vmatprep.subr.mxu0 0.0
    %2511 = vmatpush1.msra.mxu0 0.0
    %2512 = vmatprep.subr.mxu0 0.0
    %2513 = vmatpush1.msra.mxu0 0.0
    %2514 = vmatprep.subr.mxu0 0.0
    %2515 = vmatpush1.msra.mxu0 0.0
    %2516 = vmatprep.subr.mxu0 0.0
    %2517 = vmatpush1.msra.mxu0 0.0
    %2518 = vmatprep.subr.mxu0 0.0
    %2519 = vmatpush1.msra.mxu0 0.0
    %2520 = vmatprep.subr.mxu0 0.0
    %2521 = vmatpush1.msra.mxu0 0.0
    %2522 = vmatprep.subr.mxu0 0.0
    %2523 = vmatpush1.msra.mxu0 0.0
    %2524 = vmatprep.subr.mxu0 0.0
    %2525 = vmatpush1.msra.mxu0 0.0
    %2526 = vmatprep.subr.mxu0 0.0
    %2527 = vmatpush1.msra.mxu0 0.0
    %2528 = vmatprep.subr.mxu0 0.0
    %2529 = vmatpush1.msra.mxu0 0.0
    %2530 = vmatprep.subr.mxu0 0.0
    %2531 = vmatpush1.msra.mxu0 0.0
    %2532 = vmatprep.subr.mxu0 0.0
    %2533 = vmatpush1.msra.mxu0 0.0
    %2534 = vmatprep.mubr.f32.mxu0 0.0
    %2535 = vmatmul.mubr.f32.gmra.mrb[0].mxu0 %v1363
    %v2536 = vpop.f32.mrb[0].mxu0
    %v2537 = vadd.f32 0.0, %v2536
    %v2538 = vpop.f32.mrb[0].mxu0
    %2539 = vmatprep.mubr.f32.mxu0 0.0
    %2540 = vmatmul.mubr.f32.gmra.mrb[0].mxu0 %v1365
    %v2541 = vpop.f32.mrb[0].mxu0
    %v2542 = vadd.f32 0.0, %v2541
    %v2543 = vpop.f32.mrb[0].mxu0
    %2544 = vmatprep.mubr.f32.mxu0 0.0
    %2545 = vmatmul.mubr.f32.gmra.mrb[0].mxu0 %v1367
    %v2546 = vpop.f32.mrb[0].mxu0
    %v2547 = vadd.f32 0.0, %v2546
    %v2548 = vpop.f32.mrb[0].mxu0
    %2549 = vmatprep.mubr.f32.mxu0 0.0
    %2550 = vmatmul.mubr.f32.gmra.mrb[0].mxu0 %v1369
    %v2551 = vpop.f32.mrb[0].mxu0
    %v2552 = vadd.f32 0.0, %v2551
    %v2553 = vpop.f32.mrb[0].mxu0
    %2554 = vmatprep.mubr.f32.mxu0 0.0
    %2555 = vmatmul.mubr.f32.gmra.mrb[0].mxu0 %v1371
    %v2556 = vpop.f32.mrb[0].mxu0
    %v2557 = vadd.f32 0.0, %v2556
    %v2558 = vpop.f32.mrb[0].mxu0
    %2559 = vmatprep.mubr.f32.mxu0 0.0
    %2560 = vmatmul.mubr.f32.gmra.mrb[0].mxu0 %v1373
    %v2561 = vpop.f32.mrb[0].mxu0
    %v2562 = vadd.f32 0.0, %v2561
    %v2563 = vpop.f32.mrb[0].mxu0
    %2564 = vmatprep.mubr.f32.mxu0 0.0
    %2565 = vmatmul.mubr.f32.gmra.mrb[0].mxu0 %v1375
    %v2566 = vpop.f32.mrb[0].mxu0
    %v2567 = vadd.f32 0.0, %v2566
    %v2568 = vpop.f32.mrb[0].mxu0
    %2569 = vmatprep.mubr.f32.mxu0 0.0
    %2570 = vmatmul.mubr.f32.gmra.mrb[0].mxu0 %v1377
    %v2571 = vpop.f32.mrb[0].mxu0
    %v2572 = vadd.f32 0.0, %v2571
    %v2573 = vpop.f32.mrb[0].mxu0
    %2574 = vmatprep.mubr.f32.mxu0 0.0
    %2575 = vmatmul.mubr.f32.gmra.mrb[0].mxu0 %v1379
    %v2576 = vpop.f32.mrb[0].mxu0
    %v2577 = vadd.f32 0.0, %v2576
    %v2578 = vpop.f32.mrb[0].mxu0
    %2579 = vmatprep.mubr.f32.mxu0 0.0
    %2580 = vmatmul.mubr.f32.gmra.mrb[0].mxu0 %v1381
    %v2581 = vpop.f32.mrb[0].mxu0
    %v2582 = vadd.f32 0.0, %v2581
    %v2583 = vpop.f32.mrb[0].mxu0
    %2584 = vmatprep.mubr.f32.mxu0 0.0
    %2585 = vmatmul.mubr.f32.gmra.mrb[0].mxu0 %v1383
    %v2586 = vpop.f32.mrb[0].mxu0
    %v2587 = vadd.f32 0.0, %v2586
    %v2588 = vpop.f32.mrb[0].mxu0
    %2589 = vmatprep.mubr.f32.mxu0 0.0
    %2590 = vmatmul.mubr.f32.gmra.mrb[0].mxu0 %v1385
    %v2591 = vpop.f32.mrb[0].mxu0
    %v2592 = vadd.f32 0.0, %v2591
    %v2593 = vpop.f32.mrb[0].mxu0
    %2594 = vmatprep.mubr.f32.mxu0 0.0
    %2595 = vmatmul.mubr.f32.gmra.mrb[0].mxu0 %v1387
    %v2596 = vpop.f32.mrb[0].mxu0
    %v2597 = vadd.f32 0.0, %v2596
    %v2598 = vpop.f32.mrb[0].mxu0
    %2599 = vmatprep.mubr.f32.mxu0 0.0
    %2600 = vmatmul.mubr.f32.gmra.mrb[0].mxu0 %v1389
    %v2601 = vpop.f32.mrb[0].mxu0
    %v2602 = vadd.f32 0.0, %v2601
    %v2603 = vpop.f32.mrb[0].mxu0
    %2604 = vmatprep.mubr.f32.mxu0 0.0
    %2605 = vmatmul.mubr.f32.gmra.mrb[0].mxu0 %v1391
    %v2606 = vpop.f32.mrb[0].mxu0
    %v2607 = vadd.f32 0.0, %v2606
    %v2608 = vpop.f32.mrb[0].mxu0
    %2609 = vmatprep.mubr.f32.mxu0 0.0
    %2610 = vmatmul.mubr.f32.gmra.mrb[0].mxu0 %v1393
    %v2611 = vpop.f32.mrb[0].mxu0
    %v2612 = vadd.f32 0.0, %v2611
    %v2613 = vpop.f32.mrb[0].mxu0
    %2614 = vmatprep.mubr.f32.mxu0 0.0
    %2615 = vmatmul.mubr.f32.gmra.mrb[0].mxu0 %v1395
    %v2616 = vpop.f32.mrb[0].mxu0
    %v2617 = vadd.f32 0.0, %v2616
    %v2618 = vpop.f32.mrb[0].mxu0
    %2619 = vmatprep.mubr.f32.mxu0 0.0
    %2620 = vmatmul.mubr.f32.gmra.mrb[0].mxu0 %v1397
    %v2621 = vpop.f32.mrb[0].mxu0
    %v2622 = vadd.f32 0.0, %v2621
    %v2623 = vpop.f32.mrb[0].mxu0
    %2624 = vmatprep.mubr.f32.mxu0 0.0
    %2625 = vmatmul.mubr.f32.gmra.mrb[0].mxu0 %v1399
    %v2626 = vpop.f32.mrb[0].mxu0
    %v2627 = vadd.f32 0.0, %v2626
    %v2628 = vpop.f32.mrb[0].mxu0
    %2629 = vmatprep.mubr.f32.mxu0 0.0
    %2630 = vmatmul.mubr.f32.gmra.mrb[0].mxu0 %v1401
    %v2631 = vpop.f32.mrb[0].mxu0
    %v2632 = vadd.f32 0.0, %v2631
    %v2633 = vpop.f32.mrb[0].mxu0
    %2634 = vmatprep.mubr.f32.mxu0 0.0
    %2635 = vmatmul.mubr.f32.gmra.mrb[0].mxu0 %v1403
    %v2636 = vpop.f32.mrb[0].mxu0
    %v2637 = vadd.f32 0.0, %v2636
    %v2638 = vpop.f32.mrb[0].mxu0
    %2639 = vmatprep.mubr.f32.mxu0 0.0
    %2640 = vmatmul.mubr.f32.gmra.mrb[0].mxu0 %v1405
    %v2641 = vpop.f32.mrb[0].mxu0
    %v2642 = vadd.f32 0.0, %v2641
    %v2643 = vpop.f32.mrb[0].mxu0
    %2644 = vmatprep.mubr.f32.mxu0 0.0
    %2645 = vmatmul.mubr.f32.gmra.mrb[0].mxu0 %v1407
    %v2646 = vpop.f32.mrb[0].mxu0
    %v2647 = vadd.f32 0.0, %v2646
    %v2648 = vpop.f32.mrb[0].mxu0
    %2649 = vmatprep.mubr.f32.mxu0 0.0
    %2650 = vmatmul.mubr.f32.gmra.mrb[0].mxu0 %v1409
    %v2651 = vpop.f32.mrb[0].mxu0
    %v2652 = vadd.f32 0.0, %v2651
    %v2653 = vpop.f32.mrb[0].mxu0
    %2654 = vmatprep.mubr.f32.mxu0 0.0
    %2655 = vmatmul.mubr.f32.gmra.mrb[0].mxu0 %v1411
    %v2656 = vpop.f32.mrb[0].mxu0
    %v2657 = vadd.f32 0.0, %v2656
    %v2658 = vpop.f32.mrb[0].mxu0
    %2659 = vmatprep.mubr.f32.mxu0 0.0
    %2660 = vmatmul.mubr.f32.gmra.mrb[0].mxu0 %v1413
    %v2661 = vpop.f32.mrb[0].mxu0
    %v2662 = vadd.f32 0.0, %v2661
    %v2663 = vpop.f32.mrb[0].mxu0
    %2664 = vmatprep.mubr.f32.mxu0 0.0
    %2665 = vmatmul.mubr.f32.gmra.mrb[0].mxu0 %v1415
    %v2666 = vpop.f32.mrb[0].mxu0
    %v2667 = vadd.f32 0.0, %v2666
    %v2668 = vpop.f32.mrb[0].mxu0
    %2669 = vmatprep.mubr.f32.mxu0 0.0
    %2670 = vmatmul.mubr.f32.gmra.mrb[0].mxu0 %v1417
    %v2671 = vpop.f32.mrb[0].mxu0
    %v2672 = vadd.f32 0.0, %v2671
    %v2673 = vpop.f32.mrb[0].mxu0
    %2674 = vmatprep.mubr.f32.mxu0 0.0
    %2675 = vmatmul.mubr.f32.gmra.mrb[0].mxu0 %v1419
    %v2676 = vpop.f32.mrb[0].mxu0
    %v2677 = vadd.f32 0.0, %v2676
    %v2678 = vpop.f32.mrb[0].mxu0
    %2679 = vmatprep.mubr.f32.mxu0 0.0
    %2680 = vmatmul.mubr.f32.gmra.mrb[0].mxu0 %v1421
    %v2681 = vpop.f32.mrb[0].mxu0
    %v2682 = vadd.f32 0.0, %v2681
    %v2683 = vpop.f32.mrb[0].mxu0
    %2684 = vmatprep.mubr.f32.mxu0 0.0
    %2685 = vmatmul.mubr.f32.gmra.mrb[0].mxu0 %v2459
    %v2686 = vpop.f32.mrb[0].mxu0
    %v2687 = vadd.f32 0.0, %v2686
    %v2688 = vpop.f32.mrb[0].mxu0
    %2689 = vmatprep.mubr.f32.mxu0 0.0
    %2690 = vmatmul.mubr.f32.gmra.mrb[0].mxu0 %v2461
    %v2691 = vpop.f32.mrb[0].mxu0
    %v2692 = vadd.f32 0.0, %v2691
    %v2693 = vpop.f32.mrb[0].mxu0
    %2694 = vmatprep.mubr.f32.mxu0 0.0
    %2695 = vmatmul.mubr.f32.gmra.mrb[0].mxu0 %v1427
    %v2696 = vpop.f32.mrb[0].mxu0
    %v2697 = vadd.f32 0.0, %v2696
    %v2698 = vpop.f32.mrb[0].mxu0
    %2699 = vmatprep.mubr.f32.mxu0 0.0
    %2700 = vmatmul.mubr.f32.gmra.mrb[0].mxu0 %v1429
    %v2701 = vpop.f32.mrb[0].mxu0
    %v2702 = vadd.f32 0.0, %v2701
    %v2703 = vpop.f32.mrb[0].mxu0
    %2704 = vmatprep.mubr.f32.mxu0 0.0
    %2705 = vmatmul.mubr.f32.gmra.mrb[0].mxu0 %v1431
    %v2706 = vpop.f32.mrb[0].mxu0
    %v2707 = vadd.f32 0.0, %v2706
    %v2708 = vpop.f32.mrb[0].mxu0
    %2709 = vmatprep.mubr.f32.mxu0 0.0
    %2710 = vmatmul.mubr.f32.gmra.mrb[0].mxu0 %v1433
    %v2711 = vpop.f32.mrb[0].mxu0
    %v2712 = vadd.f32 0.0, %v2711
    %v2713 = vpop.f32.mrb[0].mxu0
    %2714 = vmatprep.mubr.f32.mxu0 0.0
    %2715 = vmatmul.mubr.f32.gmra.mrb[0].mxu0 %v1435
    %v2716 = vpop.f32.mrb[0].mxu0
    %v2717 = vadd.f32 0.0, %v2716
    %v2718 = vpop.f32.mrb[0].mxu0
    %2719 = vmatprep.mubr.f32.mxu0 0.0
    %2720 = vmatmul.mubr.f32.gmra.mrb[0].mxu0 %v1437
    %v2721 = vpop.f32.mrb[0].mxu0
    %v2722 = vadd.f32 0.0, %v2721
    %v2723 = vpop.f32.mrb[0].mxu0
    %2724 = vmatprep.mubr.f32.mxu0 0.0
    %2725 = vmatmul.mubr.f32.gmra.mrb[0].mxu0 %v1439
    %v2726 = vpop.f32.mrb[0].mxu0
    %v2727 = vadd.f32 0.0, %v2726
    %v2728 = vpop.f32.mrb[0].mxu0
    %2729 = vmatprep.mubr.f32.mxu0 0.0
    %2730 = vmatmul.mubr.f32.gmra.mrb[0].mxu0 %v1441
    %v2731 = vpop.f32.mrb[0].mxu0
    %v2732 = vadd.f32 0.0, %v2731
    %v2733 = vpop.f32.mrb[0].mxu0
    %2734 = vmatprep.mubr.f32.mxu0 0.0
    %2735 = vmatmul.mubr.f32.gmra.mrb[0].mxu0 %v1443
    %v2736 = vpop.f32.mrb[0].mxu0
    %v2737 = vadd.f32 0.0, %v2736
    %v2738 = vpop.f32.mrb[0].mxu0
    %2739 = vmatprep.mubr.f32.mxu0 0.0
    %2740 = vmatmul.mubr.f32.gmra.mrb[0].mxu0 %v1445
    %v2741 = vpop.f32.mrb[0].mxu0
    %v2742 = vadd.f32 0.0, %v2741
    %v2743 = vpop.f32.mrb[0].mxu0
    %2744 = vmatprep.mubr.f32.mxu0 0.0
    %2745 = vmatmul.mubr.f32.gmra.mrb[0].mxu0 %v1447
    %v2746 = vpop.f32.mrb[0].mxu0
    %v2747 = vadd.f32 0.0, %v2746
    %v2748 = vpop.f32.mrb[0].mxu0
    %2749 = vmatprep.mubr.f32.mxu0 0.0
    %2750 = vmatmul.mubr.f32.gmra.mrb[0].mxu0 %v1449
    %v2751 = vpop.f32.mrb[0].mxu0
    %v2752 = vadd.f32 0.0, %v2751
    %v2753 = vpop.f32.mrb[0].mxu0
    %2754 = vmatprep.mubr.f32.mxu0 0.0
    %2755 = vmatmul.mubr.f32.gmra.mrb[0].mxu0 %v1451
    %v2756 = vpop.f32.mrb[0].mxu0
    %v2757 = vadd.f32 0.0, %v2756
    %v2758 = vpop.f32.mrb[0].mxu0
    %2759 = vmatprep.mubr.f32.mxu0 0.0
    %2760 = vmatmul.mubr.f32.gmra.mrb[0].mxu0 %v1453
    %v2761 = vpop.f32.mrb[0].mxu0
    %v2762 = vadd.f32 0.0, %v2761
    %v2763 = vpop.f32.mrb[0].mxu0
    %2764 = vmatprep.mubr.f32.mxu0 0.0
    %2765 = vmatmul.mubr.f32.gmra.mrb[0].mxu0 %v1455
    %v2766 = vpop.f32.mrb[0].mxu0
    %v2767 = vadd.f32 0.0, %v2766
    %v2768 = vpop.f32.mrb[0].mxu0
    %2769 = vmatprep.mubr.f32.mxu0 0.0
    %2770 = vmatmul.mubr.f32.gmra.mrb[0].mxu0 %v1457
    %v2771 = vpop.f32.mrb[0].mxu0
    %v2772 = vadd.f32 0.0, %v2771
    %v2773 = vpop.f32.mrb[0].mxu0
    %2774 = vmatprep.mubr.f32.mxu0 0.0
    %2775 = vmatmul.mubr.f32.gmra.mrb[0].mxu0 %v1459
    %v2776 = vpop.f32.mrb[0].mxu0
    %v2777 = vadd.f32 0.0, %v2776
    %v2778 = vpop.f32.mrb[0].mxu0
    %2779 = vmatprep.mubr.f32.mxu0 0.0
    %2780 = vmatmul.mubr.f32.gmra.mrb[0].mxu0 %v1461
    %v2781 = vpop.f32.mrb[0].mxu0
    %v2782 = vadd.f32 0.0, %v2781
    %v2783 = vpop.f32.mrb[0].mxu0
    %2784 = vmatprep.mubr.f32.mxu0 0.0
    %2785 = vmatmul.mubr.f32.gmra.mrb[0].mxu0 %v1463
    %v2786 = vpop.f32.mrb[0].mxu0
    %v2787 = vadd.f32 0.0, %v2786
    %v2788 = vpop.f32.mrb[0].mxu0
    %2789 = vmatprep.mubr.f32.mxu0 0.0
    %2790 = vmatmul.mubr.f32.gmra.mrb[0].mxu0 %v1465
    %v2791 = vpop.f32.mrb[0].mxu0
    %v2792 = vadd.f32 0.0, %v2791
    %v2793 = vpop.f32.mrb[0].mxu0
    %2794 = vmatprep.mubr.f32.mxu0 0.0
    %2795 = vmatmul.mubr.f32.gmra.mrb[0].mxu0 %v1467
    %v2796 = vpop.f32.mrb[0].mxu0
    %v2797 = vadd.f32 0.0, %v2796
    %v2798 = vpop.f32.mrb[0].mxu0
    %2799 = vmatprep.mubr.f32.mxu0 0.0
    %2800 = vmatmul.mubr.f32.gmra.mrb[0].mxu0 %v1469
    %v2801 = vpop.f32.mrb[0].mxu0
    %v2802 = vadd.f32 0.0, %v2801
    %v2803 = vpop.f32.mrb[0].mxu0
    %2804 = vmatprep.mubr.f32.mxu0 0.0
    %2805 = vmatmul.mubr.f32.gmra.mrb[0].mxu0 %v1471
    %v2806 = vpop.f32.mrb[0].mxu0
    %v2807 = vadd.f32 0.0, %v2806
    %v2808 = vpop.f32.mrb[0].mxu0
    %2809 = vmatprep.mubr.f32.mxu0 0.0
    %2810 = vmatmul.mubr.f32.gmra.mrb[0].mxu0 %v1473
    %v2811 = vpop.f32.mrb[0].mxu0
    %v2812 = vadd.f32 0.0, %v2811
    %v2813 = vpop.f32.mrb[0].mxu0
    %2814 = vmatprep.mubr.f32.mxu0 0.0
    %2815 = vmatmul.mubr.f32.gmra.mrb[0].mxu0 %v1475
    %v2816 = vpop.f32.mrb[0].mxu0
    %v2817 = vadd.f32 0.0, %v2816
    %v2818 = vpop.f32.mrb[0].mxu0
    %2819 = vmatprep.mubr.f32.mxu0 0.0
    %2820 = vmatmul.mubr.f32.gmra.mrb[0].mxu0 %v1477
    %v2821 = vpop.f32.mrb[0].mxu0
    %v2822 = vadd.f32 0.0, %v2821
    %v2823 = vpop.f32.mrb[0].mxu0
    %2824 = vmatprep.mubr.f32.mxu0 0.0
    %2825 = vmatmul.mubr.f32.gmra.mrb[0].mxu0 %v1479
    %v2826 = vpop.f32.mrb[0].mxu0
    %v2827 = vadd.f32 0.0, %v2826
    %v2828 = vpop.f32.mrb[0].mxu0
    %2829 = vmatprep.mubr.f32.mxu0 0.0
    %2830 = vmatmul.mubr.f32.gmra.mrb[0].mxu0 %v1481
    %v2831 = vpop.f32.mrb[0].mxu0
    %v2832 = vadd.f32 0.0, %v2831
    %v2833 = vpop.f32.mrb[0].mxu0
    %2834 = vmatprep.mubr.f32.mxu0 0.0
    %2835 = vmatmul.mubr.f32.gmra.mrb[0].mxu0 %v1483
    %v2836 = vpop.f32.mrb[0].mxu0
    %v2837 = vadd.f32 0.0, %v2836
    %v2838 = vpop.f32.mrb[0].mxu0
    %2839 = vmatprep.mubr.f32.mxu0 0.0
    %2840 = vmatmul.mubr.f32.gmra.mrb[0].mxu0 %v1485
    %v2841 = vpop.f32.mrb[0].mxu0
    %v2842 = vadd.f32 0.0, %v2841
    %v2843 = vpop.f32.mrb[0].mxu0
    %2844 = vmatprep.mubr.f32.mxu0 0.0
    %2845 = vmatmul.mubr.f32.gmra.mrb[0].mxu0 %v2463
    %v2846 = vpop.f32.mrb[0].mxu0
    %v2847 = vadd.f32 0.0, %v2846
    %v2848 = vpop.f32.mrb[0].mxu0
    %2849 = vmatprep.mubr.f32.mxu0 0.0
    %2850 = vmatmul.mubr.f32.gmra.mrb[0].mxu0 %v2465
    %v2851 = vpop.f32.mrb[0].mxu0
    %v2852 = vadd.f32 0.0, %v2851
    %v2853 = vpop.f32.mrb[0].mxu0
    %2854 = vdwg.mxu0
    %v2855 = vadd.f32 %v2393, %v2537
    %v2856 = vadd.f32 %v2394, %v2542
    %v2857 = vadd.f32 %v2395, %v2547
    %v2858 = vadd.f32 %v2396, %v2552
    %v2859 = vadd.f32 %v2397, %v2557
    %v2860 = vadd.f32 %v2398, %v2562
    %v2861 = vadd.f32 %v2399, %v2567
    %v2862 = vadd.f32 %v2400, %v2572
    %v2863 = vadd.f32 %v2401, %v2577
    %v2864 = vadd.f32 %v2402, %v2582
    %v2865 = vadd.f32 %v2403, %v2587
    %v2866 = vadd.f32 %v2404, %v2592
    %v2867 = vadd.f32 %v2405, %v2597
    %v2868 = vadd.f32 %v2406, %v2602
    %v2869 = vadd.f32 %v2407, %v2607
    %v2870 = vadd.f32 %v2408, %v2612
    %v2871 = vadd.f32 %v2409, %v2617
    %v2872 = vadd.f32 %v2410, %v2622
    %v2873 = vadd.f32 %v2411, %v2627
    %v2874 = vadd.f32 %v2412, %v2632
    %v2875 = vadd.f32 %v2413, %v2637
    %v2876 = vadd.f32 %v2414, %v2642
    %v2877 = vadd.f32 %v2415, %v2647
    %v2878 = vadd.f32 %v2416, %v2652
    %v2879 = vadd.f32 %v2417, %v2657
    %v2880 = vadd.f32 %v2418, %v2662
    %v2881 = vadd.f32 %v2419, %v2667
    %v2882 = vadd.f32 %v2420, %v2672
    %v2883 = vadd.f32 %v2421, %v2677
    %v2884 = vadd.f32 %v2422, %v2682
    %v2885 = vadd.f32 %v2423, %v2687
    %v2886 = vadd.f32 %v2424, %v2692
    %v2887 = vadd.f32 %v2425, %v2697
    %v2888 = vadd.f32 %v2426, %v2702
    %v2889 = vadd.f32 %v2427, %v2707
    %v2890 = vadd.f32 %v2428, %v2712
    %v2891 = vadd.f32 %v2429, %v2717
    %v2892 = vadd.f32 %v2430, %v2722
    %v2893 = vadd.f32 %v2431, %v2727
    %v2894 = vadd.f32 %v2432, %v2732
    %v2895 = vadd.f32 %v2433, %v2737
    %v2896 = vadd.f32 %v2434, %v2742
    %v2897 = vadd.f32 %v2435, %v2747
    %v2898 = vadd.f32 %v2436, %v2752
    %v2899 = vadd.f32 %v2437, %v2757
    %v2900 = vadd.f32 %v2438, %v2762
    %v2901 = vadd.f32 %v2439, %v2767
    %v2902 = vadd.f32 %v2440, %v2772
    %v2903 = vadd.f32 %v2441, %v2777
    %v2904 = vadd.f32 %v2442, %v2782
    %v2905 = vadd.f32 %v2443, %v2787
    %v2906 = vadd.f32 %v2444, %v2792
    %v2907 = vadd.f32 %v2445, %v2797
    %v2908 = vadd.f32 %v2446, %v2802
    %v2909 = vadd.f32 %v2447, %v2807
    %v2910 = vadd.f32 %v2448, %v2812
    %v2911 = vadd.f32 %v2449, %v2817
    %v2912 = vadd.f32 %v2450, %v2822
    %v2913 = vadd.f32 %v2451, %v2827
    %v2914 = vadd.f32 %v2452, %v2832
    %v2915 = vadd.f32 %v2453, %v2837
    %v2916 = vadd.f32 %v2454, %v2842
    %v2917 = vadd.f32 %v2455, %v2847
    %v2918 = vadd.f32 %v2456, %v2852
    %s2919 = scalar_lea.vmem %s1, 16
    %v2920 = vld [vmem:[%s2919] sm:$0xf]
    %v2921 = vsel %vm86, %v795, 0
    %v2923 = vsel %vm86, %v797, 0
    %v2925 = vsel %vm86, %v800, 0
    %v2927 = vsel %vm86, %v802, 0
    %v2930 = vsel %vm970, %v2920, 0
    %2932 = vmatprep.subr.mxu0 0.0
    %2933 = vmatpush1.msra.mxu0 %v2930
    %2934 = vmatprep.subr.mxu0 0.0
    %2935 = vmatpush1.msra.mxu0 0.0
    %2936 = vmatprep.subr.mxu0 0.0
    %2937 = vmatpush1.msra.mxu0 0.0
    %2938 = vmatprep.subr.mxu0 0.0
    %2939 = vmatpush1.msra.mxu0 0.0
    %2940 = vmatprep.subr.mxu0 0.0
    %2941 = vmatpush1.msra.mxu0 0.0
    %2942 = vmatprep.subr.mxu0 0.0
    %2943 = vmatpush1.msra.mxu0 0.0
    %2944 = vmatprep.subr.mxu0 0.0
    %2945 = vmatpush1.msra.mxu0 0.0
    %2946 = vmatprep.subr.mxu0 0.0
    %2947 = vmatpush1.msra.mxu0 0.0
    %2948 = vmatprep.subr.mxu0 0.0
    %2949 = vmatpush1.msra.mxu0 0.0
    %2950 = vmatprep.subr.mxu0 0.0
    %2951 = vmatpush1.msra.mxu0 0.0
    %2952 = vmatprep.subr.mxu0 0.0
    %2953 = vmatpush1.msra.mxu0 0.0
    %2954 = vmatprep.subr.mxu0 0.0
    %2955 = vmatpush1.msra.mxu0 0.0
    %2956 = vmatprep.subr.mxu0 0.0
    %2957 = vmatpush1.msra.mxu0 0.0
    %2958 = vmatprep.subr.mxu0 0.0
    %2959 = vmatpush1.msra.mxu0 0.0
    %2960 = vmatprep.subr.mxu0 0.0
    %2961 = vmatpush1.msra.mxu0 0.0
    %2962 = vmatprep.subr.mxu0 0.0
    %2963 = vmatpush1.msra.mxu0 0.0
    %2964 = vmatprep.subr.mxu0 0.0
    %2965 = vmatpush1.msra.mxu0 0.0
    %2966 = vmatprep.subr.mxu0 0.0
    %2967 = vmatpush1.msra.mxu0 0.0
    %2968 = vmatprep.subr.mxu0 0.0
    %2969 = vmatpush1.msra.mxu0 0.0
    %2970 = vmatprep.subr.mxu0 0.0
    %2971 = vmatpush1.msra.mxu0 0.0
    %2972 = vmatprep.subr.mxu0 0.0
    %2973 = vmatpush1.msra.mxu0 0.0
    %2974 = vmatprep.subr.mxu0 0.0
    %2975 = vmatpush1.msra.mxu0 0.0
    %2976 = vmatprep.subr.mxu0 0.0
    %2977 = vmatpush1.msra.mxu0 0.0
    %2978 = vmatprep.subr.mxu0 0.0
    %2979 = vmatpush1.msra.mxu0 0.0
    %2980 = vmatprep.subr.mxu0 0.0
    %2981 = vmatpush1.msra.mxu0 0.0
    %2982 = vmatprep.subr.mxu0 0.0
    %2983 = vmatpush1.msra.mxu0 0.0
    %2984 = vmatprep.subr.mxu0 0.0
    %2985 = vmatpush1.msra.mxu0 0.0
    %2986 = vmatprep.subr.mxu0 0.0
    %2987 = vmatpush1.msra.mxu0 0.0
    %2988 = vmatprep.subr.mxu0 0.0
    %2989 = vmatpush1.msra.mxu0 0.0
    %2990 = vmatprep.subr.mxu0 0.0
    %2991 = vmatpush1.msra.mxu0 0.0
    %2992 = vmatprep.subr.mxu0 0.0
    %2993 = vmatpush1.msra.mxu0 0.0
    %2994 = vmatprep.subr.mxu0 0.0
    %2995 = vmatpush1.msra.mxu0 0.0
    %2996 = vmatprep.mubr.f32.mxu0 0.0
    %2997 = vmatmul.mubr.f32.gmra.mrb[0].mxu0 %v846
    %v2998 = vpop.f32.mrb[0].mxu0
    %v2999 = vadd.f32 0.0, %v2998
    %v3000 = vpop.f32.mrb[0].mxu0
    %3001 = vmatprep.mubr.f32.mxu0 0.0
    %3002 = vmatmul.mubr.f32.gmra.mrb[0].mxu0 %v848
    %v3003 = vpop.f32.mrb[0].mxu0
    %v3004 = vadd.f32 0.0, %v3003
    %v3005 = vpop.f32.mrb[0].mxu0
    %3006 = vmatprep.mubr.f32.mxu0 0.0
    %3007 = vmatmul.mubr.f32.gmra.mrb[0].mxu0 %v850
    %v3008 = vpop.f32.mrb[0].mxu0
    %v3009 = vadd.f32 0.0, %v3008
    %v3010 = vpop.f32.mrb[0].mxu0
    %3011 = vmatprep.mubr.f32.mxu0 0.0
    %3012 = vmatmul.mubr.f32.gmra.mrb[0].mxu0 %v852
    %v3013 = vpop.f32.mrb[0].mxu0
    %v3014 = vadd.f32 0.0, %v3013
    %v3015 = vpop.f32.mrb[0].mxu0
    %3016 = vmatprep.mubr.f32.mxu0 0.0
    %3017 = vmatmul.mubr.f32.gmra.mrb[0].mxu0 %v854
    %v3018 = vpop.f32.mrb[0].mxu0
    %v3019 = vadd.f32 0.0, %v3018
    %v3020 = vpop.f32.mrb[0].mxu0
    %3021 = vmatprep.mubr.f32.mxu0 0.0
    %3022 = vmatmul.mubr.f32.gmra.mrb[0].mxu0 %v856
    %v3023 = vpop.f32.mrb[0].mxu0
    %v3024 = vadd.f32 0.0, %v3023
    %v3025 = vpop.f32.mrb[0].mxu0
    %3026 = vmatprep.mubr.f32.mxu0 0.0
    %3027 = vmatmul.mubr.f32.gmra.mrb[0].mxu0 %v858
    %v3028 = vpop.f32.mrb[0].mxu0
    %v3029 = vadd.f32 0.0, %v3028
    %v3030 = vpop.f32.mrb[0].mxu0
    %3031 = vmatprep.mubr.f32.mxu0 0.0
    %3032 = vmatmul.mubr.f32.gmra.mrb[0].mxu0 %v860
    %v3033 = vpop.f32.mrb[0].mxu0
    %v3034 = vadd.f32 0.0, %v3033
    %v3035 = vpop.f32.mrb[0].mxu0
    %3036 = vmatprep.mubr.f32.mxu0 0.0
    %3037 = vmatmul.mubr.f32.gmra.mrb[0].mxu0 %v862
    %v3038 = vpop.f32.mrb[0].mxu0
    %v3039 = vadd.f32 0.0, %v3038
    %v3040 = vpop.f32.mrb[0].mxu0
    %3041 = vmatprep.mubr.f32.mxu0 0.0
    %3042 = vmatmul.mubr.f32.gmra.mrb[0].mxu0 %v864
    %v3043 = vpop.f32.mrb[0].mxu0
    %v3044 = vadd.f32 0.0, %v3043
    %v3045 = vpop.f32.mrb[0].mxu0
    %3046 = vmatprep.mubr.f32.mxu0 0.0
    %3047 = vmatmul.mubr.f32.gmra.mrb[0].mxu0 %v866
    %v3048 = vpop.f32.mrb[0].mxu0
    %v3049 = vadd.f32 0.0, %v3048
    %v3050 = vpop.f32.mrb[0].mxu0
    %3051 = vmatprep.mubr.f32.mxu0 0.0
    %3052 = vmatmul.mubr.f32.gmra.mrb[0].mxu0 %v868
    %v3053 = vpop.f32.mrb[0].mxu0
    %v3054 = vadd.f32 0.0, %v3053
    %v3055 = vpop.f32.mrb[0].mxu0
    %3056 = vmatprep.mubr.f32.mxu0 0.0
    %3057 = vmatmul.mubr.f32.gmra.mrb[0].mxu0 %v870
    %v3058 = vpop.f32.mrb[0].mxu0
    %v3059 = vadd.f32 0.0, %v3058
    %v3060 = vpop.f32.mrb[0].mxu0
    %3061 = vmatprep.mubr.f32.mxu0 0.0
    %3062 = vmatmul.mubr.f32.gmra.mrb[0].mxu0 %v872
    %v3063 = vpop.f32.mrb[0].mxu0
    %v3064 = vadd.f32 0.0, %v3063
    %v3065 = vpop.f32.mrb[0].mxu0
    %3066 = vmatprep.mubr.f32.mxu0 0.0
    %3067 = vmatmul.mubr.f32.gmra.mrb[0].mxu0 %v874
    %v3068 = vpop.f32.mrb[0].mxu0
    %v3069 = vadd.f32 0.0, %v3068
    %v3070 = vpop.f32.mrb[0].mxu0
    %3071 = vmatprep.mubr.f32.mxu0 0.0
    %3072 = vmatmul.mubr.f32.gmra.mrb[0].mxu0 %v876
    %v3073 = vpop.f32.mrb[0].mxu0
    %v3074 = vadd.f32 0.0, %v3073
    %v3075 = vpop.f32.mrb[0].mxu0
    %3076 = vmatprep.mubr.f32.mxu0 0.0
    %3077 = vmatmul.mubr.f32.gmra.mrb[0].mxu0 %v878
    %v3078 = vpop.f32.mrb[0].mxu0
    %v3079 = vadd.f32 0.0, %v3078
    %v3080 = vpop.f32.mrb[0].mxu0
    %3081 = vmatprep.mubr.f32.mxu0 0.0
    %3082 = vmatmul.mubr.f32.gmra.mrb[0].mxu0 %v880
    %v3083 = vpop.f32.mrb[0].mxu0
    %v3084 = vadd.f32 0.0, %v3083
    %v3085 = vpop.f32.mrb[0].mxu0
    %3086 = vmatprep.mubr.f32.mxu0 0.0
    %3087 = vmatmul.mubr.f32.gmra.mrb[0].mxu0 %v882
    %v3088 = vpop.f32.mrb[0].mxu0
    %v3089 = vadd.f32 0.0, %v3088
    %v3090 = vpop.f32.mrb[0].mxu0
    %3091 = vmatprep.mubr.f32.mxu0 0.0
    %3092 = vmatmul.mubr.f32.gmra.mrb[0].mxu0 %v884
    %v3093 = vpop.f32.mrb[0].mxu0
    %v3094 = vadd.f32 0.0, %v3093
    %v3095 = vpop.f32.mrb[0].mxu0
    %3096 = vmatprep.mubr.f32.mxu0 0.0
    %3097 = vmatmul.mubr.f32.gmra.mrb[0].mxu0 %v886
    %v3098 = vpop.f32.mrb[0].mxu0
    %v3099 = vadd.f32 0.0, %v3098
    %v3100 = vpop.f32.mrb[0].mxu0
    %3101 = vmatprep.mubr.f32.mxu0 0.0
    %3102 = vmatmul.mubr.f32.gmra.mrb[0].mxu0 %v888
    %v3103 = vpop.f32.mrb[0].mxu0
    %v3104 = vadd.f32 0.0, %v3103
    %v3105 = vpop.f32.mrb[0].mxu0
    %3106 = vmatprep.mubr.f32.mxu0 0.0
    %3107 = vmatmul.mubr.f32.gmra.mrb[0].mxu0 %v890
    %v3108 = vpop.f32.mrb[0].mxu0
    %v3109 = vadd.f32 0.0, %v3108
    %v3110 = vpop.f32.mrb[0].mxu0
    %3111 = vmatprep.mubr.f32.mxu0 0.0
    %3112 = vmatmul.mubr.f32.gmra.mrb[0].mxu0 %v892
    %v3113 = vpop.f32.mrb[0].mxu0
    %v3114 = vadd.f32 0.0, %v3113
    %v3115 = vpop.f32.mrb[0].mxu0
    %3116 = vmatprep.mubr.f32.mxu0 0.0
    %3117 = vmatmul.mubr.f32.gmra.mrb[0].mxu0 %v894
    %v3118 = vpop.f32.mrb[0].mxu0
    %v3119 = vadd.f32 0.0, %v3118
    %v3120 = vpop.f32.mrb[0].mxu0
    %3121 = vmatprep.mubr.f32.mxu0 0.0
    %3122 = vmatmul.mubr.f32.gmra.mrb[0].mxu0 %v896
    %v3123 = vpop.f32.mrb[0].mxu0
    %v3124 = vadd.f32 0.0, %v3123
    %v3125 = vpop.f32.mrb[0].mxu0
    %3126 = vmatprep.mubr.f32.mxu0 0.0
    %3127 = vmatmul.mubr.f32.gmra.mrb[0].mxu0 %v898
    %v3128 = vpop.f32.mrb[0].mxu0
    %v3129 = vadd.f32 0.0, %v3128
    %v3130 = vpop.f32.mrb[0].mxu0
    %3131 = vmatprep.mubr.f32.mxu0 0.0
    %3132 = vmatmul.mubr.f32.gmra.mrb[0].mxu0 %v900
    %v3133 = vpop.f32.mrb[0].mxu0
    %v3134 = vadd.f32 0.0, %v3133
    %v3135 = vpop.f32.mrb[0].mxu0
    %3136 = vmatprep.mubr.f32.mxu0 0.0
    %3137 = vmatmul.mubr.f32.gmra.mrb[0].mxu0 %v902
    %v3138 = vpop.f32.mrb[0].mxu0
    %v3139 = vadd.f32 0.0, %v3138
    %v3140 = vpop.f32.mrb[0].mxu0
    %3141 = vmatprep.mubr.f32.mxu0 0.0
    %3142 = vmatmul.mubr.f32.gmra.mrb[0].mxu0 %v904
    %v3143 = vpop.f32.mrb[0].mxu0
    %v3144 = vadd.f32 0.0, %v3143
    %v3145 = vpop.f32.mrb[0].mxu0
    %3146 = vmatprep.mubr.f32.mxu0 0.0
    %3147 = vmatmul.mubr.f32.gmra.mrb[0].mxu0 %v2921
    %v3148 = vpop.f32.mrb[0].mxu0
    %v3149 = vadd.f32 0.0, %v3148
    %v3150 = vpop.f32.mrb[0].mxu0
    %3151 = vmatprep.mubr.f32.mxu0 0.0
    %3152 = vmatmul.mubr.f32.gmra.mrb[0].mxu0 %v2923
    %v3153 = vpop.f32.mrb[0].mxu0
    %v3154 = vadd.f32 0.0, %v3153
    %v3155 = vpop.f32.mrb[0].mxu0
    %3156 = vmatprep.mubr.f32.mxu0 0.0
    %3157 = vmatmul.mubr.f32.gmra.mrb[0].mxu0 %v910
    %v3158 = vpop.f32.mrb[0].mxu0
    %v3159 = vadd.f32 0.0, %v3158
    %v3160 = vpop.f32.mrb[0].mxu0
    %3161 = vmatprep.mubr.f32.mxu0 0.0
    %3162 = vmatmul.mubr.f32.gmra.mrb[0].mxu0 %v912
    %v3163 = vpop.f32.mrb[0].mxu0
    %v3164 = vadd.f32 0.0, %v3163
    %v3165 = vpop.f32.mrb[0].mxu0
    %3166 = vmatprep.mubr.f32.mxu0 0.0
    %3167 = vmatmul.mubr.f32.gmra.mrb[0].mxu0 %v914
    %v3168 = vpop.f32.mrb[0].mxu0
    %v3169 = vadd.f32 0.0, %v3168
    %v3170 = vpop.f32.mrb[0].mxu0
    %3171 = vmatprep.mubr.f32.mxu0 0.0
    %3172 = vmatmul.mubr.f32.gmra.mrb[0].mxu0 %v916
    %v3173 = vpop.f32.mrb[0].mxu0
    %v3174 = vadd.f32 0.0, %v3173
    %v3175 = vpop.f32.mrb[0].mxu0
    %3176 = vmatprep.mubr.f32.mxu0 0.0
    %3177 = vmatmul.mubr.f32.gmra.mrb[0].mxu0 %v918
    %v3178 = vpop.f32.mrb[0].mxu0
    %v3179 = vadd.f32 0.0, %v3178
    %v3180 = vpop.f32.mrb[0].mxu0
    %3181 = vmatprep.mubr.f32.mxu0 0.0
    %3182 = vmatmul.mubr.f32.gmra.mrb[0].mxu0 %v920
    %v3183 = vpop.f32.mrb[0].mxu0
    %v3184 = vadd.f32 0.0, %v3183
    %v3185 = vpop.f32.mrb[0].mxu0
    %3186 = vmatprep.mubr.f32.mxu0 0.0
    %3187 = vmatmul.mubr.f32.gmra.mrb[0].mxu0 %v922
    %v3188 = vpop.f32.mrb[0].mxu0
    %v3189 = vadd.f32 0.0, %v3188
    %v3190 = vpop.f32.mrb[0].mxu0
    %3191 = vmatprep.mubr.f32.mxu0 0.0
    %3192 = vmatmul.mubr.f32.gmra.mrb[0].mxu0 %v924
    %v3193 = vpop.f32.mrb[0].mxu0
    %v3194 = vadd.f32 0.0, %v3193
    %v3195 = vpop.f32.mrb[0].mxu0
    %3196 = vmatprep.mubr.f32.mxu0 0.0
    %3197 = vmatmul.mubr.f32.gmra.mrb[0].mxu0 %v926
    %v3198 = vpop.f32.mrb[0].mxu0
    %v3199 = vadd.f32 0.0, %v3198
    %v3200 = vpop.f32.mrb[0].mxu0
    %3201 = vmatprep.mubr.f32.mxu0 0.0
    %3202 = vmatmul.mubr.f32.gmra.mrb[0].mxu0 %v928
    %v3203 = vpop.f32.mrb[0].mxu0
    %v3204 = vadd.f32 0.0, %v3203
    %v3205 = vpop.f32.mrb[0].mxu0
    %3206 = vmatprep.mubr.f32.mxu0 0.0
    %3207 = vmatmul.mubr.f32.gmra.mrb[0].mxu0 %v930
    %v3208 = vpop.f32.mrb[0].mxu0
    %v3209 = vadd.f32 0.0, %v3208
    %v3210 = vpop.f32.mrb[0].mxu0
    %3211 = vmatprep.mubr.f32.mxu0 0.0
    %3212 = vmatmul.mubr.f32.gmra.mrb[0].mxu0 %v932
    %v3213 = vpop.f32.mrb[0].mxu0
    %v3214 = vadd.f32 0.0, %v3213
    %v3215 = vpop.f32.mrb[0].mxu0
    %3216 = vmatprep.mubr.f32.mxu0 0.0
    %3217 = vmatmul.mubr.f32.gmra.mrb[0].mxu0 %v934
    %v3218 = vpop.f32.mrb[0].mxu0
    %v3219 = vadd.f32 0.0, %v3218
    %v3220 = vpop.f32.mrb[0].mxu0
    %3221 = vmatprep.mubr.f32.mxu0 0.0
    %3222 = vmatmul.mubr.f32.gmra.mrb[0].mxu0 %v936
    %v3223 = vpop.f32.mrb[0].mxu0
    %v3224 = vadd.f32 0.0, %v3223
    %v3225 = vpop.f32.mrb[0].mxu0
    %3226 = vmatprep.mubr.f32.mxu0 0.0
    %3227 = vmatmul.mubr.f32.gmra.mrb[0].mxu0 %v938
    %v3228 = vpop.f32.mrb[0].mxu0
    %v3229 = vadd.f32 0.0, %v3228
    %v3230 = vpop.f32.mrb[0].mxu0
    %3231 = vmatprep.mubr.f32.mxu0 0.0
    %3232 = vmatmul.mubr.f32.gmra.mrb[0].mxu0 %v940
    %v3233 = vpop.f32.mrb[0].mxu0
    %v3234 = vadd.f32 0.0, %v3233
    %v3235 = vpop.f32.mrb[0].mxu0
    %3236 = vmatprep.mubr.f32.mxu0 0.0
    %3237 = vmatmul.mubr.f32.gmra.mrb[0].mxu0 %v942
    %v3238 = vpop.f32.mrb[0].mxu0
    %v3239 = vadd.f32 0.0, %v3238
    %v3240 = vpop.f32.mrb[0].mxu0
    %3241 = vmatprep.mubr.f32.mxu0 0.0
    %3242 = vmatmul.mubr.f32.gmra.mrb[0].mxu0 %v944
    %v3243 = vpop.f32.mrb[0].mxu0
    %v3244 = vadd.f32 0.0, %v3243
    %v3245 = vpop.f32.mrb[0].mxu0
    %3246 = vmatprep.mubr.f32.mxu0 0.0
    %3247 = vmatmul.mubr.f32.gmra.mrb[0].mxu0 %v946
    %v3248 = vpop.f32.mrb[0].mxu0
    %v3249 = vadd.f32 0.0, %v3248
    %v3250 = vpop.f32.mrb[0].mxu0
    %3251 = vmatprep.mubr.f32.mxu0 0.0
    %3252 = vmatmul.mubr.f32.gmra.mrb[0].mxu0 %v948
    %v3253 = vpop.f32.mrb[0].mxu0
    %v3254 = vadd.f32 0.0, %v3253
    %v3255 = vpop.f32.mrb[0].mxu0
    %3256 = vmatprep.mubr.f32.mxu0 0.0
    %3257 = vmatmul.mubr.f32.gmra.mrb[0].mxu0 %v950
    %v3258 = vpop.f32.mrb[0].mxu0
    %v3259 = vadd.f32 0.0, %v3258
    %v3260 = vpop.f32.mrb[0].mxu0
    %3261 = vmatprep.mubr.f32.mxu0 0.0
    %3262 = vmatmul.mubr.f32.gmra.mrb[0].mxu0 %v952
    %v3263 = vpop.f32.mrb[0].mxu0
    %v3264 = vadd.f32 0.0, %v3263
    %v3265 = vpop.f32.mrb[0].mxu0
    %3266 = vmatprep.mubr.f32.mxu0 0.0
    %3267 = vmatmul.mubr.f32.gmra.mrb[0].mxu0 %v954
    %v3268 = vpop.f32.mrb[0].mxu0
    %v3269 = vadd.f32 0.0, %v3268
    %v3270 = vpop.f32.mrb[0].mxu0
    %3271 = vmatprep.mubr.f32.mxu0 0.0
    %3272 = vmatmul.mubr.f32.gmra.mrb[0].mxu0 %v956
    %v3273 = vpop.f32.mrb[0].mxu0
    %v3274 = vadd.f32 0.0, %v3273
    %v3275 = vpop.f32.mrb[0].mxu0
    %3276 = vmatprep.mubr.f32.mxu0 0.0
    %3277 = vmatmul.mubr.f32.gmra.mrb[0].mxu0 %v958
    %v3278 = vpop.f32.mrb[0].mxu0
    %v3279 = vadd.f32 0.0, %v3278
    %v3280 = vpop.f32.mrb[0].mxu0
    %3281 = vmatprep.mubr.f32.mxu0 0.0
    %3282 = vmatmul.mubr.f32.gmra.mrb[0].mxu0 %v960
    %v3283 = vpop.f32.mrb[0].mxu0
    %v3284 = vadd.f32 0.0, %v3283
    %v3285 = vpop.f32.mrb[0].mxu0
    %3286 = vmatprep.mubr.f32.mxu0 0.0
    %3287 = vmatmul.mubr.f32.gmra.mrb[0].mxu0 %v962
    %v3288 = vpop.f32.mrb[0].mxu0
    %v3289 = vadd.f32 0.0, %v3288
    %v3290 = vpop.f32.mrb[0].mxu0
    %3291 = vmatprep.mubr.f32.mxu0 0.0
    %3292 = vmatmul.mubr.f32.gmra.mrb[0].mxu0 %v964
    %v3293 = vpop.f32.mrb[0].mxu0
    %v3294 = vadd.f32 0.0, %v3293
    %v3295 = vpop.f32.mrb[0].mxu0
    %3296 = vmatprep.mubr.f32.mxu0 0.0
    %3297 = vmatmul.mubr.f32.gmra.mrb[0].mxu0 %v966
    %v3298 = vpop.f32.mrb[0].mxu0
    %v3299 = vadd.f32 0.0, %v3298
    %v3300 = vpop.f32.mrb[0].mxu0
    %3301 = vmatprep.mubr.f32.mxu0 0.0
    %3302 = vmatmul.mubr.f32.gmra.mrb[0].mxu0 %v968
    %v3303 = vpop.f32.mrb[0].mxu0
    %v3304 = vadd.f32 0.0, %v3303
    %v3305 = vpop.f32.mrb[0].mxu0
    %3306 = vmatprep.mubr.f32.mxu0 0.0
    %3307 = vmatmul.mubr.f32.gmra.mrb[0].mxu0 %v2925
    %v3308 = vpop.f32.mrb[0].mxu0
    %v3309 = vadd.f32 0.0, %v3308
    %v3310 = vpop.f32.mrb[0].mxu0
    %3311 = vmatprep.mubr.f32.mxu0 0.0
    %3312 = vmatmul.mubr.f32.gmra.mrb[0].mxu0 %v2927
    %v3313 = vpop.f32.mrb[0].mxu0
    %v3314 = vadd.f32 0.0, %v3313
    %v3315 = vpop.f32.mrb[0].mxu0
    %3316 = vdwg.mxu0
    %v3317 = vadd.f32 %v2855, %v2999
    %v3318 = vadd.f32 %v2856, %v3004
    %v3319 = vadd.f32 %v2857, %v3009
    %v3320 = vadd.f32 %v2858, %v3014
    %v3321 = vadd.f32 %v2859, %v3019
    %v3322 = vadd.f32 %v2860, %v3024
    %v3323 = vadd.f32 %v2861, %v3029
    %v3324 = vadd.f32 %v2862, %v3034
    %v3325 = vadd.f32 %v2863, %v3039
    %v3326 = vadd.f32 %v2864, %v3044
    %v3327 = vadd.f32 %v2865, %v3049
    %v3328 = vadd.f32 %v2866, %v3054
    %v3329 = vadd.f32 %v2867, %v3059
    %v3330 = vadd.f32 %v2868, %v3064
    %v3331 = vadd.f32 %v2869, %v3069
    %v3332 = vadd.f32 %v2870, %v3074
    %v3333 = vadd.f32 %v2871, %v3079
    %v3334 = vadd.f32 %v2872, %v3084
    %v3335 = vadd.f32 %v2873, %v3089
    %v3336 = vadd.f32 %v2874, %v3094
    %v3337 = vadd.f32 %v2875, %v3099
    %v3338 = vadd.f32 %v2876, %v3104
    %v3339 = vadd.f32 %v2877, %v3109
    %v3340 = vadd.f32 %v2878, %v3114
    %v3341 = vadd.f32 %v2879, %v3119
    %v3342 = vadd.f32 %v2880, %v3124
    %v3343 = vadd.f32 %v2881, %v3129
    %v3344 = vadd.f32 %v2882, %v3134
    %v3345 = vadd.f32 %v2883, %v3139
    %v3346 = vadd.f32 %v2884, %v3144
    %v3347 = vadd.f32 %v2885, %v3149
    %v3348 = vadd.f32 %v2886, %v3154
    %v3349 = vadd.f32 %v2887, %v3159
    %v3350 = vadd.f32 %v2888, %v3164
    %v3351 = vadd.f32 %v2889, %v3169
    %v3352 = vadd.f32 %v2890, %v3174
    %v3353 = vadd.f32 %v2891, %v3179
    %v3354 = vadd.f32 %v2892, %v3184
    %v3355 = vadd.f32 %v2893, %v3189
    %v3356 = vadd.f32 %v2894, %v3194
    %v3357 = vadd.f32 %v2895, %v3199
    %v3358 = vadd.f32 %v2896, %v3204
    %v3359 = vadd.f32 %v2897, %v3209
    %v3360 = vadd.f32 %v2898, %v3214
    %v3361 = vadd.f32 %v2899, %v3219
    %v3362 = vadd.f32 %v2900, %v3224
    %v3363 = vadd.f32 %v2901, %v3229
    %v3364 = vadd.f32 %v2902, %v3234
    %v3365 = vadd.f32 %v2903, %v3239
    %v3366 = vadd.f32 %v2904, %v3244
    %v3367 = vadd.f32 %v2905, %v3249
    %v3368 = vadd.f32 %v2906, %v3254
    %v3369 = vadd.f32 %v2907, %v3259
    %v3370 = vadd.f32 %v2908, %v3264
    %v3371 = vadd.f32 %v2909, %v3269
    %v3372 = vadd.f32 %v2910, %v3274
    %v3373 = vadd.f32 %v2911, %v3279
    %v3374 = vadd.f32 %v2912, %v3284
    %v3375 = vadd.f32 %v2913, %v3289
    %v3376 = vadd.f32 %v2914, %v3294
    %v3377 = vadd.f32 %v2915, %v3299
    %v3378 = vadd.f32 %v2916, %v3304
    %v3379 = vadd.f32 %v2917, %v3309
    %v3380 = vadd.f32 %v2918, %v3314
    %s3381 = scalar_lea.vmem %s1, 20
    %v3382 = vld [vmem:[%s3381] sm:$0xf]
    %v3383 = vsel %vm86, %v805, 0
    %v3385 = vsel %vm86, %v807, 0
    %v3387 = vsel %vm86, %v810, 0
    %v3389 = vsel %vm86, %v812, 0
    %v3392 = vsel %vm970, %v3382, 0
    %3394 = vmatprep.subr.mxu0 0.0
    %3395 = vmatpush1.msra.mxu0 %v3392
    %3396 = vmatprep.subr.mxu0 0.0
    %3397 = vmatpush1.msra.mxu0 0.0
    %3398 = vmatprep.subr.mxu0 0.0
    %3399 = vmatpush1.msra.mxu0 0.0
    %3400 = vmatprep.subr.mxu0 0.0
    %3401 = vmatpush1.msra.mxu0 0.0
    %3402 = vmatprep.subr.mxu0 0.0
    %3403 = vmatpush1.msra.mxu0 0.0
    %3404 = vmatprep.subr.mxu0 0.0
    %3405 = vmatpush1.msra.mxu0 0.0
    %3406 = vmatprep.subr.mxu0 0.0
    %3407 = vmatpush1.msra.mxu0 0.0
    %3408 = vmatprep.subr.mxu0 0.0
    %3409 = vmatpush1.msra.mxu0 0.0
    %3410 = vmatprep.subr.mxu0 0.0
    %3411 = vmatpush1.msra.mxu0 0.0
    %3412 = vmatprep.subr.mxu0 0.0
    %3413 = vmatpush1.msra.mxu0 0.0
    %3414 = vmatprep.subr.mxu0 0.0
    %3415 = vmatpush1.msra.mxu0 0.0
    %3416 = vmatprep.subr.mxu0 0.0
    %3417 = vmatpush1.msra.mxu0 0.0
    %3418 = vmatprep.subr.mxu0 0.0
    %3419 = vmatpush1.msra.mxu0 0.0
    %3420 = vmatprep.subr.mxu0 0.0
    %3421 = vmatpush1.msra.mxu0 0.0
    %3422 = vmatprep.subr.mxu0 0.0
    %3423 = vmatpush1.msra.mxu0 0.0
    %3424 = vmatprep.subr.mxu0 0.0
    %3425 = vmatpush1.msra.mxu0 0.0
    %3426 = vmatprep.subr.mxu0 0.0
    %3427 = vmatpush1.msra.mxu0 0.0
    %3428 = vmatprep.subr.mxu0 0.0
    %3429 = vmatpush1.msra.mxu0 0.0
    %3430 = vmatprep.subr.mxu0 0.0
    %3431 = vmatpush1.msra.mxu0 0.0
    %3432 = vmatprep.subr.mxu0 0.0
    %3433 = vmatpush1.msra.mxu0 0.0
    %3434 = vmatprep.subr.mxu0 0.0
    %3435 = vmatpush1.msra.mxu0 0.0
    %3436 = vmatprep.subr.mxu0 0.0
    %3437 = vmatpush1.msra.mxu0 0.0
    %3438 = vmatprep.subr.mxu0 0.0
    %3439 = vmatpush1.msra.mxu0 0.0
    %3440 = vmatprep.subr.mxu0 0.0
    %3441 = vmatpush1.msra.mxu0 0.0
    %3442 = vmatprep.subr.mxu0 0.0
    %3443 = vmatpush1.msra.mxu0 0.0
    %3444 = vmatprep.subr.mxu0 0.0
    %3445 = vmatpush1.msra.mxu0 0.0
    %3446 = vmatprep.subr.mxu0 0.0
    %3447 = vmatpush1.msra.mxu0 0.0
    %3448 = vmatprep.subr.mxu0 0.0
    %3449 = vmatpush1.msra.mxu0 0.0
    %3450 = vmatprep.subr.mxu0 0.0
    %3451 = vmatpush1.msra.mxu0 0.0
    %3452 = vmatprep.subr.mxu0 0.0
    %3453 = vmatpush1.msra.mxu0 0.0
    %3454 = vmatprep.subr.mxu0 0.0
    %3455 = vmatpush1.msra.mxu0 0.0
    %3456 = vmatprep.subr.mxu0 0.0
    %3457 = vmatpush1.msra.mxu0 0.0
    %3458 = vmatprep.mubr.f32.mxu0 0.0
    %3459 = vmatmul.mubr.f32.gmra.mrb[0].mxu0 %v1881
    %v3460 = vpop.f32.mrb[0].mxu0
    %v3461 = vadd.f32 0.0, %v3460
    %v3462 = vpop.f32.mrb[0].mxu0
    %3463 = vmatprep.mubr.f32.mxu0 0.0
    %3464 = vmatmul.mubr.f32.gmra.mrb[0].mxu0 %v1883
    %v3465 = vpop.f32.mrb[0].mxu0
    %v3466 = vadd.f32 0.0, %v3465
    %v3467 = vpop.f32.mrb[0].mxu0
    %3468 = vmatprep.mubr.f32.mxu0 0.0
    %3469 = vmatmul.mubr.f32.gmra.mrb[0].mxu0 %v1885
    %v3470 = vpop.f32.mrb[0].mxu0
    %v3471 = vadd.f32 0.0, %v3470
    %v3472 = vpop.f32.mrb[0].mxu0
    %3473 = vmatprep.mubr.f32.mxu0 0.0
    %3474 = vmatmul.mubr.f32.gmra.mrb[0].mxu0 %v1887
    %v3475 = vpop.f32.mrb[0].mxu0
    %v3476 = vadd.f32 0.0, %v3475
    %v3477 = vpop.f32.mrb[0].mxu0
    %3478 = vmatprep.mubr.f32.mxu0 0.0
    %3479 = vmatmul.mubr.f32.gmra.mrb[0].mxu0 %v1889
    %v3480 = vpop.f32.mrb[0].mxu0
    %v3481 = vadd.f32 0.0, %v3480
    %v3482 = vpop.f32.mrb[0].mxu0
    %3483 = vmatprep.mubr.f32.mxu0 0.0
    %3484 = vmatmul.mubr.f32.gmra.mrb[0].mxu0 %v1891
    %v3485 = vpop.f32.mrb[0].mxu0
    %v3486 = vadd.f32 0.0, %v3485
    %v3487 = vpop.f32.mrb[0].mxu0
    %3488 = vmatprep.mubr.f32.mxu0 0.0
    %3489 = vmatmul.mubr.f32.gmra.mrb[0].mxu0 %v1893
    %v3490 = vpop.f32.mrb[0].mxu0
    %v3491 = vadd.f32 0.0, %v3490
    %v3492 = vpop.f32.mrb[0].mxu0
    %3493 = vmatprep.mubr.f32.mxu0 0.0
    %3494 = vmatmul.mubr.f32.gmra.mrb[0].mxu0 %v1895
    %v3495 = vpop.f32.mrb[0].mxu0
    %v3496 = vadd.f32 0.0, %v3495
    %v3497 = vpop.f32.mrb[0].mxu0
    %3498 = vmatprep.mubr.f32.mxu0 0.0
    %3499 = vmatmul.mubr.f32.gmra.mrb[0].mxu0 %v1897
    %v3500 = vpop.f32.mrb[0].mxu0
    %v3501 = vadd.f32 0.0, %v3500
    %v3502 = vpop.f32.mrb[0].mxu0
    %3503 = vmatprep.mubr.f32.mxu0 0.0
    %3504 = vmatmul.mubr.f32.gmra.mrb[0].mxu0 %v1899
    %v3505 = vpop.f32.mrb[0].mxu0
    %v3506 = vadd.f32 0.0, %v3505
    %v3507 = vpop.f32.mrb[0].mxu0
    %3508 = vmatprep.mubr.f32.mxu0 0.0
    %3509 = vmatmul.mubr.f32.gmra.mrb[0].mxu0 %v1901
    %v3510 = vpop.f32.mrb[0].mxu0
    %v3511 = vadd.f32 0.0, %v3510
    %v3512 = vpop.f32.mrb[0].mxu0
    %3513 = vmatprep.mubr.f32.mxu0 0.0
    %3514 = vmatmul.mubr.f32.gmra.mrb[0].mxu0 %v1903
    %v3515 = vpop.f32.mrb[0].mxu0
    %v3516 = vadd.f32 0.0, %v3515
    %v3517 = vpop.f32.mrb[0].mxu0
    %3518 = vmatprep.mubr.f32.mxu0 0.0
    %3519 = vmatmul.mubr.f32.gmra.mrb[0].mxu0 %v1905
    %v3520 = vpop.f32.mrb[0].mxu0
    %v3521 = vadd.f32 0.0, %v3520
    %v3522 = vpop.f32.mrb[0].mxu0
    %3523 = vmatprep.mubr.f32.mxu0 0.0
    %3524 = vmatmul.mubr.f32.gmra.mrb[0].mxu0 %v1907
    %v3525 = vpop.f32.mrb[0].mxu0
    %v3526 = vadd.f32 0.0, %v3525
    %v3527 = vpop.f32.mrb[0].mxu0
    %3528 = vmatprep.mubr.f32.mxu0 0.0
    %3529 = vmatmul.mubr.f32.gmra.mrb[0].mxu0 %v1909
    %v3530 = vpop.f32.mrb[0].mxu0
    %v3531 = vadd.f32 0.0, %v3530
    %v3532 = vpop.f32.mrb[0].mxu0
    %3533 = vmatprep.mubr.f32.mxu0 0.0
    %3534 = vmatmul.mubr.f32.gmra.mrb[0].mxu0 %v1911
    %v3535 = vpop.f32.mrb[0].mxu0
    %v3536 = vadd.f32 0.0, %v3535
    %v3537 = vpop.f32.mrb[0].mxu0
    %3538 = vmatprep.mubr.f32.mxu0 0.0
    %3539 = vmatmul.mubr.f32.gmra.mrb[0].mxu0 %v1913
    %v3540 = vpop.f32.mrb[0].mxu0
    %v3541 = vadd.f32 0.0, %v3540
    %v3542 = vpop.f32.mrb[0].mxu0
    %3543 = vmatprep.mubr.f32.mxu0 0.0
    %3544 = vmatmul.mubr.f32.gmra.mrb[0].mxu0 %v1915
    %v3545 = vpop.f32.mrb[0].mxu0
    %v3546 = vadd.f32 0.0, %v3545
    %v3547 = vpop.f32.mrb[0].mxu0
    %3548 = vmatprep.mubr.f32.mxu0 0.0
    %3549 = vmatmul.mubr.f32.gmra.mrb[0].mxu0 %v1917
    %v3550 = vpop.f32.mrb[0].mxu0
    %v3551 = vadd.f32 0.0, %v3550
    %v3552 = vpop.f32.mrb[0].mxu0
    %3553 = vmatprep.mubr.f32.mxu0 0.0
    %3554 = vmatmul.mubr.f32.gmra.mrb[0].mxu0 %v1919
    %v3555 = vpop.f32.mrb[0].mxu0
    %v3556 = vadd.f32 0.0, %v3555
    %v3557 = vpop.f32.mrb[0].mxu0
    %3558 = vmatprep.mubr.f32.mxu0 0.0
    %3559 = vmatmul.mubr.f32.gmra.mrb[0].mxu0 %v1921
    %v3560 = vpop.f32.mrb[0].mxu0
    %v3561 = vadd.f32 0.0, %v3560
    %v3562 = vpop.f32.mrb[0].mxu0
    %3563 = vmatprep.mubr.f32.mxu0 0.0
    %3564 = vmatmul.mubr.f32.gmra.mrb[0].mxu0 %v1923
    %v3565 = vpop.f32.mrb[0].mxu0
    %v3566 = vadd.f32 0.0, %v3565
    %v3567 = vpop.f32.mrb[0].mxu0
    %3568 = vmatprep.mubr.f32.mxu0 0.0
    %3569 = vmatmul.mubr.f32.gmra.mrb[0].mxu0 %v1925
    %v3570 = vpop.f32.mrb[0].mxu0
    %v3571 = vadd.f32 0.0, %v3570
    %v3572 = vpop.f32.mrb[0].mxu0
    %3573 = vmatprep.mubr.f32.mxu0 0.0
    %3574 = vmatmul.mubr.f32.gmra.mrb[0].mxu0 %v1927
    %v3575 = vpop.f32.mrb[0].mxu0
    %v3576 = vadd.f32 0.0, %v3575
    %v3577 = vpop.f32.mrb[0].mxu0
    %3578 = vmatprep.mubr.f32.mxu0 0.0
    %3579 = vmatmul.mubr.f32.gmra.mrb[0].mxu0 %v1929
    %v3580 = vpop.f32.mrb[0].mxu0
    %v3581 = vadd.f32 0.0, %v3580
    %v3582 = vpop.f32.mrb[0].mxu0
    %3583 = vmatprep.mubr.f32.mxu0 0.0
    %3584 = vmatmul.mubr.f32.gmra.mrb[0].mxu0 %v1931
    %v3585 = vpop.f32.mrb[0].mxu0
    %v3586 = vadd.f32 0.0, %v3585
    %v3587 = vpop.f32.mrb[0].mxu0
    %3588 = vmatprep.mubr.f32.mxu0 0.0
    %3589 = vmatmul.mubr.f32.gmra.mrb[0].mxu0 %v1933
    %v3590 = vpop.f32.mrb[0].mxu0
    %v3591 = vadd.f32 0.0, %v3590
    %v3592 = vpop.f32.mrb[0].mxu0
    %3593 = vmatprep.mubr.f32.mxu0 0.0
    %3594 = vmatmul.mubr.f32.gmra.mrb[0].mxu0 %v1935
    %v3595 = vpop.f32.mrb[0].mxu0
    %v3596 = vadd.f32 0.0, %v3595
    %v3597 = vpop.f32.mrb[0].mxu0
    %3598 = vmatprep.mubr.f32.mxu0 0.0
    %3599 = vmatmul.mubr.f32.gmra.mrb[0].mxu0 %v1937
    %v3600 = vpop.f32.mrb[0].mxu0
    %v3601 = vadd.f32 0.0, %v3600
    %v3602 = vpop.f32.mrb[0].mxu0
    %3603 = vmatprep.mubr.f32.mxu0 0.0
    %3604 = vmatmul.mubr.f32.gmra.mrb[0].mxu0 %v1939
    %v3605 = vpop.f32.mrb[0].mxu0
    %v3606 = vadd.f32 0.0, %v3605
    %v3607 = vpop.f32.mrb[0].mxu0
    %3608 = vmatprep.mubr.f32.mxu0 0.0
    %3609 = vmatmul.mubr.f32.gmra.mrb[0].mxu0 %v3383
    %v3610 = vpop.f32.mrb[0].mxu0
    %v3611 = vadd.f32 0.0, %v3610
    %v3612 = vpop.f32.mrb[0].mxu0
    %3613 = vmatprep.mubr.f32.mxu0 0.0
    %3614 = vmatmul.mubr.f32.gmra.mrb[0].mxu0 %v3385
    %v3615 = vpop.f32.mrb[0].mxu0
    %v3616 = vadd.f32 0.0, %v3615
    %v3617 = vpop.f32.mrb[0].mxu0
    %3618 = vmatprep.mubr.f32.mxu0 0.0
    %3619 = vmatmul.mubr.f32.gmra.mrb[0].mxu0 %v1945
    %v3620 = vpop.f32.mrb[0].mxu0
    %v3621 = vadd.f32 0.0, %v3620
    %v3622 = vpop.f32.mrb[0].mxu0
    %3623 = vmatprep.mubr.f32.mxu0 0.0
    %3624 = vmatmul.mubr.f32.gmra.mrb[0].mxu0 %v1947
    %v3625 = vpop.f32.mrb[0].mxu0
    %v3626 = vadd.f32 0.0, %v3625
    %v3627 = vpop.f32.mrb[0].mxu0
    %3628 = vmatprep.mubr.f32.mxu0 0.0
    %3629 = vmatmul.mubr.f32.gmra.mrb[0].mxu0 %v1949
    %v3630 = vpop.f32.mrb[0].mxu0
    %v3631 = vadd.f32 0.0, %v3630
    %v3632 = vpop.f32.mrb[0].mxu0
    %3633 = vmatprep.mubr.f32.mxu0 0.0
    %3634 = vmatmul.mubr.f32.gmra.mrb[0].mxu0 %v1951
    %v3635 = vpop.f32.mrb[0].mxu0
    %v3636 = vadd.f32 0.0, %v3635
    %v3637 = vpop.f32.mrb[0].mxu0
    %3638 = vmatprep.mubr.f32.mxu0 0.0
    %3639 = vmatmul.mubr.f32.gmra.mrb[0].mxu0 %v1953
    %v3640 = vpop.f32.mrb[0].mxu0
    %v3641 = vadd.f32 0.0, %v3640
    %v3642 = vpop.f32.mrb[0].mxu0
    %3643 = vmatprep.mubr.f32.mxu0 0.0
    %3644 = vmatmul.mubr.f32.gmra.mrb[0].mxu0 %v1955
    %v3645 = vpop.f32.mrb[0].mxu0
    %v3646 = vadd.f32 0.0, %v3645
    %v3647 = vpop.f32.mrb[0].mxu0
    %3648 = vmatprep.mubr.f32.mxu0 0.0
    %3649 = vmatmul.mubr.f32.gmra.mrb[0].mxu0 %v1957
    %v3650 = vpop.f32.mrb[0].mxu0
    %v3651 = vadd.f32 0.0, %v3650
    %v3652 = vpop.f32.mrb[0].mxu0
    %3653 = vmatprep.mubr.f32.mxu0 0.0
    %3654 = vmatmul.mubr.f32.gmra.mrb[0].mxu0 %v1959
    %v3655 = vpop.f32.mrb[0].mxu0
    %v3656 = vadd.f32 0.0, %v3655
    %v3657 = vpop.f32.mrb[0].mxu0
    %3658 = vmatprep.mubr.f32.mxu0 0.0
    %3659 = vmatmul.mubr.f32.gmra.mrb[0].mxu0 %v1961
    %v3660 = vpop.f32.mrb[0].mxu0
    %v3661 = vadd.f32 0.0, %v3660
    %v3662 = vpop.f32.mrb[0].mxu0
    %3663 = vmatprep.mubr.f32.mxu0 0.0
    %3664 = vmatmul.mubr.f32.gmra.mrb[0].mxu0 %v1963
    %v3665 = vpop.f32.mrb[0].mxu0
    %v3666 = vadd.f32 0.0, %v3665
    %v3667 = vpop.f32.mrb[0].mxu0
    %3668 = vmatprep.mubr.f32.mxu0 0.0
    %3669 = vmatmul.mubr.f32.gmra.mrb[0].mxu0 %v1965
    %v3670 = vpop.f32.mrb[0].mxu0
    %v3671 = vadd.f32 0.0, %v3670
    %v3672 = vpop.f32.mrb[0].mxu0
    %3673 = vmatprep.mubr.f32.mxu0 0.0
    %3674 = vmatmul.mubr.f32.gmra.mrb[0].mxu0 %v1967
    %v3675 = vpop.f32.mrb[0].mxu0
    %v3676 = vadd.f32 0.0, %v3675
    %v3677 = vpop.f32.mrb[0].mxu0
    %3678 = vmatprep.mubr.f32.mxu0 0.0
    %3679 = vmatmul.mubr.f32.gmra.mrb[0].mxu0 %v1969
    %v3680 = vpop.f32.mrb[0].mxu0
    %v3681 = vadd.f32 0.0, %v3680
    %v3682 = vpop.f32.mrb[0].mxu0
    %3683 = vmatprep.mubr.f32.mxu0 0.0
    %3684 = vmatmul.mubr.f32.gmra.mrb[0].mxu0 %v1971
    %v3685 = vpop.f32.mrb[0].mxu0
    %v3686 = vadd.f32 0.0, %v3685
    %v3687 = vpop.f32.mrb[0].mxu0
    %3688 = vmatprep.mubr.f32.mxu0 0.0
    %3689 = vmatmul.mubr.f32.gmra.mrb[0].mxu0 %v1973
    %v3690 = vpop.f32.mrb[0].mxu0
    %v3691 = vadd.f32 0.0, %v3690
    %v3692 = vpop.f32.mrb[0].mxu0
    %3693 = vmatprep.mubr.f32.mxu0 0.0
    %3694 = vmatmul.mubr.f32.gmra.mrb[0].mxu0 %v1975
    %v3695 = vpop.f32.mrb[0].mxu0
    %v3696 = vadd.f32 0.0, %v3695
    %v3697 = vpop.f32.mrb[0].mxu0
    %3698 = vmatprep.mubr.f32.mxu0 0.0
    %3699 = vmatmul.mubr.f32.gmra.mrb[0].mxu0 %v1977
    %v3700 = vpop.f32.mrb[0].mxu0
    %v3701 = vadd.f32 0.0, %v3700
    %v3702 = vpop.f32.mrb[0].mxu0
    %3703 = vmatprep.mubr.f32.mxu0 0.0
    %3704 = vmatmul.mubr.f32.gmra.mrb[0].mxu0 %v1979
    %v3705 = vpop.f32.mrb[0].mxu0
    %v3706 = vadd.f32 0.0, %v3705
    %v3707 = vpop.f32.mrb[0].mxu0
    %3708 = vmatprep.mubr.f32.mxu0 0.0
    %3709 = vmatmul.mubr.f32.gmra.mrb[0].mxu0 %v1981
    %v3710 = vpop.f32.mrb[0].mxu0
    %v3711 = vadd.f32 0.0, %v3710
    %v3712 = vpop.f32.mrb[0].mxu0
    %3713 = vmatprep.mubr.f32.mxu0 0.0
    %3714 = vmatmul.mubr.f32.gmra.mrb[0].mxu0 %v1983
    %v3715 = vpop.f32.mrb[0].mxu0
    %v3716 = vadd.f32 0.0, %v3715
    %v3717 = vpop.f32.mrb[0].mxu0
    %3718 = vmatprep.mubr.f32.mxu0 0.0
    %3719 = vmatmul.mubr.f32.gmra.mrb[0].mxu0 %v1985
    %v3720 = vpop.f32.mrb[0].mxu0
    %v3721 = vadd.f32 0.0, %v3720
    %v3722 = vpop.f32.mrb[0].mxu0
    %3723 = vmatprep.mubr.f32.mxu0 0.0
    %3724 = vmatmul.mubr.f32.gmra.mrb[0].mxu0 %v1987
    %v3725 = vpop.f32.mrb[0].mxu0
    %v3726 = vadd.f32 0.0, %v3725
    %v3727 = vpop.f32.mrb[0].mxu0
    %3728 = vmatprep.mubr.f32.mxu0 0.0
    %3729 = vmatmul.mubr.f32.gmra.mrb[0].mxu0 %v1989
    %v3730 = vpop.f32.mrb[0].mxu0
    %v3731 = vadd.f32 0.0, %v3730
    %v3732 = vpop.f32.mrb[0].mxu0
    %3733 = vmatprep.mubr.f32.mxu0 0.0
    %3734 = vmatmul.mubr.f32.gmra.mrb[0].mxu0 %v1991
    %v3735 = vpop.f32.mrb[0].mxu0
    %v3736 = vadd.f32 0.0, %v3735
    %v3737 = vpop.f32.mrb[0].mxu0
    %3738 = vmatprep.mubr.f32.mxu0 0.0
    %3739 = vmatmul.mubr.f32.gmra.mrb[0].mxu0 %v1993
    %v3740 = vpop.f32.mrb[0].mxu0
    %v3741 = vadd.f32 0.0, %v3740
    %v3742 = vpop.f32.mrb[0].mxu0
    %3743 = vmatprep.mubr.f32.mxu0 0.0
    %3744 = vmatmul.mubr.f32.gmra.mrb[0].mxu0 %v1995
    %v3745 = vpop.f32.mrb[0].mxu0
    %v3746 = vadd.f32 0.0, %v3745
    %v3747 = vpop.f32.mrb[0].mxu0
    %3748 = vmatprep.mubr.f32.mxu0 0.0
    %3749 = vmatmul.mubr.f32.gmra.mrb[0].mxu0 %v1997
    %v3750 = vpop.f32.mrb[0].mxu0
    %v3751 = vadd.f32 0.0, %v3750
    %v3752 = vpop.f32.mrb[0].mxu0
    %3753 = vmatprep.mubr.f32.mxu0 0.0
    %3754 = vmatmul.mubr.f32.gmra.mrb[0].mxu0 %v1999
    %v3755 = vpop.f32.mrb[0].mxu0
    %v3756 = vadd.f32 0.0, %v3755
    %v3757 = vpop.f32.mrb[0].mxu0
    %3758 = vmatprep.mubr.f32.mxu0 0.0
    %3759 = vmatmul.mubr.f32.gmra.mrb[0].mxu0 %v2001
    %v3760 = vpop.f32.mrb[0].mxu0
    %v3761 = vadd.f32 0.0, %v3760
    %v3762 = vpop.f32.mrb[0].mxu0
    %3763 = vmatprep.mubr.f32.mxu0 0.0
    %3764 = vmatmul.mubr.f32.gmra.mrb[0].mxu0 %v2003
    %v3765 = vpop.f32.mrb[0].mxu0
    %v3766 = vadd.f32 0.0, %v3765
    %v3767 = vpop.f32.mrb[0].mxu0
    %3768 = vmatprep.mubr.f32.mxu0 0.0
    %3769 = vmatmul.mubr.f32.gmra.mrb[0].mxu0 %v3387
    %v3770 = vpop.f32.mrb[0].mxu0
    %v3771 = vadd.f32 0.0, %v3770
    %v3772 = vpop.f32.mrb[0].mxu0
    %3773 = vmatprep.mubr.f32.mxu0 0.0
    %3774 = vmatmul.mubr.f32.gmra.mrb[0].mxu0 %v3389
    %v3775 = vpop.f32.mrb[0].mxu0
    %v3776 = vadd.f32 0.0, %v3775
    %v3777 = vpop.f32.mrb[0].mxu0
    %3778 = vdwg.mxu0
    %v3779 = vadd.f32 %v3317, %v3461
    %v3780 = vadd.f32 %v3318, %v3466
    %v3781 = vadd.f32 %v3319, %v3471
    %v3782 = vadd.f32 %v3320, %v3476
    %v3783 = vadd.f32 %v3321, %v3481
    %v3784 = vadd.f32 %v3322, %v3486
    %v3785 = vadd.f32 %v3323, %v3491
    %v3786 = vadd.f32 %v3324, %v3496
    %v3787 = vadd.f32 %v3325, %v3501
    %v3788 = vadd.f32 %v3326, %v3506
    %v3789 = vadd.f32 %v3327, %v3511
    %v3790 = vadd.f32 %v3328, %v3516
    %v3791 = vadd.f32 %v3329, %v3521
    %v3792 = vadd.f32 %v3330, %v3526
    %v3793 = vadd.f32 %v3331, %v3531
    %v3794 = vadd.f32 %v3332, %v3536
    %v3795 = vadd.f32 %v3333, %v3541
    %v3796 = vadd.f32 %v3334, %v3546
    %v3797 = vadd.f32 %v3335, %v3551
    %v3798 = vadd.f32 %v3336, %v3556
    %v3799 = vadd.f32 %v3337, %v3561
    %v3800 = vadd.f32 %v3338, %v3566
    %v3801 = vadd.f32 %v3339, %v3571
    %v3802 = vadd.f32 %v3340, %v3576
    %v3803 = vadd.f32 %v3341, %v3581
    %v3804 = vadd.f32 %v3342, %v3586
    %v3805 = vadd.f32 %v3343, %v3591
    %v3806 = vadd.f32 %v3344, %v3596
    %v3807 = vadd.f32 %v3345, %v3601
    %v3808 = vadd.f32 %v3346, %v3606
    %v3809 = vadd.f32 %v3347, %v3611
    %v3810 = vadd.f32 %v3348, %v3616
    %v3811 = vadd.f32 %v3349, %v3621
    %v3812 = vadd.f32 %v3350, %v3626
    %v3813 = vadd.f32 %v3351, %v3631
    %v3814 = vadd.f32 %v3352, %v3636
    %v3815 = vadd.f32 %v3353, %v3641
    %v3816 = vadd.f32 %v3354, %v3646
    %v3817 = vadd.f32 %v3355, %v3651
    %v3818 = vadd.f32 %v3356, %v3656
    %v3819 = vadd.f32 %v3357, %v3661
    %v3820 = vadd.f32 %v3358, %v3666
    %v3821 = vadd.f32 %v3359, %v3671
    %v3822 = vadd.f32 %v3360, %v3676
    %v3823 = vadd.f32 %v3361, %v3681
    %v3824 = vadd.f32 %v3362, %v3686
    %v3825 = vadd.f32 %v3363, %v3691
    %v3826 = vadd.f32 %v3364, %v3696
    %v3827 = vadd.f32 %v3365, %v3701
    %v3828 = vadd.f32 %v3366, %v3706
    %v3829 = vadd.f32 %v3367, %v3711
    %v3830 = vadd.f32 %v3368, %v3716
    %v3831 = vadd.f32 %v3369, %v3721
    %v3832 = vadd.f32 %v3370, %v3726
    %v3833 = vadd.f32 %v3371, %v3731
    %v3834 = vadd.f32 %v3372, %v3736
    %v3835 = vadd.f32 %v3373, %v3741
    %v3836 = vadd.f32 %v3374, %v3746
    %v3837 = vadd.f32 %v3375, %v3751
    %v3838 = vadd.f32 %v3376, %v3756
    %v3839 = vadd.f32 %v3377, %v3761
    %v3840 = vadd.f32 %v3378, %v3766
    %v3841 = vadd.f32 %v3379, %v3771
    %v3842 = vadd.f32 %v3380, %v3776
    %s3843 = scalar_lea.vmem %s1, 24
    %v3844 = vld [vmem:[%s3843] sm:$0xf]
    %v3845 = vsel %vm86, %v312, 0
    %v3847 = vsel %vm86, %v313, 0
    %v3849 = vsel %vm86, %v366, 0
    %v3851 = vsel %vm86, %v367, 0
    %v3854 = vsel %vm970, %v3844, 0
    %3856 = vmatprep.subr.mxu0 0.0
    %3857 = vmatpush1.msra.mxu0 %v3854
    %3858 = vmatprep.subr.mxu0 0.0
    %3859 = vmatpush1.msra.mxu0 0.0
    %3860 = vmatprep.subr.mxu0 0.0
    %3861 = vmatpush1.msra.mxu0 0.0
    %3862 = vmatprep.subr.mxu0 0.0
    %3863 = vmatpush1.msra.mxu0 0.0
    %3864 = vmatprep.subr.mxu0 0.0
    %3865 = vmatpush1.msra.mxu0 0.0
    %3866 = vmatprep.subr.mxu0 0.0
    %3867 = vmatpush1.msra.mxu0 0.0
    %3868 = vmatprep.subr.mxu0 0.0
    %3869 = vmatpush1.msra.mxu0 0.0
    %3870 = vmatprep.subr.mxu0 0.0
    %3871 = vmatpush1.msra.mxu0 0.0
    %3872 = vmatprep.subr.mxu0 0.0
    %3873 = vmatpush1.msra.mxu0 0.0
    %3874 = vmatprep.subr.mxu0 0.0
    %3875 = vmatpush1.msra.mxu0 0.0
    %3876 = vmatprep.subr.mxu0 0.0
    %3877 = vmatpush1.msra.mxu0 0.0
    %3878 = vmatprep.subr.mxu0 0.0
    %3879 = vmatpush1.msra.mxu0 0.0
    %3880 = vmatprep.subr.mxu0 0.0
    %3881 = vmatpush1.msra.mxu0 0.0
    %3882 = vmatprep.subr.mxu0 0.0
    %3883 = vmatpush1.msra.mxu0 0.0
    %3884 = vmatprep.subr.mxu0 0.0
    %3885 = vmatpush1.msra.mxu0 0.0
    %3886 = vmatprep.subr.mxu0 0.0
    %3887 = vmatpush1.msra.mxu0 0.0
    %3888 = vmatprep.subr.mxu0 0.0
    %3889 = vmatpush1.msra.mxu0 0.0
    %3890 = vmatprep.subr.mxu0 0.0
    %3891 = vmatpush1.msra.mxu0 0.0
    %3892 = vmatprep.subr.mxu0 0.0
    %3893 = vmatpush1.msra.mxu0 0.0
    %3894 = vmatprep.subr.mxu0 0.0
    %3895 = vmatpush1.msra.mxu0 0.0
    %3896 = vmatprep.subr.mxu0 0.0
    %3897 = vmatpush1.msra.mxu0 0.0
    %3898 = vmatprep.subr.mxu0 0.0
    %3899 = vmatpush1.msra.mxu0 0.0
    %3900 = vmatprep.subr.mxu0 0.0
    %3901 = vmatpush1.msra.mxu0 0.0
    %3902 = vmatprep.subr.mxu0 0.0
    %3903 = vmatpush1.msra.mxu0 0.0
    %3904 = vmatprep.subr.mxu0 0.0
    %3905 = vmatpush1.msra.mxu0 0.0
    %3906 = vmatprep.subr.mxu0 0.0
    %3907 = vmatpush1.msra.mxu0 0.0
    %3908 = vmatprep.subr.mxu0 0.0
    %3909 = vmatpush1.msra.mxu0 0.0
    %3910 = vmatprep.subr.mxu0 0.0
    %3911 = vmatpush1.msra.mxu0 0.0
    %3912 = vmatprep.subr.mxu0 0.0
    %3913 = vmatpush1.msra.mxu0 0.0
    %3914 = vmatprep.subr.mxu0 0.0
    %3915 = vmatpush1.msra.mxu0 0.0
    %3916 = vmatprep.subr.mxu0 0.0
    %3917 = vmatpush1.msra.mxu0 0.0
    %3918 = vmatprep.subr.mxu0 0.0
    %3919 = vmatpush1.msra.mxu0 0.0
    %3920 = vmatprep.mubr.f32.mxu0 0.0
    %3921 = vmatmul.mubr.f32.gmra.mrb[0].mxu0 %v1367
    %v3922 = vpop.f32.mrb[0].mxu0
    %v3923 = vadd.f32 0.0, %v3922
    %v3924 = vpop.f32.mrb[0].mxu0
    %3925 = vmatprep.mubr.f32.mxu0 0.0
    %3926 = vmatmul.mubr.f32.gmra.mrb[0].mxu0 %v1369
    %v3927 = vpop.f32.mrb[0].mxu0
    %v3928 = vadd.f32 0.0, %v3927
    %v3929 = vpop.f32.mrb[0].mxu0
    %3930 = vmatprep.mubr.f32.mxu0 0.0
    %3931 = vmatmul.mubr.f32.gmra.mrb[0].mxu0 %v1371
    %v3932 = vpop.f32.mrb[0].mxu0
    %v3933 = vadd.f32 0.0, %v3932
    %v3934 = vpop.f32.mrb[0].mxu0
    %3935 = vmatprep.mubr.f32.mxu0 0.0
    %3936 = vmatmul.mubr.f32.gmra.mrb[0].mxu0 %v1373
    %v3937 = vpop.f32.mrb[0].mxu0
    %v3938 = vadd.f32 0.0, %v3937
    %v3939 = vpop.f32.mrb[0].mxu0
    %3940 = vmatprep.mubr.f32.mxu0 0.0
    %3941 = vmatmul.mubr.f32.gmra.mrb[0].mxu0 %v1375
    %v3942 = vpop.f32.mrb[0].mxu0
    %v3943 = vadd.f32 0.0, %v3942
    %v3944 = vpop.f32.mrb[0].mxu0
    %3945 = vmatprep.mubr.f32.mxu0 0.0
    %3946 = vmatmul.mubr.f32.gmra.mrb[0].mxu0 %v1377
    %v3947 = vpop.f32.mrb[0].mxu0
    %v3948 = vadd.f32 0.0, %v3947
    %v3949 = vpop.f32.mrb[0].mxu0
    %3950 = vmatprep.mubr.f32.mxu0 0.0
    %3951 = vmatmul.mubr.f32.gmra.mrb[0].mxu0 %v1379
    %v3952 = vpop.f32.mrb[0].mxu0
    %v3953 = vadd.f32 0.0, %v3952
    %v3954 = vpop.f32.mrb[0].mxu0
    %3955 = vmatprep.mubr.f32.mxu0 0.0
    %3956 = vmatmul.mubr.f32.gmra.mrb[0].mxu0 %v1381
    %v3957 = vpop.f32.mrb[0].mxu0
    %v3958 = vadd.f32 0.0, %v3957
    %v3959 = vpop.f32.mrb[0].mxu0
    %3960 = vmatprep.mubr.f32.mxu0 0.0
    %3961 = vmatmul.mubr.f32.gmra.mrb[0].mxu0 %v1383
    %v3962 = vpop.f32.mrb[0].mxu0
    %v3963 = vadd.f32 0.0, %v3962
    %v3964 = vpop.f32.mrb[0].mxu0
    %3965 = vmatprep.mubr.f32.mxu0 0.0
    %3966 = vmatmul.mubr.f32.gmra.mrb[0].mxu0 %v1385
    %v3967 = vpop.f32.mrb[0].mxu0
    %v3968 = vadd.f32 0.0, %v3967
    %v3969 = vpop.f32.mrb[0].mxu0
    %3970 = vmatprep.mubr.f32.mxu0 0.0
    %3971 = vmatmul.mubr.f32.gmra.mrb[0].mxu0 %v1387
    %v3972 = vpop.f32.mrb[0].mxu0
    %v3973 = vadd.f32 0.0, %v3972
    %v3974 = vpop.f32.mrb[0].mxu0
    %3975 = vmatprep.mubr.f32.mxu0 0.0
    %3976 = vmatmul.mubr.f32.gmra.mrb[0].mxu0 %v1389
    %v3977 = vpop.f32.mrb[0].mxu0
    %v3978 = vadd.f32 0.0, %v3977
    %v3979 = vpop.f32.mrb[0].mxu0
    %3980 = vmatprep.mubr.f32.mxu0 0.0
    %3981 = vmatmul.mubr.f32.gmra.mrb[0].mxu0 %v1391
    %v3982 = vpop.f32.mrb[0].mxu0
    %v3983 = vadd.f32 0.0, %v3982
    %v3984 = vpop.f32.mrb[0].mxu0
    %3985 = vmatprep.mubr.f32.mxu0 0.0
    %3986 = vmatmul.mubr.f32.gmra.mrb[0].mxu0 %v1393
    %v3987 = vpop.f32.mrb[0].mxu0
    %v3988 = vadd.f32 0.0, %v3987
    %v3989 = vpop.f32.mrb[0].mxu0
    %3990 = vmatprep.mubr.f32.mxu0 0.0
    %3991 = vmatmul.mubr.f32.gmra.mrb[0].mxu0 %v1395
    %v3992 = vpop.f32.mrb[0].mxu0
    %v3993 = vadd.f32 0.0, %v3992
    %v3994 = vpop.f32.mrb[0].mxu0
    %3995 = vmatprep.mubr.f32.mxu0 0.0
    %3996 = vmatmul.mubr.f32.gmra.mrb[0].mxu0 %v1397
    %v3997 = vpop.f32.mrb[0].mxu0
    %v3998 = vadd.f32 0.0, %v3997
    %v3999 = vpop.f32.mrb[0].mxu0
    %4000 = vmatprep.mubr.f32.mxu0 0.0
    %4001 = vmatmul.mubr.f32.gmra.mrb[0].mxu0 %v1399
    %v4002 = vpop.f32.mrb[0].mxu0
    %v4003 = vadd.f32 0.0, %v4002
    %v4004 = vpop.f32.mrb[0].mxu0
    %4005 = vmatprep.mubr.f32.mxu0 0.0
    %4006 = vmatmul.mubr.f32.gmra.mrb[0].mxu0 %v1401
    %v4007 = vpop.f32.mrb[0].mxu0
    %v4008 = vadd.f32 0.0, %v4007
    %v4009 = vpop.f32.mrb[0].mxu0
    %4010 = vmatprep.mubr.f32.mxu0 0.0
    %4011 = vmatmul.mubr.f32.gmra.mrb[0].mxu0 %v1403
    %v4012 = vpop.f32.mrb[0].mxu0
    %v4013 = vadd.f32 0.0, %v4012
    %v4014 = vpop.f32.mrb[0].mxu0
    %4015 = vmatprep.mubr.f32.mxu0 0.0
    %4016 = vmatmul.mubr.f32.gmra.mrb[0].mxu0 %v1405
    %v4017 = vpop.f32.mrb[0].mxu0
    %v4018 = vadd.f32 0.0, %v4017
    %v4019 = vpop.f32.mrb[0].mxu0
    %4020 = vmatprep.mubr.f32.mxu0 0.0
    %4021 = vmatmul.mubr.f32.gmra.mrb[0].mxu0 %v1407
    %v4022 = vpop.f32.mrb[0].mxu0
    %v4023 = vadd.f32 0.0, %v4022
    %v4024 = vpop.f32.mrb[0].mxu0
    %4025 = vmatprep.mubr.f32.mxu0 0.0
    %4026 = vmatmul.mubr.f32.gmra.mrb[0].mxu0 %v1409
    %v4027 = vpop.f32.mrb[0].mxu0
    %v4028 = vadd.f32 0.0, %v4027
    %v4029 = vpop.f32.mrb[0].mxu0
    %4030 = vmatprep.mubr.f32.mxu0 0.0
    %4031 = vmatmul.mubr.f32.gmra.mrb[0].mxu0 %v1411
    %v4032 = vpop.f32.mrb[0].mxu0
    %v4033 = vadd.f32 0.0, %v4032
    %v4034 = vpop.f32.mrb[0].mxu0
    %4035 = vmatprep.mubr.f32.mxu0 0.0
    %4036 = vmatmul.mubr.f32.gmra.mrb[0].mxu0 %v1413
    %v4037 = vpop.f32.mrb[0].mxu0
    %v4038 = vadd.f32 0.0, %v4037
    %v4039 = vpop.f32.mrb[0].mxu0
    %4040 = vmatprep.mubr.f32.mxu0 0.0
    %4041 = vmatmul.mubr.f32.gmra.mrb[0].mxu0 %v1415
    %v4042 = vpop.f32.mrb[0].mxu0
    %v4043 = vadd.f32 0.0, %v4042
    %v4044 = vpop.f32.mrb[0].mxu0
    %4045 = vmatprep.mubr.f32.mxu0 0.0
    %4046 = vmatmul.mubr.f32.gmra.mrb[0].mxu0 %v1417
    %v4047 = vpop.f32.mrb[0].mxu0
    %v4048 = vadd.f32 0.0, %v4047
    %v4049 = vpop.f32.mrb[0].mxu0
    %4050 = vmatprep.mubr.f32.mxu0 0.0
    %4051 = vmatmul.mubr.f32.gmra.mrb[0].mxu0 %v1419
    %v4052 = vpop.f32.mrb[0].mxu0
    %v4053 = vadd.f32 0.0, %v4052
    %v4054 = vpop.f32.mrb[0].mxu0
    %4055 = vmatprep.mubr.f32.mxu0 0.0
    %4056 = vmatmul.mubr.f32.gmra.mrb[0].mxu0 %v1421
    %v4057 = vpop.f32.mrb[0].mxu0
    %v4058 = vadd.f32 0.0, %v4057
    %v4059 = vpop.f32.mrb[0].mxu0
    %4060 = vmatprep.mubr.f32.mxu0 0.0
    %4061 = vmatmul.mubr.f32.gmra.mrb[0].mxu0 %v2459
    %v4062 = vpop.f32.mrb[0].mxu0
    %v4063 = vadd.f32 0.0, %v4062
    %v4064 = vpop.f32.mrb[0].mxu0
    %4065 = vmatprep.mubr.f32.mxu0 0.0
    %4066 = vmatmul.mubr.f32.gmra.mrb[0].mxu0 %v2461
    %v4067 = vpop.f32.mrb[0].mxu0
    %v4068 = vadd.f32 0.0, %v4067
    %v4069 = vpop.f32.mrb[0].mxu0
    %4070 = vmatprep.mubr.f32.mxu0 0.0
    %4071 = vmatmul.mubr.f32.gmra.mrb[0].mxu0 %v3845
    %v4072 = vpop.f32.mrb[0].mxu0
    %v4073 = vadd.f32 0.0, %v4072
    %v4074 = vpop.f32.mrb[0].mxu0
    %4075 = vmatprep.mubr.f32.mxu0 0.0
    %4076 = vmatmul.mubr.f32.gmra.mrb[0].mxu0 %v3847
    %v4077 = vpop.f32.mrb[0].mxu0
    %v4078 = vadd.f32 0.0, %v4077
    %v4079 = vpop.f32.mrb[0].mxu0
    %4080 = vmatprep.mubr.f32.mxu0 0.0
    %4081 = vmatmul.mubr.f32.gmra.mrb[0].mxu0 %v1431
    %v4082 = vpop.f32.mrb[0].mxu0
    %v4083 = vadd.f32 0.0, %v4082
    %v4084 = vpop.f32.mrb[0].mxu0
    %4085 = vmatprep.mubr.f32.mxu0 0.0
    %4086 = vmatmul.mubr.f32.gmra.mrb[0].mxu0 %v1433
    %v4087 = vpop.f32.mrb[0].mxu0
    %v4088 = vadd.f32 0.0, %v4087
    %v4089 = vpop.f32.mrb[0].mxu0
    %4090 = vmatprep.mubr.f32.mxu0 0.0
    %4091 = vmatmul.mubr.f32.gmra.mrb[0].mxu0 %v1435
    %v4092 = vpop.f32.mrb[0].mxu0
    %v4093 = vadd.f32 0.0, %v4092
    %v4094 = vpop.f32.mrb[0].mxu0
    %4095 = vmatprep.mubr.f32.mxu0 0.0
    %4096 = vmatmul.mubr.f32.gmra.mrb[0].mxu0 %v1437
    %v4097 = vpop.f32.mrb[0].mxu0
    %v4098 = vadd.f32 0.0, %v4097
    %v4099 = vpop.f32.mrb[0].mxu0
    %4100 = vmatprep.mubr.f32.mxu0 0.0
    %4101 = vmatmul.mubr.f32.gmra.mrb[0].mxu0 %v1439
    %v4102 = vpop.f32.mrb[0].mxu0
    %v4103 = vadd.f32 0.0, %v4102
    %v4104 = vpop.f32.mrb[0].mxu0
    %4105 = vmatprep.mubr.f32.mxu0 0.0
    %4106 = vmatmul.mubr.f32.gmra.mrb[0].mxu0 %v1441
    %v4107 = vpop.f32.mrb[0].mxu0
    %v4108 = vadd.f32 0.0, %v4107
    %v4109 = vpop.f32.mrb[0].mxu0
    %4110 = vmatprep.mubr.f32.mxu0 0.0
    %4111 = vmatmul.mubr.f32.gmra.mrb[0].mxu0 %v1443
    %v4112 = vpop.f32.mrb[0].mxu0
    %v4113 = vadd.f32 0.0, %v4112
    %v4114 = vpop.f32.mrb[0].mxu0
    %4115 = vmatprep.mubr.f32.mxu0 0.0
    %4116 = vmatmul.mubr.f32.gmra.mrb[0].mxu0 %v1445
    %v4117 = vpop.f32.mrb[0].mxu0
    %v4118 = vadd.f32 0.0, %v4117
    %v4119 = vpop.f32.mrb[0].mxu0
    %4120 = vmatprep.mubr.f32.mxu0 0.0
    %4121 = vmatmul.mubr.f32.gmra.mrb[0].mxu0 %v1447
    %v4122 = vpop.f32.mrb[0].mxu0
    %v4123 = vadd.f32 0.0, %v4122
    %v4124 = vpop.f32.mrb[0].mxu0
    %4125 = vmatprep.mubr.f32.mxu0 0.0
    %4126 = vmatmul.mubr.f32.gmra.mrb[0].mxu0 %v1449
    %v4127 = vpop.f32.mrb[0].mxu0
    %v4128 = vadd.f32 0.0, %v4127
    %v4129 = vpop.f32.mrb[0].mxu0
    %4130 = vmatprep.mubr.f32.mxu0 0.0
    %4131 = vmatmul.mubr.f32.gmra.mrb[0].mxu0 %v1451
    %v4132 = vpop.f32.mrb[0].mxu0
    %v4133 = vadd.f32 0.0, %v4132
    %v4134 = vpop.f32.mrb[0].mxu0
    %4135 = vmatprep.mubr.f32.mxu0 0.0
    %4136 = vmatmul.mubr.f32.gmra.mrb[0].mxu0 %v1453
    %v4137 = vpop.f32.mrb[0].mxu0
    %v4138 = vadd.f32 0.0, %v4137
    %v4139 = vpop.f32.mrb[0].mxu0
    %4140 = vmatprep.mubr.f32.mxu0 0.0
    %4141 = vmatmul.mubr.f32.gmra.mrb[0].mxu0 %v1455
    %v4142 = vpop.f32.mrb[0].mxu0
    %v4143 = vadd.f32 0.0, %v4142
    %v4144 = vpop.f32.mrb[0].mxu0
    %4145 = vmatprep.mubr.f32.mxu0 0.0
    %4146 = vmatmul.mubr.f32.gmra.mrb[0].mxu0 %v1457
    %v4147 = vpop.f32.mrb[0].mxu0
    %v4148 = vadd.f32 0.0, %v4147
    %v4149 = vpop.f32.mrb[0].mxu0
    %4150 = vmatprep.mubr.f32.mxu0 0.0
    %4151 = vmatmul.mubr.f32.gmra.mrb[0].mxu0 %v1459
    %v4152 = vpop.f32.mrb[0].mxu0
    %v4153 = vadd.f32 0.0, %v4152
    %v4154 = vpop.f32.mrb[0].mxu0
    %4155 = vmatprep.mubr.f32.mxu0 0.0
    %4156 = vmatmul.mubr.f32.gmra.mrb[0].mxu0 %v1461
    %v4157 = vpop.f32.mrb[0].mxu0
    %v4158 = vadd.f32 0.0, %v4157
    %v4159 = vpop.f32.mrb[0].mxu0
    %4160 = vmatprep.mubr.f32.mxu0 0.0
    %4161 = vmatmul.mubr.f32.gmra.mrb[0].mxu0 %v1463
    %v4162 = vpop.f32.mrb[0].mxu0
    %v4163 = vadd.f32 0.0, %v4162
    %v4164 = vpop.f32.mrb[0].mxu0
    %4165 = vmatprep.mubr.f32.mxu0 0.0
    %4166 = vmatmul.mubr.f32.gmra.mrb[0].mxu0 %v1465
    %v4167 = vpop.f32.mrb[0].mxu0
    %v4168 = vadd.f32 0.0, %v4167
    %v4169 = vpop.f32.mrb[0].mxu0
    %4170 = vmatprep.mubr.f32.mxu0 0.0
    %4171 = vmatmul.mubr.f32.gmra.mrb[0].mxu0 %v1467
    %v4172 = vpop.f32.mrb[0].mxu0
    %v4173 = vadd.f32 0.0, %v4172
    %v4174 = vpop.f32.mrb[0].mxu0
    %4175 = vmatprep.mubr.f32.mxu0 0.0
    %4176 = vmatmul.mubr.f32.gmra.mrb[0].mxu0 %v1469
    %v4177 = vpop.f32.mrb[0].mxu0
    %v4178 = vadd.f32 0.0, %v4177
    %v4179 = vpop.f32.mrb[0].mxu0
    %4180 = vmatprep.mubr.f32.mxu0 0.0
    %4181 = vmatmul.mubr.f32.gmra.mrb[0].mxu0 %v1471
    %v4182 = vpop.f32.mrb[0].mxu0
    %v4183 = vadd.f32 0.0, %v4182
    %v4184 = vpop.f32.mrb[0].mxu0
    %4185 = vmatprep.mubr.f32.mxu0 0.0
    %4186 = vmatmul.mubr.f32.gmra.mrb[0].mxu0 %v1473
    %v4187 = vpop.f32.mrb[0].mxu0
    %v4188 = vadd.f32 0.0, %v4187
    %v4189 = vpop.f32.mrb[0].mxu0
    %4190 = vmatprep.mubr.f32.mxu0 0.0
    %4191 = vmatmul.mubr.f32.gmra.mrb[0].mxu0 %v1475
    %v4192 = vpop.f32.mrb[0].mxu0
    %v4193 = vadd.f32 0.0, %v4192
    %v4194 = vpop.f32.mrb[0].mxu0
    %4195 = vmatprep.mubr.f32.mxu0 0.0
    %4196 = vmatmul.mubr.f32.gmra.mrb[0].mxu0 %v1477
    %v4197 = vpop.f32.mrb[0].mxu0
    %v4198 = vadd.f32 0.0, %v4197
    %v4199 = vpop.f32.mrb[0].mxu0
    %4200 = vmatprep.mubr.f32.mxu0 0.0
    %4201 = vmatmul.mubr.f32.gmra.mrb[0].mxu0 %v1479
    %v4202 = vpop.f32.mrb[0].mxu0
    %v4203 = vadd.f32 0.0, %v4202
    %v4204 = vpop.f32.mrb[0].mxu0
    %4205 = vmatprep.mubr.f32.mxu0 0.0
    %4206 = vmatmul.mubr.f32.gmra.mrb[0].mxu0 %v1481
    %v4207 = vpop.f32.mrb[0].mxu0
    %v4208 = vadd.f32 0.0, %v4207
    %v4209 = vpop.f32.mrb[0].mxu0
    %4210 = vmatprep.mubr.f32.mxu0 0.0
    %4211 = vmatmul.mubr.f32.gmra.mrb[0].mxu0 %v1483
    %v4212 = vpop.f32.mrb[0].mxu0
    %v4213 = vadd.f32 0.0, %v4212
    %v4214 = vpop.f32.mrb[0].mxu0
    %4215 = vmatprep.mubr.f32.mxu0 0.0
    %4216 = vmatmul.mubr.f32.gmra.mrb[0].mxu0 %v1485
    %v4217 = vpop.f32.mrb[0].mxu0
    %v4218 = vadd.f32 0.0, %v4217
    %v4219 = vpop.f32.mrb[0].mxu0
    %4220 = vmatprep.mubr.f32.mxu0 0.0
    %4221 = vmatmul.mubr.f32.gmra.mrb[0].mxu0 %v2463
    %v4222 = vpop.f32.mrb[0].mxu0
    %v4223 = vadd.f32 0.0, %v4222
    %v4224 = vpop.f32.mrb[0].mxu0
    %4225 = vmatprep.mubr.f32.mxu0 0.0
    %4226 = vmatmul.mubr.f32.gmra.mrb[0].mxu0 %v2465
    %v4227 = vpop.f32.mrb[0].mxu0
    %v4228 = vadd.f32 0.0, %v4227
    %v4229 = vpop.f32.mrb[0].mxu0
    %4230 = vmatprep.mubr.f32.mxu0 0.0
    %4231 = vmatmul.mubr.f32.gmra.mrb[0].mxu0 %v3849
    %v4232 = vpop.f32.mrb[0].mxu0
    %v4233 = vadd.f32 0.0, %v4232
    %v4234 = vpop.f32.mrb[0].mxu0
    %4235 = vmatprep.mubr.f32.mxu0 0.0
    %4236 = vmatmul.mubr.f32.gmra.mrb[0].mxu0 %v3851
    %v4237 = vpop.f32.mrb[0].mxu0
    %v4238 = vadd.f32 0.0, %v4237
    %v4239 = vpop.f32.mrb[0].mxu0
    %4240 = vdwg.mxu0
    %v4241 = vadd.f32 %v3779, %v3923
    %v4242 = vadd.f32 %v3780, %v3928
    %v4243 = vadd.f32 %v3781, %v3933
    %v4244 = vadd.f32 %v3782, %v3938
    %v4245 = vadd.f32 %v3783, %v3943
    %v4246 = vadd.f32 %v3784, %v3948
    %v4247 = vadd.f32 %v3785, %v3953
    %v4248 = vadd.f32 %v3786, %v3958
    %v4249 = vadd.f32 %v3787, %v3963
    %v4250 = vadd.f32 %v3788, %v3968
    %v4251 = vadd.f32 %v3789, %v3973
    %v4252 = vadd.f32 %v3790, %v3978
    %v4253 = vadd.f32 %v3791, %v3983
    %v4254 = vadd.f32 %v3792, %v3988
    %v4255 = vadd.f32 %v3793, %v3993
    %v4256 = vadd.f32 %v3794, %v3998
    %v4257 = vadd.f32 %v3795, %v4003
    %v4258 = vadd.f32 %v3796, %v4008
    %v4259 = vadd.f32 %v3797, %v4013
    %v4260 = vadd.f32 %v3798, %v4018
    %v4261 = vadd.f32 %v3799, %v4023
    %v4262 = vadd.f32 %v3800, %v4028
    %v4263 = vadd.f32 %v3801, %v4033
    %v4264 = vadd.f32 %v3802, %v4038
    %v4265 = vadd.f32 %v3803, %v4043
    %v4266 = vadd.f32 %v3804, %v4048
    %v4267 = vadd.f32 %v3805, %v4053
    %v4268 = vadd.f32 %v3806, %v4058
    %v4269 = vadd.f32 %v3807, %v4063
    %v4270 = vadd.f32 %v3808, %v4068
    %v4271 = vadd.f32 %v3809, %v4073
    %v4272 = vadd.f32 %v3810, %v4078
    %v4273 = vadd.f32 %v3811, %v4083
    %v4274 = vadd.f32 %v3812, %v4088
    %v4275 = vadd.f32 %v3813, %v4093
    %v4276 = vadd.f32 %v3814, %v4098
    %v4277 = vadd.f32 %v3815, %v4103
    %v4278 = vadd.f32 %v3816, %v4108
    %v4279 = vadd.f32 %v3817, %v4113
    %v4280 = vadd.f32 %v3818, %v4118
    %v4281 = vadd.f32 %v3819, %v4123
    %v4282 = vadd.f32 %v3820, %v4128
    %v4283 = vadd.f32 %v3821, %v4133
    %v4284 = vadd.f32 %v3822, %v4138
    %v4285 = vadd.f32 %v3823, %v4143
    %v4286 = vadd.f32 %v3824, %v4148
    %v4287 = vadd.f32 %v3825, %v4153
    %v4288 = vadd.f32 %v3826, %v4158
    %v4289 = vadd.f32 %v3827, %v4163
    %v4290 = vadd.f32 %v3828, %v4168
    %v4291 = vadd.f32 %v3829, %v4173
    %v4292 = vadd.f32 %v3830, %v4178
    %v4293 = vadd.f32 %v3831, %v4183
    %v4294 = vadd.f32 %v3832, %v4188
    %v4295 = vadd.f32 %v3833, %v4193
    %v4296 = vadd.f32 %v3834, %v4198
    %v4297 = vadd.f32 %v3835, %v4203
    %v4298 = vadd.f32 %v3836, %v4208
    %v4299 = vadd.f32 %v3837, %v4213
    %v4300 = vadd.f32 %v3838, %v4218
    %v4301 = vadd.f32 %v3839, %v4223
    %v4302 = vadd.f32 %v3840, %v4228
    %v4303 = vadd.f32 %v3841, %v4233
    %v4304 = vadd.f32 %v3842, %v4238
    %s4305 = scalar_lea.vmem %s1, 28
    %v4306 = vld [vmem:[%s4305] sm:$0xf]
    %v4307 = vsel %vm86, %v821, 0
    %v4309 = vsel %vm86, %v823, 0
    %v4311 = vsel %vm86, %v826, 0
    %v4313 = vsel %vm86, %v828, 0
    %v4316 = vsel %vm970, %v4306, 0
    %4318 = vmatprep.subr.mxu0 0.0
    %4319 = vmatpush1.msra.mxu0 %v4316
    %4320 = vmatprep.subr.mxu0 0.0
    %4321 = vmatpush1.msra.mxu0 0.0
    %4322 = vmatprep.subr.mxu0 0.0
    %4323 = vmatpush1.msra.mxu0 0.0
    %4324 = vmatprep.subr.mxu0 0.0
    %4325 = vmatpush1.msra.mxu0 0.0
    %4326 = vmatprep.subr.mxu0 0.0
    %4327 = vmatpush1.msra.mxu0 0.0
    %4328 = vmatprep.subr.mxu0 0.0
    %4329 = vmatpush1.msra.mxu0 0.0
    %4330 = vmatprep.subr.mxu0 0.0
    %4331 = vmatpush1.msra.mxu0 0.0
    %4332 = vmatprep.subr.mxu0 0.0
    %4333 = vmatpush1.msra.mxu0 0.0
    %4334 = vmatprep.subr.mxu0 0.0
    %4335 = vmatpush1.msra.mxu0 0.0
    %4336 = vmatprep.subr.mxu0 0.0
    %4337 = vmatpush1.msra.mxu0 0.0
    %4338 = vmatprep.subr.mxu0 0.0
    %4339 = vmatpush1.msra.mxu0 0.0
    %4340 = vmatprep.subr.mxu0 0.0
    %4341 = vmatpush1.msra.mxu0 0.0
    %4342 = vmatprep.subr.mxu0 0.0
    %4343 = vmatpush1.msra.mxu0 0.0
    %4344 = vmatprep.subr.mxu0 0.0
    %4345 = vmatpush1.msra.mxu0 0.0
    %4346 = vmatprep.subr.mxu0 0.0
    %4347 = vmatpush1.msra.mxu0 0.0
    %4348 = vmatprep.subr.mxu0 0.0
    %4349 = vmatpush1.msra.mxu0 0.0
    %4350 = vmatprep.subr.mxu0 0.0
    %4351 = vmatpush1.msra.mxu0 0.0
    %4352 = vmatprep.subr.mxu0 0.0
    %4353 = vmatpush1.msra.mxu0 0.0
    %4354 = vmatprep.subr.mxu0 0.0
    %4355 = vmatpush1.msra.mxu0 0.0
    %4356 = vmatprep.subr.mxu0 0.0
    %4357 = vmatpush1.msra.mxu0 0.0
    %4358 = vmatprep.subr.mxu0 0.0
    %4359 = vmatpush1.msra.mxu0 0.0
    %4360 = vmatprep.subr.mxu0 0.0
    %4361 = vmatpush1.msra.mxu0 0.0
    %4362 = vmatprep.subr.mxu0 0.0
    %4363 = vmatpush1.msra.mxu0 0.0
    %4364 = vmatprep.subr.mxu0 0.0
    %4365 = vmatpush1.msra.mxu0 0.0
    %4366 = vmatprep.subr.mxu0 0.0
    %4367 = vmatpush1.msra.mxu0 0.0
    %4368 = vmatprep.subr.mxu0 0.0
    %4369 = vmatpush1.msra.mxu0 0.0
    %4370 = vmatprep.subr.mxu0 0.0
    %4371 = vmatpush1.msra.mxu0 0.0
    %4372 = vmatprep.subr.mxu0 0.0
    %4373 = vmatpush1.msra.mxu0 0.0
    %4374 = vmatprep.subr.mxu0 0.0
    %4375 = vmatpush1.msra.mxu0 0.0
    %4376 = vmatprep.subr.mxu0 0.0
    %4377 = vmatpush1.msra.mxu0 0.0
    %4378 = vmatprep.subr.mxu0 0.0
    %4379 = vmatpush1.msra.mxu0 0.0
    %4380 = vmatprep.subr.mxu0 0.0
    %4381 = vmatpush1.msra.mxu0 0.0
    %4382 = vmatprep.mubr.f32.mxu0 0.0
    %4383 = vmatmul.mubr.f32.gmra.mrb[0].mxu0 %v850
    %v4384 = vpop.f32.mrb[0].mxu0
    %v4385 = vadd.f32 0.0, %v4384
    %v4386 = vpop.f32.mrb[0].mxu0
    %4387 = vmatprep.mubr.f32.mxu0 0.0
    %4388 = vmatmul.mubr.f32.gmra.mrb[0].mxu0 %v852
    %v4389 = vpop.f32.mrb[0].mxu0
    %v4390 = vadd.f32 0.0, %v4389
    %v4391 = vpop.f32.mrb[0].mxu0
    %4392 = vmatprep.mubr.f32.mxu0 0.0
    %4393 = vmatmul.mubr.f32.gmra.mrb[0].mxu0 %v854
    %v4394 = vpop.f32.mrb[0].mxu0
    %v4395 = vadd.f32 0.0, %v4394
    %v4396 = vpop.f32.mrb[0].mxu0
    %4397 = vmatprep.mubr.f32.mxu0 0.0
    %4398 = vmatmul.mubr.f32.gmra.mrb[0].mxu0 %v856
    %v4399 = vpop.f32.mrb[0].mxu0
    %v4400 = vadd.f32 0.0, %v4399
    %v4401 = vpop.f32.mrb[0].mxu0
    %4402 = vmatprep.mubr.f32.mxu0 0.0
    %4403 = vmatmul.mubr.f32.gmra.mrb[0].mxu0 %v858
    %v4404 = vpop.f32.mrb[0].mxu0
    %v4405 = vadd.f32 0.0, %v4404
    %v4406 = vpop.f32.mrb[0].mxu0
    %4407 = vmatprep.mubr.f32.mxu0 0.0
    %4408 = vmatmul.mubr.f32.gmra.mrb[0].mxu0 %v860
    %v4409 = vpop.f32.mrb[0].mxu0
    %v4410 = vadd.f32 0.0, %v4409
    %v4411 = vpop.f32.mrb[0].mxu0
    %4412 = vmatprep.mubr.f32.mxu0 0.0
    %4413 = vmatmul.mubr.f32.gmra.mrb[0].mxu0 %v862
    %v4414 = vpop.f32.mrb[0].mxu0
    %v4415 = vadd.f32 0.0, %v4414
    %v4416 = vpop.f32.mrb[0].mxu0
    %4417 = vmatprep.mubr.f32.mxu0 0.0
    %4418 = vmatmul.mubr.f32.gmra.mrb[0].mxu0 %v864
    %v4419 = vpop.f32.mrb[0].mxu0
    %v4420 = vadd.f32 0.0, %v4419
    %v4421 = vpop.f32.mrb[0].mxu0
    %4422 = vmatprep.mubr.f32.mxu0 0.0
    %4423 = vmatmul.mubr.f32.gmra.mrb[0].mxu0 %v866
    %v4424 = vpop.f32.mrb[0].mxu0
    %v4425 = vadd.f32 0.0, %v4424
    %v4426 = vpop.f32.mrb[0].mxu0
    %4427 = vmatprep.mubr.f32.mxu0 0.0
    %4428 = vmatmul.mubr.f32.gmra.mrb[0].mxu0 %v868
    %v4429 = vpop.f32.mrb[0].mxu0
    %v4430 = vadd.f32 0.0, %v4429
    %v4431 = vpop.f32.mrb[0].mxu0
    %4432 = vmatprep.mubr.f32.mxu0 0.0
    %4433 = vmatmul.mubr.f32.gmra.mrb[0].mxu0 %v870
    %v4434 = vpop.f32.mrb[0].mxu0
    %v4435 = vadd.f32 0.0, %v4434
    %v4436 = vpop.f32.mrb[0].mxu0
    %4437 = vmatprep.mubr.f32.mxu0 0.0
    %4438 = vmatmul.mubr.f32.gmra.mrb[0].mxu0 %v872
    %v4439 = vpop.f32.mrb[0].mxu0
    %v4440 = vadd.f32 0.0, %v4439
    %v4441 = vpop.f32.mrb[0].mxu0
    %4442 = vmatprep.mubr.f32.mxu0 0.0
    %4443 = vmatmul.mubr.f32.gmra.mrb[0].mxu0 %v874
    %v4444 = vpop.f32.mrb[0].mxu0
    %v4445 = vadd.f32 0.0, %v4444
    %v4446 = vpop.f32.mrb[0].mxu0
    %4447 = vmatprep.mubr.f32.mxu0 0.0
    %4448 = vmatmul.mubr.f32.gmra.mrb[0].mxu0 %v876
    %v4449 = vpop.f32.mrb[0].mxu0
    %v4450 = vadd.f32 0.0, %v4449
    %v4451 = vpop.f32.mrb[0].mxu0
    %4452 = vmatprep.mubr.f32.mxu0 0.0
    %4453 = vmatmul.mubr.f32.gmra.mrb[0].mxu0 %v878
    %v4454 = vpop.f32.mrb[0].mxu0
    %v4455 = vadd.f32 0.0, %v4454
    %v4456 = vpop.f32.mrb[0].mxu0
    %4457 = vmatprep.mubr.f32.mxu0 0.0
    %4458 = vmatmul.mubr.f32.gmra.mrb[0].mxu0 %v880
    %v4459 = vpop.f32.mrb[0].mxu0
    %v4460 = vadd.f32 0.0, %v4459
    %v4461 = vpop.f32.mrb[0].mxu0
    %4462 = vmatprep.mubr.f32.mxu0 0.0
    %4463 = vmatmul.mubr.f32.gmra.mrb[0].mxu0 %v882
    %v4464 = vpop.f32.mrb[0].mxu0
    %v4465 = vadd.f32 0.0, %v4464
    %v4466 = vpop.f32.mrb[0].mxu0
    %4467 = vmatprep.mubr.f32.mxu0 0.0
    %4468 = vmatmul.mubr.f32.gmra.mrb[0].mxu0 %v884
    %v4469 = vpop.f32.mrb[0].mxu0
    %v4470 = vadd.f32 0.0, %v4469
    %v4471 = vpop.f32.mrb[0].mxu0
    %4472 = vmatprep.mubr.f32.mxu0 0.0
    %4473 = vmatmul.mubr.f32.gmra.mrb[0].mxu0 %v886
    %v4474 = vpop.f32.mrb[0].mxu0
    %v4475 = vadd.f32 0.0, %v4474
    %v4476 = vpop.f32.mrb[0].mxu0
    %4477 = vmatprep.mubr.f32.mxu0 0.0
    %4478 = vmatmul.mubr.f32.gmra.mrb[0].mxu0 %v888
    %v4479 = vpop.f32.mrb[0].mxu0
    %v4480 = vadd.f32 0.0, %v4479
    %v4481 = vpop.f32.mrb[0].mxu0
    %4482 = vmatprep.mubr.f32.mxu0 0.0
    %4483 = vmatmul.mubr.f32.gmra.mrb[0].mxu0 %v890
    %v4484 = vpop.f32.mrb[0].mxu0
    %v4485 = vadd.f32 0.0, %v4484
    %v4486 = vpop.f32.mrb[0].mxu0
    %4487 = vmatprep.mubr.f32.mxu0 0.0
    %4488 = vmatmul.mubr.f32.gmra.mrb[0].mxu0 %v892
    %v4489 = vpop.f32.mrb[0].mxu0
    %v4490 = vadd.f32 0.0, %v4489
    %v4491 = vpop.f32.mrb[0].mxu0
    %4492 = vmatprep.mubr.f32.mxu0 0.0
    %4493 = vmatmul.mubr.f32.gmra.mrb[0].mxu0 %v894
    %v4494 = vpop.f32.mrb[0].mxu0
    %v4495 = vadd.f32 0.0, %v4494
    %v4496 = vpop.f32.mrb[0].mxu0
    %4497 = vmatprep.mubr.f32.mxu0 0.0
    %4498 = vmatmul.mubr.f32.gmra.mrb[0].mxu0 %v896
    %v4499 = vpop.f32.mrb[0].mxu0
    %v4500 = vadd.f32 0.0, %v4499
    %v4501 = vpop.f32.mrb[0].mxu0
    %4502 = vmatprep.mubr.f32.mxu0 0.0
    %4503 = vmatmul.mubr.f32.gmra.mrb[0].mxu0 %v898
    %v4504 = vpop.f32.mrb[0].mxu0
    %v4505 = vadd.f32 0.0, %v4504
    %v4506 = vpop.f32.mrb[0].mxu0
    %4507 = vmatprep.mubr.f32.mxu0 0.0
    %4508 = vmatmul.mubr.f32.gmra.mrb[0].mxu0 %v900
    %v4509 = vpop.f32.mrb[0].mxu0
    %v4510 = vadd.f32 0.0, %v4509
    %v4511 = vpop.f32.mrb[0].mxu0
    %4512 = vmatprep.mubr.f32.mxu0 0.0
    %4513 = vmatmul.mubr.f32.gmra.mrb[0].mxu0 %v902
    %v4514 = vpop.f32.mrb[0].mxu0
    %v4515 = vadd.f32 0.0, %v4514
    %v4516 = vpop.f32.mrb[0].mxu0
    %4517 = vmatprep.mubr.f32.mxu0 0.0
    %4518 = vmatmul.mubr.f32.gmra.mrb[0].mxu0 %v904
    %v4519 = vpop.f32.mrb[0].mxu0
    %v4520 = vadd.f32 0.0, %v4519
    %v4521 = vpop.f32.mrb[0].mxu0
    %4522 = vmatprep.mubr.f32.mxu0 0.0
    %4523 = vmatmul.mubr.f32.gmra.mrb[0].mxu0 %v2921
    %v4524 = vpop.f32.mrb[0].mxu0
    %v4525 = vadd.f32 0.0, %v4524
    %v4526 = vpop.f32.mrb[0].mxu0
    %4527 = vmatprep.mubr.f32.mxu0 0.0
    %4528 = vmatmul.mubr.f32.gmra.mrb[0].mxu0 %v2923
    %v4529 = vpop.f32.mrb[0].mxu0
    %v4530 = vadd.f32 0.0, %v4529
    %v4531 = vpop.f32.mrb[0].mxu0
    %4532 = vmatprep.mubr.f32.mxu0 0.0
    %4533 = vmatmul.mubr.f32.gmra.mrb[0].mxu0 %v4307
    %v4534 = vpop.f32.mrb[0].mxu0
    %v4535 = vadd.f32 0.0, %v4534
    %v4536 = vpop.f32.mrb[0].mxu0
    %4537 = vmatprep.mubr.f32.mxu0 0.0
    %4538 = vmatmul.mubr.f32.gmra.mrb[0].mxu0 %v4309
    %v4539 = vpop.f32.mrb[0].mxu0
    %v4540 = vadd.f32 0.0, %v4539
    %v4541 = vpop.f32.mrb[0].mxu0
    %4542 = vmatprep.mubr.f32.mxu0 0.0
    %4543 = vmatmul.mubr.f32.gmra.mrb[0].mxu0 %v914
    %v4544 = vpop.f32.mrb[0].mxu0
    %v4545 = vadd.f32 0.0, %v4544
    %v4546 = vpop.f32.mrb[0].mxu0
    %4547 = vmatprep.mubr.f32.mxu0 0.0
    %4548 = vmatmul.mubr.f32.gmra.mrb[0].mxu0 %v916
    %v4549 = vpop.f32.mrb[0].mxu0
    %v4550 = vadd.f32 0.0, %v4549
    %v4551 = vpop.f32.mrb[0].mxu0
    %4552 = vmatprep.mubr.f32.mxu0 0.0
    %4553 = vmatmul.mubr.f32.gmra.mrb[0].mxu0 %v918
    %v4554 = vpop.f32.mrb[0].mxu0
    %v4555 = vadd.f32 0.0, %v4554
    %v4556 = vpop.f32.mrb[0].mxu0
    %4557 = vmatprep.mubr.f32.mxu0 0.0
    %4558 = vmatmul.mubr.f32.gmra.mrb[0].mxu0 %v920
    %v4559 = vpop.f32.mrb[0].mxu0
    %v4560 = vadd.f32 0.0, %v4559
    %v4561 = vpop.f32.mrb[0].mxu0
    %4562 = vmatprep.mubr.f32.mxu0 0.0
    %4563 = vmatmul.mubr.f32.gmra.mrb[0].mxu0 %v922
    %v4564 = vpop.f32.mrb[0].mxu0
    %v4565 = vadd.f32 0.0, %v4564
    %v4566 = vpop.f32.mrb[0].mxu0
    %4567 = vmatprep.mubr.f32.mxu0 0.0
    %4568 = vmatmul.mubr.f32.gmra.mrb[0].mxu0 %v924
    %v4569 = vpop.f32.mrb[0].mxu0
    %v4570 = vadd.f32 0.0, %v4569
    %v4571 = vpop.f32.mrb[0].mxu0
    %4572 = vmatprep.mubr.f32.mxu0 0.0
    %4573 = vmatmul.mubr.f32.gmra.mrb[0].mxu0 %v926
    %v4574 = vpop.f32.mrb[0].mxu0
    %v4575 = vadd.f32 0.0, %v4574
    %v4576 = vpop.f32.mrb[0].mxu0
    %4577 = vmatprep.mubr.f32.mxu0 0.0
    %4578 = vmatmul.mubr.f32.gmra.mrb[0].mxu0 %v928
    %v4579 = vpop.f32.mrb[0].mxu0
    %v4580 = vadd.f32 0.0, %v4579
    %v4581 = vpop.f32.mrb[0].mxu0
    %4582 = vmatprep.mubr.f32.mxu0 0.0
    %4583 = vmatmul.mubr.f32.gmra.mrb[0].mxu0 %v930
    %v4584 = vpop.f32.mrb[0].mxu0
    %v4585 = vadd.f32 0.0, %v4584
    %v4586 = vpop.f32.mrb[0].mxu0
    %4587 = vmatprep.mubr.f32.mxu0 0.0
    %4588 = vmatmul.mubr.f32.gmra.mrb[0].mxu0 %v932
    %v4589 = vpop.f32.mrb[0].mxu0
    %v4590 = vadd.f32 0.0, %v4589
    %v4591 = vpop.f32.mrb[0].mxu0
    %4592 = vmatprep.mubr.f32.mxu0 0.0
    %4593 = vmatmul.mubr.f32.gmra.mrb[0].mxu0 %v934
    %v4594 = vpop.f32.mrb[0].mxu0
    %v4595 = vadd.f32 0.0, %v4594
    %v4596 = vpop.f32.mrb[0].mxu0
    %4597 = vmatprep.mubr.f32.mxu0 0.0
    %4598 = vmatmul.mubr.f32.gmra.mrb[0].mxu0 %v936
    %v4599 = vpop.f32.mrb[0].mxu0
    %v4600 = vadd.f32 0.0, %v4599
    %v4601 = vpop.f32.mrb[0].mxu0
    %4602 = vmatprep.mubr.f32.mxu0 0.0
    %4603 = vmatmul.mubr.f32.gmra.mrb[0].mxu0 %v938
    %v4604 = vpop.f32.mrb[0].mxu0
    %v4605 = vadd.f32 0.0, %v4604
    %v4606 = vpop.f32.mrb[0].mxu0
    %4607 = vmatprep.mubr.f32.mxu0 0.0
    %4608 = vmatmul.mubr.f32.gmra.mrb[0].mxu0 %v940
    %v4609 = vpop.f32.mrb[0].mxu0
    %v4610 = vadd.f32 0.0, %v4609
    %v4611 = vpop.f32.mrb[0].mxu0
    %4612 = vmatprep.mubr.f32.mxu0 0.0
    %4613 = vmatmul.mubr.f32.gmra.mrb[0].mxu0 %v942
    %v4614 = vpop.f32.mrb[0].mxu0
    %v4615 = vadd.f32 0.0, %v4614
    %v4616 = vpop.f32.mrb[0].mxu0
    %4617 = vmatprep.mubr.f32.mxu0 0.0
    %4618 = vmatmul.mubr.f32.gmra.mrb[0].mxu0 %v944
    %v4619 = vpop.f32.mrb[0].mxu0
    %v4620 = vadd.f32 0.0, %v4619
    %v4621 = vpop.f32.mrb[0].mxu0
    %4622 = vmatprep.mubr.f32.mxu0 0.0
    %4623 = vmatmul.mubr.f32.gmra.mrb[0].mxu0 %v946
    %v4624 = vpop.f32.mrb[0].mxu0
    %v4625 = vadd.f32 0.0, %v4624
    %v4626 = vpop.f32.mrb[0].mxu0
    %4627 = vmatprep.mubr.f32.mxu0 0.0
    %4628 = vmatmul.mubr.f32.gmra.mrb[0].mxu0 %v948
    %v4629 = vpop.f32.mrb[0].mxu0
    %v4630 = vadd.f32 0.0, %v4629
    %v4631 = vpop.f32.mrb[0].mxu0
    %4632 = vmatprep.mubr.f32.mxu0 0.0
    %4633 = vmatmul.mubr.f32.gmra.mrb[0].mxu0 %v950
    %v4634 = vpop.f32.mrb[0].mxu0
    %v4635 = vadd.f32 0.0, %v4634
    %v4636 = vpop.f32.mrb[0].mxu0
    %4637 = vmatprep.mubr.f32.mxu0 0.0
    %4638 = vmatmul.mubr.f32.gmra.mrb[0].mxu0 %v952
    %v4639 = vpop.f32.mrb[0].mxu0
    %v4640 = vadd.f32 0.0, %v4639
    %v4641 = vpop.f32.mrb[0].mxu0
    %4642 = vmatprep.mubr.f32.mxu0 0.0
    %4643 = vmatmul.mubr.f32.gmra.mrb[0].mxu0 %v954
    %v4644 = vpop.f32.mrb[0].mxu0
    %v4645 = vadd.f32 0.0, %v4644
    %v4646 = vpop.f32.mrb[0].mxu0
    %4647 = vmatprep.mubr.f32.mxu0 0.0
    %4648 = vmatmul.mubr.f32.gmra.mrb[0].mxu0 %v956
    %v4649 = vpop.f32.mrb[0].mxu0
    %v4650 = vadd.f32 0.0, %v4649
    %v4651 = vpop.f32.mrb[0].mxu0
    %4652 = vmatprep.mubr.f32.mxu0 0.0
    %4653 = vmatmul.mubr.f32.gmra.mrb[0].mxu0 %v958
    %v4654 = vpop.f32.mrb[0].mxu0
    %v4655 = vadd.f32 0.0, %v4654
    %v4656 = vpop.f32.mrb[0].mxu0
    %4657 = vmatprep.mubr.f32.mxu0 0.0
    %4658 = vmatmul.mubr.f32.gmra.mrb[0].mxu0 %v960
    %v4659 = vpop.f32.mrb[0].mxu0
    %v4660 = vadd.f32 0.0, %v4659
    %v4661 = vpop.f32.mrb[0].mxu0
    %4662 = vmatprep.mubr.f32.mxu0 0.0
    %4663 = vmatmul.mubr.f32.gmra.mrb[0].mxu0 %v962
    %v4664 = vpop.f32.mrb[0].mxu0
    %v4665 = vadd.f32 0.0, %v4664
    %v4666 = vpop.f32.mrb[0].mxu0
    %4667 = vmatprep.mubr.f32.mxu0 0.0
    %4668 = vmatmul.mubr.f32.gmra.mrb[0].mxu0 %v964
    %v4669 = vpop.f32.mrb[0].mxu0
    %v4670 = vadd.f32 0.0, %v4669
    %v4671 = vpop.f32.mrb[0].mxu0
    %4672 = vmatprep.mubr.f32.mxu0 0.0
    %4673 = vmatmul.mubr.f32.gmra.mrb[0].mxu0 %v966
    %v4674 = vpop.f32.mrb[0].mxu0
    %v4675 = vadd.f32 0.0, %v4674
    %v4676 = vpop.f32.mrb[0].mxu0
    %4677 = vmatprep.mubr.f32.mxu0 0.0
    %4678 = vmatmul.mubr.f32.gmra.mrb[0].mxu0 %v968
    %v4679 = vpop.f32.mrb[0].mxu0
    %v4680 = vadd.f32 0.0, %v4679
    %v4681 = vpop.f32.mrb[0].mxu0
    %4682 = vmatprep.mubr.f32.mxu0 0.0
    %4683 = vmatmul.mubr.f32.gmra.mrb[0].mxu0 %v2925
    %v4684 = vpop.f32.mrb[0].mxu0
    %v4685 = vadd.f32 0.0, %v4684
    %v4686 = vpop.f32.mrb[0].mxu0
    %4687 = vmatprep.mubr.f32.mxu0 0.0
    %4688 = vmatmul.mubr.f32.gmra.mrb[0].mxu0 %v2927
    %v4689 = vpop.f32.mrb[0].mxu0
    %v4690 = vadd.f32 0.0, %v4689
    %v4691 = vpop.f32.mrb[0].mxu0
    %4692 = vmatprep.mubr.f32.mxu0 0.0
    %4693 = vmatmul.mubr.f32.gmra.mrb[0].mxu0 %v4311
    %v4694 = vpop.f32.mrb[0].mxu0
    %v4695 = vadd.f32 0.0, %v4694
    %v4696 = vpop.f32.mrb[0].mxu0
    %4697 = vmatprep.mubr.f32.mxu0 0.0
    %4698 = vmatmul.mubr.f32.gmra.mrb[0].mxu0 %v4313
    %v4699 = vpop.f32.mrb[0].mxu0
    %v4700 = vadd.f32 0.0, %v4699
    %v4701 = vpop.f32.mrb[0].mxu0
    %4702 = vdwg.mxu0
    %v4703 = vadd.f32 %v4241, %v4385
    %v4704 = vadd.f32 %v4242, %v4390
    %v4705 = vadd.f32 %v4243, %v4395
    %v4706 = vadd.f32 %v4244, %v4400
    %v4707 = vadd.f32 %v4245, %v4405
    %v4708 = vadd.f32 %v4246, %v4410
    %v4709 = vadd.f32 %v4247, %v4415
    %v4710 = vadd.f32 %v4248, %v4420
    %v4711 = vadd.f32 %v4249, %v4425
    %v4712 = vadd.f32 %v4250, %v4430
    %v4713 = vadd.f32 %v4251, %v4435
    %v4714 = vadd.f32 %v4252, %v4440
    %v4715 = vadd.f32 %v4253, %v4445
    %v4716 = vadd.f32 %v4254, %v4450
    %v4717 = vadd.f32 %v4255, %v4455
    %v4718 = vadd.f32 %v4256, %v4460
    %v4719 = vadd.f32 %v4257, %v4465
    %v4720 = vadd.f32 %v4258, %v4470
    %v4721 = vadd.f32 %v4259, %v4475
    %v4722 = vadd.f32 %v4260, %v4480
    %v4723 = vadd.f32 %v4261, %v4485
    %v4724 = vadd.f32 %v4262, %v4490
    %v4725 = vadd.f32 %v4263, %v4495
    %v4726 = vadd.f32 %v4264, %v4500
    %v4727 = vadd.f32 %v4265, %v4505
    %v4728 = vadd.f32 %v4266, %v4510
    %v4729 = vadd.f32 %v4267, %v4515
    %v4730 = vadd.f32 %v4268, %v4520
    %v4731 = vadd.f32 %v4269, %v4525
    %v4732 = vadd.f32 %v4270, %v4530
    %v4733 = vadd.f32 %v4271, %v4535
    %v4734 = vadd.f32 %v4272, %v4540
    %v4735 = vadd.f32 %v4273, %v4545
    %v4736 = vadd.f32 %v4274, %v4550
    %v4737 = vadd.f32 %v4275, %v4555
    %v4738 = vadd.f32 %v4276, %v4560
    %v4739 = vadd.f32 %v4277, %v4565
    %v4740 = vadd.f32 %v4278, %v4570
    %v4741 = vadd.f32 %v4279, %v4575
    %v4742 = vadd.f32 %v4280, %v4580
    %v4743 = vadd.f32 %v4281, %v4585
    %v4744 = vadd.f32 %v4282, %v4590
    %v4745 = vadd.f32 %v4283, %v4595
    %v4746 = vadd.f32 %v4284, %v4600
    %v4747 = vadd.f32 %v4285, %v4605
    %v4748 = vadd.f32 %v4286, %v4610
    %v4749 = vadd.f32 %v4287, %v4615
    %v4750 = vadd.f32 %v4288, %v4620
    %v4751 = vadd.f32 %v4289, %v4625
    %v4752 = vadd.f32 %v4290, %v4630
    %v4753 = vadd.f32 %v4291, %v4635
    %v4754 = vadd.f32 %v4292, %v4640
    %v4755 = vadd.f32 %v4293, %v4645
    %v4756 = vadd.f32 %v4294, %v4650
    %v4757 = vadd.f32 %v4295, %v4655
    %v4758 = vadd.f32 %v4296, %v4660
    %v4759 = vadd.f32 %v4297, %v4665
    %v4760 = vadd.f32 %v4298, %v4670
    %v4761 = vadd.f32 %v4299, %v4675
    %v4762 = vadd.f32 %v4300, %v4680
    %v4763 = vadd.f32 %v4301, %v4685
    %v4764 = vadd.f32 %v4302, %v4690
    %v4765 = vadd.f32 %v4303, %v4695
    %v4766 = vadd.f32 %v4304, %v4700
    %s4767 = scalar_lea.vmem %s1, 32
    %v4768 = vld [vmem:[%s4767] sm:$0xf]
    %v4769 = vsel %vm86, %v831, 0
    %v4771 = vsel %vm86, %v833, 0
    %v4773 = vsel %vm86, %v836, 0
    %v4775 = vsel %vm86, %v838, 0
    %v4778 = vsel %vm970, %v4768, 0
    %4780 = vmatprep.subr.mxu0 0.0
    %4781 = vmatpush1.msra.mxu0 %v4778
    %4782 = vmatprep.subr.mxu0 0.0
    %4783 = vmatpush1.msra.mxu0 0.0
    %4784 = vmatprep.subr.mxu0 0.0
    %4785 = vmatpush1.msra.mxu0 0.0
    %4786 = vmatprep.subr.mxu0 0.0
    %4787 = vmatpush1.msra.mxu0 0.0
    %4788 = vmatprep.subr.mxu0 0.0
    %4789 = vmatpush1.msra.mxu0 0.0
    %4790 = vmatprep.subr.mxu0 0.0
    %4791 = vmatpush1.msra.mxu0 0.0
    %4792 = vmatprep.subr.mxu0 0.0
    %4793 = vmatpush1.msra.mxu0 0.0
    %4794 = vmatprep.subr.mxu0 0.0
    %4795 = vmatpush1.msra.mxu0 0.0
    %4796 = vmatprep.subr.mxu0 0.0
    %4797 = vmatpush1.msra.mxu0 0.0
    %4798 = vmatprep.subr.mxu0 0.0
    %4799 = vmatpush1.msra.mxu0 0.0
    %4800 = vmatprep.subr.mxu0 0.0
    %4801 = vmatpush1.msra.mxu0 0.0
    %4802 = vmatprep.subr.mxu0 0.0
    %4803 = vmatpush1.msra.mxu0 0.0
    %4804 = vmatprep.subr.mxu0 0.0
    %4805 = vmatpush1.msra.mxu0 0.0
    %4806 = vmatprep.subr.mxu0 0.0
    %4807 = vmatpush1.msra.mxu0 0.0
    %4808 = vmatprep.subr.mxu0 0.0
    %4809 = vmatpush1.msra.mxu0 0.0
    %4810 = vmatprep.subr.mxu0 0.0
    %4811 = vmatpush1.msra.mxu0 0.0
    %4812 = vmatprep.subr.mxu0 0.0
    %4813 = vmatpush1.msra.mxu0 0.0
    %4814 = vmatprep.subr.mxu0 0.0
    %4815 = vmatpush1.msra.mxu0 0.0
    %4816 = vmatprep.subr.mxu0 0.0
    %4817 = vmatpush1.msra.mxu0 0.0
    %4818 = vmatprep.subr.mxu0 0.0
    %4819 = vmatpush1.msra.mxu0 0.0
    %4820 = vmatprep.subr.mxu0 0.0
    %4821 = vmatpush1.msra.mxu0 0.0
    %4822 = vmatprep.subr.mxu0 0.0
    %4823 = vmatpush1.msra.mxu0 0.0
    %4824 = vmatprep.subr.mxu0 0.0
    %4825 = vmatpush1.msra.mxu0 0.0
    %4826 = vmatprep.subr.mxu0 0.0
    %4827 = vmatpush1.msra.mxu0 0.0
    %4828 = vmatprep.subr.mxu0 0.0
    %4829 = vmatpush1.msra.mxu0 0.0
    %4830 = vmatprep.subr.mxu0 0.0
    %4831 = vmatpush1.msra.mxu0 0.0
    %4832 = vmatprep.subr.mxu0 0.0
    %4833 = vmatpush1.msra.mxu0 0.0
    %4834 = vmatprep.subr.mxu0 0.0
    %4835 = vmatpush1.msra.mxu0 0.0
    %4836 = vmatprep.subr.mxu0 0.0
    %4837 = vmatpush1.msra.mxu0 0.0
    %4838 = vmatprep.subr.mxu0 0.0
    %4839 = vmatpush1.msra.mxu0 0.0
    %4840 = vmatprep.subr.mxu0 0.0
    %4841 = vmatpush1.msra.mxu0 0.0
    %4842 = vmatprep.subr.mxu0 0.0
    %4843 = vmatpush1.msra.mxu0 0.0
    %4844 = vmatprep.mubr.f32.mxu0 0.0
    %4845 = vmatmul.mubr.f32.gmra.mrb[0].mxu0 %v1885
    %v4846 = vpop.f32.mrb[0].mxu0
    %v4847 = vadd.f32 0.0, %v4846
    %v4848 = vpop.f32.mrb[0].mxu0
    %4849 = vmatprep.mubr.f32.mxu0 0.0
    %4850 = vmatmul.mubr.f32.gmra.mrb[0].mxu0 %v1887
    %v4851 = vpop.f32.mrb[0].mxu0
    %v4852 = vadd.f32 0.0, %v4851
    %v4853 = vpop.f32.mrb[0].mxu0
    %4854 = vmatprep.mubr.f32.mxu0 0.0
    %4855 = vmatmul.mubr.f32.gmra.mrb[0].mxu0 %v1889
    %v4856 = vpop.f32.mrb[0].mxu0
    %v4857 = vadd.f32 0.0, %v4856
    %v4858 = vpop.f32.mrb[0].mxu0
    %4859 = vmatprep.mubr.f32.mxu0 0.0
    %4860 = vmatmul.mubr.f32.gmra.mrb[0].mxu0 %v1891
    %v4861 = vpop.f32.mrb[0].mxu0
    %v4862 = vadd.f32 0.0, %v4861
    %v4863 = vpop.f32.mrb[0].mxu0
    %4864 = vmatprep.mubr.f32.mxu0 0.0
    %4865 = vmatmul.mubr.f32.gmra.mrb[0].mxu0 %v1893
    %v4866 = vpop.f32.mrb[0].mxu0
    %v4867 = vadd.f32 0.0, %v4866
    %v4868 = vpop.f32.mrb[0].mxu0
    %4869 = vmatprep.mubr.f32.mxu0 0.0
    %4870 = vmatmul.mubr.f32.gmra.mrb[0].mxu0 %v1895
    %v4871 = vpop.f32.mrb[0].mxu0
    %v4872 = vadd.f32 0.0, %v4871
    %v4873 = vpop.f32.mrb[0].mxu0
    %4874 = vmatprep.mubr.f32.mxu0 0.0
    %4875 = vmatmul.mubr.f32.gmra.mrb[0].mxu0 %v1897
    %v4876 = vpop.f32.mrb[0].mxu0
    %v4877 = vadd.f32 0.0, %v4876
    %v4878 = vpop.f32.mrb[0].mxu0
    %4879 = vmatprep.mubr.f32.mxu0 0.0
    %4880 = vmatmul.mubr.f32.gmra.mrb[0].mxu0 %v1899
    %v4881 = vpop.f32.mrb[0].mxu0
    %v4882 = vadd.f32 0.0, %v4881
    %v4883 = vpop.f32.mrb[0].mxu0
    %4884 = vmatprep.mubr.f32.mxu0 0.0
    %4885 = vmatmul.mubr.f32.gmra.mrb[0].mxu0 %v1901
    %v4886 = vpop.f32.mrb[0].mxu0
    %v4887 = vadd.f32 0.0, %v4886
    %v4888 = vpop.f32.mrb[0].mxu0
    %4889 = vmatprep.mubr.f32.mxu0 0.0
    %4890 = vmatmul.mubr.f32.gmra.mrb[0].mxu0 %v1903
    %v4891 = vpop.f32.mrb[0].mxu0
    %v4892 = vadd.f32 0.0, %v4891
    %v4893 = vpop.f32.mrb[0].mxu0
    %4894 = vmatprep.mubr.f32.mxu0 0.0
    %4895 = vmatmul.mubr.f32.gmra.mrb[0].mxu0 %v1905
    %v4896 = vpop.f32.mrb[0].mxu0
    %v4897 = vadd.f32 0.0, %v4896
    %v4898 = vpop.f32.mrb[0].mxu0
    %4899 = vmatprep.mubr.f32.mxu0 0.0
    %4900 = vmatmul.mubr.f32.gmra.mrb[0].mxu0 %v1907
    %v4901 = vpop.f32.mrb[0].mxu0
    %v4902 = vadd.f32 0.0, %v4901
    %v4903 = vpop.f32.mrb[0].mxu0
    %4904 = vmatprep.mubr.f32.mxu0 0.0
    %4905 = vmatmul.mubr.f32.gmra.mrb[0].mxu0 %v1909
    %v4906 = vpop.f32.mrb[0].mxu0
    %v4907 = vadd.f32 0.0, %v4906
    %v4908 = vpop.f32.mrb[0].mxu0
    %4909 = vmatprep.mubr.f32.mxu0 0.0
    %4910 = vmatmul.mubr.f32.gmra.mrb[0].mxu0 %v1911
    %v4911 = vpop.f32.mrb[0].mxu0
    %v4912 = vadd.f32 0.0, %v4911
    %v4913 = vpop.f32.mrb[0].mxu0
    %4914 = vmatprep.mubr.f32.mxu0 0.0
    %4915 = vmatmul.mubr.f32.gmra.mrb[0].mxu0 %v1913
    %v4916 = vpop.f32.mrb[0].mxu0
    %v4917 = vadd.f32 0.0, %v4916
    %v4918 = vpop.f32.mrb[0].mxu0
    %4919 = vmatprep.mubr.f32.mxu0 0.0
    %4920 = vmatmul.mubr.f32.gmra.mrb[0].mxu0 %v1915
    %v4921 = vpop.f32.mrb[0].mxu0
    %v4922 = vadd.f32 0.0, %v4921
    %v4923 = vpop.f32.mrb[0].mxu0
    %4924 = vmatprep.mubr.f32.mxu0 0.0
    %4925 = vmatmul.mubr.f32.gmra.mrb[0].mxu0 %v1917
    %v4926 = vpop.f32.mrb[0].mxu0
    %v4927 = vadd.f32 0.0, %v4926
    %v4928 = vpop.f32.mrb[0].mxu0
    %4929 = vmatprep.mubr.f32.mxu0 0.0
    %4930 = vmatmul.mubr.f32.gmra.mrb[0].mxu0 %v1919
    %v4931 = vpop.f32.mrb[0].mxu0
    %v4932 = vadd.f32 0.0, %v4931
    %v4933 = vpop.f32.mrb[0].mxu0
    %4934 = vmatprep.mubr.f32.mxu0 0.0
    %4935 = vmatmul.mubr.f32.gmra.mrb[0].mxu0 %v1921
    %v4936 = vpop.f32.mrb[0].mxu0
    %v4937 = vadd.f32 0.0, %v4936
    %v4938 = vpop.f32.mrb[0].mxu0
    %4939 = vmatprep.mubr.f32.mxu0 0.0
    %4940 = vmatmul.mubr.f32.gmra.mrb[0].mxu0 %v1923
    %v4941 = vpop.f32.mrb[0].mxu0
    %v4942 = vadd.f32 0.0, %v4941
    %v4943 = vpop.f32.mrb[0].mxu0
    %4944 = vmatprep.mubr.f32.mxu0 0.0
    %4945 = vmatmul.mubr.f32.gmra.mrb[0].mxu0 %v1925
    %v4946 = vpop.f32.mrb[0].mxu0
    %v4947 = vadd.f32 0.0, %v4946
    %v4948 = vpop.f32.mrb[0].mxu0
    %4949 = vmatprep.mubr.f32.mxu0 0.0
    %4950 = vmatmul.mubr.f32.gmra.mrb[0].mxu0 %v1927
    %v4951 = vpop.f32.mrb[0].mxu0
    %v4952 = vadd.f32 0.0, %v4951
    %v4953 = vpop.f32.mrb[0].mxu0
    %4954 = vmatprep.mubr.f32.mxu0 0.0
    %4955 = vmatmul.mubr.f32.gmra.mrb[0].mxu0 %v1929
    %v4956 = vpop.f32.mrb[0].mxu0
    %v4957 = vadd.f32 0.0, %v4956
    %v4958 = vpop.f32.mrb[0].mxu0
    %4959 = vmatprep.mubr.f32.mxu0 0.0
    %4960 = vmatmul.mubr.f32.gmra.mrb[0].mxu0 %v1931
    %v4961 = vpop.f32.mrb[0].mxu0
    %v4962 = vadd.f32 0.0, %v4961
    %v4963 = vpop.f32.mrb[0].mxu0
    %4964 = vmatprep.mubr.f32.mxu0 0.0
    %4965 = vmatmul.mubr.f32.gmra.mrb[0].mxu0 %v1933
    %v4966 = vpop.f32.mrb[0].mxu0
    %v4967 = vadd.f32 0.0, %v4966
    %v4968 = vpop.f32.mrb[0].mxu0
    %4969 = vmatprep.mubr.f32.mxu0 0.0
    %4970 = vmatmul.mubr.f32.gmra.mrb[0].mxu0 %v1935
    %v4971 = vpop.f32.mrb[0].mxu0
    %v4972 = vadd.f32 0.0, %v4971
    %v4973 = vpop.f32.mrb[0].mxu0
    %4974 = vmatprep.mubr.f32.mxu0 0.0
    %4975 = vmatmul.mubr.f32.gmra.mrb[0].mxu0 %v1937
    %v4976 = vpop.f32.mrb[0].mxu0
    %v4977 = vadd.f32 0.0, %v4976
    %v4978 = vpop.f32.mrb[0].mxu0
    %4979 = vmatprep.mubr.f32.mxu0 0.0
    %4980 = vmatmul.mubr.f32.gmra.mrb[0].mxu0 %v1939
    %v4981 = vpop.f32.mrb[0].mxu0
    %v4982 = vadd.f32 0.0, %v4981
    %v4983 = vpop.f32.mrb[0].mxu0
    %4984 = vmatprep.mubr.f32.mxu0 0.0
    %4985 = vmatmul.mubr.f32.gmra.mrb[0].mxu0 %v3383
    %v4986 = vpop.f32.mrb[0].mxu0
    %v4987 = vadd.f32 0.0, %v4986
    %v4988 = vpop.f32.mrb[0].mxu0
    %4989 = vmatprep.mubr.f32.mxu0 0.0
    %4990 = vmatmul.mubr.f32.gmra.mrb[0].mxu0 %v3385
    %v4991 = vpop.f32.mrb[0].mxu0
    %v4992 = vadd.f32 0.0, %v4991
    %v4993 = vpop.f32.mrb[0].mxu0
    %4994 = vmatprep.mubr.f32.mxu0 0.0
    %4995 = vmatmul.mubr.f32.gmra.mrb[0].mxu0 %v4769
    %v4996 = vpop.f32.mrb[0].mxu0
    %v4997 = vadd.f32 0.0, %v4996
    %v4998 = vpop.f32.mrb[0].mxu0
    %4999 = vmatprep.mubr.f32.mxu0 0.0
    %5000 = vmatmul.mubr.f32.gmra.mrb[0].mxu0 %v4771
    %v5001 = vpop.f32.mrb[0].mxu0
    %v5002 = vadd.f32 0.0, %v5001
    %v5003 = vpop.f32.mrb[0].mxu0
    %5004 = vmatprep.mubr.f32.mxu0 0.0
    %5005 = vmatmul.mubr.f32.gmra.mrb[0].mxu0 %v1949
    %v5006 = vpop.f32.mrb[0].mxu0
    %v5007 = vadd.f32 0.0, %v5006
    %v5008 = vpop.f32.mrb[0].mxu0
    %5009 = vmatprep.mubr.f32.mxu0 0.0
    %5010 = vmatmul.mubr.f32.gmra.mrb[0].mxu0 %v1951
    %v5011 = vpop.f32.mrb[0].mxu0
    %v5012 = vadd.f32 0.0, %v5011
    %v5013 = vpop.f32.mrb[0].mxu0
    %5014 = vmatprep.mubr.f32.mxu0 0.0
    %5015 = vmatmul.mubr.f32.gmra.mrb[0].mxu0 %v1953
    %v5016 = vpop.f32.mrb[0].mxu0
    %v5017 = vadd.f32 0.0, %v5016
    %v5018 = vpop.f32.mrb[0].mxu0
    %5019 = vmatprep.mubr.f32.mxu0 0.0
    %5020 = vmatmul.mubr.f32.gmra.mrb[0].mxu0 %v1955
    %v5021 = vpop.f32.mrb[0].mxu0
    %v5022 = vadd.f32 0.0, %v5021
    %v5023 = vpop.f32.mrb[0].mxu0
    %5024 = vmatprep.mubr.f32.mxu0 0.0
    %5025 = vmatmul.mubr.f32.gmra.mrb[0].mxu0 %v1957
    %v5026 = vpop.f32.mrb[0].mxu0
    %v5027 = vadd.f32 0.0, %v5026
    %v5028 = vpop.f32.mrb[0].mxu0
    %5029 = vmatprep.mubr.f32.mxu0 0.0
    %5030 = vmatmul.mubr.f32.gmra.mrb[0].mxu0 %v1959
    %v5031 = vpop.f32.mrb[0].mxu0
    %v5032 = vadd.f32 0.0, %v5031
    %v5033 = vpop.f32.mrb[0].mxu0
    %5034 = vmatprep.mubr.f32.mxu0 0.0
    %5035 = vmatmul.mubr.f32.gmra.mrb[0].mxu0 %v1961
    %v5036 = vpop.f32.mrb[0].mxu0
    %v5037 = vadd.f32 0.0, %v5036
    %v5038 = vpop.f32.mrb[0].mxu0
    %5039 = vmatprep.mubr.f32.mxu0 0.0
    %5040 = vmatmul.mubr.f32.gmra.mrb[0].mxu0 %v1963
    %v5041 = vpop.f32.mrb[0].mxu0
    %v5042 = vadd.f32 0.0, %v5041
    %v5043 = vpop.f32.mrb[0].mxu0
    %5044 = vmatprep.mubr.f32.mxu0 0.0
    %5045 = vmatmul.mubr.f32.gmra.mrb[0].mxu0 %v1965
    %v5046 = vpop.f32.mrb[0].mxu0
    %v5047 = vadd.f32 0.0, %v5046
    %v5048 = vpop.f32.mrb[0].mxu0
    %5049 = vmatprep.mubr.f32.mxu0 0.0
    %5050 = vmatmul.mubr.f32.gmra.mrb[0].mxu0 %v1967
    %v5051 = vpop.f32.mrb[0].mxu0
    %v5052 = vadd.f32 0.0, %v5051
    %v5053 = vpop.f32.mrb[0].mxu0
    %5054 = vmatprep.mubr.f32.mxu0 0.0
    %5055 = vmatmul.mubr.f32.gmra.mrb[0].mxu0 %v1969
    %v5056 = vpop.f32.mrb[0].mxu0
    %v5057 = vadd.f32 0.0, %v5056
    %v5058 = vpop.f32.mrb[0].mxu0
    %5059 = vmatprep.mubr.f32.mxu0 0.0
    %5060 = vmatmul.mubr.f32.gmra.mrb[0].mxu0 %v1971
    %v5061 = vpop.f32.mrb[0].mxu0
    %v5062 = vadd.f32 0.0, %v5061
    %v5063 = vpop.f32.mrb[0].mxu0
    %5064 = vmatprep.mubr.f32.mxu0 0.0
    %5065 = vmatmul.mubr.f32.gmra.mrb[0].mxu0 %v1973
    %v5066 = vpop.f32.mrb[0].mxu0
    %v5067 = vadd.f32 0.0, %v5066
    %v5068 = vpop.f32.mrb[0].mxu0
    %5069 = vmatprep.mubr.f32.mxu0 0.0
    %5070 = vmatmul.mubr.f32.gmra.mrb[0].mxu0 %v1975
    %v5071 = vpop.f32.mrb[0].mxu0
    %v5072 = vadd.f32 0.0, %v5071
    %v5073 = vpop.f32.mrb[0].mxu0
    %5074 = vmatprep.mubr.f32.mxu0 0.0
    %5075 = vmatmul.mubr.f32.gmra.mrb[0].mxu0 %v1977
    %v5076 = vpop.f32.mrb[0].mxu0
    %v5077 = vadd.f32 0.0, %v5076
    %v5078 = vpop.f32.mrb[0].mxu0
    %5079 = vmatprep.mubr.f32.mxu0 0.0
    %5080 = vmatmul.mubr.f32.gmra.mrb[0].mxu0 %v1979
    %v5081 = vpop.f32.mrb[0].mxu0
    %v5082 = vadd.f32 0.0, %v5081
    %v5083 = vpop.f32.mrb[0].mxu0
    %5084 = vmatprep.mubr.f32.mxu0 0.0
    %5085 = vmatmul.mubr.f32.gmra.mrb[0].mxu0 %v1981
    %v5086 = vpop.f32.mrb[0].mxu0
    %v5087 = vadd.f32 0.0, %v5086
    %v5088 = vpop.f32.mrb[0].mxu0
    %5089 = vmatprep.mubr.f32.mxu0 0.0
    %5090 = vmatmul.mubr.f32.gmra.mrb[0].mxu0 %v1983
    %v5091 = vpop.f32.mrb[0].mxu0
    %v5092 = vadd.f32 0.0, %v5091
    %v5093 = vpop.f32.mrb[0].mxu0
    %5094 = vmatprep.mubr.f32.mxu0 0.0
    %5095 = vmatmul.mubr.f32.gmra.mrb[0].mxu0 %v1985
    %v5096 = vpop.f32.mrb[0].mxu0
    %v5097 = vadd.f32 0.0, %v5096
    %v5098 = vpop.f32.mrb[0].mxu0
    %5099 = vmatprep.mubr.f32.mxu0 0.0
    %5100 = vmatmul.mubr.f32.gmra.mrb[0].mxu0 %v1987
    %v5101 = vpop.f32.mrb[0].mxu0
    %v5102 = vadd.f32 0.0, %v5101
    %v5103 = vpop.f32.mrb[0].mxu0
    %5104 = vmatprep.mubr.f32.mxu0 0.0
    %5105 = vmatmul.mubr.f32.gmra.mrb[0].mxu0 %v1989
    %v5106 = vpop.f32.mrb[0].mxu0
    %v5107 = vadd.f32 0.0, %v5106
    %v5108 = vpop.f32.mrb[0].mxu0
    %5109 = vmatprep.mubr.f32.mxu0 0.0
    %5110 = vmatmul.mubr.f32.gmra.mrb[0].mxu0 %v1991
    %v5111 = vpop.f32.mrb[0].mxu0
    %v5112 = vadd.f32 0.0, %v5111
    %v5113 = vpop.f32.mrb[0].mxu0
    %5114 = vmatprep.mubr.f32.mxu0 0.0
    %5115 = vmatmul.mubr.f32.gmra.mrb[0].mxu0 %v1993
    %v5116 = vpop.f32.mrb[0].mxu0
    %v5117 = vadd.f32 0.0, %v5116
    %v5118 = vpop.f32.mrb[0].mxu0
    %5119 = vmatprep.mubr.f32.mxu0 0.0
    %5120 = vmatmul.mubr.f32.gmra.mrb[0].mxu0 %v1995
    %v5121 = vpop.f32.mrb[0].mxu0
    %v5122 = vadd.f32 0.0, %v5121
    %v5123 = vpop.f32.mrb[0].mxu0
    %5124 = vmatprep.mubr.f32.mxu0 0.0
    %5125 = vmatmul.mubr.f32.gmra.mrb[0].mxu0 %v1997
    %v5126 = vpop.f32.mrb[0].mxu0
    %v5127 = vadd.f32 0.0, %v5126
    %v5128 = vpop.f32.mrb[0].mxu0
    %5129 = vmatprep.mubr.f32.mxu0 0.0
    %5130 = vmatmul.mubr.f32.gmra.mrb[0].mxu0 %v1999
    %v5131 = vpop.f32.mrb[0].mxu0
    %v5132 = vadd.f32 0.0, %v5131
    %v5133 = vpop.f32.mrb[0].mxu0
    %5134 = vmatprep.mubr.f32.mxu0 0.0
    %5135 = vmatmul.mubr.f32.gmra.mrb[0].mxu0 %v2001
    %v5136 = vpop.f32.mrb[0].mxu0
    %v5137 = vadd.f32 0.0, %v5136
    %v5138 = vpop.f32.mrb[0].mxu0
    %5139 = vmatprep.mubr.f32.mxu0 0.0
    %5140 = vmatmul.mubr.f32.gmra.mrb[0].mxu0 %v2003
    %v5141 = vpop.f32.mrb[0].mxu0
    %v5142 = vadd.f32 0.0, %v5141
    %v5143 = vpop.f32.mrb[0].mxu0
    %5144 = vmatprep.mubr.f32.mxu0 0.0
    %5145 = vmatmul.mubr.f32.gmra.mrb[0].mxu0 %v3387
    %v5146 = vpop.f32.mrb[0].mxu0
    %v5147 = vadd.f32 0.0, %v5146
    %v5148 = vpop.f32.mrb[0].mxu0
    %5149 = vmatprep.mubr.f32.mxu0 0.0
    %5150 = vmatmul.mubr.f32.gmra.mrb[0].mxu0 %v3389
    %v5151 = vpop.f32.mrb[0].mxu0
    %v5152 = vadd.f32 0.0, %v5151
    %v5153 = vpop.f32.mrb[0].mxu0
    %5154 = vmatprep.mubr.f32.mxu0 0.0
    %5155 = vmatmul.mubr.f32.gmra.mrb[0].mxu0 %v4773
    %v5156 = vpop.f32.mrb[0].mxu0
    %v5157 = vadd.f32 0.0, %v5156
    %v5158 = vpop.f32.mrb[0].mxu0
    %5159 = vmatprep.mubr.f32.mxu0 0.0
    %5160 = vmatmul.mubr.f32.gmra.mrb[0].mxu0 %v4775
    %v5161 = vpop.f32.mrb[0].mxu0
    %v5162 = vadd.f32 0.0, %v5161
    %v5163 = vpop.f32.mrb[0].mxu0
    %5164 = vdwg.mxu0
    %v5165 = vadd.f32 %v4703, %v4847
    %v5166 = vadd.f32 %v4704, %v4852
    %v5167 = vadd.f32 %v4705, %v4857
    %v5168 = vadd.f32 %v4706, %v4862
    %v5169 = vadd.f32 %v4707, %v4867
    %v5170 = vadd.f32 %v4708, %v4872
    %v5171 = vadd.f32 %v4709, %v4877
    %v5172 = vadd.f32 %v4710, %v4882
    %v5173 = vadd.f32 %v4711, %v4887
    %v5174 = vadd.f32 %v4712, %v4892
    %v5175 = vadd.f32 %v4713, %v4897
    %v5176 = vadd.f32 %v4714, %v4902
    %v5177 = vadd.f32 %v4715, %v4907
    %v5178 = vadd.f32 %v4716, %v4912
    %v5179 = vadd.f32 %v4717, %v4917
    %v5180 = vadd.f32 %v4718, %v4922
    %v5181 = vadd.f32 %v4719, %v4927
    %v5182 = vadd.f32 %v4720, %v4932
    %v5183 = vadd.f32 %v4721, %v4937
    %v5184 = vadd.f32 %v4722, %v4942
    %v5185 = vadd.f32 %v4723, %v4947
    %v5186 = vadd.f32 %v4724, %v4952
    %v5187 = vadd.f32 %v4725, %v4957
    %v5188 = vadd.f32 %v4726, %v4962
    %v5189 = vadd.f32 %v4727, %v4967
    %v5190 = vadd.f32 %v4728, %v4972
    %v5191 = vadd.f32 %v4729, %v4977
    %v5192 = vadd.f32 %v4730, %v4982
    %v5193 = vadd.f32 %v4731, %v4987
    %v5194 = vadd.f32 %v4732, %v4992
    %v5195 = vadd.f32 %v4733, %v4997
    %v5196 = vadd.f32 %v4734, %v5002
    %v5197 = vadd.f32 %v4735, %v5007
    %v5198 = vadd.f32 %v4736, %v5012
    %v5199 = vadd.f32 %v4737, %v5017
    %v5200 = vadd.f32 %v4738, %v5022
    %v5201 = vadd.f32 %v4739, %v5027
    %v5202 = vadd.f32 %v4740, %v5032
    %v5203 = vadd.f32 %v4741, %v5037
    %v5204 = vadd.f32 %v4742, %v5042
    %v5205 = vadd.f32 %v4743, %v5047
    %v5206 = vadd.f32 %v4744, %v5052
    %v5207 = vadd.f32 %v4745, %v5057
    %v5208 = vadd.f32 %v4746, %v5062
    %v5209 = vadd.f32 %v4747, %v5067
    %v5210 = vadd.f32 %v4748, %v5072
    %v5211 = vadd.f32 %v4749, %v5077
    %v5212 = vadd.f32 %v4750, %v5082
    %v5213 = vadd.f32 %v4751, %v5087
    %v5214 = vadd.f32 %v4752, %v5092
    %v5215 = vadd.f32 %v4753, %v5097
    %v5216 = vadd.f32 %v4754, %v5102
    %v5217 = vadd.f32 %v4755, %v5107
    %v5218 = vadd.f32 %v4756, %v5112
    %v5219 = vadd.f32 %v4757, %v5117
    %v5220 = vadd.f32 %v4758, %v5122
    %v5221 = vadd.f32 %v4759, %v5127
    %v5222 = vadd.f32 %v4760, %v5132
    %v5223 = vadd.f32 %v4761, %v5137
    %v5224 = vadd.f32 %v4762, %v5142
    %v5225 = vadd.f32 %v4763, %v5147
    %v5226 = vadd.f32 %v4764, %v5152
    %v5227 = vadd.f32 %v4765, %v5157
    %v5228 = vadd.f32 %v4766, %v5162
    %vm5229 = vcmask 64512
    %5230 = vst.msk [vmem:[%s3] sm:$0xff] %vm5229, %v5165
    %5231 = vst.msk [vmem:[%s3 + $0x8] sm:$0xff] %vm5229, %v5166
    %5232 = vst.msk [vmem:[%s3 + $0x10] sm:$0xff] %vm5229, %v5167
    %5233 = vst.msk [vmem:[%s3 + $0x18] sm:$0xff] %vm5229, %v5168
    %5234 = vst.msk [vmem:[%s3 + $0x20] sm:$0xff] %vm5229, %v5169
    %5235 = vst.msk [vmem:[%s3 + $0x28] sm:$0xff] %vm5229, %v5170
    %5236 = vst.msk [vmem:[%s3 + $0x30] sm:$0xff] %vm5229, %v5171
    %5237 = vst.msk [vmem:[%s3 + $0x38] sm:$0xff] %vm5229, %v5172
    %5238 = vst.msk [vmem:[%s3 + $0x40] sm:$0xff] %vm5229, %v5173
    %5239 = vst.msk [vmem:[%s3 + $0x48] sm:$0xff] %vm5229, %v5174
    %5240 = vst.msk [vmem:[%s3 + $0x50] sm:$0xff] %vm5229, %v5175
    %5241 = vst.msk [vmem:[%s3 + $0x58] sm:$0xff] %vm5229, %v5176
    %5242 = vst.msk [vmem:[%s3 + $0x60] sm:$0xff] %vm5229, %v5177
    %5243 = vst.msk [vmem:[%s3 + $0x68] sm:$0xff] %vm5229, %v5178
    %5244 = vst.msk [vmem:[%s3 + $0x70] sm:$0xff] %vm5229, %v5179
    %5245 = vst.msk [vmem:[%s3 + $0x78] sm:$0xff] %vm5229, %v5180
    %5246 = vst.msk [vmem:[%s3 + $0x80] sm:$0xff] %vm5229, %v5181
    %5247 = vst.msk [vmem:[%s3 + $0x88] sm:$0xff] %vm5229, %v5182
    %5248 = vst.msk [vmem:[%s3 + $0x90] sm:$0xff] %vm5229, %v5183
    %5249 = vst.msk [vmem:[%s3 + $0x98] sm:$0xff] %vm5229, %v5184
    %5250 = vst.msk [vmem:[%s3 + $0xa0] sm:$0xff] %vm5229, %v5185
    %5251 = vst.msk [vmem:[%s3 + $0xa8] sm:$0xff] %vm5229, %v5186
    %5252 = vst.msk [vmem:[%s3 + $0xb0] sm:$0xff] %vm5229, %v5187
    %5253 = vst.msk [vmem:[%s3 + $0xb8] sm:$0xff] %vm5229, %v5188
    %5254 = vst.msk [vmem:[%s3 + $0xc0] sm:$0xff] %vm5229, %v5189
    %5255 = vst.msk [vmem:[%s3 + $0xc8] sm:$0xff] %vm5229, %v5190
    %5256 = vst.msk [vmem:[%s3 + $0xd0] sm:$0xff] %vm5229, %v5191
    %5257 = vst.msk [vmem:[%s3 + $0xd8] sm:$0xff] %vm5229, %v5192
    %5258 = vst.msk [vmem:[%s3 + $0xe0] sm:$0xff] %vm5229, %v5193
    %5259 = vst.msk [vmem:[%s3 + $0xe8] sm:$0xff] %vm5229, %v5194
    %5260 = vst.msk [vmem:[%s3 + $0xf0] sm:$0xff] %vm5229, %v5195
    %5261 = vst.msk [vmem:[%s3 + $0xf8] sm:$0xff] %vm5229, %v5196
    %5262 = vst.msk [vmem:[%s3 + $0x100] sm:$0xff] %vm5229, %v5197
    %5263 = vst.msk [vmem:[%s3 + $0x108] sm:$0xff] %vm5229, %v5198
    %5264 = vst.msk [vmem:[%s3 + $0x110] sm:$0xff] %vm5229, %v5199
    %5265 = vst.msk [vmem:[%s3 + $0x118] sm:$0xff] %vm5229, %v5200
    %5266 = vst.msk [vmem:[%s3 + $0x120] sm:$0xff] %vm5229, %v5201
    %5267 = vst.msk [vmem:[%s3 + $0x128] sm:$0xff] %vm5229, %v5202
    %5268 = vst.msk [vmem:[%s3 + $0x130] sm:$0xff] %vm5229, %v5203
    %5269 = vst.msk [vmem:[%s3 + $0x138] sm:$0xff] %vm5229, %v5204
    %5270 = vst.msk [vmem:[%s3 + $0x140] sm:$0xff] %vm5229, %v5205
    %5271 = vst.msk [vmem:[%s3 + $0x148] sm:$0xff] %vm5229, %v5206
    %5272 = vst.msk [vmem:[%s3 + $0x150] sm:$0xff] %vm5229, %v5207
    %5273 = vst.msk [vmem:[%s3 + $0x158] sm:$0xff] %vm5229, %v5208
    %5274 = vst.msk [vmem:[%s3 + $0x160] sm:$0xff] %vm5229, %v5209
    %5275 = vst.msk [vmem:[%s3 + $0x168] sm:$0xff] %vm5229, %v5210
    %5276 = vst.msk [vmem:[%s3 + $0x170] sm:$0xff] %vm5229, %v5211
    %5277 = vst.msk [vmem:[%s3 + $0x178] sm:$0xff] %vm5229, %v5212
    %5278 = vst.msk [vmem:[%s3 + $0x180] sm:$0xff] %vm5229, %v5213
    %5279 = vst.msk [vmem:[%s3 + $0x188] sm:$0xff] %vm5229, %v5214
    %5280 = vst.msk [vmem:[%s3 + $0x190] sm:$0xff] %vm5229, %v5215
    %5281 = vst.msk [vmem:[%s3 + $0x198] sm:$0xff] %vm5229, %v5216
    %5282 = vst.msk [vmem:[%s3 + $0x1a0] sm:$0xff] %vm5229, %v5217
    %5283 = vst.msk [vmem:[%s3 + $0x1a8] sm:$0xff] %vm5229, %v5218
    %5284 = vst.msk [vmem:[%s3 + $0x1b0] sm:$0xff] %vm5229, %v5219
    %5285 = vst.msk [vmem:[%s3 + $0x1b8] sm:$0xff] %vm5229, %v5220
    %5286 = vst.msk [vmem:[%s3 + $0x1c0] sm:$0xff] %vm5229, %v5221
    %5287 = vst.msk [vmem:[%s3 + $0x1c8] sm:$0xff] %vm5229, %v5222
    %5288 = vst.msk [vmem:[%s3 + $0x1d0] sm:$0xff] %vm5229, %v5223
    %5289 = vst.msk [vmem:[%s3 + $0x1d8] sm:$0xff] %vm5229, %v5224
    %5290 = vst.msk [vmem:[%s3 + $0x1e0] sm:$0xff] %vm5229, %v5225
    %5291 = vst.msk [vmem:[%s3 + $0x1e8] sm:$0xff] %vm5229, %v5226
    %5292 = vst.msk [vmem:[%s3 + $0x1f0] sm:$0xff] %vm5229, %v5227
    %5293 = vst.msk [vmem:[%s3 + $0x1f8] sm:$0xff] %vm5229, %v5228
    %v5294 = vsel %vm5229, %v5165, 0.0
    %v5295 = vsel %vm5229, %v5166, 0.0
    %v5296 = vadd.f32 %v5294, %v5295
    %v5297 = vsel %vm5229, %v5167, 0.0
    %v5298 = vadd.f32 %v5296, %v5297
    %v5299 = vsel %vm5229, %v5168, 0.0
    %v5300 = vadd.f32 %v5298, %v5299
    %v5301 = vsel %vm5229, %v5169, 0.0
    %v5302 = vadd.f32 %v5300, %v5301
    %v5303 = vsel %vm5229, %v5170, 0.0
    %v5304 = vadd.f32 %v5302, %v5303
    %v5305 = vsel %vm5229, %v5171, 0.0
    %v5306 = vadd.f32 %v5304, %v5305
    %v5307 = vsel %vm5229, %v5172, 0.0
    %v5308 = vadd.f32 %v5306, %v5307
    %v5309 = vsel %vm5229, %v5173, 0.0
    %v5310 = vadd.f32 %v5308, %v5309
    %v5311 = vsel %vm5229, %v5174, 0.0
    %v5312 = vadd.f32 %v5310, %v5311
    %v5313 = vsel %vm5229, %v5175, 0.0
    %v5314 = vadd.f32 %v5312, %v5313
    %v5315 = vsel %vm5229, %v5176, 0.0
    %v5316 = vadd.f32 %v5314, %v5315
    %v5317 = vsel %vm5229, %v5177, 0.0
    %v5318 = vadd.f32 %v5316, %v5317
    %v5319 = vsel %vm5229, %v5178, 0.0
    %v5320 = vadd.f32 %v5318, %v5319
    %v5321 = vsel %vm5229, %v5179, 0.0
    %v5322 = vadd.f32 %v5320, %v5321
    %v5323 = vsel %vm5229, %v5180, 0.0
    %v5324 = vadd.f32 %v5322, %v5323
    %v5325 = vsel %vm5229, %v5181, 0.0
    %v5326 = vadd.f32 %v5324, %v5325
    %v5327 = vsel %vm5229, %v5182, 0.0
    %v5328 = vadd.f32 %v5326, %v5327
    %v5329 = vsel %vm5229, %v5183, 0.0
    %v5330 = vadd.f32 %v5328, %v5329
    %v5331 = vsel %vm5229, %v5184, 0.0
    %v5332 = vadd.f32 %v5330, %v5331
    %v5333 = vsel %vm5229, %v5185, 0.0
    %v5334 = vadd.f32 %v5332, %v5333
    %v5335 = vsel %vm5229, %v5186, 0.0
    %v5336 = vadd.f32 %v5334, %v5335
    %v5337 = vsel %vm5229, %v5187, 0.0
    %v5338 = vadd.f32 %v5336, %v5337
    %v5339 = vsel %vm5229, %v5188, 0.0
    %v5340 = vadd.f32 %v5338, %v5339
    %v5341 = vsel %vm5229, %v5189, 0.0
    %v5342 = vadd.f32 %v5340, %v5341
    %v5343 = vsel %vm5229, %v5190, 0.0
    %v5344 = vadd.f32 %v5342, %v5343
    %v5345 = vsel %vm5229, %v5191, 0.0
    %v5346 = vadd.f32 %v5344, %v5345
    %v5347 = vsel %vm5229, %v5192, 0.0
    %v5348 = vadd.f32 %v5346, %v5347
    %v5349 = vsel %vm5229, %v5193, 0.0
    %v5350 = vadd.f32 %v5348, %v5349
    %v5351 = vsel %vm5229, %v5194, 0.0
    %v5352 = vadd.f32 %v5350, %v5351
    %v5353 = vsel %vm5229, %v5195, 0.0
    %v5354 = vadd.f32 %v5352, %v5353
    %v5355 = vsel %vm5229, %v5196, 0.0
    %v5356 = vadd.f32 %v5354, %v5355
    %v5357 = vsel %vm5229, %v5197, 0.0
    %v5358 = vadd.f32 %v5356, %v5357
    %v5359 = vsel %vm5229, %v5198, 0.0
    %v5360 = vadd.f32 %v5358, %v5359
    %v5361 = vsel %vm5229, %v5199, 0.0
    %v5362 = vadd.f32 %v5360, %v5361
    %v5363 = vsel %vm5229, %v5200, 0.0
    %v5364 = vadd.f32 %v5362, %v5363
    %v5365 = vsel %vm5229, %v5201, 0.0
    %v5366 = vadd.f32 %v5364, %v5365
    %v5367 = vsel %vm5229, %v5202, 0.0
    %v5368 = vadd.f32 %v5366, %v5367
    %v5369 = vsel %vm5229, %v5203, 0.0
    %v5370 = vadd.f32 %v5368, %v5369
    %v5371 = vsel %vm5229, %v5204, 0.0
    %v5372 = vadd.f32 %v5370, %v5371
    %v5373 = vsel %vm5229, %v5205, 0.0
    %v5374 = vadd.f32 %v5372, %v5373
    %v5375 = vsel %vm5229, %v5206, 0.0
    %v5376 = vadd.f32 %v5374, %v5375
    %v5377 = vsel %vm5229, %v5207, 0.0
    %v5378 = vadd.f32 %v5376, %v5377
    %v5379 = vsel %vm5229, %v5208, 0.0
    %v5380 = vadd.f32 %v5378, %v5379
    %v5381 = vsel %vm5229, %v5209, 0.0
    %v5382 = vadd.f32 %v5380, %v5381
    %v5383 = vsel %vm5229, %v5210, 0.0
    %v5384 = vadd.f32 %v5382, %v5383
    %v5385 = vsel %vm5229, %v5211, 0.0
    %v5386 = vadd.f32 %v5384, %v5385
    %v5387 = vsel %vm5229, %v5212, 0.0
    %v5388 = vadd.f32 %v5386, %v5387
    %v5389 = vsel %vm5229, %v5213, 0.0
    %v5390 = vadd.f32 %v5388, %v5389
    %v5391 = vsel %vm5229, %v5214, 0.0
    %v5392 = vadd.f32 %v5390, %v5391
    %v5393 = vsel %vm5229, %v5215, 0.0
    %v5394 = vadd.f32 %v5392, %v5393
    %v5395 = vsel %vm5229, %v5216, 0.0
    %v5396 = vadd.f32 %v5394, %v5395
    %v5397 = vsel %vm5229, %v5217, 0.0
    %v5398 = vadd.f32 %v5396, %v5397
    %v5399 = vsel %vm5229, %v5218, 0.0
    %v5400 = vadd.f32 %v5398, %v5399
    %v5401 = vsel %vm5229, %v5219, 0.0
    %v5402 = vadd.f32 %v5400, %v5401
    %v5403 = vsel %vm5229, %v5220, 0.0
    %v5404 = vadd.f32 %v5402, %v5403
    %v5405 = vsel %vm5229, %v5221, 0.0
    %v5406 = vadd.f32 %v5404, %v5405
    %v5407 = vsel %vm5229, %v5222, 0.0
    %v5408 = vadd.f32 %v5406, %v5407
    %v5409 = vsel %vm5229, %v5223, 0.0
    %v5410 = vadd.f32 %v5408, %v5409
    %v5411 = vsel %vm5229, %v5224, 0.0
    %v5412 = vadd.f32 %v5410, %v5411
    %v5413 = vsel %vm5229, %v5225, 0.0
    %v5414 = vadd.f32 %v5412, %v5413
    %v5415 = vsel %vm5229, %v5226, 0.0
    %v5416 = vadd.f32 %v5414, %v5415
    %v5417 = vsel %vm5229, %v5227, 0.0
    %v5418 = vadd.f32 %v5416, %v5417
    %v5419 = vsel %vm5229, %v5228, 0.0
    %v5420 = vadd.f32 %v5418, %v5419
    %v5421 = vrot.slane %v5420, 4
    %v5422 = vadd.f32 %v5420, %v5421
    %v5423 = vrot.slane %v5422, 2
    %v5424 = vadd.f32 %v5422, %v5423
    %v5425 = vrot.slane %v5424, 1
    %v5426 = vadd.f32 %v5424, %v5425
    %vm5427 = vcmask 57344
    %5428 = vst.msk [vmem:[#allocation3] sm:$0x1] %vm5427, %v5426
    %v5429 = vmul.f32 %v5165, %v5165
    %v5430 = vmul.f32 %v5166, %v5166
    %v5431 = vmul.f32 %v5167, %v5167
    %v5432 = vmul.f32 %v5168, %v5168
    %v5433 = vmul.f32 %v5169, %v5169
    %v5434 = vmul.f32 %v5170, %v5170
    %v5435 = vmul.f32 %v5171, %v5171
    %v5436 = vmul.f32 %v5172, %v5172
    %v5437 = vmul.f32 %v5173, %v5173
    %v5438 = vmul.f32 %v5174, %v5174
    %v5439 = vmul.f32 %v5175, %v5175
    %v5440 = vmul.f32 %v5176, %v5176
    %v5441 = vmul.f32 %v5177, %v5177
    %v5442 = vmul.f32 %v5178, %v5178
    %v5443 = vmul.f32 %v5179, %v5179
    %v5444 = vmul.f32 %v5180, %v5180
    %v5445 = vmul.f32 %v5181, %v5181
    %v5446 = vmul.f32 %v5182, %v5182
    %v5447 = vmul.f32 %v5183, %v5183
    %v5448 = vmul.f32 %v5184, %v5184
    %v5449 = vmul.f32 %v5185, %v5185
    %v5450 = vmul.f32 %v5186, %v5186
    %v5451 = vmul.f32 %v5187, %v5187
    %v5452 = vmul.f32 %v5188, %v5188
    %v5453 = vmul.f32 %v5189, %v5189
    %v5454 = vmul.f32 %v5190, %v5190
    %v5455 = vmul.f32 %v5191, %v5191
    %v5456 = vmul.f32 %v5192, %v5192
    %v5457 = vmul.f32 %v5193, %v5193
    %v5458 = vmul.f32 %v5194, %v5194
    %v5459 = vmul.f32 %v5195, %v5195
    %v5460 = vmul.f32 %v5196, %v5196
    %v5461 = vmul.f32 %v5197, %v5197
    %v5462 = vmul.f32 %v5198, %v5198
    %v5463 = vmul.f32 %v5199, %v5199
    %v5464 = vmul.f32 %v5200, %v5200
    %v5465 = vmul.f32 %v5201, %v5201
    %v5466 = vmul.f32 %v5202, %v5202
    %v5467 = vmul.f32 %v5203, %v5203
    %v5468 = vmul.f32 %v5204, %v5204
    %v5469 = vmul.f32 %v5205, %v5205
    %v5470 = vmul.f32 %v5206, %v5206
    %v5471 = vmul.f32 %v5207, %v5207
    %v5472 = vmul.f32 %v5208, %v5208
    %v5473 = vmul.f32 %v5209, %v5209
    %v5474 = vmul.f32 %v5210, %v5210
    %v5475 = vmul.f32 %v5211, %v5211
    %v5476 = vmul.f32 %v5212, %v5212
    %v5477 = vmul.f32 %v5213, %v5213
    %v5478 = vmul.f32 %v5214, %v5214
    %v5479 = vmul.f32 %v5215, %v5215
    %v5480 = vmul.f32 %v5216, %v5216
    %v5481 = vmul.f32 %v5217, %v5217
    %v5482 = vmul.f32 %v5218, %v5218
    %v5483 = vmul.f32 %v5219, %v5219
    %v5484 = vmul.f32 %v5220, %v5220
    %v5485 = vmul.f32 %v5221, %v5221
    %v5486 = vmul.f32 %v5222, %v5222
    %v5487 = vmul.f32 %v5223, %v5223
    %v5488 = vmul.f32 %v5224, %v5224
    %v5489 = vmul.f32 %v5225, %v5225
    %v5490 = vmul.f32 %v5226, %v5226
    %v5491 = vmul.f32 %v5227, %v5227
    %v5492 = vmul.f32 %v5228, %v5228
    %v5493 = vsel %vm5229, %v5429, 0.0
    %v5494 = vsel %vm5229, %v5430, 0.0
    %v5495 = vadd.f32 %v5493, %v5494
    %v5496 = vsel %vm5229, %v5431, 0.0
    %v5497 = vadd.f32 %v5495, %v5496
    %v5498 = vsel %vm5229, %v5432, 0.0
    %v5499 = vadd.f32 %v5497, %v5498
    %v5500 = vsel %vm5229, %v5433, 0.0
    %v5501 = vadd.f32 %v5499, %v5500
    %v5502 = vsel %vm5229, %v5434, 0.0
    %v5503 = vadd.f32 %v5501, %v5502
    %v5504 = vsel %vm5229, %v5435, 0.0
    %v5505 = vadd.f32 %v5503, %v5504
    %v5506 = vsel %vm5229, %v5436, 0.0
    %v5507 = vadd.f32 %v5505, %v5506
    %v5508 = vsel %vm5229, %v5437, 0.0
    %v5509 = vadd.f32 %v5507, %v5508
    %v5510 = vsel %vm5229, %v5438, 0.0
    %v5511 = vadd.f32 %v5509, %v5510
    %v5512 = vsel %vm5229, %v5439, 0.0
    %v5513 = vadd.f32 %v5511, %v5512
    %v5514 = vsel %vm5229, %v5440, 0.0
    %v5515 = vadd.f32 %v5513, %v5514
    %v5516 = vsel %vm5229, %v5441, 0.0
    %v5517 = vadd.f32 %v5515, %v5516
    %v5518 = vsel %vm5229, %v5442, 0.0
    %v5519 = vadd.f32 %v5517, %v5518
    %v5520 = vsel %vm5229, %v5443, 0.0
    %v5521 = vadd.f32 %v5519, %v5520
    %v5522 = vsel %vm5229, %v5444, 0.0
    %v5523 = vadd.f32 %v5521, %v5522
    %v5524 = vsel %vm5229, %v5445, 0.0
    %v5525 = vadd.f32 %v5523, %v5524
    %v5526 = vsel %vm5229, %v5446, 0.0
    %v5527 = vadd.f32 %v5525, %v5526
    %v5528 = vsel %vm5229, %v5447, 0.0
    %v5529 = vadd.f32 %v5527, %v5528
    %v5530 = vsel %vm5229, %v5448, 0.0
    %v5531 = vadd.f32 %v5529, %v5530
    %v5532 = vsel %vm5229, %v5449, 0.0
    %v5533 = vadd.f32 %v5531, %v5532
    %v5534 = vsel %vm5229, %v5450, 0.0
    %v5535 = vadd.f32 %v5533, %v5534
    %v5536 = vsel %vm5229, %v5451, 0.0
    %v5537 = vadd.f32 %v5535, %v5536
    %v5538 = vsel %vm5229, %v5452, 0.0
    %v5539 = vadd.f32 %v5537, %v5538
    %v5540 = vsel %vm5229, %v5453, 0.0
    %v5541 = vadd.f32 %v5539, %v5540
    %v5542 = vsel %vm5229, %v5454, 0.0
    %v5543 = vadd.f32 %v5541, %v5542
    %v5544 = vsel %vm5229, %v5455, 0.0
    %v5545 = vadd.f32 %v5543, %v5544
    %v5546 = vsel %vm5229, %v5456, 0.0
    %v5547 = vadd.f32 %v5545, %v5546
    %v5548 = vsel %vm5229, %v5457, 0.0
    %v5549 = vadd.f32 %v5547, %v5548
    %v5550 = vsel %vm5229, %v5458, 0.0
    %v5551 = vadd.f32 %v5549, %v5550
    %v5552 = vsel %vm5229, %v5459, 0.0
    %v5553 = vadd.f32 %v5551, %v5552
    %v5554 = vsel %vm5229, %v5460, 0.0
    %v5555 = vadd.f32 %v5553, %v5554
    %v5556 = vsel %vm5229, %v5461, 0.0
    %v5557 = vadd.f32 %v5555, %v5556
    %v5558 = vsel %vm5229, %v5462, 0.0
    %v5559 = vadd.f32 %v5557, %v5558
    %v5560 = vsel %vm5229, %v5463, 0.0
    %v5561 = vadd.f32 %v5559, %v5560
    %v5562 = vsel %vm5229, %v5464, 0.0
    %v5563 = vadd.f32 %v5561, %v5562
    %v5564 = vsel %vm5229, %v5465, 0.0
    %v5565 = vadd.f32 %v5563, %v5564
    %v5566 = vsel %vm5229, %v5466, 0.0
    %v5567 = vadd.f32 %v5565, %v5566
    %v5568 = vsel %vm5229, %v5467, 0.0
    %v5569 = vadd.f32 %v5567, %v5568
    %v5570 = vsel %vm5229, %v5468, 0.0
    %v5571 = vadd.f32 %v5569, %v5570
    %v5572 = vsel %vm5229, %v5469, 0.0
    %v5573 = vadd.f32 %v5571, %v5572
    %v5574 = vsel %vm5229, %v5470, 0.0
    %v5575 = vadd.f32 %v5573, %v5574
    %v5576 = vsel %vm5229, %v5471, 0.0
    %v5577 = vadd.f32 %v5575, %v5576
    %v5578 = vsel %vm5229, %v5472, 0.0
    %v5579 = vadd.f32 %v5577, %v5578
    %v5580 = vsel %vm5229, %v5473, 0.0
    %v5581 = vadd.f32 %v5579, %v5580
    %v5582 = vsel %vm5229, %v5474, 0.0
    %v5583 = vadd.f32 %v5581, %v5582
    %v5584 = vsel %vm5229, %v5475, 0.0
    %v5585 = vadd.f32 %v5583, %v5584
    %v5586 = vsel %vm5229, %v5476, 0.0
    %v5587 = vadd.f32 %v5585, %v5586
    %v5588 = vsel %vm5229, %v5477, 0.0
    %v5589 = vadd.f32 %v5587, %v5588
    %v5590 = vsel %vm5229, %v5478, 0.0
    %v5591 = vadd.f32 %v5589, %v5590
    %v5592 = vsel %vm5229, %v5479, 0.0
    %v5593 = vadd.f32 %v5591, %v5592
    %v5594 = vsel %vm5229, %v5480, 0.0
    %v5595 = vadd.f32 %v5593, %v5594
    %v5596 = vsel %vm5229, %v5481, 0.0
    %v5597 = vadd.f32 %v5595, %v5596
    %v5598 = vsel %vm5229, %v5482, 0.0
    %v5599 = vadd.f32 %v5597, %v5598
    %v5600 = vsel %vm5229, %v5483, 0.0
    %v5601 = vadd.f32 %v5599, %v5600
    %v5602 = vsel %vm5229, %v5484, 0.0
    %v5603 = vadd.f32 %v5601, %v5602
    %v5604 = vsel %vm5229, %v5485, 0.0
    %v5605 = vadd.f32 %v5603, %v5604
    %v5606 = vsel %vm5229, %v5486, 0.0
    %v5607 = vadd.f32 %v5605, %v5606
    %v5608 = vsel %vm5229, %v5487, 0.0
    %v5609 = vadd.f32 %v5607, %v5608
    %v5610 = vsel %vm5229, %v5488, 0.0
    %v5611 = vadd.f32 %v5609, %v5610
    %v5612 = vsel %vm5229, %v5489, 0.0
    %v5613 = vadd.f32 %v5611, %v5612
    %v5614 = vsel %vm5229, %v5490, 0.0
    %v5615 = vadd.f32 %v5613, %v5614
    %v5616 = vsel %vm5229, %v5491, 0.0
    %v5617 = vadd.f32 %v5615, %v5616
    %v5618 = vsel %vm5229, %v5492, 0.0
    %v5619 = vadd.f32 %v5617, %v5618
    %v5620 = vrot.slane %v5619, 4
    %v5621 = vadd.f32 %v5619, %v5620
    %v5622 = vrot.slane %v5621, 2
    %v5623 = vadd.f32 %v5621, %v5622
    %v5624 = vrot.slane %v5623, 1
    %v5625 = vadd.f32 %v5623, %v5624
    %5626 = vst.msk [vmem:[#allocation5] sm:$0x1] %vm5427, %v5625
    %v5627 = vld [vmem:[%s2] sm:$0xf]
    %v5629 = vsel %vm86, %v22, 0
    %v5632 = vsel %vm86, %v23, 0
    %v5635 = vsel %vm86, %v24, 0
    %v5638 = vsel %vm86, %v25, 0
    %v5641 = vsel %vm86, %v26, 0
    %v5644 = vsel %vm86, %v27, 0
    %v5647 = vsel %vm86, %v28, 0
    %v5650 = vsel %vm86, %v29, 0
    %v5653 = vsel %vm86, %v30, 0
    %v5656 = vsel %vm86, %v31, 0
    %v5659 = vsel %vm86, %v32, 0
    %v5662 = vsel %vm86, %v33, 0
    %v5665 = vsel %vm86, %v34, 0
    %v5668 = vsel %vm86, %v35, 0
    %v5671 = vsel %vm86, %v36, 0
    %v5674 = vsel %vm86, %v37, 0
    %v5677 = vsel %vm86, %v38, 0
    %v5680 = vsel %vm86, %v39, 0
    %v5683 = vsel %vm86, %v40, 0
    %v5686 = vsel %vm86, %v41, 0
    %v5689 = vsel %vm86, %v42, 0
    %v5692 = vsel %vm86, %v43, 0
    %v5695 = vsel %vm86, %v44, 0
    %v5698 = vsel %vm86, %v45, 0
    %v5701 = vsel %vm86, %v46, 0
    %v5704 = vsel %vm86, %v47, 0
    %v5707 = vsel %vm86, %v48, 0
    %v5710 = vsel %vm86, %v49, 0
    %v5713 = vsel %vm86, %v50, 0
    %v5716 = vsel %vm86, %v51, 0
    %v5719 = vsel %vm86, %v52, 0
    %v5722 = vsel %vm86, %v53, 0
    %v5725 = vsel %vm86, %v54, 0
    %v5728 = vsel %vm86, %v55, 0
    %v5731 = vsel %vm86, %v56, 0
    %v5734 = vsel %vm86, %v57, 0
    %v5737 = vsel %vm86, %v58, 0
    %v5740 = vsel %vm86, %v59, 0
    %v5743 = vsel %vm86, %v60, 0
    %v5746 = vsel %vm86, %v61, 0
    %v5749 = vsel %vm86, %v62, 0
    %v5752 = vsel %vm86, %v63, 0
    %v5755 = vsel %vm86, %v64, 0
    %v5758 = vsel %vm86, %v65, 0
    %v5761 = vsel %vm86, %v66, 0
    %v5764 = vsel %vm86, %v67, 0
    %v5767 = vsel %vm86, %v68, 0
    %v5770 = vsel %vm86, %v69, 0
    %v5773 = vsel %vm86, %v70, 0
    %v5776 = vsel %vm86, %v71, 0
    %v5779 = vsel %vm86, %v72, 0
    %v5782 = vsel %vm86, %v73, 0
    %v5785 = vsel %vm86, %v74, 0
    %v5788 = vsel %vm86, %v75, 0
    %v5791 = vsel %vm86, %v76, 0
    %v5794 = vsel %vm86, %v77, 0
    %v5797 = vsel %vm86, %v78, 0
    %v5800 = vsel %vm86, %v79, 0
    %v5803 = vsel %vm86, %v80, 0
    %v5806 = vsel %vm86, %v81, 0
    %v5809 = vsel %vm86, %v82, 0
    %v5812 = vsel %vm86, %v83, 0
    %v5815 = vsel %vm86, %v84, 0
    %v5818 = vsel %vm86, %v85, 0
    %v5821 = vsel %vm970, %v5627, 0
    %5823 = vmatprep.subr.mxu0 0.0
    %5824 = vmatpush1.msra.mxu0 %v5821
    %5825 = vmatprep.subr.mxu0 0.0
    %5826 = vmatpush1.msra.mxu0 0.0
    %5827 = vmatprep.subr.mxu0 0.0
    %5828 = vmatpush1.msra.mxu0 0.0
    %5829 = vmatprep.subr.mxu0 0.0
    %5830 = vmatpush1.msra.mxu0 0.0
    %5831 = vmatprep.subr.mxu0 0.0
    %5832 = vmatpush1.msra.mxu0 0.0
    %5833 = vmatprep.subr.mxu0 0.0
    %5834 = vmatpush1.msra.mxu0 0.0
    %5835 = vmatprep.subr.mxu0 0.0
    %5836 = vmatpush1.msra.mxu0 0.0
    %5837 = vmatprep.subr.mxu0 0.0
    %5838 = vmatpush1.msra.mxu0 0.0
    %5839 = vmatprep.subr.mxu0 0.0
    %5840 = vmatpush1.msra.mxu0 0.0
    %5841 = vmatprep.subr.mxu0 0.0
    %5842 = vmatpush1.msra.mxu0 0.0
    %5843 = vmatprep.subr.mxu0 0.0
    %5844 = vmatpush1.msra.mxu0 0.0
    %5845 = vmatprep.subr.mxu0 0.0
    %5846 = vmatpush1.msra.mxu0 0.0
    %5847 = vmatprep.subr.mxu0 0.0
    %5848 = vmatpush1.msra.mxu0 0.0
    %5849 = vmatprep.subr.mxu0 0.0
    %5850 = vmatpush1.msra.mxu0 0.0
    %5851 = vmatprep.subr.mxu0 0.0
    %5852 = vmatpush1.msra.mxu0 0.0
    %5853 = vmatprep.subr.mxu0 0.0
    %5854 = vmatpush1.msra.mxu0 0.0
    %5855 = vmatprep.subr.mxu0 0.0
    %5856 = vmatpush1.msra.mxu0 0.0
    %5857 = vmatprep.subr.mxu0 0.0
    %5858 = vmatpush1.msra.mxu0 0.0
    %5859 = vmatprep.subr.mxu0 0.0
    %5860 = vmatpush1.msra.mxu0 0.0
    %5861 = vmatprep.subr.mxu0 0.0
    %5862 = vmatpush1.msra.mxu0 0.0
    %5863 = vmatprep.subr.mxu0 0.0
    %5864 = vmatpush1.msra.mxu0 0.0
    %5865 = vmatprep.subr.mxu0 0.0
    %5866 = vmatpush1.msra.mxu0 0.0
    %5867 = vmatprep.subr.mxu0 0.0
    %5868 = vmatpush1.msra.mxu0 0.0
    %5869 = vmatprep.subr.mxu0 0.0
    %5870 = vmatpush1.msra.mxu0 0.0
    %5871 = vmatprep.subr.mxu0 0.0
    %5872 = vmatpush1.msra.mxu0 0.0
    %5873 = vmatprep.subr.mxu0 0.0
    %5874 = vmatpush1.msra.mxu0 0.0
    %5875 = vmatprep.subr.mxu0 0.0
    %5876 = vmatpush1.msra.mxu0 0.0
    %5877 = vmatprep.subr.mxu0 0.0
    %5878 = vmatpush1.msra.mxu0 0.0
    %5879 = vmatprep.subr.mxu0 0.0
    %5880 = vmatpush1.msra.mxu0 0.0
    %5881 = vmatprep.subr.mxu0 0.0
    %5882 = vmatpush1.msra.mxu0 0.0
    %5883 = vmatprep.subr.mxu0 0.0
    %5884 = vmatpush1.msra.mxu0 0.0
    %5885 = vmatprep.subr.mxu0 0.0
    %5886 = vmatpush1.msra.mxu0 0.0
    %5887 = vmatprep.mubr.f32.mxu0 0.0
    %5888 = vmatmul.mubr.f32.gmra.mrb[0].mxu0 %v5629
    %v5889 = vpop.f32.mrb[0].mxu0
    %v5890 = vadd.f32 0.0, %v5889
    %v5891 = vpop.f32.mrb[0].mxu0
    %5892 = vmatprep.mubr.f32.mxu0 0.0
    %5893 = vmatmul.mubr.f32.gmra.mrb[0].mxu0 %v5632
    %v5894 = vpop.f32.mrb[0].mxu0
    %v5895 = vadd.f32 0.0, %v5894
    %v5896 = vpop.f32.mrb[0].mxu0
    %5897 = vmatprep.mubr.f32.mxu0 0.0
    %5898 = vmatmul.mubr.f32.gmra.mrb[0].mxu0 %v5635
    %v5899 = vpop.f32.mrb[0].mxu0
    %v5900 = vadd.f32 0.0, %v5899
    %v5901 = vpop.f32.mrb[0].mxu0
    %5902 = vmatprep.mubr.f32.mxu0 0.0
    %5903 = vmatmul.mubr.f32.gmra.mrb[0].mxu0 %v5638
    %v5904 = vpop.f32.mrb[0].mxu0
    %v5905 = vadd.f32 0.0, %v5904
    %v5906 = vpop.f32.mrb[0].mxu0
    %5907 = vmatprep.mubr.f32.mxu0 0.0
    %5908 = vmatmul.mubr.f32.gmra.mrb[0].mxu0 %v5641
    %v5909 = vpop.f32.mrb[0].mxu0
    %v5910 = vadd.f32 0.0, %v5909
    %v5911 = vpop.f32.mrb[0].mxu0
    %5912 = vmatprep.mubr.f32.mxu0 0.0
    %5913 = vmatmul.mubr.f32.gmra.mrb[0].mxu0 %v5644
    %v5914 = vpop.f32.mrb[0].mxu0
    %v5915 = vadd.f32 0.0, %v5914
    %v5916 = vpop.f32.mrb[0].mxu0
    %5917 = vmatprep.mubr.f32.mxu0 0.0
    %5918 = vmatmul.mubr.f32.gmra.mrb[0].mxu0 %v5647
    %v5919 = vpop.f32.mrb[0].mxu0
    %v5920 = vadd.f32 0.0, %v5919
    %v5921 = vpop.f32.mrb[0].mxu0
    %5922 = vmatprep.mubr.f32.mxu0 0.0
    %5923 = vmatmul.mubr.f32.gmra.mrb[0].mxu0 %v5650
    %v5924 = vpop.f32.mrb[0].mxu0
    %v5925 = vadd.f32 0.0, %v5924
    %v5926 = vpop.f32.mrb[0].mxu0
    %5927 = vmatprep.mubr.f32.mxu0 0.0
    %5928 = vmatmul.mubr.f32.gmra.mrb[0].mxu0 %v5653
    %v5929 = vpop.f32.mrb[0].mxu0
    %v5930 = vadd.f32 0.0, %v5929
    %v5931 = vpop.f32.mrb[0].mxu0
    %5932 = vmatprep.mubr.f32.mxu0 0.0
    %5933 = vmatmul.mubr.f32.gmra.mrb[0].mxu0 %v5656
    %v5934 = vpop.f32.mrb[0].mxu0
    %v5935 = vadd.f32 0.0, %v5934
    %v5936 = vpop.f32.mrb[0].mxu0
    %5937 = vmatprep.mubr.f32.mxu0 0.0
    %5938 = vmatmul.mubr.f32.gmra.mrb[0].mxu0 %v5659
    %v5939 = vpop.f32.mrb[0].mxu0
    %v5940 = vadd.f32 0.0, %v5939
    %v5941 = vpop.f32.mrb[0].mxu0
    %5942 = vmatprep.mubr.f32.mxu0 0.0
    %5943 = vmatmul.mubr.f32.gmra.mrb[0].mxu0 %v5662
    %v5944 = vpop.f32.mrb[0].mxu0
    %v5945 = vadd.f32 0.0, %v5944
    %v5946 = vpop.f32.mrb[0].mxu0
    %5947 = vmatprep.mubr.f32.mxu0 0.0
    %5948 = vmatmul.mubr.f32.gmra.mrb[0].mxu0 %v5665
    %v5949 = vpop.f32.mrb[0].mxu0
    %v5950 = vadd.f32 0.0, %v5949
    %v5951 = vpop.f32.mrb[0].mxu0
    %5952 = vmatprep.mubr.f32.mxu0 0.0
    %5953 = vmatmul.mubr.f32.gmra.mrb[0].mxu0 %v5668
    %v5954 = vpop.f32.mrb[0].mxu0
    %v5955 = vadd.f32 0.0, %v5954
    %v5956 = vpop.f32.mrb[0].mxu0
    %5957 = vmatprep.mubr.f32.mxu0 0.0
    %5958 = vmatmul.mubr.f32.gmra.mrb[0].mxu0 %v5671
    %v5959 = vpop.f32.mrb[0].mxu0
    %v5960 = vadd.f32 0.0, %v5959
    %v5961 = vpop.f32.mrb[0].mxu0
    %5962 = vmatprep.mubr.f32.mxu0 0.0
    %5963 = vmatmul.mubr.f32.gmra.mrb[0].mxu0 %v5674
    %v5964 = vpop.f32.mrb[0].mxu0
    %v5965 = vadd.f32 0.0, %v5964
    %v5966 = vpop.f32.mrb[0].mxu0
    %5967 = vmatprep.mubr.f32.mxu0 0.0
    %5968 = vmatmul.mubr.f32.gmra.mrb[0].mxu0 %v5677
    %v5969 = vpop.f32.mrb[0].mxu0
    %v5970 = vadd.f32 0.0, %v5969
    %v5971 = vpop.f32.mrb[0].mxu0
    %5972 = vmatprep.mubr.f32.mxu0 0.0
    %5973 = vmatmul.mubr.f32.gmra.mrb[0].mxu0 %v5680
    %v5974 = vpop.f32.mrb[0].mxu0
    %v5975 = vadd.f32 0.0, %v5974
    %v5976 = vpop.f32.mrb[0].mxu0
    %5977 = vmatprep.mubr.f32.mxu0 0.0
    %5978 = vmatmul.mubr.f32.gmra.mrb[0].mxu0 %v5683
    %v5979 = vpop.f32.mrb[0].mxu0
    %v5980 = vadd.f32 0.0, %v5979
    %v5981 = vpop.f32.mrb[0].mxu0
    %5982 = vmatprep.mubr.f32.mxu0 0.0
    %5983 = vmatmul.mubr.f32.gmra.mrb[0].mxu0 %v5686
    %v5984 = vpop.f32.mrb[0].mxu0
    %v5985 = vadd.f32 0.0, %v5984
    %v5986 = vpop.f32.mrb[0].mxu0
    %5987 = vmatprep.mubr.f32.mxu0 0.0
    %5988 = vmatmul.mubr.f32.gmra.mrb[0].mxu0 %v5689
    %v5989 = vpop.f32.mrb[0].mxu0
    %v5990 = vadd.f32 0.0, %v5989
    %v5991 = vpop.f32.mrb[0].mxu0
    %5992 = vmatprep.mubr.f32.mxu0 0.0
    %5993 = vmatmul.mubr.f32.gmra.mrb[0].mxu0 %v5692
    %v5994 = vpop.f32.mrb[0].mxu0
    %v5995 = vadd.f32 0.0, %v5994
    %v5996 = vpop.f32.mrb[0].mxu0
    %5997 = vmatprep.mubr.f32.mxu0 0.0
    %5998 = vmatmul.mubr.f32.gmra.mrb[0].mxu0 %v5695
    %v5999 = vpop.f32.mrb[0].mxu0
    %v6000 = vadd.f32 0.0, %v5999
    %v6001 = vpop.f32.mrb[0].mxu0
    %6002 = vmatprep.mubr.f32.mxu0 0.0
    %6003 = vmatmul.mubr.f32.gmra.mrb[0].mxu0 %v5698
    %v6004 = vpop.f32.mrb[0].mxu0
    %v6005 = vadd.f32 0.0, %v6004
    %v6006 = vpop.f32.mrb[0].mxu0
    %6007 = vmatprep.mubr.f32.mxu0 0.0
    %6008 = vmatmul.mubr.f32.gmra.mrb[0].mxu0 %v5701
    %v6009 = vpop.f32.mrb[0].mxu0
    %v6010 = vadd.f32 0.0, %v6009
    %v6011 = vpop.f32.mrb[0].mxu0
    %6012 = vmatprep.mubr.f32.mxu0 0.0
    %6013 = vmatmul.mubr.f32.gmra.mrb[0].mxu0 %v5704
    %v6014 = vpop.f32.mrb[0].mxu0
    %v6015 = vadd.f32 0.0, %v6014
    %v6016 = vpop.f32.mrb[0].mxu0
    %6017 = vmatprep.mubr.f32.mxu0 0.0
    %6018 = vmatmul.mubr.f32.gmra.mrb[0].mxu0 %v5707
    %v6019 = vpop.f32.mrb[0].mxu0
    %v6020 = vadd.f32 0.0, %v6019
    %v6021 = vpop.f32.mrb[0].mxu0
    %6022 = vmatprep.mubr.f32.mxu0 0.0
    %6023 = vmatmul.mubr.f32.gmra.mrb[0].mxu0 %v5710
    %v6024 = vpop.f32.mrb[0].mxu0
    %v6025 = vadd.f32 0.0, %v6024
    %v6026 = vpop.f32.mrb[0].mxu0
    %6027 = vmatprep.mubr.f32.mxu0 0.0
    %6028 = vmatmul.mubr.f32.gmra.mrb[0].mxu0 %v5713
    %v6029 = vpop.f32.mrb[0].mxu0
    %v6030 = vadd.f32 0.0, %v6029
    %v6031 = vpop.f32.mrb[0].mxu0
    %6032 = vmatprep.mubr.f32.mxu0 0.0
    %6033 = vmatmul.mubr.f32.gmra.mrb[0].mxu0 %v5716
    %v6034 = vpop.f32.mrb[0].mxu0
    %v6035 = vadd.f32 0.0, %v6034
    %v6036 = vpop.f32.mrb[0].mxu0
    %6037 = vmatprep.mubr.f32.mxu0 0.0
    %6038 = vmatmul.mubr.f32.gmra.mrb[0].mxu0 %v5719
    %v6039 = vpop.f32.mrb[0].mxu0
    %v6040 = vadd.f32 0.0, %v6039
    %v6041 = vpop.f32.mrb[0].mxu0
    %6042 = vmatprep.mubr.f32.mxu0 0.0
    %6043 = vmatmul.mubr.f32.gmra.mrb[0].mxu0 %v5722
    %v6044 = vpop.f32.mrb[0].mxu0
    %v6045 = vadd.f32 0.0, %v6044
    %v6046 = vpop.f32.mrb[0].mxu0
    %6047 = vmatprep.mubr.f32.mxu0 0.0
    %6048 = vmatmul.mubr.f32.gmra.mrb[0].mxu0 %v5725
    %v6049 = vpop.f32.mrb[0].mxu0
    %v6050 = vadd.f32 0.0, %v6049
    %v6051 = vpop.f32.mrb[0].mxu0
    %6052 = vmatprep.mubr.f32.mxu0 0.0
    %6053 = vmatmul.mubr.f32.gmra.mrb[0].mxu0 %v5728
    %v6054 = vpop.f32.mrb[0].mxu0
    %v6055 = vadd.f32 0.0, %v6054
    %v6056 = vpop.f32.mrb[0].mxu0
    %6057 = vmatprep.mubr.f32.mxu0 0.0
    %6058 = vmatmul.mubr.f32.gmra.mrb[0].mxu0 %v5731
    %v6059 = vpop.f32.mrb[0].mxu0
    %v6060 = vadd.f32 0.0, %v6059
    %v6061 = vpop.f32.mrb[0].mxu0
    %6062 = vmatprep.mubr.f32.mxu0 0.0
    %6063 = vmatmul.mubr.f32.gmra.mrb[0].mxu0 %v5734
    %v6064 = vpop.f32.mrb[0].mxu0
    %v6065 = vadd.f32 0.0, %v6064
    %v6066 = vpop.f32.mrb[0].mxu0
    %6067 = vmatprep.mubr.f32.mxu0 0.0
    %6068 = vmatmul.mubr.f32.gmra.mrb[0].mxu0 %v5737
    %v6069 = vpop.f32.mrb[0].mxu0
    %v6070 = vadd.f32 0.0, %v6069
    %v6071 = vpop.f32.mrb[0].mxu0
    %6072 = vmatprep.mubr.f32.mxu0 0.0
    %6073 = vmatmul.mubr.f32.gmra.mrb[0].mxu0 %v5740
    %v6074 = vpop.f32.mrb[0].mxu0
    %v6075 = vadd.f32 0.0, %v6074
    %v6076 = vpop.f32.mrb[0].mxu0
    %6077 = vmatprep.mubr.f32.mxu0 0.0
    %6078 = vmatmul.mubr.f32.gmra.mrb[0].mxu0 %v5743
    %v6079 = vpop.f32.mrb[0].mxu0
    %v6080 = vadd.f32 0.0, %v6079
    %v6081 = vpop.f32.mrb[0].mxu0
    %6082 = vmatprep.mubr.f32.mxu0 0.0
    %6083 = vmatmul.mubr.f32.gmra.mrb[0].mxu0 %v5746
    %v6084 = vpop.f32.mrb[0].mxu0
    %v6085 = vadd.f32 0.0, %v6084
    %v6086 = vpop.f32.mrb[0].mxu0
    %6087 = vmatprep.mubr.f32.mxu0 0.0
    %6088 = vmatmul.mubr.f32.gmra.mrb[0].mxu0 %v5749
    %v6089 = vpop.f32.mrb[0].mxu0
    %v6090 = vadd.f32 0.0, %v6089
    %v6091 = vpop.f32.mrb[0].mxu0
    %6092 = vmatprep.mubr.f32.mxu0 0.0
    %6093 = vmatmul.mubr.f32.gmra.mrb[0].mxu0 %v5752
    %v6094 = vpop.f32.mrb[0].mxu0
    %v6095 = vadd.f32 0.0, %v6094
    %v6096 = vpop.f32.mrb[0].mxu0
    %6097 = vmatprep.mubr.f32.mxu0 0.0
    %6098 = vmatmul.mubr.f32.gmra.mrb[0].mxu0 %v5755
    %v6099 = vpop.f32.mrb[0].mxu0
    %v6100 = vadd.f32 0.0, %v6099
    %v6101 = vpop.f32.mrb[0].mxu0
    %6102 = vmatprep.mubr.f32.mxu0 0.0
    %6103 = vmatmul.mubr.f32.gmra.mrb[0].mxu0 %v5758
    %v6104 = vpop.f32.mrb[0].mxu0
    %v6105 = vadd.f32 0.0, %v6104
    %v6106 = vpop.f32.mrb[0].mxu0
    %6107 = vmatprep.mubr.f32.mxu0 0.0
    %6108 = vmatmul.mubr.f32.gmra.mrb[0].mxu0 %v5761
    %v6109 = vpop.f32.mrb[0].mxu0
    %v6110 = vadd.f32 0.0, %v6109
    %v6111 = vpop.f32.mrb[0].mxu0
    %6112 = vmatprep.mubr.f32.mxu0 0.0
    %6113 = vmatmul.mubr.f32.gmra.mrb[0].mxu0 %v5764
    %v6114 = vpop.f32.mrb[0].mxu0
    %v6115 = vadd.f32 0.0, %v6114
    %v6116 = vpop.f32.mrb[0].mxu0
    %6117 = vmatprep.mubr.f32.mxu0 0.0
    %6118 = vmatmul.mubr.f32.gmra.mrb[0].mxu0 %v5767
    %v6119 = vpop.f32.mrb[0].mxu0
    %v6120 = vadd.f32 0.0, %v6119
    %v6121 = vpop.f32.mrb[0].mxu0
    %6122 = vmatprep.mubr.f32.mxu0 0.0
    %6123 = vmatmul.mubr.f32.gmra.mrb[0].mxu0 %v5770
    %v6124 = vpop.f32.mrb[0].mxu0
    %v6125 = vadd.f32 0.0, %v6124
    %v6126 = vpop.f32.mrb[0].mxu0
    %6127 = vmatprep.mubr.f32.mxu0 0.0
    %6128 = vmatmul.mubr.f32.gmra.mrb[0].mxu0 %v5773
    %v6129 = vpop.f32.mrb[0].mxu0
    %v6130 = vadd.f32 0.0, %v6129
    %v6131 = vpop.f32.mrb[0].mxu0
    %6132 = vmatprep.mubr.f32.mxu0 0.0
    %6133 = vmatmul.mubr.f32.gmra.mrb[0].mxu0 %v5776
    %v6134 = vpop.f32.mrb[0].mxu0
    %v6135 = vadd.f32 0.0, %v6134
    %v6136 = vpop.f32.mrb[0].mxu0
    %6137 = vmatprep.mubr.f32.mxu0 0.0
    %6138 = vmatmul.mubr.f32.gmra.mrb[0].mxu0 %v5779
    %v6139 = vpop.f32.mrb[0].mxu0
    %v6140 = vadd.f32 0.0, %v6139
    %v6141 = vpop.f32.mrb[0].mxu0
    %6142 = vmatprep.mubr.f32.mxu0 0.0
    %6143 = vmatmul.mubr.f32.gmra.mrb[0].mxu0 %v5782
    %v6144 = vpop.f32.mrb[0].mxu0
    %v6145 = vadd.f32 0.0, %v6144
    %v6146 = vpop.f32.mrb[0].mxu0
    %6147 = vmatprep.mubr.f32.mxu0 0.0
    %6148 = vmatmul.mubr.f32.gmra.mrb[0].mxu0 %v5785
    %v6149 = vpop.f32.mrb[0].mxu0
    %v6150 = vadd.f32 0.0, %v6149
    %v6151 = vpop.f32.mrb[0].mxu0
    %6152 = vmatprep.mubr.f32.mxu0 0.0
    %6153 = vmatmul.mubr.f32.gmra.mrb[0].mxu0 %v5788
    %v6154 = vpop.f32.mrb[0].mxu0
    %v6155 = vadd.f32 0.0, %v6154
    %v6156 = vpop.f32.mrb[0].mxu0
    %6157 = vmatprep.mubr.f32.mxu0 0.0
    %6158 = vmatmul.mubr.f32.gmra.mrb[0].mxu0 %v5791
    %v6159 = vpop.f32.mrb[0].mxu0
    %v6160 = vadd.f32 0.0, %v6159
    %v6161 = vpop.f32.mrb[0].mxu0
    %6162 = vmatprep.mubr.f32.mxu0 0.0
    %6163 = vmatmul.mubr.f32.gmra.mrb[0].mxu0 %v5794
    %v6164 = vpop.f32.mrb[0].mxu0
    %v6165 = vadd.f32 0.0, %v6164
    %v6166 = vpop.f32.mrb[0].mxu0
    %6167 = vmatprep.mubr.f32.mxu0 0.0
    %6168 = vmatmul.mubr.f32.gmra.mrb[0].mxu0 %v5797
    %v6169 = vpop.f32.mrb[0].mxu0
    %v6170 = vadd.f32 0.0, %v6169
    %v6171 = vpop.f32.mrb[0].mxu0
    %6172 = vmatprep.mubr.f32.mxu0 0.0
    %6173 = vmatmul.mubr.f32.gmra.mrb[0].mxu0 %v5800
    %v6174 = vpop.f32.mrb[0].mxu0
    %v6175 = vadd.f32 0.0, %v6174
    %v6176 = vpop.f32.mrb[0].mxu0
    %6177 = vmatprep.mubr.f32.mxu0 0.0
    %6178 = vmatmul.mubr.f32.gmra.mrb[0].mxu0 %v5803
    %v6179 = vpop.f32.mrb[0].mxu0
    %v6180 = vadd.f32 0.0, %v6179
    %v6181 = vpop.f32.mrb[0].mxu0
    %6182 = vmatprep.mubr.f32.mxu0 0.0
    %6183 = vmatmul.mubr.f32.gmra.mrb[0].mxu0 %v5806
    %v6184 = vpop.f32.mrb[0].mxu0
    %v6185 = vadd.f32 0.0, %v6184
    %v6186 = vpop.f32.mrb[0].mxu0
    %6187 = vmatprep.mubr.f32.mxu0 0.0
    %6188 = vmatmul.mubr.f32.gmra.mrb[0].mxu0 %v5809
    %v6189 = vpop.f32.mrb[0].mxu0
    %v6190 = vadd.f32 0.0, %v6189
    %v6191 = vpop.f32.mrb[0].mxu0
    %6192 = vmatprep.mubr.f32.mxu0 0.0
    %6193 = vmatmul.mubr.f32.gmra.mrb[0].mxu0 %v5812
    %v6194 = vpop.f32.mrb[0].mxu0
    %v6195 = vadd.f32 0.0, %v6194
    %v6196 = vpop.f32.mrb[0].mxu0
    %6197 = vmatprep.mubr.f32.mxu0 0.0
    %6198 = vmatmul.mubr.f32.gmra.mrb[0].mxu0 %v5815
    %v6199 = vpop.f32.mrb[0].mxu0
    %v6200 = vadd.f32 0.0, %v6199
    %v6201 = vpop.f32.mrb[0].mxu0
    %6202 = vmatprep.mubr.f32.mxu0 0.0
    %6203 = vmatmul.mubr.f32.gmra.mrb[0].mxu0 %v5818
    %v6204 = vpop.f32.mrb[0].mxu0
    %v6205 = vadd.f32 0.0, %v6204
    %v6206 = vpop.f32.mrb[0].mxu0
    %6207 = vdwg.mxu0
    %v6208 = vsel %vm5229, %v5890, 0.0
    %v6209 = vsel %vm5229, %v5895, 0.0
    %v6210 = vadd.f32 %v6208, %v6209
    %v6211 = vsel %vm5229, %v5900, 0.0
    %v6212 = vadd.f32 %v6210, %v6211
    %v6213 = vsel %vm5229, %v5905, 0.0
    %v6214 = vadd.f32 %v6212, %v6213
    %v6215 = vsel %vm5229, %v5910, 0.0
    %v6216 = vadd.f32 %v6214, %v6215
    %v6217 = vsel %vm5229, %v5915, 0.0
    %v6218 = vadd.f32 %v6216, %v6217
    %v6219 = vsel %vm5229, %v5920, 0.0
    %v6220 = vadd.f32 %v6218, %v6219
    %v6221 = vsel %vm5229, %v5925, 0.0
    %v6222 = vadd.f32 %v6220, %v6221
    %v6223 = vsel %vm5229, %v5930, 0.0
    %v6224 = vadd.f32 %v6222, %v6223
    %v6225 = vsel %vm5229, %v5935, 0.0
    %v6226 = vadd.f32 %v6224, %v6225
    %v6227 = vsel %vm5229, %v5940, 0.0
    %v6228 = vadd.f32 %v6226, %v6227
    %v6229 = vsel %vm5229, %v5945, 0.0
    %v6230 = vadd.f32 %v6228, %v6229
    %v6231 = vsel %vm5229, %v5950, 0.0
    %v6232 = vadd.f32 %v6230, %v6231
    %v6233 = vsel %vm5229, %v5955, 0.0
    %v6234 = vadd.f32 %v6232, %v6233
    %v6235 = vsel %vm5229, %v5960, 0.0
    %v6236 = vadd.f32 %v6234, %v6235
    %v6237 = vsel %vm5229, %v5965, 0.0
    %v6238 = vadd.f32 %v6236, %v6237
    %v6239 = vsel %vm5229, %v5970, 0.0
    %v6240 = vadd.f32 %v6238, %v6239
    %v6241 = vsel %vm5229, %v5975, 0.0
    %v6242 = vadd.f32 %v6240, %v6241
    %v6243 = vsel %vm5229, %v5980, 0.0
    %v6244 = vadd.f32 %v6242, %v6243
    %v6245 = vsel %vm5229, %v5985, 0.0
    %v6246 = vadd.f32 %v6244, %v6245
    %v6247 = vsel %vm5229, %v5990, 0.0
    %v6248 = vadd.f32 %v6246, %v6247
    %v6249 = vsel %vm5229, %v5995, 0.0
    %v6250 = vadd.f32 %v6248, %v6249
    %v6251 = vsel %vm5229, %v6000, 0.0
    %v6252 = vadd.f32 %v6250, %v6251
    %v6253 = vsel %vm5229, %v6005, 0.0
    %v6254 = vadd.f32 %v6252, %v6253
    %v6255 = vsel %vm5229, %v6010, 0.0
    %v6256 = vadd.f32 %v6254, %v6255
    %v6257 = vsel %vm5229, %v6015, 0.0
    %v6258 = vadd.f32 %v6256, %v6257
    %v6259 = vsel %vm5229, %v6020, 0.0
    %v6260 = vadd.f32 %v6258, %v6259
    %v6261 = vsel %vm5229, %v6025, 0.0
    %v6262 = vadd.f32 %v6260, %v6261
    %v6263 = vsel %vm5229, %v6030, 0.0
    %v6264 = vadd.f32 %v6262, %v6263
    %v6265 = vsel %vm5229, %v6035, 0.0
    %v6266 = vadd.f32 %v6264, %v6265
    %v6267 = vsel %vm5229, %v6040, 0.0
    %v6268 = vadd.f32 %v6266, %v6267
    %v6269 = vsel %vm5229, %v6045, 0.0
    %v6270 = vadd.f32 %v6268, %v6269
    %v6271 = vsel %vm5229, %v6050, 0.0
    %v6272 = vadd.f32 %v6270, %v6271
    %v6273 = vsel %vm5229, %v6055, 0.0
    %v6274 = vadd.f32 %v6272, %v6273
    %v6275 = vsel %vm5229, %v6060, 0.0
    %v6276 = vadd.f32 %v6274, %v6275
    %v6277 = vsel %vm5229, %v6065, 0.0
    %v6278 = vadd.f32 %v6276, %v6277
    %v6279 = vsel %vm5229, %v6070, 0.0
    %v6280 = vadd.f32 %v6278, %v6279
    %v6281 = vsel %vm5229, %v6075, 0.0
    %v6282 = vadd.f32 %v6280, %v6281
    %v6283 = vsel %vm5229, %v6080, 0.0
    %v6284 = vadd.f32 %v6282, %v6283
    %v6285 = vsel %vm5229, %v6085, 0.0
    %v6286 = vadd.f32 %v6284, %v6285
    %v6287 = vsel %vm5229, %v6090, 0.0
    %v6288 = vadd.f32 %v6286, %v6287
    %v6289 = vsel %vm5229, %v6095, 0.0
    %v6290 = vadd.f32 %v6288, %v6289
    %v6291 = vsel %vm5229, %v6100, 0.0
    %v6292 = vadd.f32 %v6290, %v6291
    %v6293 = vsel %vm5229, %v6105, 0.0
    %v6294 = vadd.f32 %v6292, %v6293
    %v6295 = vsel %vm5229, %v6110, 0.0
    %v6296 = vadd.f32 %v6294, %v6295
    %v6297 = vsel %vm5229, %v6115, 0.0
    %v6298 = vadd.f32 %v6296, %v6297
    %v6299 = vsel %vm5229, %v6120, 0.0
    %v6300 = vadd.f32 %v6298, %v6299
    %v6301 = vsel %vm5229, %v6125, 0.0
    %v6302 = vadd.f32 %v6300, %v6301
    %v6303 = vsel %vm5229, %v6130, 0.0
    %v6304 = vadd.f32 %v6302, %v6303
    %v6305 = vsel %vm5229, %v6135, 0.0
    %v6306 = vadd.f32 %v6304, %v6305
    %v6307 = vsel %vm5229, %v6140, 0.0
    %v6308 = vadd.f32 %v6306, %v6307
    %v6309 = vsel %vm5229, %v6145, 0.0
    %v6310 = vadd.f32 %v6308, %v6309
    %v6311 = vsel %vm5229, %v6150, 0.0
    %v6312 = vadd.f32 %v6310, %v6311
    %v6313 = vsel %vm5229, %v6155, 0.0
    %v6314 = vadd.f32 %v6312, %v6313
    %v6315 = vsel %vm5229, %v6160, 0.0
    %v6316 = vadd.f32 %v6314, %v6315
    %v6317 = vsel %vm5229, %v6165, 0.0
    %v6318 = vadd.f32 %v6316, %v6317
    %v6319 = vsel %vm5229, %v6170, 0.0
    %v6320 = vadd.f32 %v6318, %v6319
    %v6321 = vsel %vm5229, %v6175, 0.0
    %v6322 = vadd.f32 %v6320, %v6321
    %v6323 = vsel %vm5229, %v6180, 0.0
    %v6324 = vadd.f32 %v6322, %v6323
    %v6325 = vsel %vm5229, %v6185, 0.0
    %v6326 = vadd.f32 %v6324, %v6325
    %v6327 = vsel %vm5229, %v6190, 0.0
    %v6328 = vadd.f32 %v6326, %v6327
    %v6329 = vsel %vm5229, %v6195, 0.0
    %v6330 = vadd.f32 %v6328, %v6329
    %v6331 = vsel %vm5229, %v6200, 0.0
    %v6332 = vadd.f32 %v6330, %v6331
    %v6333 = vsel %vm5229, %v6205, 0.0
    %v6334 = vadd.f32 %v6332, %v6333
    %v6335 = vrot.slane %v6334, 4
    %v6336 = vadd.f32 %v6334, %v6335
    %v6337 = vrot.slane %v6336, 2
    %v6338 = vadd.f32 %v6336, %v6337
    %v6339 = vrot.slane %v6338, 1
    %v6340 = vadd.f32 %v6338, %v6339
    %6341 = vst.msk [vmem:[#allocation7] sm:$0x1] %vm5427, %v6340
    %v6342 = vmul.f32 %v5890, %v5890
    %v6343 = vmul.f32 %v5895, %v5895
    %v6344 = vmul.f32 %v5900, %v5900
    %v6345 = vmul.f32 %v5905, %v5905
    %v6346 = vmul.f32 %v5910, %v5910
    %v6347 = vmul.f32 %v5915, %v5915
    %v6348 = vmul.f32 %v5920, %v5920
    %v6349 = vmul.f32 %v5925, %v5925
    %v6350 = vmul.f32 %v5930, %v5930
    %v6351 = vmul.f32 %v5935, %v5935
    %v6352 = vmul.f32 %v5940, %v5940
    %v6353 = vmul.f32 %v5945, %v5945
    %v6354 = vmul.f32 %v5950, %v5950
    %v6355 = vmul.f32 %v5955, %v5955
    %v6356 = vmul.f32 %v5960, %v5960
    %v6357 = vmul.f32 %v5965, %v5965
    %v6358 = vmul.f32 %v5970, %v5970
    %v6359 = vmul.f32 %v5975, %v5975
    %v6360 = vmul.f32 %v5980, %v5980
    %v6361 = vmul.f32 %v5985, %v5985
    %v6362 = vmul.f32 %v5990, %v5990
    %v6363 = vmul.f32 %v5995, %v5995
    %v6364 = vmul.f32 %v6000, %v6000
    %v6365 = vmul.f32 %v6005, %v6005
    %v6366 = vmul.f32 %v6010, %v6010
    %v6367 = vmul.f32 %v6015, %v6015
    %v6368 = vmul.f32 %v6020, %v6020
    %v6369 = vmul.f32 %v6025, %v6025
    %v6370 = vmul.f32 %v6030, %v6030
    %v6371 = vmul.f32 %v6035, %v6035
    %v6372 = vmul.f32 %v6040, %v6040
    %v6373 = vmul.f32 %v6045, %v6045
    %v6374 = vmul.f32 %v6050, %v6050
    %v6375 = vmul.f32 %v6055, %v6055
    %v6376 = vmul.f32 %v6060, %v6060
    %v6377 = vmul.f32 %v6065, %v6065
    %v6378 = vmul.f32 %v6070, %v6070
    %v6379 = vmul.f32 %v6075, %v6075
    %v6380 = vmul.f32 %v6080, %v6080
    %v6381 = vmul.f32 %v6085, %v6085
    %v6382 = vmul.f32 %v6090, %v6090
    %v6383 = vmul.f32 %v6095, %v6095
    %v6384 = vmul.f32 %v6100, %v6100
    %v6385 = vmul.f32 %v6105, %v6105
    %v6386 = vmul.f32 %v6110, %v6110
    %v6387 = vmul.f32 %v6115, %v6115
    %v6388 = vmul.f32 %v6120, %v6120
    %v6389 = vmul.f32 %v6125, %v6125
    %v6390 = vmul.f32 %v6130, %v6130
    %v6391 = vmul.f32 %v6135, %v6135
    %v6392 = vmul.f32 %v6140, %v6140
    %v6393 = vmul.f32 %v6145, %v6145
    %v6394 = vmul.f32 %v6150, %v6150
    %v6395 = vmul.f32 %v6155, %v6155
    %v6396 = vmul.f32 %v6160, %v6160
    %v6397 = vmul.f32 %v6165, %v6165
    %v6398 = vmul.f32 %v6170, %v6170
    %v6399 = vmul.f32 %v6175, %v6175
    %v6400 = vmul.f32 %v6180, %v6180
    %v6401 = vmul.f32 %v6185, %v6185
    %v6402 = vmul.f32 %v6190, %v6190
    %v6403 = vmul.f32 %v6195, %v6195
    %v6404 = vmul.f32 %v6200, %v6200
    %v6405 = vmul.f32 %v6205, %v6205
    %v6406 = vsel %vm5229, %v6342, 0.0
    %v6407 = vsel %vm5229, %v6343, 0.0
    %v6408 = vadd.f32 %v6406, %v6407
    %v6409 = vsel %vm5229, %v6344, 0.0
    %v6410 = vadd.f32 %v6408, %v6409
    %v6411 = vsel %vm5229, %v6345, 0.0
    %v6412 = vadd.f32 %v6410, %v6411
    %v6413 = vsel %vm5229, %v6346, 0.0
    %v6414 = vadd.f32 %v6412, %v6413
    %v6415 = vsel %vm5229, %v6347, 0.0
    %v6416 = vadd.f32 %v6414, %v6415
    %v6417 = vsel %vm5229, %v6348, 0.0
    %v6418 = vadd.f32 %v6416, %v6417
    %v6419 = vsel %vm5229, %v6349, 0.0
    %v6420 = vadd.f32 %v6418, %v6419
    %v6421 = vsel %vm5229, %v6350, 0.0
    %v6422 = vadd.f32 %v6420, %v6421
    %v6423 = vsel %vm5229, %v6351, 0.0
    %v6424 = vadd.f32 %v6422, %v6423
    %v6425 = vsel %vm5229, %v6352, 0.0
    %v6426 = vadd.f32 %v6424, %v6425
    %v6427 = vsel %vm5229, %v6353, 0.0
    %v6428 = vadd.f32 %v6426, %v6427
    %v6429 = vsel %vm5229, %v6354, 0.0
    %v6430 = vadd.f32 %v6428, %v6429
    %v6431 = vsel %vm5229, %v6355, 0.0
    %v6432 = vadd.f32 %v6430, %v6431
    %v6433 = vsel %vm5229, %v6356, 0.0
    %v6434 = vadd.f32 %v6432, %v6433
    %v6435 = vsel %vm5229, %v6357, 0.0
    %v6436 = vadd.f32 %v6434, %v6435
    %v6437 = vsel %vm5229, %v6358, 0.0
    %v6438 = vadd.f32 %v6436, %v6437
    %v6439 = vsel %vm5229, %v6359, 0.0
    %v6440 = vadd.f32 %v6438, %v6439
    %v6441 = vsel %vm5229, %v6360, 0.0
    %v6442 = vadd.f32 %v6440, %v6441
    %v6443 = vsel %vm5229, %v6361, 0.0
    %v6444 = vadd.f32 %v6442, %v6443
    %v6445 = vsel %vm5229, %v6362, 0.0
    %v6446 = vadd.f32 %v6444, %v6445
    %v6447 = vsel %vm5229, %v6363, 0.0
    %v6448 = vadd.f32 %v6446, %v6447
    %v6449 = vsel %vm5229, %v6364, 0.0
    %v6450 = vadd.f32 %v6448, %v6449
    %v6451 = vsel %vm5229, %v6365, 0.0
    %v6452 = vadd.f32 %v6450, %v6451
    %v6453 = vsel %vm5229, %v6366, 0.0
    %v6454 = vadd.f32 %v6452, %v6453
    %v6455 = vsel %vm5229, %v6367, 0.0
    %v6456 = vadd.f32 %v6454, %v6455
    %v6457 = vsel %vm5229, %v6368, 0.0
    %v6458 = vadd.f32 %v6456, %v6457
    %v6459 = vsel %vm5229, %v6369, 0.0
    %v6460 = vadd.f32 %v6458, %v6459
    %v6461 = vsel %vm5229, %v6370, 0.0
    %v6462 = vadd.f32 %v6460, %v6461
    %v6463 = vsel %vm5229, %v6371, 0.0
    %v6464 = vadd.f32 %v6462, %v6463
    %v6465 = vsel %vm5229, %v6372, 0.0
    %v6466 = vadd.f32 %v6464, %v6465
    %v6467 = vsel %vm5229, %v6373, 0.0
    %v6468 = vadd.f32 %v6466, %v6467
    %v6469 = vsel %vm5229, %v6374, 0.0
    %v6470 = vadd.f32 %v6468, %v6469
    %v6471 = vsel %vm5229, %v6375, 0.0
    %v6472 = vadd.f32 %v6470, %v6471
    %v6473 = vsel %vm5229, %v6376, 0.0
    %v6474 = vadd.f32 %v6472, %v6473
    %v6475 = vsel %vm5229, %v6377, 0.0
    %v6476 = vadd.f32 %v6474, %v6475
    %v6477 = vsel %vm5229, %v6378, 0.0
    %v6478 = vadd.f32 %v6476, %v6477
    %v6479 = vsel %vm5229, %v6379, 0.0
    %v6480 = vadd.f32 %v6478, %v6479
    %v6481 = vsel %vm5229, %v6380, 0.0
    %v6482 = vadd.f32 %v6480, %v6481
    %v6483 = vsel %vm5229, %v6381, 0.0
    %v6484 = vadd.f32 %v6482, %v6483
    %v6485 = vsel %vm5229, %v6382, 0.0
    %v6486 = vadd.f32 %v6484, %v6485
    %v6487 = vsel %vm5229, %v6383, 0.0
    %v6488 = vadd.f32 %v6486, %v6487
    %v6489 = vsel %vm5229, %v6384, 0.0
    %v6490 = vadd.f32 %v6488, %v6489
    %v6491 = vsel %vm5229, %v6385, 0.0
    %v6492 = vadd.f32 %v6490, %v6491
    %v6493 = vsel %vm5229, %v6386, 0.0
    %v6494 = vadd.f32 %v6492, %v6493
    %v6495 = vsel %vm5229, %v6387, 0.0
    %v6496 = vadd.f32 %v6494, %v6495
    %v6497 = vsel %vm5229, %v6388, 0.0
    %v6498 = vadd.f32 %v6496, %v6497
    %v6499 = vsel %vm5229, %v6389, 0.0
    %v6500 = vadd.f32 %v6498, %v6499
    %v6501 = vsel %vm5229, %v6390, 0.0
    %v6502 = vadd.f32 %v6500, %v6501
    %v6503 = vsel %vm5229, %v6391, 0.0
    %v6504 = vadd.f32 %v6502, %v6503
    %v6505 = vsel %vm5229, %v6392, 0.0
    %v6506 = vadd.f32 %v6504, %v6505
    %v6507 = vsel %vm5229, %v6393, 0.0
    %v6508 = vadd.f32 %v6506, %v6507
    %v6509 = vsel %vm5229, %v6394, 0.0
    %v6510 = vadd.f32 %v6508, %v6509
    %v6511 = vsel %vm5229, %v6395, 0.0
    %v6512 = vadd.f32 %v6510, %v6511
    %v6513 = vsel %vm5229, %v6396, 0.0
    %v6514 = vadd.f32 %v6512, %v6513
    %v6515 = vsel %vm5229, %v6397, 0.0
    %v6516 = vadd.f32 %v6514, %v6515
    %v6517 = vsel %vm5229, %v6398, 0.0
    %v6518 = vadd.f32 %v6516, %v6517
    %v6519 = vsel %vm5229, %v6399, 0.0
    %v6520 = vadd.f32 %v6518, %v6519
    %v6521 = vsel %vm5229, %v6400, 0.0
    %v6522 = vadd.f32 %v6520, %v6521
    %v6523 = vsel %vm5229, %v6401, 0.0
    %v6524 = vadd.f32 %v6522, %v6523
    %v6525 = vsel %vm5229, %v6402, 0.0
    %v6526 = vadd.f32 %v6524, %v6525
    %v6527 = vsel %vm5229, %v6403, 0.0
    %v6528 = vadd.f32 %v6526, %v6527
    %v6529 = vsel %vm5229, %v6404, 0.0
    %v6530 = vadd.f32 %v6528, %v6529
    %v6531 = vsel %vm5229, %v6405, 0.0
    %v6532 = vadd.f32 %v6530, %v6531
    %v6533 = vrot.slane %v6532, 4
    %v6534 = vadd.f32 %v6532, %v6533
    %v6535 = vrot.slane %v6534, 2
    %v6536 = vadd.f32 %v6534, %v6535
    %v6537 = vrot.slane %v6536, 1
    %v6538 = vadd.f32 %v6536, %v6537
    %6539 = vst.msk [vmem:[#allocation8] sm:$0x1] %vm5427, %v6538
    // Predicated region
    $region14: #{tpu_custom_call.1} parent=1 // pred_check
      _
    $region15: #{tpu_custom_call.1} parent=1 // pred_check_branch
      %6541 = sbr.rel (0) target = $region17
    $region16: #{tpu_custom_call.1} parent=1 // pred_region
      _
    $region17: #{tpu_custom_call.1} parent=1 // pred_fallthru
      _
    // Predicated region
    $region18: #{tpu_custom_call.1} parent=1 // pred_check
      _
    $region19: #{tpu_custom_call.1} parent=1 // pred_check_branch
      %6543 = sbr.rel (0) target = $region21
    $region20: #{tpu_custom_call.1} parent=1 // pred_region
      %s6545 = ssub.s32 16, 16
      %6546 = vsyncadd [#allocation4], %s6545
      %s6548 = sshll.u32 [#allocation3], 4
      %s6549 = int_to_ptr.vmem [resolvable:$true] %s6548
      %6551 = dma.vmem_to_hbm [thread:$0]  %s6549, 16, %s4, [#allocation4]
    $region21: #{tpu_custom_call.1} parent=1 // pred_fallthru
      _
    // Predicated region
    $region22: #{tpu_custom_call.1} parent=1 // pred_check
      _
    $region23: #{tpu_custom_call.1} parent=1 // pred_check_branch
      %6553 = sbr.rel (0) target = $region25
    $region24: #{tpu_custom_call.1} parent=1 // pred_region
      %s6555 = ssub.s32 16, 16
      %6556 = vsyncadd [#allocation6], %s6555
      %s6558 = sshll.u32 [#allocation5], 4
      %s6559 = int_to_ptr.vmem [resolvable:$true] %s6558
      %6561 = dma.vmem_to_hbm [thread:$0]  %s6559, 16, %s5, [#allocation6]
    $region25: #{tpu_custom_call.1} parent=1 // pred_fallthru
      _
    // Predicated region
    $region26: #{tpu_custom_call.1} parent=1 // pred_check
      _
    $region27: #{tpu_custom_call.1} parent=1 // pred_check_branch
      %6563 = sbr.rel (0) target = $region29
    $region28: #{tpu_custom_call.1} parent=1 // pred_region
      %s6565 = ssub.s32 16, 16
      %6566 = vsyncadd [#allocation6], %s6565
      %s6568 = sshll.u32 [#allocation7], 4
      %s6569 = int_to_ptr.vmem [resolvable:$true] %s6568
      %6571 = dma.vmem_to_hbm [thread:$0]  %s6569, 16, %s6, [#allocation6]
    $region29: #{tpu_custom_call.1} parent=1 // pred_fallthru
      _
    // Predicated region
    $region30: #{tpu_custom_call.1} parent=1 // pred_check
      _
    $region31: #{tpu_custom_call.1} parent=1 // pred_check_branch
      %6573 = sbr.rel (0) target = $region33
    $region32: #{tpu_custom_call.1} parent=1 // pred_region
      %s6575 = ssub.s32 16, 16
      %6576 = vsyncadd [#allocation9], %s6575
      %s6578 = sshll.u32 [#allocation8], 4
      %s6579 = int_to_ptr.vmem [resolvable:$true] %s6578
      %6581 = dma.vmem_to_hbm [thread:$0]  %s6579, 16, %s7, [#allocation9]
    $region33: #{tpu_custom_call.1} parent=1 // pred_fallthru
      _
    // Predicated region
    $region34: #{tpu_custom_call.1} parent=1 // pred_check
      _
    $region35: #{tpu_custom_call.1} parent=1 // pred_check_branch
      %6583 = sbr.rel (0) target = $region37
    $region36: #{tpu_custom_call.1} parent=1 // pred_region
      _
    $region37: #{tpu_custom_call.1} parent=1 // pred_fallthru
      _
    // Predicated region
    $region38: #{tpu_custom_call.1} parent=1 // pred_check
      _
    $region39: #{tpu_custom_call.1} parent=1 // pred_check_branch
      %6585 = sbr.rel (0) target = $region41
    $region40: #{tpu_custom_call.1} parent=1 // pred_region
      %6586 = dma.done [#allocation4], 16
    $region41: #{tpu_custom_call.1} parent=1 // pred_fallthru
      _
    // Predicated region
    $region42: #{tpu_custom_call.1} parent=1 // pred_check
      _
    $region43: #{tpu_custom_call.1} parent=1 // pred_check_branch
      %6588 = sbr.rel (0) target = $region45
    $region44: #{tpu_custom_call.1} parent=1 // pred_region
      %6589 = dma.done [#allocation6], 16
    $region45: #{tpu_custom_call.1} parent=1 // pred_fallthru
      _
    // Predicated region
    $region46: #{tpu_custom_call.1} parent=1 // pred_check
      _
    $region47: #{tpu_custom_call.1} parent=1 // pred_check_branch
      %6591 = sbr.rel (0) target = $region49
    $region48: #{tpu_custom_call.1} parent=1 // pred_region
      %6592 = dma.done [#allocation6], 16
    $region49: #{tpu_custom_call.1} parent=1 // pred_fallthru
      _
    // Predicated region
    $region50: #{tpu_custom_call.1} parent=1 // pred_check
      _
    $region51: #{tpu_custom_call.1} parent=1 // pred_check_branch
      %6594 = sbr.rel (0) target = $region53
    $region52: #{tpu_custom_call.1} parent=1 // pred_region
      %6595 = dma.done [#allocation9], 16
    $region53: #{tpu_custom_call.1} parent=1 // pred_fallthru
      _
    %6596 = vsyncpa [#allocation4], 1
    %6597 = vsyncpa [#allocation6], 1
    %6598 = vsyncpa [#allocation9], 1

</llo_original>
